<compile_context>
chip_gen: v7x
topology: tpu7x:2x2x1
jax: 0.10.0
libtpu: 0.0.40
codegen_flags: <defaults>
</compile_context>

<pallas_src>
import jax
import jax.numpy as jnp
from jax.experimental import pallas as pl
from jax.experimental.pallas import tpu as pltpu
from jax.scipy.linalg import block_diag

NUM_FEATURES = 83
DIM = 32            # hidden dim ("dim" arg of NetGIN)
OUT_CLASSES = 12
NUM_LAYERS = 6
NUM_REL = 4         # relation order: [1_l, 1_g, 2_l, 2_g] == torch.cat([x_1, x_3, x_2, x_4])
SET2SET_STEPS = 6


# ------------------------------ fused Pallas kernel ------------------------------

def _netgin_kernel(adj_ref, x_ref, assign_ref,
                   w1c0_ref, w1cr_ref, eps_ref, b1c_ref,
                   w2bd_ref, b2c_ref,
                   wm1_ref, bm1_ref, wm2_ref, bm2_ref,
                   w_lstm_q_ref, w_lstm_r_ref, b_lstm_ref,
                   w_fc1_q_ref, w_fc1_r_ref, b_fc1_ref,
                   w_fc4_ref, b_fc4_ref,
                   out_ref):
    f32 = jnp.float32
    bf16 = jnp.bfloat16
    relu = lambda v: jnp.maximum(v, 0.0)
    # bf16 operands feed the MXU natively; accumulation stays f32.
    bdot = lambda a, b: jnp.dot(a.astype(bf16), b.astype(bf16),
                                preferred_element_type=f32)

    adj = adj_ref[...]                        # (4N, N) bf16, row blocks = relations
    h = x_ref[...]                            # (N, 83) f32
    n = h.shape[0]
    wide = NUM_REL * DIM                      # 128 lanes

    # Lane masks selecting relation block r of the 128-wide tile (layer-invariant,
    # hoisted once).
    lane = jax.lax.broadcasted_iota(jnp.int32, (1, wide), 1)
    blk_mask = [((lane >= r * DIM) & (lane < (r + 1) * DIM)).astype(f32)
                for r in range(NUM_REL)]

    # -------- 6 x (4 GINConv + concat + mlp), fully unrolled, all in VMEM --------
    # Aggregation path is 2 dots/layer (was 5):
    #   hw = h @ W1cat                       (lane block r == h @ W1_r)
    #   Y  = adj_stacked @ hw                (row block r, lane block r is what we need)
    #   neighbour term = block-diag(Y) via lane masks
    #   self term      = (1 + eps_r) * hw    (eps pre-expanded to 128 lanes)
    for l in range(NUM_LAYERS):
        w1c = w1c0_ref[...] if l == 0 else w1cr_ref[l - 1]     # (F, 4*dim) bf16
        hw = bdot(h, w1c)                                       # (N, 4*dim) f32
        y = bdot(adj, hw)                                       # (4N, 4*dim) f32
        acc = blk_mask[0] * y[0 * n:1 * n, :]
        for r in range(1, NUM_REL):
            acc = acc + blk_mask[r] * y[r * n:(r + 1) * n, :]
        h1 = relu(acc + eps_ref[l] * hw + b1c_ref[l])           # (N, 4*dim)
        # 2nd Linear of every conv MLP as ONE block-diagonal (128,128) matmul.
        # h2 == torch.cat([x_1, x_3, x_2, x_4]); the outer F.relu is a no-op.
        h2 = relu(bdot(h1, w2bd_ref[l]) + b2c_ref[l])
        m1 = relu(bdot(h2, wm1_ref[l]) + bm1_ref[l])
        h = relu(bdot(m1, wm2_ref[l]) + bm2_ref[l])             # (N, dim)

    # -------- Set2Set: 6 LSTM steps + dense per-graph softmax --------
    assign = assign_ref[...]                  # (G, N) one-hot graph membership
    g_cnt = assign.shape[0]
    dim = DIM
    # Loop-invariant attention operands, hoisted (incl. the transpose for the
    # q @ h^T logits dot).
    h_bf = h.astype(bf16)                     # (N, dim)  readout operand
    h_t_bf = jnp.transpose(h).astype(bf16)    # (dim, N)  logits operand
    w_q = w_lstm_q_ref[...]                   # (dim, 4*dim) bf16 == W_ih_q + W_hh
    w_r = w_lstm_r_ref[...]                   # (dim, 4*dim) bf16 == W_ih_r
    b_l = b_lstm_ref[...]                     # (1, 4*dim)  f32  == b_ih + b_hh

    # Invariant used for the W_hh fold: q (the q-half of q_star) equals the LSTM
    # hidden state at every gate computation (both start at 0, q := hidden each step).
    q = jnp.zeros((g_cnt, dim), f32)          # doubles as the LSTM hidden state
    r_read = jnp.zeros((g_cnt, dim), f32)
    cs = jnp.zeros((g_cnt, dim), f32)
    for _ in range(SET2SET_STEPS):
        gates = bdot(q, w_q) + bdot(r_read, w_r) + b_l          # (G, 4*dim) f32
        i_g = jax.nn.sigmoid(gates[:, 0 * dim:1 * dim])
        f_g = jax.nn.sigmoid(gates[:, 1 * dim:2 * dim])
        g_g = jnp.tanh(gates[:, 2 * dim:3 * dim])
        o_g = jax.nn.sigmoid(gates[:, 3 * dim:4 * dim])
        cs = f_g * cs + i_g * g_g
        q = o_g * jnp.tanh(cs)                                  # new hidden == q
        # e[g, j] = q_g . h_j ; dense per-graph softmax via the membership mask.
        # NOTE: assumes every graph has >= 1 node (true for this data).
        e = bdot(q, h_t_bf)                                     # (G, N)
        e_masked = jnp.where(assign > 0.0, e, -1e30)
        e_max = jnp.max(e_masked, axis=-1, keepdims=True)
        p = jnp.exp(e_masked - e_max)                           # 0 outside own graph
        a = p * pl.reciprocal(jnp.sum(p, axis=-1, keepdims=True), approx=True)
        r_read = bdot(a, h_bf)                                  # (G, dim) readout

    # -------- head: fc4(relu(fc1([q | r_read]))) --------
    fh = relu(bdot(q, w_fc1_q_ref[...]) + bdot(r_read, w_fc1_r_ref[...])
              + b_fc1_ref[...])
    out_ref[...] = bdot(fh, w_fc4_ref[...]) + b_fc4_ref[...]


def netgin_forward(adj_stacked, x, assign, packed):
    """Whole-network forward as a single pallas_call (weights resident in VMEM)."""
    num_graphs = assign.shape[0]
    inputs = (adj_stacked, x, assign,
              packed["w1c0"], packed["w1cr"], packed["eps_scale"], packed["b1c"],
              packed["w2bd"], packed["b2c"],
              packed["wm1"], packed["bm1"], packed["wm2"], packed["bm2"],
              packed["w_lstm_q"], packed["w_lstm_r"], packed["b_lstm"],
              packed["w_fc1_q"], packed["w_fc1_r"], packed["b_fc1"],
              packed["w_fc4"], packed["b_fc4"])
    vmem = pl.BlockSpec(memory_space=pltpu.MemorySpace.VMEM)
    return pl.pallas_call(
        _netgin_kernel,
        out_shape=jax.ShapeDtypeStruct((num_graphs, OUT_CLASSES), jnp.float32),
        in_specs=[vmem] * len(inputs),
        out_specs=vmem,
    )(*inputs)


# ------------------------ parameter init (BN folded, eval mode) ------------------------

def _init_linear(key, fan_in, fan_out):
    k1, k2 = jax.random.split(key)
    bound = 1.0 / jnp.sqrt(float(fan_in))
    w = jax.random.uniform(k1, (fan_in, fan_out), jnp.float32, -bound, bound)
    b = jax.random.uniform(k2, (fan_out,), jnp.float32, -bound, bound)
    return w, b


def _init_bn(key, d):
    k1, k2, k3 = jax.random.split(key, 3)
    gamma = 1.0 + 0.1 * jax.random.normal(k1, (d,), jnp.float32)
    beta = 0.1 * jax.random.normal(k2, (d,), jnp.float32)
    mean = 0.1 * jax.random.normal(k3, (d,), jnp.float32)
    var = jnp.ones((d,), jnp.float32)
    return gamma, beta, mean, var


def _fold_bn(w, b, gamma, beta, mean, var, eps=1e-5):
    scale = gamma / jnp.sqrt(var + eps)
    return w * scale[None, :], (b - mean) * scale + beta


def _init_conv_mlp(key, in_dim, out_dim):
    """Linear,BN,ReLU,Linear,BN,ReLU with BN (eval mode) folded into the Linears."""
    k = jax.random.split(key, 4)
    w1, b1 = _init_linear(k[0], in_dim, out_dim)
    w1, b1 = _fold_bn(w1, b1, *_init_bn(k[1], out_dim))
    w2, b2 = _init_linear(k[2], out_dim, out_dim)
    w2, b2 = _fold_bn(w2, b2, *_init_bn(k[3], out_dim))
    return (w1, b1, w2, b2)


def init_netgin_params(key, dim=DIM):
    keys = jax.random.split(key, NUM_LAYERS + 2)
    layers = []
    for l in range(NUM_LAYERS):
        in_dim = NUM_FEATURES if l == 0 else dim
        lk = jax.random.split(keys[l], NUM_REL + 2)
        convs = tuple(_init_conv_mlp(lk[r], in_dim, dim) for r in range(NUM_REL))
        mlp = _init_conv_mlp(lk[NUM_REL], 4 * dim, dim)
        # GINConv(train_eps=True) initializes eps to 0.0; small random values are used
        # here so the per-relation eps plumbing is actually exercised (still traced).
        eps = 0.05 * jax.random.normal(lk[NUM_REL + 1], (NUM_REL,), jnp.float32)
        layers.append({"convs": convs, "mlp": mlp, "eps": eps})

    # Set2Set LSTM: input 2*dim -> hidden dim (PyTorch layout, gate order i,f,g,o)
    lk = jax.random.split(keys[NUM_LAYERS], 4)
    bound = 1.0 / jnp.sqrt(float(dim))
    lstm = (
        jax.random.uniform(lk[0], (4 * dim, 2 * dim), jnp.float32, -bound, bound),  # w_ih
        jax.random.uniform(lk[1], (4 * dim, dim), jnp.float32, -bound, bound),      # w_hh
        jax.random.uniform(lk[2], (4 * dim,), jnp.float32, -bound, bound),          # b_ih
        jax.random.uniform(lk[3], (4 * dim,), jnp.float32, -bound, bound),          # b_hh
    )

    hk = jax.random.split(keys[NUM_LAYERS + 1], 2)
    w_fc1, b_fc1 = _init_linear(hk[0], 2 * dim, dim)
    w_fc4, b_fc4 = _init_linear(hk[1], dim, OUT_CLASSES)
    return {"layers": layers, "lstm": lstm, "head": (w_fc1, b_fc1, w_fc4, b_fc4)}


def pack_params(params, dim=DIM):
    """Repack per-layer params into the stacked / lane-concat / block-diag kernel
    layout.  All matrices that feed MXU dots are shipped as bf16; biases and the
    pre-expanded eps lane-scale stay f32."""
    bf16 = jnp.bfloat16
    layers = params["layers"]

    def w1cat(l):
        # dense lane-concat of the 4 relation W1s -> (F, 4*dim), NO zero padding
        return jnp.concatenate([layers[l]["convs"][r][0] for r in range(NUM_REL)],
                               axis=1)

    w1c0 = w1cat(0).astype(bf16)                                         # (83, 4*dim)
    w1cr = jnp.stack([w1cat(l) for l in range(1, NUM_LAYERS)]).astype(bf16)
    b1c = jnp.stack([
        jnp.concatenate([layers[l]["convs"][r][1] for r in range(NUM_REL)])[None, :]
        for l in range(NUM_LAYERS)])
    # (1 + eps_r) pre-expanded to the 128-lane tile (block r lanes get 1+eps_r)
    eps_scale = jnp.stack([
        jnp.repeat(1.0 + layers[l]["eps"], dim)[None, :] for l in range(NUM_LAYERS)])
    w2bd = jnp.stack([
        block_diag(*[layers[l]["convs"][r][2] for r in range(NUM_REL)])
        for l in range(NUM_LAYERS)]).astype(bf16)
    b2c = jnp.stack([
        jnp.concatenate([layers[l]["convs"][r][3] for r in range(NUM_REL)])[None, :]
        for l in range(NUM_LAYERS)])
    wm1 = jnp.stack([layers[l]["mlp"][0] for l in range(NUM_LAYERS)]).astype(bf16)
    bm1 = jnp.stack([layers[l]["mlp"][1][None, :] for l in range(NUM_LAYERS)])
    wm2 = jnp.stack([layers[l]["mlp"][2] for l in range(NUM_LAYERS)]).astype(bf16)
    bm2 = jnp.stack([layers[l]["mlp"][3][None, :] for l in range(NUM_LAYERS)])

    w_ih, w_hh, b_ih, b_hh = params["lstm"]
    w_ih_t = w_ih.T                                                      # (2*dim, 4*dim)
    # Fold W_hh into the q-half of W_ih (valid because q == hidden state, see kernel).
    w_lstm_q = (w_ih_t[:dim, :] + w_hh.T).astype(bf16)
    w_lstm_r = w_ih_t[dim:, :].astype(bf16)

    w_fc1, b_fc1, w_fc4, b_fc4 = params["head"]
    return {
        "w1c0": w1c0, "w1cr": w1cr, "eps_scale": eps_scale, "b1c": b1c,
        "w2bd": w2bd, "b2c": b2c,
        "wm1": wm1, "bm1": bm1, "wm2": wm2, "bm2": bm2,
        "w_lstm_q": w_lstm_q, "w_lstm_r": w_lstm_r,
        "b_lstm": (b_ih + b_hh)[None, :],
        "w_fc1_q": w_fc1[:dim, :].astype(bf16), "w_fc1_r": w_fc1[dim:, :].astype(bf16),
        "b_fc1": b_fc1[None, :],
        "w_fc4": w_fc4.astype(bf16), "b_fc4": b_fc4[None, :],
    }


# --------------------- pure-JAX reference (mirrors the PyTorch forward) ---------------------

def _gin_conv_ref(adj, x, conv, eps):
    w1, b1, w2, b2 = conv
    h = adj @ x + (1.0 + eps) * x
    h = jax.nn.relu(h @ w1 + b1)
    h = jax.nn.relu(h @ w2 + b2)
    return jax.nn.relu(h)          # the (redundant) outer F.relu in NetGIN.forward


def _lstm_cell_ref(x, h, c, w_ih, w_hh, b_ih, b_hh):
    gates = x @ w_ih.T + b_ih + h @ w_hh.T + b_hh
    i, f, g, o = jnp.split(gates, 4, axis=-1)
    i, f, o = jax.nn.sigmoid(i), jax.nn.sigmoid(f), jax.nn.sigmoid(o)
    g = jnp.tanh(g)
    c = f * c + i * g
    return o * jnp.tanh(c), c


def _set2set_ref(x, batch, num_graphs, lstm):
    w_ih, w_hh, b_ih, b_hh = lstm
    dim = x.shape[1]
    h = jnp.zeros((num_graphs, dim), jnp.float32)
    c = jnp.zeros((num_graphs, dim), jnp.float32)
    q_star = jnp.zeros((num_graphs, 2 * dim), jnp.float32)
    for _ in range(SET2SET_STEPS):
        h, c = _lstm_cell_ref(q_star, h, c, w_ih, w_hh, b_ih, b_hh)
        q = h
        e = jnp.sum(x * q[batch], axis=-1)
        e_max = jax.ops.segment_max(e, batch, num_segments=num_graphs)
        ex = jnp.exp(e - e_max[batch])
        denom = jax.ops.segment_sum(ex, batch, num_segments=num_graphs)
        a = ex / denom[batch]
        r = jax.ops.segment_sum(a[:, None] * x, batch, num_segments=num_graphs)
        q_star = jnp.concatenate([q, r], axis=-1)
    return q_star


def netgin_reference(x, adjs, batch, num_graphs, params):
    h = x
    for l in range(NUM_LAYERS):
        lp = params["layers"][l]
        outs = [_gin_conv_ref(adjs[r], h, lp["convs"][r], lp["eps"][r])
                for r in range(NUM_REL)]
        cat = jnp.concatenate(outs, axis=-1)     # == torch.cat([x_1, x_3, x_2, x_4])
        w1, b1, w2, b2 = lp["mlp"]
        hmid = jax.nn.relu(cat @ w1 + b1)
        h = jax.nn.relu(hmid @ w2 + b2)
    q_star = _set2set_ref(h, batch, num_graphs, params["lstm"])
    w_fc1, b_fc1, w_fc4, b_fc4 = params["head"]
    return jax.nn.relu(q_star @ w_fc1 + b_fc1) @ w_fc4 + b_fc4


# ---------------------------------------- main ----------------------------------------

if __name__ == "__main__":
    key = jax.random.PRNGKey(0)
    N = 32                  # total nodes (2 graphs x 16 nodes)
    NUM_GRAPHS = 2
    E = 96                  # edges per relation

    k_x, k_e, k_p = jax.random.split(key, 3)
    x = jax.random.normal(k_x, (N, NUM_FEATURES), jnp.float32)

    ek = jax.random.split(k_e, 8)

    def make_edges(ks, kd):
        per = E // NUM_GRAPHS
        src, dst = [], []
        for g in range(NUM_GRAPHS):
            s = jax.random.randint(jax.random.fold_in(ks, g), (per,), 0, 16) + 16 * g
            d = jax.random.randint(jax.random.fold_in(kd, g), (per,), 0, 16) + 16 * g
            src.append(s); dst.append(d)
        return jnp.stack([jnp.concatenate(src), jnp.concatenate(dst)])

    def edges_to_adj(edge_index, n):
        src, dst = edge_index[0], edge_index[1]
        # (A @ x)[i] = sum over edges j -> i of x[j]
        return jnp.zeros((n, n), jnp.float32).at[dst, src].add(1.0)

    edge_1_l = make_edges(ek[0], ek[1])
    edge_2_l = make_edges(ek[2], ek[3])
    edge_1_g = make_edges(ek[4], ek[5])
    edge_2_g = make_edges(ek[6], ek[7])

    # relation order must match torch.cat([x_1, x_3, x_2, x_4]): [1_l, 1_g, 2_l, 2_g]
    adjs = [edges_to_adj(edge_1_l, N), edges_to_adj(edge_1_g, N),
            edges_to_adj(edge_2_l, N), edges_to_adj(edge_2_g, N)]

    batch = jnp.repeat(jnp.arange(NUM_GRAPHS, dtype=jnp.int32), N // NUM_GRAPHS)

    params = init_netgin_params(k_p, DIM)
    packed = pack_params(params, DIM)

    @jax.jit
    def fwd(adj_list, x_in, batch_in):
        # adjacency is small non-negative integer counts -> exact in bf16; casting
        # here halves its VMEM/DMA footprint.
        adj_stacked = jnp.concatenate(adj_list, axis=0).astype(jnp.bfloat16)  # (4N, N)
        assign = (batch_in[None, :] ==
                  jnp.arange(NUM_GRAPHS, dtype=jnp.int32)[:, None]).astype(jnp.float32)
        return netgin_forward(adj_stacked, x_in, assign, packed)

    out = fwd(adjs, x, batch)
    jax.block_until_ready(out)

    ref = netgin_reference(x, adjs, batch, NUM_GRAPHS, params)

    assert out.shape == (NUM_GRAPHS, OUT_CLASSES), out.shape
    assert jnp.all(jnp.isfinite(out))
    # Kernel uses bf16 MXU operands (f32 accumulation) + approx reciprocal, the
    # reference runs at default JAX matmul precision -> compare at a loose-ish but
    # bug-catching tolerance (real semantic bugs produce O(1) relative errors).
    max_diff = float(jnp.max(jnp.abs(out - ref)))
    assert jnp.allclose(out, ref, rtol=5e-2, atol=5e-2), f"max abs diff {max_diff}"
    print("KERNEL_OK")
</pallas_src>

<mosaic_0001>
module attributes {stable_mosaic.version = 11 : i64} {
  func.func @_netgin_kernel(%arg0: memref<128x32xbf16, #tpu.memory_space<vmem>>, %arg1: memref<32x83xf32, #tpu.memory_space<vmem>>, %arg2: memref<2x32xf32, #tpu.memory_space<vmem>>, %arg3: memref<83x128xbf16, #tpu.memory_space<vmem>>, %arg4: memref<5x32x128xbf16, #tpu.memory_space<vmem>>, %arg5: memref<6x1x128xf32, #tpu.memory_space<vmem>>, %arg6: memref<6x1x128xf32, #tpu.memory_space<vmem>>, %arg7: memref<6x128x128xbf16, #tpu.memory_space<vmem>>, %arg8: memref<6x1x128xf32, #tpu.memory_space<vmem>>, %arg9: memref<6x128x32xbf16, #tpu.memory_space<vmem>>, %arg10: memref<6x1x32xf32, #tpu.memory_space<vmem>>, %arg11: memref<6x32x32xbf16, #tpu.memory_space<vmem>>, %arg12: memref<6x1x32xf32, #tpu.memory_space<vmem>>, %arg13: memref<32x128xbf16, #tpu.memory_space<vmem>>, %arg14: memref<32x128xbf16, #tpu.memory_space<vmem>>, %arg15: memref<1x128xf32, #tpu.memory_space<vmem>>, %arg16: memref<32x32xbf16, #tpu.memory_space<vmem>>, %arg17: memref<32x32xbf16, #tpu.memory_space<vmem>>, %arg18: memref<1x32xf32, #tpu.memory_space<vmem>>, %arg19: memref<32x12xbf16, #tpu.memory_space<vmem>>, %arg20: memref<1x12xf32, #tpu.memory_space<vmem>>, %arg21: memref<2x12xf32, #tpu.memory_space<vmem>>) attributes {dimension_semantics = [], scalar_prefetch = 0 : i64, scratch_operands = 0 : i64, tpu.core_type = #tpu.core_type<tc>} {
    %c0 = arith.constant 0 : index
    %c0_0 = arith.constant 0 : index
    %0 = vector.load %arg0[%c0, %c0_0] : memref<128x32xbf16, #tpu.memory_space<vmem>>, vector<128x32xbf16>
    %c0_1 = arith.constant 0 : index
    %c0_2 = arith.constant 0 : index
    %1 = vector.load %arg1[%c0_1, %c0_2] : memref<32x83xf32, #tpu.memory_space<vmem>>, vector<32x83xf32>
    %2 = tpu.iota {dimensions = array<i32: 1>} : vector<1x128xi32>
    %c0_i32 = arith.constant 0 : i32
    %3 = vector.broadcast %c0_i32 : i32 to vector<1x128xi32>
    %4 = arith.cmpi sge, %2, %3 : vector<1x128xi32>
    %c32_i32 = arith.constant 32 : i32
    %5 = vector.broadcast %c32_i32 : i32 to vector<1x128xi32>
    %6 = arith.cmpi slt, %2, %5 : vector<1x128xi32>
    %7 = arith.andi %4, %6 : vector<1x128xi1>
    %8 = arith.extui %7 : vector<1x128xi1> to vector<1x128xi32>
    %9 = arith.sitofp %8 : vector<1x128xi32> to vector<1x128xf32>
    %c32_i32_3 = arith.constant 32 : i32
    %10 = vector.broadcast %c32_i32_3 : i32 to vector<1x128xi32>
    %11 = arith.cmpi sge, %2, %10 : vector<1x128xi32>
    %c64_i32 = arith.constant 64 : i32
    %12 = vector.broadcast %c64_i32 : i32 to vector<1x128xi32>
    %13 = arith.cmpi slt, %2, %12 : vector<1x128xi32>
    %14 = arith.andi %11, %13 : vector<1x128xi1>
    %15 = arith.extui %14 : vector<1x128xi1> to vector<1x128xi32>
    %16 = arith.sitofp %15 : vector<1x128xi32> to vector<1x128xf32>
    %c64_i32_4 = arith.constant 64 : i32
    %17 = vector.broadcast %c64_i32_4 : i32 to vector<1x128xi32>
    %18 = arith.cmpi sge, %2, %17 : vector<1x128xi32>
    %c96_i32 = arith.constant 96 : i32
    %19 = vector.broadcast %c96_i32 : i32 to vector<1x128xi32>
    %20 = arith.cmpi slt, %2, %19 : vector<1x128xi32>
    %21 = arith.andi %18, %20 : vector<1x128xi1>
    %22 = arith.extui %21 : vector<1x128xi1> to vector<1x128xi32>
    %23 = arith.sitofp %22 : vector<1x128xi32> to vector<1x128xf32>
    %c96_i32_5 = arith.constant 96 : i32
    %24 = vector.broadcast %c96_i32_5 : i32 to vector<1x128xi32>
    %25 = arith.cmpi sge, %2, %24 : vector<1x128xi32>
    %c128_i32 = arith.constant 128 : i32
    %26 = vector.broadcast %c128_i32 : i32 to vector<1x128xi32>
    %27 = arith.cmpi slt, %2, %26 : vector<1x128xi32>
    %28 = arith.andi %25, %27 : vector<1x128xi1>
    %29 = arith.extui %28 : vector<1x128xi1> to vector<1x128xi32>
    %30 = arith.sitofp %29 : vector<1x128xi32> to vector<1x128xf32>
    %c0_6 = arith.constant 0 : index
    %c0_7 = arith.constant 0 : index
    %31 = vector.load %arg3[%c0_6, %c0_7] : memref<83x128xbf16, #tpu.memory_space<vmem>>, vector<83x128xbf16>
    %32 = arith.truncf %1 : vector<32x83xf32> to vector<32x83xbf16>
    %cst = arith.constant dense<0.000000e+00> : vector<32x128xf32>
    %33 = tpu.matmul %32, %31, %cst {dimension_numbers = #tpu.dot_dimension_numbers<[1], [0], [0], [1], [0, 0, 1, 1], [], []>} : vector<32x83xbf16>, vector<83x128xbf16>, vector<32x128xf32> -> vector<32x128xf32>
    %34 = arith.truncf %33 : vector<32x128xf32> to vector<32x128xbf16>
    %cst_8 = arith.constant dense<0.000000e+00> : vector<128x128xf32>
    %35 = tpu.matmul %0, %34, %cst_8 {dimension_numbers = #tpu.dot_dimension_numbers<[1], [0], [0], [1], [0, 0, 1, 1], [], []>} : vector<128x32xbf16>, vector<32x128xbf16>, vector<128x128xf32> -> vector<128x128xf32>
    %36 = vector.extract_strided_slice %35 {offsets = [0, 0], sizes = [32, 128], strides = [1, 1]} : vector<128x128xf32> to vector<32x128xf32>
    %37 = vector.broadcast %9 : vector<1x128xf32> to vector<32x128xf32>
    %38 = arith.mulf %37, %36 : vector<32x128xf32>
    %39 = vector.extract_strided_slice %35 {offsets = [32, 0], sizes = [32, 128], strides = [1, 1]} : vector<128x128xf32> to vector<32x128xf32>
    %40 = vector.broadcast %16 : vector<1x128xf32> to vector<32x128xf32>
    %41 = arith.mulf %40, %39 : vector<32x128xf32>
    %42 = arith.addf %38, %41 : vector<32x128xf32>
    %43 = vector.extract_strided_slice %35 {offsets = [64, 0], sizes = [32, 128], strides = [1, 1]} : vector<128x128xf32> to vector<32x128xf32>
    %44 = vector.broadcast %23 : vector<1x128xf32> to vector<32x128xf32>
    %45 = arith.mulf %44, %43 : vector<32x128xf32>
    %46 = arith.addf %42, %45 : vector<32x128xf32>
    %47 = vector.extract_strided_slice %35 {offsets = [96, 0], sizes = [32, 128], strides = [1, 1]} : vector<128x128xf32> to vector<32x128xf32>
    %48 = vector.broadcast %30 : vector<1x128xf32> to vector<32x128xf32>
    %49 = arith.mulf %48, %47 : vector<32x128xf32>
    %50 = arith.addf %46, %49 : vector<32x128xf32>
    %c0_9 = arith.constant 0 : index
    %c0_10 = arith.constant 0 : index
    %c0_11 = arith.constant 0 : index
    %51 = vector.load %arg5[%c0_9, %c0_10, %c0_11] : memref<6x1x128xf32, #tpu.memory_space<vmem>>, vector<1x1x128xf32>
    %52 = vector.shape_cast %51 : vector<1x1x128xf32> to vector<1x128xf32>
    %53 = vector.broadcast %52 : vector<1x128xf32> to vector<32x128xf32>
    %54 = arith.mulf %53, %33 : vector<32x128xf32>
    %55 = arith.addf %50, %54 : vector<32x128xf32>
    %c0_12 = arith.constant 0 : index
    %c0_13 = arith.constant 0 : index
    %c0_14 = arith.constant 0 : index
    %56 = vector.load %arg6[%c0_12, %c0_13, %c0_14] : memref<6x1x128xf32, #tpu.memory_space<vmem>>, vector<1x1x128xf32>
    %57 = vector.shape_cast %56 : vector<1x1x128xf32> to vector<1x128xf32>
    %58 = vector.broadcast %57 : vector<1x128xf32> to vector<32x128xf32>
    %59 = arith.addf %55, %58 : vector<32x128xf32>
    %cst_15 = arith.constant 0.000000e+00 : f32
    %60 = vector.broadcast %cst_15 : f32 to vector<32x128xf32>
    %61 = arith.maximumf %59, %60 : vector<32x128xf32>
    %c0_16 = arith.constant 0 : index
    %c0_17 = arith.constant 0 : index
    %c0_18 = arith.constant 0 : index
    %62 = vector.load %arg7[%c0_16, %c0_17, %c0_18] : memref<6x128x128xbf16, #tpu.memory_space<vmem>>, vector<1x128x128xbf16>
    %63 = vector.shape_cast %62 : vector<1x128x128xbf16> to vector<128x128xbf16>
    %64 = arith.truncf %61 : vector<32x128xf32> to vector<32x128xbf16>
    %cst_19 = arith.constant dense<0.000000e+00> : vector<32x128xf32>
    %65 = tpu.matmul %64, %63, %cst_19 {dimension_numbers = #tpu.dot_dimension_numbers<[1], [0], [0], [1], [0, 0, 1, 1], [], []>} : vector<32x128xbf16>, vector<128x128xbf16>, vector<32x128xf32> -> vector<32x128xf32>
    %c0_20 = arith.constant 0 : index
    %c0_21 = arith.constant 0 : index
    %c0_22 = arith.constant 0 : index
    %66 = vector.load %arg8[%c0_20, %c0_21, %c0_22] : memref<6x1x128xf32, #tpu.memory_space<vmem>>, vector<1x1x128xf32>
    %67 = vector.shape_cast %66 : vector<1x1x128xf32> to vector<1x128xf32>
    %68 = vector.broadcast %67 : vector<1x128xf32> to vector<32x128xf32>
    %69 = arith.addf %65, %68 : vector<32x128xf32>
    %cst_23 = arith.constant 0.000000e+00 : f32
    %70 = vector.broadcast %cst_23 : f32 to vector<32x128xf32>
    %71 = arith.maximumf %69, %70 : vector<32x128xf32>
    %c0_24 = arith.constant 0 : index
    %c0_25 = arith.constant 0 : index
    %c0_26 = arith.constant 0 : index
    %72 = vector.load %arg9[%c0_24, %c0_25, %c0_26] : memref<6x128x32xbf16, #tpu.memory_space<vmem>>, vector<1x128x32xbf16>
    %73 = vector.shape_cast %72 : vector<1x128x32xbf16> to vector<128x32xbf16>
    %74 = arith.truncf %71 : vector<32x128xf32> to vector<32x128xbf16>
    %cst_27 = arith.constant dense<0.000000e+00> : vector<32x32xf32>
    %75 = tpu.matmul %74, %73, %cst_27 {dimension_numbers = #tpu.dot_dimension_numbers<[1], [0], [0], [1], [0, 0, 1, 1], [], []>} : vector<32x128xbf16>, vector<128x32xbf16>, vector<32x32xf32> -> vector<32x32xf32>
    %c0_28 = arith.constant 0 : index
    %c0_29 = arith.constant 0 : index
    %c0_30 = arith.constant 0 : index
    %76 = vector.load %arg10[%c0_28, %c0_29, %c0_30] : memref<6x1x32xf32, #tpu.memory_space<vmem>>, vector<1x1x32xf32>
    %77 = vector.shape_cast %76 : vector<1x1x32xf32> to vector<1x32xf32>
    %78 = vector.broadcast %77 : vector<1x32xf32> to vector<32x32xf32>
    %79 = arith.addf %75, %78 : vector<32x32xf32>
    %cst_31 = arith.constant 0.000000e+00 : f32
    %80 = vector.broadcast %cst_31 : f32 to vector<32x32xf32>
    %81 = arith.maximumf %79, %80 : vector<32x32xf32>
    %c0_32 = arith.constant 0 : index
    %c0_33 = arith.constant 0 : index
    %c0_34 = arith.constant 0 : index
    %82 = vector.load %arg11[%c0_32, %c0_33, %c0_34] : memref<6x32x32xbf16, #tpu.memory_space<vmem>>, vector<1x32x32xbf16>
    %83 = vector.shape_cast %82 : vector<1x32x32xbf16> to vector<32x32xbf16>
    %84 = arith.truncf %81 : vector<32x32xf32> to vector<32x32xbf16>
    %cst_35 = arith.constant dense<0.000000e+00> : vector<32x32xf32>
    %85 = tpu.matmul %84, %83, %cst_35 {dimension_numbers = #tpu.dot_dimension_numbers<[1], [0], [0], [1], [0, 0, 1, 1], [], []>} : vector<32x32xbf16>, vector<32x32xbf16>, vector<32x32xf32> -> vector<32x32xf32>
    %c0_36 = arith.constant 0 : index
    %c0_37 = arith.constant 0 : index
    %c0_38 = arith.constant 0 : index
    %86 = vector.load %arg12[%c0_36, %c0_37, %c0_38] : memref<6x1x32xf32, #tpu.memory_space<vmem>>, vector<1x1x32xf32>
    %87 = vector.shape_cast %86 : vector<1x1x32xf32> to vector<1x32xf32>
    %88 = vector.broadcast %87 : vector<1x32xf32> to vector<32x32xf32>
    %89 = arith.addf %85, %88 : vector<32x32xf32>
    %cst_39 = arith.constant 0.000000e+00 : f32
    %90 = vector.broadcast %cst_39 : f32 to vector<32x32xf32>
    %91 = arith.maximumf %89, %90 : vector<32x32xf32>
    %c0_40 = arith.constant 0 : index
    %c0_41 = arith.constant 0 : index
    %c0_42 = arith.constant 0 : index
    %92 = vector.load %arg4[%c0_40, %c0_41, %c0_42] : memref<5x32x128xbf16, #tpu.memory_space<vmem>>, vector<1x32x128xbf16>
    %93 = vector.shape_cast %92 : vector<1x32x128xbf16> to vector<32x128xbf16>
    %94 = arith.truncf %91 : vector<32x32xf32> to vector<32x32xbf16>
    %cst_43 = arith.constant dense<0.000000e+00> : vector<32x128xf32>
    %95 = tpu.matmul %94, %93, %cst_43 {dimension_numbers = #tpu.dot_dimension_numbers<[1], [0], [0], [1], [0, 0, 1, 1], [], []>} : vector<32x32xbf16>, vector<32x128xbf16>, vector<32x128xf32> -> vector<32x128xf32>
    %96 = arith.truncf %95 : vector<32x128xf32> to vector<32x128xbf16>
    %cst_44 = arith.constant dense<0.000000e+00> : vector<128x128xf32>
    %97 = tpu.matmul %0, %96, %cst_44 {dimension_numbers = #tpu.dot_dimension_numbers<[1], [0], [0], [1], [0, 0, 1, 1], [], []>} : vector<128x32xbf16>, vector<32x128xbf16>, vector<128x128xf32> -> vector<128x128xf32>
    %98 = vector.extract_strided_slice %97 {offsets = [0, 0], sizes = [32, 128], strides = [1, 1]} : vector<128x128xf32> to vector<32x128xf32>
    %99 = vector.broadcast %9 : vector<1x128xf32> to vector<32x128xf32>
    %100 = arith.mulf %99, %98 : vector<32x128xf32>
    %101 = vector.extract_strided_slice %97 {offsets = [32, 0], sizes = [32, 128], strides = [1, 1]} : vector<128x128xf32> to vector<32x128xf32>
    %102 = vector.broadcast %16 : vector<1x128xf32> to vector<32x128xf32>
    %103 = arith.mulf %102, %101 : vector<32x128xf32>
    %104 = arith.addf %100, %103 : vector<32x128xf32>
    %105 = vector.extract_strided_slice %97 {offsets = [64, 0], sizes = [32, 128], strides = [1, 1]} : vector<128x128xf32> to vector<32x128xf32>
    %106 = vector.broadcast %23 : vector<1x128xf32> to vector<32x128xf32>
    %107 = arith.mulf %106, %105 : vector<32x128xf32>
    %108 = arith.addf %104, %107 : vector<32x128xf32>
    %109 = vector.extract_strided_slice %97 {offsets = [96, 0], sizes = [32, 128], strides = [1, 1]} : vector<128x128xf32> to vector<32x128xf32>
    %110 = vector.broadcast %30 : vector<1x128xf32> to vector<32x128xf32>
    %111 = arith.mulf %110, %109 : vector<32x128xf32>
    %112 = arith.addf %108, %111 : vector<32x128xf32>
    %c1 = arith.constant 1 : index
    %c0_45 = arith.constant 0 : index
    %c0_46 = arith.constant 0 : index
    %113 = vector.load %arg5[%c1, %c0_45, %c0_46] : memref<6x1x128xf32, #tpu.memory_space<vmem>>, vector<1x1x128xf32>
    %114 = vector.shape_cast %113 : vector<1x1x128xf32> to vector<1x128xf32>
    %115 = vector.broadcast %114 : vector<1x128xf32> to vector<32x128xf32>
    %116 = arith.mulf %115, %95 : vector<32x128xf32>
    %117 = arith.addf %112, %116 : vector<32x128xf32>
    %c1_47 = arith.constant 1 : index
    %c0_48 = arith.constant 0 : index
    %c0_49 = arith.constant 0 : index
    %118 = vector.load %arg6[%c1_47, %c0_48, %c0_49] : memref<6x1x128xf32, #tpu.memory_space<vmem>>, vector<1x1x128xf32>
    %119 = vector.shape_cast %118 : vector<1x1x128xf32> to vector<1x128xf32>
    %120 = vector.broadcast %119 : vector<1x128xf32> to vector<32x128xf32>
    %121 = arith.addf %117, %120 : vector<32x128xf32>
    %cst_50 = arith.constant 0.000000e+00 : f32
    %122 = vector.broadcast %cst_50 : f32 to vector<32x128xf32>
    %123 = arith.maximumf %121, %122 : vector<32x128xf32>
    %c1_51 = arith.constant 1 : index
    %c0_52 = arith.constant 0 : index
    %c0_53 = arith.constant 0 : index
    %124 = vector.load %arg7[%c1_51, %c0_52, %c0_53] : memref<6x128x128xbf16, #tpu.memory_space<vmem>>, vector<1x128x128xbf16>
    %125 = vector.shape_cast %124 : vector<1x128x128xbf16> to vector<128x128xbf16>
    %126 = arith.truncf %123 : vector<32x128xf32> to vector<32x128xbf16>
    %cst_54 = arith.constant dense<0.000000e+00> : vector<32x128xf32>
    %127 = tpu.matmul %126, %125, %cst_54 {dimension_numbers = #tpu.dot_dimension_numbers<[1], [0], [0], [1], [0, 0, 1, 1], [], []>} : vector<32x128xbf16>, vector<128x128xbf16>, vector<32x128xf32> -> vector<32x128xf32>
    %c1_55 = arith.constant 1 : index
    %c0_56 = arith.constant 0 : index
    %c0_57 = arith.constant 0 : index
    %128 = vector.load %arg8[%c1_55, %c0_56, %c0_57] : memref<6x1x128xf32, #tpu.memory_space<vmem>>, vector<1x1x128xf32>
    %129 = vector.shape_cast %128 : vector<1x1x128xf32> to vector<1x128xf32>
    %130 = vector.broadcast %129 : vector<1x128xf32> to vector<32x128xf32>
    %131 = arith.addf %127, %130 : vector<32x128xf32>
    %cst_58 = arith.constant 0.000000e+00 : f32
    %132 = vector.broadcast %cst_58 : f32 to vector<32x128xf32>
    %133 = arith.maximumf %131, %132 : vector<32x128xf32>
    %c1_59 = arith.constant 1 : index
    %c0_60 = arith.constant 0 : index
    %c0_61 = arith.constant 0 : index
    %134 = vector.load %arg9[%c1_59, %c0_60, %c0_61] : memref<6x128x32xbf16, #tpu.memory_space<vmem>>, vector<1x128x32xbf16>
    %135 = vector.shape_cast %134 : vector<1x128x32xbf16> to vector<128x32xbf16>
    %136 = arith.truncf %133 : vector<32x128xf32> to vector<32x128xbf16>
    %cst_62 = arith.constant dense<0.000000e+00> : vector<32x32xf32>
    %137 = tpu.matmul %136, %135, %cst_62 {dimension_numbers = #tpu.dot_dimension_numbers<[1], [0], [0], [1], [0, 0, 1, 1], [], []>} : vector<32x128xbf16>, vector<128x32xbf16>, vector<32x32xf32> -> vector<32x32xf32>
    %c1_63 = arith.constant 1 : index
    %c0_64 = arith.constant 0 : index
    %c0_65 = arith.constant 0 : index
    %138 = vector.load %arg10[%c1_63, %c0_64, %c0_65] : memref<6x1x32xf32, #tpu.memory_space<vmem>>, vector<1x1x32xf32>
    %139 = vector.shape_cast %138 : vector<1x1x32xf32> to vector<1x32xf32>
    %140 = vector.broadcast %139 : vector<1x32xf32> to vector<32x32xf32>
    %141 = arith.addf %137, %140 : vector<32x32xf32>
    %cst_66 = arith.constant 0.000000e+00 : f32
    %142 = vector.broadcast %cst_66 : f32 to vector<32x32xf32>
    %143 = arith.maximumf %141, %142 : vector<32x32xf32>
    %c1_67 = arith.constant 1 : index
    %c0_68 = arith.constant 0 : index
    %c0_69 = arith.constant 0 : index
    %144 = vector.load %arg11[%c1_67, %c0_68, %c0_69] : memref<6x32x32xbf16, #tpu.memory_space<vmem>>, vector<1x32x32xbf16>
    %145 = vector.shape_cast %144 : vector<1x32x32xbf16> to vector<32x32xbf16>
    %146 = arith.truncf %143 : vector<32x32xf32> to vector<32x32xbf16>
    %cst_70 = arith.constant dense<0.000000e+00> : vector<32x32xf32>
    %147 = tpu.matmul %146, %145, %cst_70 {dimension_numbers = #tpu.dot_dimension_numbers<[1], [0], [0], [1], [0, 0, 1, 1], [], []>} : vector<32x32xbf16>, vector<32x32xbf16>, vector<32x32xf32> -> vector<32x32xf32>
    %c1_71 = arith.constant 1 : index
    %c0_72 = arith.constant 0 : index
    %c0_73 = arith.constant 0 : index
    %148 = vector.load %arg12[%c1_71, %c0_72, %c0_73] : memref<6x1x32xf32, #tpu.memory_space<vmem>>, vector<1x1x32xf32>
    %149 = vector.shape_cast %148 : vector<1x1x32xf32> to vector<1x32xf32>
    %150 = vector.broadcast %149 : vector<1x32xf32> to vector<32x32xf32>
    %151 = arith.addf %147, %150 : vector<32x32xf32>
    %cst_74 = arith.constant 0.000000e+00 : f32
    %152 = vector.broadcast %cst_74 : f32 to vector<32x32xf32>
    %153 = arith.maximumf %151, %152 : vector<32x32xf32>
    %c1_75 = arith.constant 1 : index
    %c0_76 = arith.constant 0 : index
    %c0_77 = arith.constant 0 : index
    %154 = vector.load %arg4[%c1_75, %c0_76, %c0_77] : memref<5x32x128xbf16, #tpu.memory_space<vmem>>, vector<1x32x128xbf16>
    %155 = vector.shape_cast %154 : vector<1x32x128xbf16> to vector<32x128xbf16>
    %156 = arith.truncf %153 : vector<32x32xf32> to vector<32x32xbf16>
    %cst_78 = arith.constant dense<0.000000e+00> : vector<32x128xf32>
    %157 = tpu.matmul %156, %155, %cst_78 {dimension_numbers = #tpu.dot_dimension_numbers<[1], [0], [0], [1], [0, 0, 1, 1], [], []>} : vector<32x32xbf16>, vector<32x128xbf16>, vector<32x128xf32> -> vector<32x128xf32>
    %158 = arith.truncf %157 : vector<32x128xf32> to vector<32x128xbf16>
    %cst_79 = arith.constant dense<0.000000e+00> : vector<128x128xf32>
    %159 = tpu.matmul %0, %158, %cst_79 {dimension_numbers = #tpu.dot_dimension_numbers<[1], [0], [0], [1], [0, 0, 1, 1], [], []>} : vector<128x32xbf16>, vector<32x128xbf16>, vector<128x128xf32> -> vector<128x128xf32>
    %160 = vector.extract_strided_slice %159 {offsets = [0, 0], sizes = [32, 128], strides = [1, 1]} : vector<128x128xf32> to vector<32x128xf32>
    %161 = vector.broadcast %9 : vector<1x128xf32> to vector<32x128xf32>
    %162 = arith.mulf %161, %160 : vector<32x128xf32>
    %163 = vector.extract_strided_slice %159 {offsets = [32, 0], sizes = [32, 128], strides = [1, 1]} : vector<128x128xf32> to vector<32x128xf32>
    %164 = vector.broadcast %16 : vector<1x128xf32> to vector<32x128xf32>
    %165 = arith.mulf %164, %163 : vector<32x128xf32>
    %166 = arith.addf %162, %165 : vector<32x128xf32>
    %167 = vector.extract_strided_slice %159 {offsets = [64, 0], sizes = [32, 128], strides = [1, 1]} : vector<128x128xf32> to vector<32x128xf32>
    %168 = vector.broadcast %23 : vector<1x128xf32> to vector<32x128xf32>
    %169 = arith.mulf %168, %167 : vector<32x128xf32>
    %170 = arith.addf %166, %169 : vector<32x128xf32>
    %171 = vector.extract_strided_slice %159 {offsets = [96, 0], sizes = [32, 128], strides = [1, 1]} : vector<128x128xf32> to vector<32x128xf32>
    %172 = vector.broadcast %30 : vector<1x128xf32> to vector<32x128xf32>
    %173 = arith.mulf %172, %171 : vector<32x128xf32>
    %174 = arith.addf %170, %173 : vector<32x128xf32>
    %c2 = arith.constant 2 : index
    %c0_80 = arith.constant 0 : index
    %c0_81 = arith.constant 0 : index
    %175 = vector.load %arg5[%c2, %c0_80, %c0_81] : memref<6x1x128xf32, #tpu.memory_space<vmem>>, vector<1x1x128xf32>
    %176 = vector.shape_cast %175 : vector<1x1x128xf32> to vector<1x128xf32>
    %177 = vector.broadcast %176 : vector<1x128xf32> to vector<32x128xf32>
    %178 = arith.mulf %177, %157 : vector<32x128xf32>
    %179 = arith.addf %174, %178 : vector<32x128xf32>
    %c2_82 = arith.constant 2 : index
    %c0_83 = arith.constant 0 : index
    %c0_84 = arith.constant 0 : index
    %180 = vector.load %arg6[%c2_82, %c0_83, %c0_84] : memref<6x1x128xf32, #tpu.memory_space<vmem>>, vector<1x1x128xf32>
    %181 = vector.shape_cast %180 : vector<1x1x128xf32> to vector<1x128xf32>
    %182 = vector.broadcast %181 : vector<1x128xf32> to vector<32x128xf32>
    %183 = arith.addf %179, %182 : vector<32x128xf32>
    %cst_85 = arith.constant 0.000000e+00 : f32
    %184 = vector.broadcast %cst_85 : f32 to vector<32x128xf32>
    %185 = arith.maximumf %183, %184 : vector<32x128xf32>
    %c2_86 = arith.constant 2 : index
    %c0_87 = arith.constant 0 : index
    %c0_88 = arith.constant 0 : index
    %186 = vector.load %arg7[%c2_86, %c0_87, %c0_88] : memref<6x128x128xbf16, #tpu.memory_space<vmem>>, vector<1x128x128xbf16>
    %187 = vector.shape_cast %186 : vector<1x128x128xbf16> to vector<128x128xbf16>
    %188 = arith.truncf %185 : vector<32x128xf32> to vector<32x128xbf16>
    %cst_89 = arith.constant dense<0.000000e+00> : vector<32x128xf32>
    %189 = tpu.matmul %188, %187, %cst_89 {dimension_numbers = #tpu.dot_dimension_numbers<[1], [0], [0], [1], [0, 0, 1, 1], [], []>} : vector<32x128xbf16>, vector<128x128xbf16>, vector<32x128xf32> -> vector<32x128xf32>
    %c2_90 = arith.constant 2 : index
    %c0_91 = arith.constant 0 : index
    %c0_92 = arith.constant 0 : index
    %190 = vector.load %arg8[%c2_90, %c0_91, %c0_92] : memref<6x1x128xf32, #tpu.memory_space<vmem>>, vector<1x1x128xf32>
    %191 = vector.shape_cast %190 : vector<1x1x128xf32> to vector<1x128xf32>
    %192 = vector.broadcast %191 : vector<1x128xf32> to vector<32x128xf32>
    %193 = arith.addf %189, %192 : vector<32x128xf32>
    %cst_93 = arith.constant 0.000000e+00 : f32
    %194 = vector.broadcast %cst_93 : f32 to vector<32x128xf32>
    %195 = arith.maximumf %193, %194 : vector<32x128xf32>
    %c2_94 = arith.constant 2 : index
    %c0_95 = arith.constant 0 : index
    %c0_96 = arith.constant 0 : index
    %196 = vector.load %arg9[%c2_94, %c0_95, %c0_96] : memref<6x128x32xbf16, #tpu.memory_space<vmem>>, vector<1x128x32xbf16>
    %197 = vector.shape_cast %196 : vector<1x128x32xbf16> to vector<128x32xbf16>
    %198 = arith.truncf %195 : vector<32x128xf32> to vector<32x128xbf16>
    %cst_97 = arith.constant dense<0.000000e+00> : vector<32x32xf32>
    %199 = tpu.matmul %198, %197, %cst_97 {dimension_numbers = #tpu.dot_dimension_numbers<[1], [0], [0], [1], [0, 0, 1, 1], [], []>} : vector<32x128xbf16>, vector<128x32xbf16>, vector<32x32xf32> -> vector<32x32xf32>
    %c2_98 = arith.constant 2 : index
    %c0_99 = arith.constant 0 : index
    %c0_100 = arith.constant 0 : index
    %200 = vector.load %arg10[%c2_98, %c0_99, %c0_100] : memref<6x1x32xf32, #tpu.memory_space<vmem>>, vector<1x1x32xf32>
    %201 = vector.shape_cast %200 : vector<1x1x32xf32> to vector<1x32xf32>
    %202 = vector.broadcast %201 : vector<1x32xf32> to vector<32x32xf32>
    %203 = arith.addf %199, %202 : vector<32x32xf32>
    %cst_101 = arith.constant 0.000000e+00 : f32
    %204 = vector.broadcast %cst_101 : f32 to vector<32x32xf32>
    %205 = arith.maximumf %203, %204 : vector<32x32xf32>
    %c2_102 = arith.constant 2 : index
    %c0_103 = arith.constant 0 : index
    %c0_104 = arith.constant 0 : index
    %206 = vector.load %arg11[%c2_102, %c0_103, %c0_104] : memref<6x32x32xbf16, #tpu.memory_space<vmem>>, vector<1x32x32xbf16>
    %207 = vector.shape_cast %206 : vector<1x32x32xbf16> to vector<32x32xbf16>
    %208 = arith.truncf %205 : vector<32x32xf32> to vector<32x32xbf16>
    %cst_105 = arith.constant dense<0.000000e+00> : vector<32x32xf32>
    %209 = tpu.matmul %208, %207, %cst_105 {dimension_numbers = #tpu.dot_dimension_numbers<[1], [0], [0], [1], [0, 0, 1, 1], [], []>} : vector<32x32xbf16>, vector<32x32xbf16>, vector<32x32xf32> -> vector<32x32xf32>
    %c2_106 = arith.constant 2 : index
    %c0_107 = arith.constant 0 : index
    %c0_108 = arith.constant 0 : index
    %210 = vector.load %arg12[%c2_106, %c0_107, %c0_108] : memref<6x1x32xf32, #tpu.memory_space<vmem>>, vector<1x1x32xf32>
    %211 = vector.shape_cast %210 : vector<1x1x32xf32> to vector<1x32xf32>
    %212 = vector.broadcast %211 : vector<1x32xf32> to vector<32x32xf32>
    %213 = arith.addf %209, %212 : vector<32x32xf32>
    %cst_109 = arith.constant 0.000000e+00 : f32
    %214 = vector.broadcast %cst_109 : f32 to vector<32x32xf32>
    %215 = arith.maximumf %213, %214 : vector<32x32xf32>
    %c2_110 = arith.constant 2 : index
    %c0_111 = arith.constant 0 : index
    %c0_112 = arith.constant 0 : index
    %216 = vector.load %arg4[%c2_110, %c0_111, %c0_112] : memref<5x32x128xbf16, #tpu.memory_space<vmem>>, vector<1x32x128xbf16>
    %217 = vector.shape_cast %216 : vector<1x32x128xbf16> to vector<32x128xbf16>
    %218 = arith.truncf %215 : vector<32x32xf32> to vector<32x32xbf16>
    %cst_113 = arith.constant dense<0.000000e+00> : vector<32x128xf32>
    %219 = tpu.matmul %218, %217, %cst_113 {dimension_numbers = #tpu.dot_dimension_numbers<[1], [0], [0], [1], [0, 0, 1, 1], [], []>} : vector<32x32xbf16>, vector<32x128xbf16>, vector<32x128xf32> -> vector<32x128xf32>
    %220 = arith.truncf %219 : vector<32x128xf32> to vector<32x128xbf16>
    %cst_114 = arith.constant dense<0.000000e+00> : vector<128x128xf32>
    %221 = tpu.matmul %0, %220, %cst_114 {dimension_numbers = #tpu.dot_dimension_numbers<[1], [0], [0], [1], [0, 0, 1, 1], [], []>} : vector<128x32xbf16>, vector<32x128xbf16>, vector<128x128xf32> -> vector<128x128xf32>
    %222 = vector.extract_strided_slice %221 {offsets = [0, 0], sizes = [32, 128], strides = [1, 1]} : vector<128x128xf32> to vector<32x128xf32>
    %223 = vector.broadcast %9 : vector<1x128xf32> to vector<32x128xf32>
    %224 = arith.mulf %223, %222 : vector<32x128xf32>
    %225 = vector.extract_strided_slice %221 {offsets = [32, 0], sizes = [32, 128], strides = [1, 1]} : vector<128x128xf32> to vector<32x128xf32>
    %226 = vector.broadcast %16 : vector<1x128xf32> to vector<32x128xf32>
    %227 = arith.mulf %226, %225 : vector<32x128xf32>
    %228 = arith.addf %224, %227 : vector<32x128xf32>
    %229 = vector.extract_strided_slice %221 {offsets = [64, 0], sizes = [32, 128], strides = [1, 1]} : vector<128x128xf32> to vector<32x128xf32>
    %230 = vector.broadcast %23 : vector<1x128xf32> to vector<32x128xf32>
    %231 = arith.mulf %230, %229 : vector<32x128xf32>
    %232 = arith.addf %228, %231 : vector<32x128xf32>
    %233 = vector.extract_strided_slice %221 {offsets = [96, 0], sizes = [32, 128], strides = [1, 1]} : vector<128x128xf32> to vector<32x128xf32>
    %234 = vector.broadcast %30 : vector<1x128xf32> to vector<32x128xf32>
    %235 = arith.mulf %234, %233 : vector<32x128xf32>
    %236 = arith.addf %232, %235 : vector<32x128xf32>
    %c3 = arith.constant 3 : index
    %c0_115 = arith.constant 0 : index
    %c0_116 = arith.constant 0 : index
    %237 = vector.load %arg5[%c3, %c0_115, %c0_116] : memref<6x1x128xf32, #tpu.memory_space<vmem>>, vector<1x1x128xf32>
    %238 = vector.shape_cast %237 : vector<1x1x128xf32> to vector<1x128xf32>
    %239 = vector.broadcast %238 : vector<1x128xf32> to vector<32x128xf32>
    %240 = arith.mulf %239, %219 : vector<32x128xf32>
    %241 = arith.addf %236, %240 : vector<32x128xf32>
    %c3_117 = arith.constant 3 : index
    %c0_118 = arith.constant 0 : index
    %c0_119 = arith.constant 0 : index
    %242 = vector.load %arg6[%c3_117, %c0_118, %c0_119] : memref<6x1x128xf32, #tpu.memory_space<vmem>>, vector<1x1x128xf32>
    %243 = vector.shape_cast %242 : vector<1x1x128xf32> to vector<1x128xf32>
    %244 = vector.broadcast %243 : vector<1x128xf32> to vector<32x128xf32>
    %245 = arith.addf %241, %244 : vector<32x128xf32>
    %cst_120 = arith.constant 0.000000e+00 : f32
    %246 = vector.broadcast %cst_120 : f32 to vector<32x128xf32>
    %247 = arith.maximumf %245, %246 : vector<32x128xf32>
    %c3_121 = arith.constant 3 : index
    %c0_122 = arith.constant 0 : index
    %c0_123 = arith.constant 0 : index
    %248 = vector.load %arg7[%c3_121, %c0_122, %c0_123] : memref<6x128x128xbf16, #tpu.memory_space<vmem>>, vector<1x128x128xbf16>
    %249 = vector.shape_cast %248 : vector<1x128x128xbf16> to vector<128x128xbf16>
    %250 = arith.truncf %247 : vector<32x128xf32> to vector<32x128xbf16>
    %cst_124 = arith.constant dense<0.000000e+00> : vector<32x128xf32>
    %251 = tpu.matmul %250, %249, %cst_124 {dimension_numbers = #tpu.dot_dimension_numbers<[1], [0], [0], [1], [0, 0, 1, 1], [], []>} : vector<32x128xbf16>, vector<128x128xbf16>, vector<32x128xf32> -> vector<32x128xf32>
    %c3_125 = arith.constant 3 : index
    %c0_126 = arith.constant 0 : index
    %c0_127 = arith.constant 0 : index
    %252 = vector.load %arg8[%c3_125, %c0_126, %c0_127] : memref<6x1x128xf32, #tpu.memory_space<vmem>>, vector<1x1x128xf32>
    %253 = vector.shape_cast %252 : vector<1x1x128xf32> to vector<1x128xf32>
    %254 = vector.broadcast %253 : vector<1x128xf32> to vector<32x128xf32>
    %255 = arith.addf %251, %254 : vector<32x128xf32>
    %cst_128 = arith.constant 0.000000e+00 : f32
    %256 = vector.broadcast %cst_128 : f32 to vector<32x128xf32>
    %257 = arith.maximumf %255, %256 : vector<32x128xf32>
    %c3_129 = arith.constant 3 : index
    %c0_130 = arith.constant 0 : index
    %c0_131 = arith.constant 0 : index
    %258 = vector.load %arg9[%c3_129, %c0_130, %c0_131] : memref<6x128x32xbf16, #tpu.memory_space<vmem>>, vector<1x128x32xbf16>
    %259 = vector.shape_cast %258 : vector<1x128x32xbf16> to vector<128x32xbf16>
    %260 = arith.truncf %257 : vector<32x128xf32> to vector<32x128xbf16>
    %cst_132 = arith.constant dense<0.000000e+00> : vector<32x32xf32>
    %261 = tpu.matmul %260, %259, %cst_132 {dimension_numbers = #tpu.dot_dimension_numbers<[1], [0], [0], [1], [0, 0, 1, 1], [], []>} : vector<32x128xbf16>, vector<128x32xbf16>, vector<32x32xf32> -> vector<32x32xf32>
    %c3_133 = arith.constant 3 : index
    %c0_134 = arith.constant 0 : index
    %c0_135 = arith.constant 0 : index
    %262 = vector.load %arg10[%c3_133, %c0_134, %c0_135] : memref<6x1x32xf32, #tpu.memory_space<vmem>>, vector<1x1x32xf32>
    %263 = vector.shape_cast %262 : vector<1x1x32xf32> to vector<1x32xf32>
    %264 = vector.broadcast %263 : vector<1x32xf32> to vector<32x32xf32>
    %265 = arith.addf %261, %264 : vector<32x32xf32>
    %cst_136 = arith.constant 0.000000e+00 : f32
    %266 = vector.broadcast %cst_136 : f32 to vector<32x32xf32>
    %267 = arith.maximumf %265, %266 : vector<32x32xf32>
    %c3_137 = arith.constant 3 : index
    %c0_138 = arith.constant 0 : index
    %c0_139 = arith.constant 0 : index
    %268 = vector.load %arg11[%c3_137, %c0_138, %c0_139] : memref<6x32x32xbf16, #tpu.memory_space<vmem>>, vector<1x32x32xbf16>
    %269 = vector.shape_cast %268 : vector<1x32x32xbf16> to vector<32x32xbf16>
    %270 = arith.truncf %267 : vector<32x32xf32> to vector<32x32xbf16>
    %cst_140 = arith.constant dense<0.000000e+00> : vector<32x32xf32>
    %271 = tpu.matmul %270, %269, %cst_140 {dimension_numbers = #tpu.dot_dimension_numbers<[1], [0], [0], [1], [0, 0, 1, 1], [], []>} : vector<32x32xbf16>, vector<32x32xbf16>, vector<32x32xf32> -> vector<32x32xf32>
    %c3_141 = arith.constant 3 : index
    %c0_142 = arith.constant 0 : index
    %c0_143 = arith.constant 0 : index
    %272 = vector.load %arg12[%c3_141, %c0_142, %c0_143] : memref<6x1x32xf32, #tpu.memory_space<vmem>>, vector<1x1x32xf32>
    %273 = vector.shape_cast %272 : vector<1x1x32xf32> to vector<1x32xf32>
    %274 = vector.broadcast %273 : vector<1x32xf32> to vector<32x32xf32>
    %275 = arith.addf %271, %274 : vector<32x32xf32>
    %cst_144 = arith.constant 0.000000e+00 : f32
    %276 = vector.broadcast %cst_144 : f32 to vector<32x32xf32>
    %277 = arith.maximumf %275, %276 : vector<32x32xf32>
    %c3_145 = arith.constant 3 : index
    %c0_146 = arith.constant 0 : index
    %c0_147 = arith.constant 0 : index
    %278 = vector.load %arg4[%c3_145, %c0_146, %c0_147] : memref<5x32x128xbf16, #tpu.memory_space<vmem>>, vector<1x32x128xbf16>
    %279 = vector.shape_cast %278 : vector<1x32x128xbf16> to vector<32x128xbf16>
    %280 = arith.truncf %277 : vector<32x32xf32> to vector<32x32xbf16>
    %cst_148 = arith.constant dense<0.000000e+00> : vector<32x128xf32>
    %281 = tpu.matmul %280, %279, %cst_148 {dimension_numbers = #tpu.dot_dimension_numbers<[1], [0], [0], [1], [0, 0, 1, 1], [], []>} : vector<32x32xbf16>, vector<32x128xbf16>, vector<32x128xf32> -> vector<32x128xf32>
    %282 = arith.truncf %281 : vector<32x128xf32> to vector<32x128xbf16>
    %cst_149 = arith.constant dense<0.000000e+00> : vector<128x128xf32>
    %283 = tpu.matmul %0, %282, %cst_149 {dimension_numbers = #tpu.dot_dimension_numbers<[1], [0], [0], [1], [0, 0, 1, 1], [], []>} : vector<128x32xbf16>, vector<32x128xbf16>, vector<128x128xf32> -> vector<128x128xf32>
    %284 = vector.extract_strided_slice %283 {offsets = [0, 0], sizes = [32, 128], strides = [1, 1]} : vector<128x128xf32> to vector<32x128xf32>
    %285 = vector.broadcast %9 : vector<1x128xf32> to vector<32x128xf32>
    %286 = arith.mulf %285, %284 : vector<32x128xf32>
    %287 = vector.extract_strided_slice %283 {offsets = [32, 0], sizes = [32, 128], strides = [1, 1]} : vector<128x128xf32> to vector<32x128xf32>
    %288 = vector.broadcast %16 : vector<1x128xf32> to vector<32x128xf32>
    %289 = arith.mulf %288, %287 : vector<32x128xf32>
    %290 = arith.addf %286, %289 : vector<32x128xf32>
    %291 = vector.extract_strided_slice %283 {offsets = [64, 0], sizes = [32, 128], strides = [1, 1]} : vector<128x128xf32> to vector<32x128xf32>
    %292 = vector.broadcast %23 : vector<1x128xf32> to vector<32x128xf32>
    %293 = arith.mulf %292, %291 : vector<32x128xf32>
    %294 = arith.addf %290, %293 : vector<32x128xf32>
    %295 = vector.extract_strided_slice %283 {offsets = [96, 0], sizes = [32, 128], strides = [1, 1]} : vector<128x128xf32> to vector<32x128xf32>
    %296 = vector.broadcast %30 : vector<1x128xf32> to vector<32x128xf32>
    %297 = arith.mulf %296, %295 : vector<32x128xf32>
    %298 = arith.addf %294, %297 : vector<32x128xf32>
    %c4 = arith.constant 4 : index
    %c0_150 = arith.constant 0 : index
    %c0_151 = arith.constant 0 : index
    %299 = vector.load %arg5[%c4, %c0_150, %c0_151] : memref<6x1x128xf32, #tpu.memory_space<vmem>>, vector<1x1x128xf32>
    %300 = vector.shape_cast %299 : vector<1x1x128xf32> to vector<1x128xf32>
    %301 = vector.broadcast %300 : vector<1x128xf32> to vector<32x128xf32>
    %302 = arith.mulf %301, %281 : vector<32x128xf32>
    %303 = arith.addf %298, %302 : vector<32x128xf32>
    %c4_152 = arith.constant 4 : index
    %c0_153 = arith.constant 0 : index
    %c0_154 = arith.constant 0 : index
    %304 = vector.load %arg6[%c4_152, %c0_153, %c0_154] : memref<6x1x128xf32, #tpu.memory_space<vmem>>, vector<1x1x128xf32>
    %305 = vector.shape_cast %304 : vector<1x1x128xf32> to vector<1x128xf32>
    %306 = vector.broadcast %305 : vector<1x128xf32> to vector<32x128xf32>
    %307 = arith.addf %303, %306 : vector<32x128xf32>
    %cst_155 = arith.constant 0.000000e+00 : f32
    %308 = vector.broadcast %cst_155 : f32 to vector<32x128xf32>
    %309 = arith.maximumf %307, %308 : vector<32x128xf32>
    %c4_156 = arith.constant 4 : index
    %c0_157 = arith.constant 0 : index
    %c0_158 = arith.constant 0 : index
    %310 = vector.load %arg7[%c4_156, %c0_157, %c0_158] : memref<6x128x128xbf16, #tpu.memory_space<vmem>>, vector<1x128x128xbf16>
    %311 = vector.shape_cast %310 : vector<1x128x128xbf16> to vector<128x128xbf16>
    %312 = arith.truncf %309 : vector<32x128xf32> to vector<32x128xbf16>
    %cst_159 = arith.constant dense<0.000000e+00> : vector<32x128xf32>
    %313 = tpu.matmul %312, %311, %cst_159 {dimension_numbers = #tpu.dot_dimension_numbers<[1], [0], [0], [1], [0, 0, 1, 1], [], []>} : vector<32x128xbf16>, vector<128x128xbf16>, vector<32x128xf32> -> vector<32x128xf32>
    %c4_160 = arith.constant 4 : index
    %c0_161 = arith.constant 0 : index
    %c0_162 = arith.constant 0 : index
    %314 = vector.load %arg8[%c4_160, %c0_161, %c0_162] : memref<6x1x128xf32, #tpu.memory_space<vmem>>, vector<1x1x128xf32>
    %315 = vector.shape_cast %314 : vector<1x1x128xf32> to vector<1x128xf32>
    %316 = vector.broadcast %315 : vector<1x128xf32> to vector<32x128xf32>
    %317 = arith.addf %313, %316 : vector<32x128xf32>
    %cst_163 = arith.constant 0.000000e+00 : f32
    %318 = vector.broadcast %cst_163 : f32 to vector<32x128xf32>
    %319 = arith.maximumf %317, %318 : vector<32x128xf32>
    %c4_164 = arith.constant 4 : index
    %c0_165 = arith.constant 0 : index
    %c0_166 = arith.constant 0 : index
    %320 = vector.load %arg9[%c4_164, %c0_165, %c0_166] : memref<6x128x32xbf16, #tpu.memory_space<vmem>>, vector<1x128x32xbf16>
    %321 = vector.shape_cast %320 : vector<1x128x32xbf16> to vector<128x32xbf16>
    %322 = arith.truncf %319 : vector<32x128xf32> to vector<32x128xbf16>
    %cst_167 = arith.constant dense<0.000000e+00> : vector<32x32xf32>
    %323 = tpu.matmul %322, %321, %cst_167 {dimension_numbers = #tpu.dot_dimension_numbers<[1], [0], [0], [1], [0, 0, 1, 1], [], []>} : vector<32x128xbf16>, vector<128x32xbf16>, vector<32x32xf32> -> vector<32x32xf32>
    %c4_168 = arith.constant 4 : index
    %c0_169 = arith.constant 0 : index
    %c0_170 = arith.constant 0 : index
    %324 = vector.load %arg10[%c4_168, %c0_169, %c0_170] : memref<6x1x32xf32, #tpu.memory_space<vmem>>, vector<1x1x32xf32>
    %325 = vector.shape_cast %324 : vector<1x1x32xf32> to vector<1x32xf32>
    %326 = vector.broadcast %325 : vector<1x32xf32> to vector<32x32xf32>
    %327 = arith.addf %323, %326 : vector<32x32xf32>
    %cst_171 = arith.constant 0.000000e+00 : f32
    %328 = vector.broadcast %cst_171 : f32 to vector<32x32xf32>
    %329 = arith.maximumf %327, %328 : vector<32x32xf32>
    %c4_172 = arith.constant 4 : index
    %c0_173 = arith.constant 0 : index
    %c0_174 = arith.constant 0 : index
    %330 = vector.load %arg11[%c4_172, %c0_173, %c0_174] : memref<6x32x32xbf16, #tpu.memory_space<vmem>>, vector<1x32x32xbf16>
    %331 = vector.shape_cast %330 : vector<1x32x32xbf16> to vector<32x32xbf16>
    %332 = arith.truncf %329 : vector<32x32xf32> to vector<32x32xbf16>
    %cst_175 = arith.constant dense<0.000000e+00> : vector<32x32xf32>
    %333 = tpu.matmul %332, %331, %cst_175 {dimension_numbers = #tpu.dot_dimension_numbers<[1], [0], [0], [1], [0, 0, 1, 1], [], []>} : vector<32x32xbf16>, vector<32x32xbf16>, vector<32x32xf32> -> vector<32x32xf32>
    %c4_176 = arith.constant 4 : index
    %c0_177 = arith.constant 0 : index
    %c0_178 = arith.constant 0 : index
    %334 = vector.load %arg12[%c4_176, %c0_177, %c0_178] : memref<6x1x32xf32, #tpu.memory_space<vmem>>, vector<1x1x32xf32>
    %335 = vector.shape_cast %334 : vector<1x1x32xf32> to vector<1x32xf32>
    %336 = vector.broadcast %335 : vector<1x32xf32> to vector<32x32xf32>
    %337 = arith.addf %333, %336 : vector<32x32xf32>
    %cst_179 = arith.constant 0.000000e+00 : f32
    %338 = vector.broadcast %cst_179 : f32 to vector<32x32xf32>
    %339 = arith.maximumf %337, %338 : vector<32x32xf32>
    %c4_180 = arith.constant 4 : index
    %c0_181 = arith.constant 0 : index
    %c0_182 = arith.constant 0 : index
    %340 = vector.load %arg4[%c4_180, %c0_181, %c0_182] : memref<5x32x128xbf16, #tpu.memory_space<vmem>>, vector<1x32x128xbf16>
    %341 = vector.shape_cast %340 : vector<1x32x128xbf16> to vector<32x128xbf16>
    %342 = arith.truncf %339 : vector<32x32xf32> to vector<32x32xbf16>
    %cst_183 = arith.constant dense<0.000000e+00> : vector<32x128xf32>
    %343 = tpu.matmul %342, %341, %cst_183 {dimension_numbers = #tpu.dot_dimension_numbers<[1], [0], [0], [1], [0, 0, 1, 1], [], []>} : vector<32x32xbf16>, vector<32x128xbf16>, vector<32x128xf32> -> vector<32x128xf32>
    %344 = arith.truncf %343 : vector<32x128xf32> to vector<32x128xbf16>
    %cst_184 = arith.constant dense<0.000000e+00> : vector<128x128xf32>
    %345 = tpu.matmul %0, %344, %cst_184 {dimension_numbers = #tpu.dot_dimension_numbers<[1], [0], [0], [1], [0, 0, 1, 1], [], []>} : vector<128x32xbf16>, vector<32x128xbf16>, vector<128x128xf32> -> vector<128x128xf32>
    %346 = vector.extract_strided_slice %345 {offsets = [0, 0], sizes = [32, 128], strides = [1, 1]} : vector<128x128xf32> to vector<32x128xf32>
    %347 = vector.broadcast %9 : vector<1x128xf32> to vector<32x128xf32>
    %348 = arith.mulf %347, %346 : vector<32x128xf32>
    %349 = vector.extract_strided_slice %345 {offsets = [32, 0], sizes = [32, 128], strides = [1, 1]} : vector<128x128xf32> to vector<32x128xf32>
    %350 = vector.broadcast %16 : vector<1x128xf32> to vector<32x128xf32>
    %351 = arith.mulf %350, %349 : vector<32x128xf32>
    %352 = arith.addf %348, %351 : vector<32x128xf32>
    %353 = vector.extract_strided_slice %345 {offsets = [64, 0], sizes = [32, 128], strides = [1, 1]} : vector<128x128xf32> to vector<32x128xf32>
    %354 = vector.broadcast %23 : vector<1x128xf32> to vector<32x128xf32>
    %355 = arith.mulf %354, %353 : vector<32x128xf32>
    %356 = arith.addf %352, %355 : vector<32x128xf32>
    %357 = vector.extract_strided_slice %345 {offsets = [96, 0], sizes = [32, 128], strides = [1, 1]} : vector<128x128xf32> to vector<32x128xf32>
    %358 = vector.broadcast %30 : vector<1x128xf32> to vector<32x128xf32>
    %359 = arith.mulf %358, %357 : vector<32x128xf32>
    %360 = arith.addf %356, %359 : vector<32x128xf32>
    %c5 = arith.constant 5 : index
    %c0_185 = arith.constant 0 : index
    %c0_186 = arith.constant 0 : index
    %361 = vector.load %arg5[%c5, %c0_185, %c0_186] : memref<6x1x128xf32, #tpu.memory_space<vmem>>, vector<1x1x128xf32>
    %362 = vector.shape_cast %361 : vector<1x1x128xf32> to vector<1x128xf32>
    %363 = vector.broadcast %362 : vector<1x128xf32> to vector<32x128xf32>
    %364 = arith.mulf %363, %343 : vector<32x128xf32>
    %365 = arith.addf %360, %364 : vector<32x128xf32>
    %c5_187 = arith.constant 5 : index
    %c0_188 = arith.constant 0 : index
    %c0_189 = arith.constant 0 : index
    %366 = vector.load %arg6[%c5_187, %c0_188, %c0_189] : memref<6x1x128xf32, #tpu.memory_space<vmem>>, vector<1x1x128xf32>
    %367 = vector.shape_cast %366 : vector<1x1x128xf32> to vector<1x128xf32>
    %368 = vector.broadcast %367 : vector<1x128xf32> to vector<32x128xf32>
    %369 = arith.addf %365, %368 : vector<32x128xf32>
    %cst_190 = arith.constant 0.000000e+00 : f32
    %370 = vector.broadcast %cst_190 : f32 to vector<32x128xf32>
    %371 = arith.maximumf %369, %370 : vector<32x128xf32>
    %c5_191 = arith.constant 5 : index
    %c0_192 = arith.constant 0 : index
    %c0_193 = arith.constant 0 : index
    %372 = vector.load %arg7[%c5_191, %c0_192, %c0_193] : memref<6x128x128xbf16, #tpu.memory_space<vmem>>, vector<1x128x128xbf16>
    %373 = vector.shape_cast %372 : vector<1x128x128xbf16> to vector<128x128xbf16>
    %374 = arith.truncf %371 : vector<32x128xf32> to vector<32x128xbf16>
    %cst_194 = arith.constant dense<0.000000e+00> : vector<32x128xf32>
    %375 = tpu.matmul %374, %373, %cst_194 {dimension_numbers = #tpu.dot_dimension_numbers<[1], [0], [0], [1], [0, 0, 1, 1], [], []>} : vector<32x128xbf16>, vector<128x128xbf16>, vector<32x128xf32> -> vector<32x128xf32>
    %c5_195 = arith.constant 5 : index
    %c0_196 = arith.constant 0 : index
    %c0_197 = arith.constant 0 : index
    %376 = vector.load %arg8[%c5_195, %c0_196, %c0_197] : memref<6x1x128xf32, #tpu.memory_space<vmem>>, vector<1x1x128xf32>
    %377 = vector.shape_cast %376 : vector<1x1x128xf32> to vector<1x128xf32>
    %378 = vector.broadcast %377 : vector<1x128xf32> to vector<32x128xf32>
    %379 = arith.addf %375, %378 : vector<32x128xf32>
    %cst_198 = arith.constant 0.000000e+00 : f32
    %380 = vector.broadcast %cst_198 : f32 to vector<32x128xf32>
    %381 = arith.maximumf %379, %380 : vector<32x128xf32>
    %c5_199 = arith.constant 5 : index
    %c0_200 = arith.constant 0 : index
    %c0_201 = arith.constant 0 : index
    %382 = vector.load %arg9[%c5_199, %c0_200, %c0_201] : memref<6x128x32xbf16, #tpu.memory_space<vmem>>, vector<1x128x32xbf16>
    %383 = vector.shape_cast %382 : vector<1x128x32xbf16> to vector<128x32xbf16>
    %384 = arith.truncf %381 : vector<32x128xf32> to vector<32x128xbf16>
    %cst_202 = arith.constant dense<0.000000e+00> : vector<32x32xf32>
    %385 = tpu.matmul %384, %383, %cst_202 {dimension_numbers = #tpu.dot_dimension_numbers<[1], [0], [0], [1], [0, 0, 1, 1], [], []>} : vector<32x128xbf16>, vector<128x32xbf16>, vector<32x32xf32> -> vector<32x32xf32>
    %c5_203 = arith.constant 5 : index
    %c0_204 = arith.constant 0 : index
    %c0_205 = arith.constant 0 : index
    %386 = vector.load %arg10[%c5_203, %c0_204, %c0_205] : memref<6x1x32xf32, #tpu.memory_space<vmem>>, vector<1x1x32xf32>
    %387 = vector.shape_cast %386 : vector<1x1x32xf32> to vector<1x32xf32>
    %388 = vector.broadcast %387 : vector<1x32xf32> to vector<32x32xf32>
    %389 = arith.addf %385, %388 : vector<32x32xf32>
    %cst_206 = arith.constant 0.000000e+00 : f32
    %390 = vector.broadcast %cst_206 : f32 to vector<32x32xf32>
    %391 = arith.maximumf %389, %390 : vector<32x32xf32>
    %c5_207 = arith.constant 5 : index
    %c0_208 = arith.constant 0 : index
    %c0_209 = arith.constant 0 : index
    %392 = vector.load %arg11[%c5_207, %c0_208, %c0_209] : memref<6x32x32xbf16, #tpu.memory_space<vmem>>, vector<1x32x32xbf16>
    %393 = vector.shape_cast %392 : vector<1x32x32xbf16> to vector<32x32xbf16>
    %394 = arith.truncf %391 : vector<32x32xf32> to vector<32x32xbf16>
    %cst_210 = arith.constant dense<0.000000e+00> : vector<32x32xf32>
    %395 = tpu.matmul %394, %393, %cst_210 {dimension_numbers = #tpu.dot_dimension_numbers<[1], [0], [0], [1], [0, 0, 1, 1], [], []>} : vector<32x32xbf16>, vector<32x32xbf16>, vector<32x32xf32> -> vector<32x32xf32>
    %c5_211 = arith.constant 5 : index
    %c0_212 = arith.constant 0 : index
    %c0_213 = arith.constant 0 : index
    %396 = vector.load %arg12[%c5_211, %c0_212, %c0_213] : memref<6x1x32xf32, #tpu.memory_space<vmem>>, vector<1x1x32xf32>
    %397 = vector.shape_cast %396 : vector<1x1x32xf32> to vector<1x32xf32>
    %398 = vector.broadcast %397 : vector<1x32xf32> to vector<32x32xf32>
    %399 = arith.addf %395, %398 : vector<32x32xf32>
    %cst_214 = arith.constant 0.000000e+00 : f32
    %400 = vector.broadcast %cst_214 : f32 to vector<32x32xf32>
    %401 = arith.maximumf %399, %400 : vector<32x32xf32>
    %c0_215 = arith.constant 0 : index
    %c0_216 = arith.constant 0 : index
    %402 = vector.load %arg2[%c0_215, %c0_216] : memref<2x32xf32, #tpu.memory_space<vmem>>, vector<2x32xf32>
    %403 = arith.truncf %401 : vector<32x32xf32> to vector<32x32xbf16>
    %404 = tpu.transpose %401, [1, 0] : vector<32x32xf32> -> vector<32x32xf32>
    %405 = arith.truncf %404 : vector<32x32xf32> to vector<32x32xbf16>
    %c0_217 = arith.constant 0 : index
    %c0_218 = arith.constant 0 : index
    %406 = vector.load %arg13[%c0_217, %c0_218] : memref<32x128xbf16, #tpu.memory_space<vmem>>, vector<32x128xbf16>
    %c0_219 = arith.constant 0 : index
    %c0_220 = arith.constant 0 : index
    %407 = vector.load %arg14[%c0_219, %c0_220] : memref<32x128xbf16, #tpu.memory_space<vmem>>, vector<32x128xbf16>
    %c0_221 = arith.constant 0 : index
    %c0_222 = arith.constant 0 : index
    %408 = vector.load %arg15[%c0_221, %c0_222] : memref<1x128xf32, #tpu.memory_space<vmem>>, vector<1x128xf32>
    %cst_223 = arith.constant 0.000000e+00 : f32
    %409 = vector.broadcast %cst_223 : f32 to vector<2x32xf32>
    %cst_224 = arith.constant 0.000000e+00 : f32
    %410 = vector.broadcast %cst_224 : f32 to vector<2x32xf32>
    %cst_225 = arith.constant 0.000000e+00 : f32
    %411 = vector.broadcast %cst_225 : f32 to vector<2x32xf32>
    %412 = arith.truncf %409 : vector<2x32xf32> to vector<2x32xbf16>
    %cst_226 = arith.constant dense<0.000000e+00> : vector<2x128xf32>
    %413 = tpu.matmul %412, %406, %cst_226 {dimension_numbers = #tpu.dot_dimension_numbers<[1], [0], [0], [1], [0, 0, 1, 1], [], []>} : vector<2x32xbf16>, vector<32x128xbf16>, vector<2x128xf32> -> vector<2x128xf32>
    %414 = arith.truncf %410 : vector<2x32xf32> to vector<2x32xbf16>
    %cst_227 = arith.constant dense<0.000000e+00> : vector<2x128xf32>
    %415 = tpu.matmul %414, %407, %cst_227 {dimension_numbers = #tpu.dot_dimension_numbers<[1], [0], [0], [1], [0, 0, 1, 1], [], []>} : vector<2x32xbf16>, vector<32x128xbf16>, vector<2x128xf32> -> vector<2x128xf32>
    %416 = arith.addf %413, %415 : vector<2x128xf32>
    %417 = vector.broadcast %408 : vector<1x128xf32> to vector<2x128xf32>
    %418 = arith.addf %416, %417 : vector<2x128xf32>
    %419 = vector.extract_strided_slice %418 {offsets = [0, 0], sizes = [2, 32], strides = [1, 1]} : vector<2x128xf32> to vector<2x32xf32>
    %420 = arith.negf %419 : vector<2x32xf32>
    %421 = math.exp %420 : vector<2x32xf32>
    %cst_228 = arith.constant 1.000000e+00 : f32
    %422 = vector.broadcast %cst_228 : f32 to vector<2x32xf32>
    %423 = arith.addf %422, %421 : vector<2x32xf32>
    %424 = arith.divf %422, %423 : vector<2x32xf32>
    %425 = vector.extract_strided_slice %418 {offsets = [0, 32], sizes = [2, 32], strides = [1, 1]} : vector<2x128xf32> to vector<2x32xf32>
    %426 = arith.negf %425 : vector<2x32xf32>
    %427 = math.exp %426 : vector<2x32xf32>
    %cst_229 = arith.constant 1.000000e+00 : f32
    %428 = vector.broadcast %cst_229 : f32 to vector<2x32xf32>
    %429 = arith.addf %428, %427 : vector<2x32xf32>
    %430 = arith.divf %428, %429 : vector<2x32xf32>
    %431 = vector.extract_strided_slice %418 {offsets = [0, 64], sizes = [2, 32], strides = [1, 1]} : vector<2x128xf32> to vector<2x32xf32>
    %432 = math.tanh %431 : vector<2x32xf32>
    %433 = vector.extract_strided_slice %418 {offsets = [0, 96], sizes = [2, 32], strides = [1, 1]} : vector<2x128xf32> to vector<2x32xf32>
    %434 = arith.negf %433 : vector<2x32xf32>
    %435 = math.exp %434 : vector<2x32xf32>
    %cst_230 = arith.constant 1.000000e+00 : f32
    %436 = vector.broadcast %cst_230 : f32 to vector<2x32xf32>
    %437 = arith.addf %436, %435 : vector<2x32xf32>
    %438 = arith.divf %436, %437 : vector<2x32xf32>
    %439 = arith.mulf %430, %411 : vector<2x32xf32>
    %440 = arith.mulf %424, %432 : vector<2x32xf32>
    %441 = arith.addf %439, %440 : vector<2x32xf32>
    %442 = math.tanh %441 : vector<2x32xf32>
    %443 = arith.mulf %438, %442 : vector<2x32xf32>
    %444 = arith.truncf %443 : vector<2x32xf32> to vector<2x32xbf16>
    %cst_231 = arith.constant dense<0.000000e+00> : vector<2x32xf32>
    %445 = tpu.matmul %444, %405, %cst_231 {dimension_numbers = #tpu.dot_dimension_numbers<[1], [0], [0], [1], [0, 0, 1, 1], [], []>} : vector<2x32xbf16>, vector<32x32xbf16>, vector<2x32xf32> -> vector<2x32xf32>
    %cst_232 = arith.constant 0.000000e+00 : f32
    %446 = vector.broadcast %cst_232 : f32 to vector<2x32xf32>
    %447 = arith.cmpf ogt, %402, %446 : vector<2x32xf32>
    %cst_233 = arith.constant -1.000000e+30 : f32
    %448 = vector.broadcast %cst_233 : f32 to vector<2x32xf32>
    %449 = arith.select %447, %445, %448 : vector<2x32xi1>, vector<2x32xf32>
    %cst_234 = arith.constant dense<0xFF800000> : vector<2xf32>
    %450 = vector.multi_reduction <maximumf>, %449, %cst_234 [1] : vector<2x32xf32> to vector<2xf32>
    %451 = vector.shape_cast %450 : vector<2xf32> to vector<2x1xf32>
    %452 = vector.broadcast %451 : vector<2x1xf32> to vector<2x32xf32>
    %453 = arith.subf %449, %452 : vector<2x32xf32>
    %454 = math.exp %453 : vector<2x32xf32>
    %cst_235 = arith.constant dense<0.000000e+00> : vector<2xf32>
    %455 = vector.multi_reduction <add>, %454, %cst_235 [1] : vector<2x32xf32> to vector<2xf32>
    %456 = vector.shape_cast %455 : vector<2xf32> to vector<2x1xf32>
    %457 = tpu.reciprocal %456 {approx = true} : vector<2x1xf32> -> vector<2x1xf32>
    %458 = vector.broadcast %457 : vector<2x1xf32> to vector<2x32xf32>
    %459 = arith.mulf %454, %458 : vector<2x32xf32>
    %460 = arith.truncf %459 : vector<2x32xf32> to vector<2x32xbf16>
    %cst_236 = arith.constant dense<0.000000e+00> : vector<2x32xf32>
    %461 = tpu.matmul %460, %403, %cst_236 {dimension_numbers = #tpu.dot_dimension_numbers<[1], [0], [0], [1], [0, 0, 1, 1], [], []>} : vector<2x32xbf16>, vector<32x32xbf16>, vector<2x32xf32> -> vector<2x32xf32>
    %462 = arith.truncf %443 : vector<2x32xf32> to vector<2x32xbf16>
    %cst_237 = arith.constant dense<0.000000e+00> : vector<2x128xf32>
    %463 = tpu.matmul %462, %406, %cst_237 {dimension_numbers = #tpu.dot_dimension_numbers<[1], [0], [0], [1], [0, 0, 1, 1], [], []>} : vector<2x32xbf16>, vector<32x128xbf16>, vector<2x128xf32> -> vector<2x128xf32>
    %464 = arith.truncf %461 : vector<2x32xf32> to vector<2x32xbf16>
    %cst_238 = arith.constant dense<0.000000e+00> : vector<2x128xf32>
    %465 = tpu.matmul %464, %407, %cst_238 {dimension_numbers = #tpu.dot_dimension_numbers<[1], [0], [0], [1], [0, 0, 1, 1], [], []>} : vector<2x32xbf16>, vector<32x128xbf16>, vector<2x128xf32> -> vector<2x128xf32>
    %466 = arith.addf %463, %465 : vector<2x128xf32>
    %467 = vector.broadcast %408 : vector<1x128xf32> to vector<2x128xf32>
    %468 = arith.addf %466, %467 : vector<2x128xf32>
    %469 = vector.extract_strided_slice %468 {offsets = [0, 0], sizes = [2, 32], strides = [1, 1]} : vector<2x128xf32> to vector<2x32xf32>
    %470 = arith.negf %469 : vector<2x32xf32>
    %471 = math.exp %470 : vector<2x32xf32>
    %cst_239 = arith.constant 1.000000e+00 : f32
    %472 = vector.broadcast %cst_239 : f32 to vector<2x32xf32>
    %473 = arith.addf %472, %471 : vector<2x32xf32>
    %474 = arith.divf %472, %473 : vector<2x32xf32>
    %475 = vector.extract_strided_slice %468 {offsets = [0, 32], sizes = [2, 32], strides = [1, 1]} : vector<2x128xf32> to vector<2x32xf32>
    %476 = arith.negf %475 : vector<2x32xf32>
    %477 = math.exp %476 : vector<2x32xf32>
    %cst_240 = arith.constant 1.000000e+00 : f32
    %478 = vector.broadcast %cst_240 : f32 to vector<2x32xf32>
    %479 = arith.addf %478, %477 : vector<2x32xf32>
    %480 = arith.divf %478, %479 : vector<2x32xf32>
    %481 = vector.extract_strided_slice %468 {offsets = [0, 64], sizes = [2, 32], strides = [1, 1]} : vector<2x128xf32> to vector<2x32xf32>
    %482 = math.tanh %481 : vector<2x32xf32>
    %483 = vector.extract_strided_slice %468 {offsets = [0, 96], sizes = [2, 32], strides = [1, 1]} : vector<2x128xf32> to vector<2x32xf32>
    %484 = arith.negf %483 : vector<2x32xf32>
    %485 = math.exp %484 : vector<2x32xf32>
    %cst_241 = arith.constant 1.000000e+00 : f32
    %486 = vector.broadcast %cst_241 : f32 to vector<2x32xf32>
    %487 = arith.addf %486, %485 : vector<2x32xf32>
    %488 = arith.divf %486, %487 : vector<2x32xf32>
    %489 = arith.mulf %480, %441 : vector<2x32xf32>
    %490 = arith.mulf %474, %482 : vector<2x32xf32>
    %491 = arith.addf %489, %490 : vector<2x32xf32>
    %492 = math.tanh %491 : vector<2x32xf32>
    %493 = arith.mulf %488, %492 : vector<2x32xf32>
    %494 = arith.truncf %493 : vector<2x32xf32> to vector<2x32xbf16>
    %cst_242 = arith.constant dense<0.000000e+00> : vector<2x32xf32>
    %495 = tpu.matmul %494, %405, %cst_242 {dimension_numbers = #tpu.dot_dimension_numbers<[1], [0], [0], [1], [0, 0, 1, 1], [], []>} : vector<2x32xbf16>, vector<32x32xbf16>, vector<2x32xf32> -> vector<2x32xf32>
    %cst_243 = arith.constant 0.000000e+00 : f32
    %496 = vector.broadcast %cst_243 : f32 to vector<2x32xf32>
    %497 = arith.cmpf ogt, %402, %496 : vector<2x32xf32>
    %cst_244 = arith.constant -1.000000e+30 : f32
    %498 = vector.broadcast %cst_244 : f32 to vector<2x32xf32>
    %499 = arith.select %497, %495, %498 : vector<2x32xi1>, vector<2x32xf32>
    %cst_245 = arith.constant dense<0xFF800000> : vector<2xf32>
    %500 = vector.multi_reduction <maximumf>, %499, %cst_245 [1] : vector<2x32xf32> to vector<2xf32>
    %501 = vector.shape_cast %500 : vector<2xf32> to vector<2x1xf32>
    %502 = vector.broadcast %501 : vector<2x1xf32> to vector<2x32xf32>
    %503 = arith.subf %499, %502 : vector<2x32xf32>
    %504 = math.exp %503 : vector<2x32xf32>
    %cst_246 = arith.constant dense<0.000000e+00> : vector<2xf32>
    %505 = vector.multi_reduction <add>, %504, %cst_246 [1] : vector<2x32xf32> to vector<2xf32>
    %506 = vector.shape_cast %505 : vector<2xf32> to vector<2x1xf32>
    %507 = tpu.reciprocal %506 {approx = true} : vector<2x1xf32> -> vector<2x1xf32>
    %508 = vector.broadcast %507 : vector<2x1xf32> to vector<2x32xf32>
    %509 = arith.mulf %504, %508 : vector<2x32xf32>
    %510 = arith.truncf %509 : vector<2x32xf32> to vector<2x32xbf16>
    %cst_247 = arith.constant dense<0.000000e+00> : vector<2x32xf32>
    %511 = tpu.matmul %510, %403, %cst_247 {dimension_numbers = #tpu.dot_dimension_numbers<[1], [0], [0], [1], [0, 0, 1, 1], [], []>} : vector<2x32xbf16>, vector<32x32xbf16>, vector<2x32xf32> -> vector<2x32xf32>
    %512 = arith.truncf %493 : vector<2x32xf32> to vector<2x32xbf16>
    %cst_248 = arith.constant dense<0.000000e+00> : vector<2x128xf32>
    %513 = tpu.matmul %512, %406, %cst_248 {dimension_numbers = #tpu.dot_dimension_numbers<[1], [0], [0], [1], [0, 0, 1, 1], [], []>} : vector<2x32xbf16>, vector<32x128xbf16>, vector<2x128xf32> -> vector<2x128xf32>
    %514 = arith.truncf %511 : vector<2x32xf32> to vector<2x32xbf16>
    %cst_249 = arith.constant dense<0.000000e+00> : vector<2x128xf32>
    %515 = tpu.matmul %514, %407, %cst_249 {dimension_numbers = #tpu.dot_dimension_numbers<[1], [0], [0], [1], [0, 0, 1, 1], [], []>} : vector<2x32xbf16>, vector<32x128xbf16>, vector<2x128xf32> -> vector<2x128xf32>
    %516 = arith.addf %513, %515 : vector<2x128xf32>
    %517 = vector.broadcast %408 : vector<1x128xf32> to vector<2x128xf32>
    %518 = arith.addf %516, %517 : vector<2x128xf32>
    %519 = vector.extract_strided_slice %518 {offsets = [0, 0], sizes = [2, 32], strides = [1, 1]} : vector<2x128xf32> to vector<2x32xf32>
    %520 = arith.negf %519 : vector<2x32xf32>
    %521 = math.exp %520 : vector<2x32xf32>
    %cst_250 = arith.constant 1.000000e+00 : f32
    %522 = vector.broadcast %cst_250 : f32 to vector<2x32xf32>
    %523 = arith.addf %522, %521 : vector<2x32xf32>
    %524 = arith.divf %522, %523 : vector<2x32xf32>
    %525 = vector.extract_strided_slice %518 {offsets = [0, 32], sizes = [2, 32], strides = [1, 1]} : vector<2x128xf32> to vector<2x32xf32>
    %526 = arith.negf %525 : vector<2x32xf32>
    %527 = math.exp %526 : vector<2x32xf32>
    %cst_251 = arith.constant 1.000000e+00 : f32
    %528 = vector.broadcast %cst_251 : f32 to vector<2x32xf32>
    %529 = arith.addf %528, %527 : vector<2x32xf32>
    %530 = arith.divf %528, %529 : vector<2x32xf32>
    %531 = vector.extract_strided_slice %518 {offsets = [0, 64], sizes = [2, 32], strides = [1, 1]} : vector<2x128xf32> to vector<2x32xf32>
    %532 = math.tanh %531 : vector<2x32xf32>
    %533 = vector.extract_strided_slice %518 {offsets = [0, 96], sizes = [2, 32], strides = [1, 1]} : vector<2x128xf32> to vector<2x32xf32>
    %534 = arith.negf %533 : vector<2x32xf32>
    %535 = math.exp %534 : vector<2x32xf32>
    %cst_252 = arith.constant 1.000000e+00 : f32
    %536 = vector.broadcast %cst_252 : f32 to vector<2x32xf32>
    %537 = arith.addf %536, %535 : vector<2x32xf32>
    %538 = arith.divf %536, %537 : vector<2x32xf32>
    %539 = arith.mulf %530, %491 : vector<2x32xf32>
    %540 = arith.mulf %524, %532 : vector<2x32xf32>
    %541 = arith.addf %539, %540 : vector<2x32xf32>
    %542 = math.tanh %541 : vector<2x32xf32>
    %543 = arith.mulf %538, %542 : vector<2x32xf32>
    %544 = arith.truncf %543 : vector<2x32xf32> to vector<2x32xbf16>
    %cst_253 = arith.constant dense<0.000000e+00> : vector<2x32xf32>
    %545 = tpu.matmul %544, %405, %cst_253 {dimension_numbers = #tpu.dot_dimension_numbers<[1], [0], [0], [1], [0, 0, 1, 1], [], []>} : vector<2x32xbf16>, vector<32x32xbf16>, vector<2x32xf32> -> vector<2x32xf32>
    %cst_254 = arith.constant 0.000000e+00 : f32
    %546 = vector.broadcast %cst_254 : f32 to vector<2x32xf32>
    %547 = arith.cmpf ogt, %402, %546 : vector<2x32xf32>
    %cst_255 = arith.constant -1.000000e+30 : f32
    %548 = vector.broadcast %cst_255 : f32 to vector<2x32xf32>
    %549 = arith.select %547, %545, %548 : vector<2x32xi1>, vector<2x32xf32>
    %cst_256 = arith.constant dense<0xFF800000> : vector<2xf32>
    %550 = vector.multi_reduction <maximumf>, %549, %cst_256 [1] : vector<2x32xf32> to vector<2xf32>
    %551 = vector.shape_cast %550 : vector<2xf32> to vector<2x1xf32>
    %552 = vector.broadcast %551 : vector<2x1xf32> to vector<2x32xf32>
    %553 = arith.subf %549, %552 : vector<2x32xf32>
    %554 = math.exp %553 : vector<2x32xf32>
    %cst_257 = arith.constant dense<0.000000e+00> : vector<2xf32>
    %555 = vector.multi_reduction <add>, %554, %cst_257 [1] : vector<2x32xf32> to vector<2xf32>
    %556 = vector.shape_cast %555 : vector<2xf32> to vector<2x1xf32>
    %557 = tpu.reciprocal %556 {approx = true} : vector<2x1xf32> -> vector<2x1xf32>
    %558 = vector.broadcast %557 : vector<2x1xf32> to vector<2x32xf32>
    %559 = arith.mulf %554, %558 : vector<2x32xf32>
    %560 = arith.truncf %559 : vector<2x32xf32> to vector<2x32xbf16>
    %cst_258 = arith.constant dense<0.000000e+00> : vector<2x32xf32>
    %561 = tpu.matmul %560, %403, %cst_258 {dimension_numbers = #tpu.dot_dimension_numbers<[1], [0], [0], [1], [0, 0, 1, 1], [], []>} : vector<2x32xbf16>, vector<32x32xbf16>, vector<2x32xf32> -> vector<2x32xf32>
    %562 = arith.truncf %543 : vector<2x32xf32> to vector<2x32xbf16>
    %cst_259 = arith.constant dense<0.000000e+00> : vector<2x128xf32>
    %563 = tpu.matmul %562, %406, %cst_259 {dimension_numbers = #tpu.dot_dimension_numbers<[1], [0], [0], [1], [0, 0, 1, 1], [], []>} : vector<2x32xbf16>, vector<32x128xbf16>, vector<2x128xf32> -> vector<2x128xf32>
    %564 = arith.truncf %561 : vector<2x32xf32> to vector<2x32xbf16>
    %cst_260 = arith.constant dense<0.000000e+00> : vector<2x128xf32>
    %565 = tpu.matmul %564, %407, %cst_260 {dimension_numbers = #tpu.dot_dimension_numbers<[1], [0], [0], [1], [0, 0, 1, 1], [], []>} : vector<2x32xbf16>, vector<32x128xbf16>, vector<2x128xf32> -> vector<2x128xf32>
    %566 = arith.addf %563, %565 : vector<2x128xf32>
    %567 = vector.broadcast %408 : vector<1x128xf32> to vector<2x128xf32>
    %568 = arith.addf %566, %567 : vector<2x128xf32>
    %569 = vector.extract_strided_slice %568 {offsets = [0, 0], sizes = [2, 32], strides = [1, 1]} : vector<2x128xf32> to vector<2x32xf32>
    %570 = arith.negf %569 : vector<2x32xf32>
    %571 = math.exp %570 : vector<2x32xf32>
    %cst_261 = arith.constant 1.000000e+00 : f32
    %572 = vector.broadcast %cst_261 : f32 to vector<2x32xf32>
    %573 = arith.addf %572, %571 : vector<2x32xf32>
    %574 = arith.divf %572, %573 : vector<2x32xf32>
    %575 = vector.extract_strided_slice %568 {offsets = [0, 32], sizes = [2, 32], strides = [1, 1]} : vector<2x128xf32> to vector<2x32xf32>
    %576 = arith.negf %575 : vector<2x32xf32>
    %577 = math.exp %576 : vector<2x32xf32>
    %cst_262 = arith.constant 1.000000e+00 : f32
    %578 = vector.broadcast %cst_262 : f32 to vector<2x32xf32>
    %579 = arith.addf %578, %577 : vector<2x32xf32>
    %580 = arith.divf %578, %579 : vector<2x32xf32>
    %581 = vector.extract_strided_slice %568 {offsets = [0, 64], sizes = [2, 32], strides = [1, 1]} : vector<2x128xf32> to vector<2x32xf32>
    %582 = math.tanh %581 : vector<2x32xf32>
    %583 = vector.extract_strided_slice %568 {offsets = [0, 96], sizes = [2, 32], strides = [1, 1]} : vector<2x128xf32> to vector<2x32xf32>
    %584 = arith.negf %583 : vector<2x32xf32>
    %585 = math.exp %584 : vector<2x32xf32>
    %cst_263 = arith.constant 1.000000e+00 : f32
    %586 = vector.broadcast %cst_263 : f32 to vector<2x32xf32>
    %587 = arith.addf %586, %585 : vector<2x32xf32>
    %588 = arith.divf %586, %587 : vector<2x32xf32>
    %589 = arith.mulf %580, %541 : vector<2x32xf32>
    %590 = arith.mulf %574, %582 : vector<2x32xf32>
    %591 = arith.addf %589, %590 : vector<2x32xf32>
    %592 = math.tanh %591 : vector<2x32xf32>
    %593 = arith.mulf %588, %592 : vector<2x32xf32>
    %594 = arith.truncf %593 : vector<2x32xf32> to vector<2x32xbf16>
    %cst_264 = arith.constant dense<0.000000e+00> : vector<2x32xf32>
    %595 = tpu.matmul %594, %405, %cst_264 {dimension_numbers = #tpu.dot_dimension_numbers<[1], [0], [0], [1], [0, 0, 1, 1], [], []>} : vector<2x32xbf16>, vector<32x32xbf16>, vector<2x32xf32> -> vector<2x32xf32>
    %cst_265 = arith.constant 0.000000e+00 : f32
    %596 = vector.broadcast %cst_265 : f32 to vector<2x32xf32>
    %597 = arith.cmpf ogt, %402, %596 : vector<2x32xf32>
    %cst_266 = arith.constant -1.000000e+30 : f32
    %598 = vector.broadcast %cst_266 : f32 to vector<2x32xf32>
    %599 = arith.select %597, %595, %598 : vector<2x32xi1>, vector<2x32xf32>
    %cst_267 = arith.constant dense<0xFF800000> : vector<2xf32>
    %600 = vector.multi_reduction <maximumf>, %599, %cst_267 [1] : vector<2x32xf32> to vector<2xf32>
    %601 = vector.shape_cast %600 : vector<2xf32> to vector<2x1xf32>
    %602 = vector.broadcast %601 : vector<2x1xf32> to vector<2x32xf32>
    %603 = arith.subf %599, %602 : vector<2x32xf32>
    %604 = math.exp %603 : vector<2x32xf32>
    %cst_268 = arith.constant dense<0.000000e+00> : vector<2xf32>
    %605 = vector.multi_reduction <add>, %604, %cst_268 [1] : vector<2x32xf32> to vector<2xf32>
    %606 = vector.shape_cast %605 : vector<2xf32> to vector<2x1xf32>
    %607 = tpu.reciprocal %606 {approx = true} : vector<2x1xf32> -> vector<2x1xf32>
    %608 = vector.broadcast %607 : vector<2x1xf32> to vector<2x32xf32>
    %609 = arith.mulf %604, %608 : vector<2x32xf32>
    %610 = arith.truncf %609 : vector<2x32xf32> to vector<2x32xbf16>
    %cst_269 = arith.constant dense<0.000000e+00> : vector<2x32xf32>
    %611 = tpu.matmul %610, %403, %cst_269 {dimension_numbers = #tpu.dot_dimension_numbers<[1], [0], [0], [1], [0, 0, 1, 1], [], []>} : vector<2x32xbf16>, vector<32x32xbf16>, vector<2x32xf32> -> vector<2x32xf32>
    %612 = arith.truncf %593 : vector<2x32xf32> to vector<2x32xbf16>
    %cst_270 = arith.constant dense<0.000000e+00> : vector<2x128xf32>
    %613 = tpu.matmul %612, %406, %cst_270 {dimension_numbers = #tpu.dot_dimension_numbers<[1], [0], [0], [1], [0, 0, 1, 1], [], []>} : vector<2x32xbf16>, vector<32x128xbf16>, vector<2x128xf32> -> vector<2x128xf32>
    %614 = arith.truncf %611 : vector<2x32xf32> to vector<2x32xbf16>
    %cst_271 = arith.constant dense<0.000000e+00> : vector<2x128xf32>
    %615 = tpu.matmul %614, %407, %cst_271 {dimension_numbers = #tpu.dot_dimension_numbers<[1], [0], [0], [1], [0, 0, 1, 1], [], []>} : vector<2x32xbf16>, vector<32x128xbf16>, vector<2x128xf32> -> vector<2x128xf32>
    %616 = arith.addf %613, %615 : vector<2x128xf32>
    %617 = vector.broadcast %408 : vector<1x128xf32> to vector<2x128xf32>
    %618 = arith.addf %616, %617 : vector<2x128xf32>
    %619 = vector.extract_strided_slice %618 {offsets = [0, 0], sizes = [2, 32], strides = [1, 1]} : vector<2x128xf32> to vector<2x32xf32>
    %620 = arith.negf %619 : vector<2x32xf32>
    %621 = math.exp %620 : vector<2x32xf32>
    %cst_272 = arith.constant 1.000000e+00 : f32
    %622 = vector.broadcast %cst_272 : f32 to vector<2x32xf32>
    %623 = arith.addf %622, %621 : vector<2x32xf32>
    %624 = arith.divf %622, %623 : vector<2x32xf32>
    %625 = vector.extract_strided_slice %618 {offsets = [0, 32], sizes = [2, 32], strides = [1, 1]} : vector<2x128xf32> to vector<2x32xf32>
    %626 = arith.negf %625 : vector<2x32xf32>
    %627 = math.exp %626 : vector<2x32xf32>
    %cst_273 = arith.constant 1.000000e+00 : f32
    %628 = vector.broadcast %cst_273 : f32 to vector<2x32xf32>
    %629 = arith.addf %628, %627 : vector<2x32xf32>
    %630 = arith.divf %628, %629 : vector<2x32xf32>
    %631 = vector.extract_strided_slice %618 {offsets = [0, 64], sizes = [2, 32], strides = [1, 1]} : vector<2x128xf32> to vector<2x32xf32>
    %632 = math.tanh %631 : vector<2x32xf32>
    %633 = vector.extract_strided_slice %618 {offsets = [0, 96], sizes = [2, 32], strides = [1, 1]} : vector<2x128xf32> to vector<2x32xf32>
    %634 = arith.negf %633 : vector<2x32xf32>
    %635 = math.exp %634 : vector<2x32xf32>
    %cst_274 = arith.constant 1.000000e+00 : f32
    %636 = vector.broadcast %cst_274 : f32 to vector<2x32xf32>
    %637 = arith.addf %636, %635 : vector<2x32xf32>
    %638 = arith.divf %636, %637 : vector<2x32xf32>
    %639 = arith.mulf %630, %591 : vector<2x32xf32>
    %640 = arith.mulf %624, %632 : vector<2x32xf32>
    %641 = arith.addf %639, %640 : vector<2x32xf32>
    %642 = math.tanh %641 : vector<2x32xf32>
    %643 = arith.mulf %638, %642 : vector<2x32xf32>
    %644 = arith.truncf %643 : vector<2x32xf32> to vector<2x32xbf16>
    %cst_275 = arith.constant dense<0.000000e+00> : vector<2x32xf32>
    %645 = tpu.matmul %644, %405, %cst_275 {dimension_numbers = #tpu.dot_dimension_numbers<[1], [0], [0], [1], [0, 0, 1, 1], [], []>} : vector<2x32xbf16>, vector<32x32xbf16>, vector<2x32xf32> -> vector<2x32xf32>
    %cst_276 = arith.constant 0.000000e+00 : f32
    %646 = vector.broadcast %cst_276 : f32 to vector<2x32xf32>
    %647 = arith.cmpf ogt, %402, %646 : vector<2x32xf32>
    %cst_277 = arith.constant -1.000000e+30 : f32
    %648 = vector.broadcast %cst_277 : f32 to vector<2x32xf32>
    %649 = arith.select %647, %645, %648 : vector<2x32xi1>, vector<2x32xf32>
    %cst_278 = arith.constant dense<0xFF800000> : vector<2xf32>
    %650 = vector.multi_reduction <maximumf>, %649, %cst_278 [1] : vector<2x32xf32> to vector<2xf32>
    %651 = vector.shape_cast %650 : vector<2xf32> to vector<2x1xf32>
    %652 = vector.broadcast %651 : vector<2x1xf32> to vector<2x32xf32>
    %653 = arith.subf %649, %652 : vector<2x32xf32>
    %654 = math.exp %653 : vector<2x32xf32>
    %cst_279 = arith.constant dense<0.000000e+00> : vector<2xf32>
    %655 = vector.multi_reduction <add>, %654, %cst_279 [1] : vector<2x32xf32> to vector<2xf32>
    %656 = vector.shape_cast %655 : vector<2xf32> to vector<2x1xf32>
    %657 = tpu.reciprocal %656 {approx = true} : vector<2x1xf32> -> vector<2x1xf32>
    %658 = vector.broadcast %657 : vector<2x1xf32> to vector<2x32xf32>
    %659 = arith.mulf %654, %658 : vector<2x32xf32>
    %660 = arith.truncf %659 : vector<2x32xf32> to vector<2x32xbf16>
    %cst_280 = arith.constant dense<0.000000e+00> : vector<2x32xf32>
    %661 = tpu.matmul %660, %403, %cst_280 {dimension_numbers = #tpu.dot_dimension_numbers<[1], [0], [0], [1], [0, 0, 1, 1], [], []>} : vector<2x32xbf16>, vector<32x32xbf16>, vector<2x32xf32> -> vector<2x32xf32>
    %662 = arith.truncf %643 : vector<2x32xf32> to vector<2x32xbf16>
    %cst_281 = arith.constant dense<0.000000e+00> : vector<2x128xf32>
    %663 = tpu.matmul %662, %406, %cst_281 {dimension_numbers = #tpu.dot_dimension_numbers<[1], [0], [0], [1], [0, 0, 1, 1], [], []>} : vector<2x32xbf16>, vector<32x128xbf16>, vector<2x128xf32> -> vector<2x128xf32>
    %664 = arith.truncf %661 : vector<2x32xf32> to vector<2x32xbf16>
    %cst_282 = arith.constant dense<0.000000e+00> : vector<2x128xf32>
    %665 = tpu.matmul %664, %407, %cst_282 {dimension_numbers = #tpu.dot_dimension_numbers<[1], [0], [0], [1], [0, 0, 1, 1], [], []>} : vector<2x32xbf16>, vector<32x128xbf16>, vector<2x128xf32> -> vector<2x128xf32>
    %666 = arith.addf %663, %665 : vector<2x128xf32>
    %667 = vector.broadcast %408 : vector<1x128xf32> to vector<2x128xf32>
    %668 = arith.addf %666, %667 : vector<2x128xf32>
    %669 = vector.extract_strided_slice %668 {offsets = [0, 0], sizes = [2, 32], strides = [1, 1]} : vector<2x128xf32> to vector<2x32xf32>
    %670 = arith.negf %669 : vector<2x32xf32>
    %671 = math.exp %670 : vector<2x32xf32>
    %cst_283 = arith.constant 1.000000e+00 : f32
    %672 = vector.broadcast %cst_283 : f32 to vector<2x32xf32>
    %673 = arith.addf %672, %671 : vector<2x32xf32>
    %674 = arith.divf %672, %673 : vector<2x32xf32>
    %675 = vector.extract_strided_slice %668 {offsets = [0, 32], sizes = [2, 32], strides = [1, 1]} : vector<2x128xf32> to vector<2x32xf32>
    %676 = arith.negf %675 : vector<2x32xf32>
    %677 = math.exp %676 : vector<2x32xf32>
    %cst_284 = arith.constant 1.000000e+00 : f32
    %678 = vector.broadcast %cst_284 : f32 to vector<2x32xf32>
    %679 = arith.addf %678, %677 : vector<2x32xf32>
    %680 = arith.divf %678, %679 : vector<2x32xf32>
    %681 = vector.extract_strided_slice %668 {offsets = [0, 64], sizes = [2, 32], strides = [1, 1]} : vector<2x128xf32> to vector<2x32xf32>
    %682 = math.tanh %681 : vector<2x32xf32>
    %683 = vector.extract_strided_slice %668 {offsets = [0, 96], sizes = [2, 32], strides = [1, 1]} : vector<2x128xf32> to vector<2x32xf32>
    %684 = arith.negf %683 : vector<2x32xf32>
    %685 = math.exp %684 : vector<2x32xf32>
    %cst_285 = arith.constant 1.000000e+00 : f32
    %686 = vector.broadcast %cst_285 : f32 to vector<2x32xf32>
    %687 = arith.addf %686, %685 : vector<2x32xf32>
    %688 = arith.divf %686, %687 : vector<2x32xf32>
    %689 = arith.mulf %680, %641 : vector<2x32xf32>
    %690 = arith.mulf %674, %682 : vector<2x32xf32>
    %691 = arith.addf %689, %690 : vector<2x32xf32>
    %692 = math.tanh %691 : vector<2x32xf32>
    %693 = arith.mulf %688, %692 : vector<2x32xf32>
    %694 = arith.truncf %693 : vector<2x32xf32> to vector<2x32xbf16>
    %cst_286 = arith.constant dense<0.000000e+00> : vector<2x32xf32>
    %695 = tpu.matmul %694, %405, %cst_286 {dimension_numbers = #tpu.dot_dimension_numbers<[1], [0], [0], [1], [0, 0, 1, 1], [], []>} : vector<2x32xbf16>, vector<32x32xbf16>, vector<2x32xf32> -> vector<2x32xf32>
    %cst_287 = arith.constant 0.000000e+00 : f32
    %696 = vector.broadcast %cst_287 : f32 to vector<2x32xf32>
    %697 = arith.cmpf ogt, %402, %696 : vector<2x32xf32>
    %cst_288 = arith.constant -1.000000e+30 : f32
    %698 = vector.broadcast %cst_288 : f32 to vector<2x32xf32>
    %699 = arith.select %697, %695, %698 : vector<2x32xi1>, vector<2x32xf32>
    %cst_289 = arith.constant dense<0xFF800000> : vector<2xf32>
    %700 = vector.multi_reduction <maximumf>, %699, %cst_289 [1] : vector<2x32xf32> to vector<2xf32>
    %701 = vector.shape_cast %700 : vector<2xf32> to vector<2x1xf32>
    %702 = vector.broadcast %701 : vector<2x1xf32> to vector<2x32xf32>
    %703 = arith.subf %699, %702 : vector<2x32xf32>
    %704 = math.exp %703 : vector<2x32xf32>
    %cst_290 = arith.constant dense<0.000000e+00> : vector<2xf32>
    %705 = vector.multi_reduction <add>, %704, %cst_290 [1] : vector<2x32xf32> to vector<2xf32>
    %706 = vector.shape_cast %705 : vector<2xf32> to vector<2x1xf32>
    %707 = tpu.reciprocal %706 {approx = true} : vector<2x1xf32> -> vector<2x1xf32>
    %708 = vector.broadcast %707 : vector<2x1xf32> to vector<2x32xf32>
    %709 = arith.mulf %704, %708 : vector<2x32xf32>
    %710 = arith.truncf %709 : vector<2x32xf32> to vector<2x32xbf16>
    %cst_291 = arith.constant dense<0.000000e+00> : vector<2x32xf32>
    %711 = tpu.matmul %710, %403, %cst_291 {dimension_numbers = #tpu.dot_dimension_numbers<[1], [0], [0], [1], [0, 0, 1, 1], [], []>} : vector<2x32xbf16>, vector<32x32xbf16>, vector<2x32xf32> -> vector<2x32xf32>
    %c0_292 = arith.constant 0 : index
    %c0_293 = arith.constant 0 : index
    %712 = vector.load %arg16[%c0_292, %c0_293] : memref<32x32xbf16, #tpu.memory_space<vmem>>, vector<32x32xbf16>
    %713 = arith.truncf %693 : vector<2x32xf32> to vector<2x32xbf16>
    %cst_294 = arith.constant dense<0.000000e+00> : vector<2x32xf32>
    %714 = tpu.matmul %713, %712, %cst_294 {dimension_numbers = #tpu.dot_dimension_numbers<[1], [0], [0], [1], [0, 0, 1, 1], [], []>} : vector<2x32xbf16>, vector<32x32xbf16>, vector<2x32xf32> -> vector<2x32xf32>
    %c0_295 = arith.constant 0 : index
    %c0_296 = arith.constant 0 : index
    %715 = vector.load %arg17[%c0_295, %c0_296] : memref<32x32xbf16, #tpu.memory_space<vmem>>, vector<32x32xbf16>
    %716 = arith.truncf %711 : vector<2x32xf32> to vector<2x32xbf16>
    %cst_297 = arith.constant dense<0.000000e+00> : vector<2x32xf32>
    %717 = tpu.matmul %716, %715, %cst_297 {dimension_numbers = #tpu.dot_dimension_numbers<[1], [0], [0], [1], [0, 0, 1, 1], [], []>} : vector<2x32xbf16>, vector<32x32xbf16>, vector<2x32xf32> -> vector<2x32xf32>
    %718 = arith.addf %714, %717 : vector<2x32xf32>
    %c0_298 = arith.constant 0 : index
    %c0_299 = arith.constant 0 : index
    %719 = vector.load %arg18[%c0_298, %c0_299] : memref<1x32xf32, #tpu.memory_space<vmem>>, vector<1x32xf32>
    %720 = vector.broadcast %719 : vector<1x32xf32> to vector<2x32xf32>
    %721 = arith.addf %718, %720 : vector<2x32xf32>
    %cst_300 = arith.constant 0.000000e+00 : f32
    %722 = vector.broadcast %cst_300 : f32 to vector<2x32xf32>
    %723 = arith.maximumf %721, %722 : vector<2x32xf32>
    %c0_301 = arith.constant 0 : index
    %c0_302 = arith.constant 0 : index
    %724 = vector.load %arg19[%c0_301, %c0_302] : memref<32x12xbf16, #tpu.memory_space<vmem>>, vector<32x12xbf16>
    %725 = arith.truncf %723 : vector<2x32xf32> to vector<2x32xbf16>
    %cst_303 = arith.constant dense<0.000000e+00> : vector<2x12xf32>
    %726 = tpu.matmul %725, %724, %cst_303 {dimension_numbers = #tpu.dot_dimension_numbers<[1], [0], [0], [1], [0, 0, 1, 1], [], []>} : vector<2x32xbf16>, vector<32x12xbf16>, vector<2x12xf32> -> vector<2x12xf32>
    %c0_304 = arith.constant 0 : index
    %c0_305 = arith.constant 0 : index
    %727 = vector.load %arg20[%c0_304, %c0_305] : memref<1x12xf32, #tpu.memory_space<vmem>>, vector<1x12xf32>
    %728 = vector.broadcast %727 : vector<1x12xf32> to vector<2x12xf32>
    %729 = arith.addf %726, %728 : vector<2x12xf32>
    %c0_306 = arith.constant 0 : index
    %c0_307 = arith.constant 0 : index
    %730 = vector.load %arg21[%c0_306, %c0_307] : memref<2x12xf32, #tpu.memory_space<vmem>>, vector<2x12xf32>
    tpu.vector_store %arg21[%c0_306, %c0_307], %729 {strides = array<i32>} : memref<2x12xf32, #tpu.memory_space<vmem>>, vector<2x12xf32>,
    return
  }
}

</mosaic_0001>

<llo_original>
// kernel: fwd.1
$region0: #{fwd.1}
  #allocation0 [shape = 'u32[]', space=smem, size = 0x4, offset = 0x4, fixed_abs, tag = 'smem constant byte address 0x4 - core index']
  #allocation1 [shape = 'u32[144,128]{1,0:T(1,128)}', space=vmem, size = 0x12000, scoped, tag = 'internal scratch']
  %s0 = inlined_call_operand.vmem [shape: bf16[128,32], index: 0, kind: input, shape index: {}]
  %s1 = inlined_call_operand.hbm [shape: f32[32,83], index: 1, kind: input, shape index: {}]
  %s2 = inlined_call_operand.vmem [shape: f32[2,32], index: 2, kind: input, shape index: {}]
  %s3 = inlined_call_operand.hbm [shape: bf16[83,128], index: 3, kind: input, shape index: {}]
  %s4 = inlined_call_operand.vmem [shape: bf16[5,32,128], index: 4, kind: input, shape index: {}]
  %s5 = inlined_call_operand.vmem [shape: f32[6,1,128], index: 5, kind: input, shape index: {}]
  %s6 = inlined_call_operand.hbm [shape: f32[6,1,128], index: 6, kind: input, shape index: {}]
  %s7 = inlined_call_operand.vmem [shape: bf16[6,128,128], index: 7, kind: input, shape index: {}]
  %s8 = inlined_call_operand.hbm [shape: f32[6,1,128], index: 8, kind: input, shape index: {}]
  %s9 = inlined_call_operand.hbm [shape: bf16[6,128,32], index: 9, kind: input, shape index: {}]
  %s10 = inlined_call_operand.hbm [shape: f32[6,1,32], index: 10, kind: input, shape index: {}]
  %s11 = inlined_call_operand.hbm [shape: bf16[6,32,32], index: 11, kind: input, shape index: {}]
  %s12 = inlined_call_operand.hbm [shape: f32[6,1,32], index: 12, kind: input, shape index: {}]
  %s13 = inlined_call_operand.hbm [shape: bf16[32,128], index: 13, kind: input, shape index: {}]
  %s14 = inlined_call_operand.hbm [shape: bf16[32,128], index: 14, kind: input, shape index: {}]
  %s15 = inlined_call_operand.vmem [shape: f32[1,128], index: 15, kind: input, shape index: {}]
  %s16 = inlined_call_operand.hbm [shape: bf16[32,32], index: 16, kind: input, shape index: {}]
  %s17 = inlined_call_operand.hbm [shape: bf16[32,32], index: 17, kind: input, shape index: {}]
  %s18 = inlined_call_operand.vmem [shape: f32[1,32], index: 18, kind: input, shape index: {}]
  %s19 = inlined_call_operand.hbm [shape: bf16[32,12], index: 19, kind: input, shape index: {}]
  %s20 = inlined_call_operand.vmem [shape: f32[1,12], index: 20, kind: input, shape index: {}]
  %s21 = inlined_call_operand.hbm [shape: f32[2,12], index: 21, kind: output, shape index: {}]
  %s22 = sld [smem:[#allocation0]]
  $region146: #{fwd.1} parent=0
    _
  %s24 = ssub.s32 1, %s22
  %s25 = scalar_select 0, %s24, %s22
  $region1: #{fwd.1} parent=0
    #allocation2 [shape = 'u8[16384]{0}', space=vmem, size = 0x4000, scoped, tag = 'input window, operand 1, single buffered']
    #allocation3 [shape = 's32[1]{0}', space=sflag, size = 0x4, scoped, tag = 'scoped memory for fwd.1']
    #allocation4 [shape = 's32[1]{0}', space=sflag, size = 0x4, scoped, tag = 'scoped memory for fwd.1']
    #allocation5 [shape = 'u8[22528]{0}', space=vmem, size = 0x5800, scoped, tag = 'input window, operand 3, single buffered']
    #allocation6 [shape = 's32[1]{0}', space=sflag, size = 0x4, scoped, tag = 'scoped memory for fwd.1']
    #allocation7 [shape = 'u8[3072]{0}', space=vmem, size = 0xc00, scoped, tag = 'input window, operand 6, single buffered']
    #allocation8 [shape = 'u8[3072]{0}', space=vmem, size = 0xc00, scoped, tag = 'input window, operand 8, single buffered']
    #allocation9 [shape = 's32[1]{0}', space=sflag, size = 0x4, scoped, tag = 'scoped memory for fwd.1']
    #allocation10 [shape = 'u8[196608]{0}', space=vmem, size = 0x30000, scoped, tag = 'input window, operand 9, single buffered']
    #allocation11 [shape = 'u8[3072]{0}', space=vmem, size = 0xc00, scoped, tag = 'input window, operand 10, single buffered']
    #allocation12 [shape = 's32[1]{0}', space=sflag, size = 0x4, scoped, tag = 'scoped memory for fwd.1']
    #allocation13 [shape = 'u8[49152]{0}', space=vmem, size = 0xc000, scoped, tag = 'input window, operand 11, single buffered']
    #allocation14 [shape = 'u8[3072]{0}', space=vmem, size = 0xc00, scoped, tag = 'input window, operand 12, single buffered']
    #allocation15 [shape = 's32[1]{0}', space=sflag, size = 0x4, scoped, tag = 'scoped memory for fwd.1']
    #allocation16 [shape = 'u8[8192]{0}', space=vmem, size = 0x2000, scoped, tag = 'input window, operand 13, single buffered']
    #allocation17 [shape = 'u8[8192]{0}', space=vmem, size = 0x2000, scoped, tag = 'input window, operand 14, single buffered']
    #allocation18 [shape = 's32[1]{0}', space=sflag, size = 0x4, scoped, tag = 'scoped memory for fwd.1']
    #allocation19 [shape = 'u8[8192]{0}', space=vmem, size = 0x2000, scoped, tag = 'input window, operand 16, single buffered']
    #allocation20 [shape = 'u8[8192]{0}', space=vmem, size = 0x2000, scoped, tag = 'input window, operand 17, single buffered']
    #allocation21 [shape = 's32[1]{0}', space=sflag, size = 0x4, scoped, tag = 'scoped memory for fwd.1']
    #allocation22 [shape = 'u8[8192]{0}', space=vmem, size = 0x2000, scoped, tag = 'input window, operand 19, single buffered']
    #allocation23 [shape = 'u8[1024]{0}', space=vmem, size = 0x400, scoped, tag = 'output window, operand 0, single buffered']
    %26 = vsyncpa [#allocation3], 0
    %27 = vsyncpa [#allocation6], 0
    %28 = vsyncpa [#allocation9], 0
    %29 = vsyncpa [#allocation12], 0
    %30 = vsyncpa [#allocation15], 0
    %31 = vsyncpa [#allocation18], 0
    %32 = vsyncpa [#allocation21], 0
    %33 = vsyncpa [#allocation4], 0
    // Predicated region
    $region2: #{fwd.1} parent=1 // pred_check
      _
    $region3: #{fwd.1} parent=1 // pred_check_branch
      %35 = sbr.rel (0) target = $region5
    $region4: #{fwd.1} parent=1 // pred_region
      _
    $region5: #{fwd.1} parent=1 // pred_fallthru
      _
    // Predicated region
    $region6: #{fwd.1} parent=1 // pred_check
      _
    $region7: #{fwd.1} parent=1 // pred_check_branch
      %37 = sbr.rel (0) target = $region9
    $region8: #{fwd.1} parent=1 // pred_region
      %s39 = ssub.s32 512, 512
      %40 = vsyncadd [#allocation3], %s39
      %s41 = sshll.u32 [#allocation2], 4
      %s42 = int_to_ptr.vmem [resolvable:$true] %s41
      %47 = dma.hbm_to_vmem [thread:$0]  %s1, 512, %s42, [#allocation3], 128, 128, 8
    $region9: #{fwd.1} parent=1 // pred_fallthru
      _
    // Predicated region
    $region10: #{fwd.1} parent=1 // pred_check
      _
    $region11: #{fwd.1} parent=1 // pred_check_branch
      %49 = sbr.rel (0) target = $region13
    $region12: #{fwd.1} parent=1 // pred_region
      _
    $region13: #{fwd.1} parent=1 // pred_fallthru
      _
    // Predicated region
    $region14: #{fwd.1} parent=1 // pred_check
      _
    $region15: #{fwd.1} parent=1 // pred_check_branch
      %51 = sbr.rel (0) target = $region17
    $region16: #{fwd.1} parent=1 // pred_region
      %s53 = ssub.s32 704, 704
      %54 = vsyncadd [#allocation6], %s53
      %s55 = sshll.u32 [#allocation5], 4
      %s56 = int_to_ptr.vmem [resolvable:$true] %s55
      %61 = dma.hbm_to_vmem [thread:$0]  %s3, 704, %s56, [#allocation6], 64, 64, 4
    $region17: #{fwd.1} parent=1 // pred_fallthru
      _
    // Predicated region
    $region18: #{fwd.1} parent=1 // pred_check
      _
    $region19: #{fwd.1} parent=1 // pred_check_branch
      %63 = sbr.rel (0) target = $region21
    $region20: #{fwd.1} parent=1 // pred_region
      _
    $region21: #{fwd.1} parent=1 // pred_fallthru
      _
    // Predicated region
    $region22: #{fwd.1} parent=1 // pred_check
      _
    $region23: #{fwd.1} parent=1 // pred_check_branch
      %65 = sbr.rel (0) target = $region25
    $region24: #{fwd.1} parent=1 // pred_region
      _
    $region25: #{fwd.1} parent=1 // pred_fallthru
      _
    // Predicated region
    $region26: #{fwd.1} parent=1 // pred_check
      _
    $region27: #{fwd.1} parent=1 // pred_check_branch
      %67 = sbr.rel (0) target = $region29
    $region28: #{fwd.1} parent=1 // pred_region
      %s69 = ssub.s32 96, 96
      %70 = vsyncadd [#allocation6], %s69
      %s71 = sshll.u32 [#allocation7], 4
      %s72 = int_to_ptr.vmem [resolvable:$true] %s71
      %77 = dma.hbm_to_vmem [thread:$0]  %s6, 96, %s72, [#allocation6], 16, 16, 1
    $region29: #{fwd.1} parent=1 // pred_fallthru
      _
    // Predicated region
    $region30: #{fwd.1} parent=1 // pred_check
      _
    $region31: #{fwd.1} parent=1 // pred_check_branch
      %79 = sbr.rel (0) target = $region33
    $region32: #{fwd.1} parent=1 // pred_region
      _
    $region33: #{fwd.1} parent=1 // pred_fallthru
      _
    // Predicated region
    $region34: #{fwd.1} parent=1 // pred_check
      _
    $region35: #{fwd.1} parent=1 // pred_check_branch
      %81 = sbr.rel (0) target = $region37
    $region36: #{fwd.1} parent=1 // pred_region
      %s83 = ssub.s32 96, 96
      %84 = vsyncadd [#allocation9], %s83
      %s85 = sshll.u32 [#allocation8], 4
      %s86 = int_to_ptr.vmem [resolvable:$true] %s85
      %91 = dma.hbm_to_vmem [thread:$0]  %s8, 96, %s86, [#allocation9], 16, 16, 1
    $region37: #{fwd.1} parent=1 // pred_fallthru
      _
    // Predicated region
    $region38: #{fwd.1} parent=1 // pred_check
      _
    $region39: #{fwd.1} parent=1 // pred_check_branch
      %93 = sbr.rel (0) target = $region41
    $region40: #{fwd.1} parent=1 // pred_region
      %s95 = ssub.s32 6144, 6144
      %96 = vsyncadd [#allocation9], %s95
      %s97 = sshll.u32 [#allocation10], 4
      %s98 = int_to_ptr.vmem [resolvable:$true] %s97
      %103 = dma.hbm_to_vmem [thread:$0]  %s9, 6144, %s98, [#allocation9], 64, 64, 4
    $region41: #{fwd.1} parent=1 // pred_fallthru
      _
    // Predicated region
    $region42: #{fwd.1} parent=1 // pred_check
      _
    $region43: #{fwd.1} parent=1 // pred_check_branch
      %105 = sbr.rel (0) target = $region45
    $region44: #{fwd.1} parent=1 // pred_region
      %s107 = ssub.s32 96, 96
      %108 = vsyncadd [#allocation12], %s107
      %s109 = sshll.u32 [#allocation11], 4
      %s110 = int_to_ptr.vmem [resolvable:$true] %s109
      %115 = dma.hbm_to_vmem [thread:$0]  %s10, 96, %s110, [#allocation12], 16, 16, 1
    $region45: #{fwd.1} parent=1 // pred_fallthru
      _
    // Predicated region
    $region46: #{fwd.1} parent=1 // pred_check
      _
    $region47: #{fwd.1} parent=1 // pred_check_branch
      %117 = sbr.rel (0) target = $region49
    $region48: #{fwd.1} parent=1 // pred_region
      %s119 = ssub.s32 1536, 1536
      %120 = vsyncadd [#allocation12], %s119
      %s121 = sshll.u32 [#allocation13], 4
      %s122 = int_to_ptr.vmem [resolvable:$true] %s121
      %127 = dma.hbm_to_vmem [thread:$0]  %s11, 1536, %s122, [#allocation12], 64, 64, 4
    $region49: #{fwd.1} parent=1 // pred_fallthru
      _
    // Predicated region
    $region50: #{fwd.1} parent=1 // pred_check
      _
    $region51: #{fwd.1} parent=1 // pred_check_branch
      %129 = sbr.rel (0) target = $region53
    $region52: #{fwd.1} parent=1 // pred_region
      %s131 = ssub.s32 96, 96
      %132 = vsyncadd [#allocation15], %s131
      %s133 = sshll.u32 [#allocation14], 4
      %s134 = int_to_ptr.vmem [resolvable:$true] %s133
      %139 = dma.hbm_to_vmem [thread:$0]  %s12, 96, %s134, [#allocation15], 16, 16, 1
    $region53: #{fwd.1} parent=1 // pred_fallthru
      _
    // Predicated region
    $region54: #{fwd.1} parent=1 // pred_check
      _
    $region55: #{fwd.1} parent=1 // pred_check_branch
      %141 = sbr.rel (0) target = $region57
    $region56: #{fwd.1} parent=1 // pred_region
      %s143 = ssub.s32 256, 256
      %144 = vsyncadd [#allocation15], %s143
      %s145 = sshll.u32 [#allocation16], 4
      %s146 = int_to_ptr.vmem [resolvable:$true] %s145
      %151 = dma.hbm_to_vmem [thread:$0]  %s13, 256, %s146, [#allocation15], 64, 64, 4
    $region57: #{fwd.1} parent=1 // pred_fallthru
      _
    // Predicated region
    $region58: #{fwd.1} parent=1 // pred_check
      _
    $region59: #{fwd.1} parent=1 // pred_check_branch
      %153 = sbr.rel (0) target = $region61
    $region60: #{fwd.1} parent=1 // pred_region
      %s155 = ssub.s32 256, 256
      %156 = vsyncadd [#allocation18], %s155
      %s157 = sshll.u32 [#allocation17], 4
      %s158 = int_to_ptr.vmem [resolvable:$true] %s157
      %163 = dma.hbm_to_vmem [thread:$0]  %s14, 256, %s158, [#allocation18], 64, 64, 4
    $region61: #{fwd.1} parent=1 // pred_fallthru
      _
    // Predicated region
    $region62: #{fwd.1} parent=1 // pred_check
      _
    $region63: #{fwd.1} parent=1 // pred_check_branch
      %165 = sbr.rel (0) target = $region65
    $region64: #{fwd.1} parent=1 // pred_region
      _
    $region65: #{fwd.1} parent=1 // pred_fallthru
      _
    // Predicated region
    $region66: #{fwd.1} parent=1 // pred_check
      _
    $region67: #{fwd.1} parent=1 // pred_check_branch
      %167 = sbr.rel (0) target = $region69
    $region68: #{fwd.1} parent=1 // pred_region
      %s169 = ssub.s32 256, 256
      %170 = vsyncadd [#allocation18], %s169
      %s171 = sshll.u32 [#allocation19], 4
      %s172 = int_to_ptr.vmem [resolvable:$true] %s171
      %177 = dma.hbm_to_vmem [thread:$0]  %s16, 256, %s172, [#allocation18], 64, 64, 4
    $region69: #{fwd.1} parent=1 // pred_fallthru
      _
    // Predicated region
    $region70: #{fwd.1} parent=1 // pred_check
      _
    $region71: #{fwd.1} parent=1 // pred_check_branch
      %179 = sbr.rel (0) target = $region73
    $region72: #{fwd.1} parent=1 // pred_region
      %s181 = ssub.s32 256, 256
      %182 = vsyncadd [#allocation21], %s181
      %s183 = sshll.u32 [#allocation20], 4
      %s184 = int_to_ptr.vmem [resolvable:$true] %s183
      %189 = dma.hbm_to_vmem [thread:$0]  %s17, 256, %s184, [#allocation21], 64, 64, 4
    $region73: #{fwd.1} parent=1 // pred_fallthru
      _
    // Predicated region
    $region74: #{fwd.1} parent=1 // pred_check
      _
    $region75: #{fwd.1} parent=1 // pred_check_branch
      %191 = sbr.rel (0) target = $region77
    $region76: #{fwd.1} parent=1 // pred_region
      _
    $region77: #{fwd.1} parent=1 // pred_fallthru
      _
    // Predicated region
    $region78: #{fwd.1} parent=1 // pred_check
      _
    $region79: #{fwd.1} parent=1 // pred_check_branch
      %193 = sbr.rel (0) target = $region81
    $region80: #{fwd.1} parent=1 // pred_region
      %s195 = ssub.s32 256, 256
      %196 = vsyncadd [#allocation21], %s195
      %s197 = sshll.u32 [#allocation22], 4
      %s198 = int_to_ptr.vmem [resolvable:$true] %s197
      %203 = dma.hbm_to_vmem [thread:$0]  %s19, 256, %s198, [#allocation21], 64, 64, 4
    $region81: #{fwd.1} parent=1 // pred_fallthru
      _
    // Predicated region
    $region82: #{fwd.1} parent=1 // pred_check
      _
    $region83: #{fwd.1} parent=1 // pred_check_branch
      %205 = sbr.rel (0) target = $region85
    $region84: #{fwd.1} parent=1 // pred_region
      _
    $region85: #{fwd.1} parent=1 // pred_fallthru
      _
    // Predicated region
    $region86: #{fwd.1} parent=1 // pred_check
      _
    $region87: #{fwd.1} parent=1 // pred_check_branch
      %207 = sbr.rel (0) target = $region89
    $region88: #{fwd.1} parent=1 // pred_region
      %208 = dma.done [#allocation3], 512
    $region89: #{fwd.1} parent=1 // pred_fallthru
      _
    // Predicated region
    $region90: #{fwd.1} parent=1 // pred_check
      _
    $region91: #{fwd.1} parent=1 // pred_check_branch
      %210 = sbr.rel (0) target = $region93
    $region92: #{fwd.1} parent=1 // pred_region
      %211 = dma.done [#allocation6], 704
    $region93: #{fwd.1} parent=1 // pred_fallthru
      _
    // Predicated region
    $region94: #{fwd.1} parent=1 // pred_check
      _
    $region95: #{fwd.1} parent=1 // pred_check_branch
      %213 = sbr.rel (0) target = $region97
    $region96: #{fwd.1} parent=1 // pred_region
      %214 = dma.done [#allocation6], 96
    $region97: #{fwd.1} parent=1 // pred_fallthru
      _
    // Predicated region
    $region98: #{fwd.1} parent=1 // pred_check
      _
    $region99: #{fwd.1} parent=1 // pred_check_branch
      %216 = sbr.rel (0) target = $region101
    $region100: #{fwd.1} parent=1 // pred_region
      %217 = dma.done [#allocation9], 96
    $region101: #{fwd.1} parent=1 // pred_fallthru
      _
    // Predicated region
    $region102: #{fwd.1} parent=1 // pred_check
      _
    $region103: #{fwd.1} parent=1 // pred_check_branch
      %219 = sbr.rel (0) target = $region105
    $region104: #{fwd.1} parent=1 // pred_region
      %220 = dma.done [#allocation9], 6144
    $region105: #{fwd.1} parent=1 // pred_fallthru
      _
    // Predicated region
    $region106: #{fwd.1} parent=1 // pred_check
      _
    $region107: #{fwd.1} parent=1 // pred_check_branch
      %222 = sbr.rel (0) target = $region109
    $region108: #{fwd.1} parent=1 // pred_region
      %223 = dma.done [#allocation12], 96
    $region109: #{fwd.1} parent=1 // pred_fallthru
      _
    // Predicated region
    $region110: #{fwd.1} parent=1 // pred_check
      _
    $region111: #{fwd.1} parent=1 // pred_check_branch
      %225 = sbr.rel (0) target = $region113
    $region112: #{fwd.1} parent=1 // pred_region
      %226 = dma.done [#allocation12], 1536
    $region113: #{fwd.1} parent=1 // pred_fallthru
      _
    // Predicated region
    $region114: #{fwd.1} parent=1 // pred_check
      _
    $region115: #{fwd.1} parent=1 // pred_check_branch
      %228 = sbr.rel (0) target = $region117
    $region116: #{fwd.1} parent=1 // pred_region
      %229 = dma.done [#allocation15], 96
    $region117: #{fwd.1} parent=1 // pred_fallthru
      _
    // Predicated region
    $region118: #{fwd.1} parent=1 // pred_check
      _
    $region119: #{fwd.1} parent=1 // pred_check_branch
      %231 = sbr.rel (0) target = $region121
    $region120: #{fwd.1} parent=1 // pred_region
      %232 = dma.done [#allocation15], 256
    $region121: #{fwd.1} parent=1 // pred_fallthru
      _
    // Predicated region
    $region122: #{fwd.1} parent=1 // pred_check
      _
    $region123: #{fwd.1} parent=1 // pred_check_branch
      %234 = sbr.rel (0) target = $region125
    $region124: #{fwd.1} parent=1 // pred_region
      %235 = dma.done [#allocation18], 256
    $region125: #{fwd.1} parent=1 // pred_fallthru
      _
    // Predicated region
    $region126: #{fwd.1} parent=1 // pred_check
      _
    $region127: #{fwd.1} parent=1 // pred_check_branch
      %237 = sbr.rel (0) target = $region129
    $region128: #{fwd.1} parent=1 // pred_region
      %238 = dma.done [#allocation18], 256
    $region129: #{fwd.1} parent=1 // pred_fallthru
      _
    // Predicated region
    $region130: #{fwd.1} parent=1 // pred_check
      _
    $region131: #{fwd.1} parent=1 // pred_check_branch
      %240 = sbr.rel (0) target = $region133
    $region132: #{fwd.1} parent=1 // pred_region
      %241 = dma.done [#allocation21], 256
    $region133: #{fwd.1} parent=1 // pred_fallthru
      _
    // Predicated region
    $region134: #{fwd.1} parent=1 // pred_check
      _
    $region135: #{fwd.1} parent=1 // pred_check_branch
      %243 = sbr.rel (0) target = $region137
    $region136: #{fwd.1} parent=1 // pred_region
      %244 = dma.done [#allocation21], 256
    $region137: #{fwd.1} parent=1 // pred_fallthru
      _
    %v246 = vld [vmem:[%s0] sm:$0xf]
    %v247 = vld [vmem:[%s0 + $0x4] sm:$0xf]
    %v248 = vld [vmem:[%s0 + $0x8] sm:$0xf]
    %v249 = vld [vmem:[%s0 + $0xc] sm:$0xf]
    %v250 = vld [vmem:[%s0 + $0x10] sm:$0xf]
    %v251 = vld [vmem:[%s0 + $0x14] sm:$0xf]
    %v252 = vld [vmem:[%s0 + $0x18] sm:$0xf]
    %v253 = vld [vmem:[%s0 + $0x1c] sm:$0xf]
    %v254 = vld [vmem:[%s0 + $0x20] sm:$0xf]
    %v255 = vld [vmem:[%s0 + $0x24] sm:$0xf]
    %v256 = vld [vmem:[%s0 + $0x28] sm:$0xf]
    %v257 = vld [vmem:[%s0 + $0x2c] sm:$0xf]
    %v258 = vld [vmem:[%s0 + $0x30] sm:$0xf]
    %v259 = vld [vmem:[%s0 + $0x34] sm:$0xf]
    %v260 = vld [vmem:[%s0 + $0x38] sm:$0xf]
    %v261 = vld [vmem:[%s0 + $0x3c] sm:$0xf]
    %v262 = vld [vmem:[#allocation2] sm:$0xff]
    %v263 = vld [vmem:[#allocation2 + $0x8] sm:$0xff]
    %v264 = vld [vmem:[#allocation2 + $0x10] sm:$0xff]
    %v265 = vld [vmem:[#allocation2 + $0x18] sm:$0xff]
    %v266 = vlaneseq
    %v267 = vand.u32 %v266, 127
    %vm268 = vcmp.ge.s32.totalorder %v267, 0
    %vm269 = vcmp.lt.s32.totalorder %v267, 32
    %vm270 = vmand %vm268, %vm269
    %v271 = vsel %vm270, 1, 0
    %v272 = vcvt.s32.f32 %v271
    %vm273 = vcmp.ge.s32.totalorder %v267, 32
    %vm274 = vcmp.lt.s32.totalorder %v267, 64
    %vm275 = vmand %vm273, %vm274
    %v276 = vsel %vm275, 1, 0
    %v277 = vcvt.s32.f32 %v276
    %vm278 = vcmp.ge.s32.totalorder %v267, 64
    %vm279 = vcmp.lt.s32.totalorder %v267, 96
    %vm280 = vmand %vm278, %vm279
    %v281 = vsel %vm280, 1, 0
    %v282 = vcvt.s32.f32 %v281
    %vm283 = vcmp.ge.s32.totalorder %v267, 96
    %vm284 = vcmp.lt.s32.totalorder %v267, 128
    %vm285 = vmand %vm283, %vm284
    %v286 = vsel %vm285, 1, 0
    %v287 = vcvt.s32.f32 %v286
    %v288 = vld [vmem:[#allocation5] sm:$0xf]
    %v289 = vld [vmem:[#allocation5 + $0x4] sm:$0xf]
    %v290 = vld [vmem:[#allocation5 + $0x8] sm:$0xf]
    %v291 = vld [vmem:[#allocation5 + $0xc] sm:$0xf]
    %v292 = vld [vmem:[#allocation5 + $0x10] sm:$0xf]
    %v293 = vld [vmem:[#allocation5 + $0x14] sm:$0xf]
    %v294 = vld [vmem:[#allocation5 + $0x18] sm:$0xf]
    %v295 = vld [vmem:[#allocation5 + $0x1c] sm:$0xf]
    %v296 = vld [vmem:[#allocation5 + $0x20] sm:$0xf]
    %v297 = vld [vmem:[#allocation5 + $0x24] sm:$0xf]
    %v298 = vld [vmem:[#allocation5 + $0x28] sm:$0x3]
    %v299 = vpack.c.bf16 %v263, %v262
    %v300 = vpack.c.bf16 %v265, %v264
    %v312 = vunpack.c.l.b16 %v288
    %v313 = vunpack.c.l.b16 %v289
    %v314 = vunpack.c.l.b16 %v290
    %v315 = vunpack.c.l.b16 %v291
    %v316 = vunpack.c.l.b16 %v292
    %v317 = vunpack.c.l.b16 %v293
    %v318 = vunpack.c.l.b16 %v294
    %v319 = vunpack.c.l.b16 %v295
    %v320 = vunpack.c.l.b16 %v296
    %v321 = vunpack.c.l.b16 %v297
    %v322 = vunpack.c.l.b16 %v298
    %v323 = vpack.c.b16 %v313, %v312
    %v324 = vpack.c.b16 %v315, %v314
    %v325 = vpack.c.b16 %v317, %v316
    %v326 = vpack.c.b16 %v319, %v318
    %v327 = vpack.c.b16 %v321, %v320
    %v328 = vpack.c.b16 %v322, %v322
    %vm334 = vcmask 678912
    %v336 = vsel %vm334, %v299, 0
    %v339 = vsel %vm334, %v300, 0
    %vm341 = vcmask 1040384
    %vm342 = vcmask 1041408
    %v343 = vsel %vm341, 4294967295, 65535
    %v344 = vsel %vm342, %v343, 0
    %v346 = vand.u32 %v328, %v344
    %348 = vmatprep.subr.bf16.mxu0 0
    %349 = vmatpush1.bf16.msra.mxu0 %v323
    %350 = vmatprep.subr.bf16.mxu0 0
    %351 = vmatpush1.bf16.msra.mxu0 %v324
    %352 = vmatprep.subr.bf16.mxu0 0
    %353 = vmatpush1.bf16.msra.mxu0 %v325
    %354 = vmatprep.subr.bf16.mxu0 0
    %355 = vmatpush1.bf16.msra.mxu0 %v326
    %356 = vmatprep.subr.bf16.mxu0 0
    %357 = vmatpush1.bf16.msra.mxu0 %v327
    %358 = vmatprep.subr.bf16.mxu0 0
    %359 = vmatpush1.bf16.msra.mxu0 %v346
    %360 = vmatprep.subr.bf16.mxu0 0
    %361 = vmatpush1.bf16.msra.mxu0 0
    %362 = vmatprep.subr.bf16.mxu0 0
    %363 = vmatpush1.bf16.msra.mxu0 0
    %364 = vmatprep.subr.bf16.mxu0 0
    %365 = vmatpush1.bf16.msra.mxu0 0
    %366 = vmatprep.subr.bf16.mxu0 0
    %367 = vmatpush1.bf16.msra.mxu0 0
    %368 = vmatprep.subr.bf16.mxu0 0
    %369 = vmatpush1.bf16.msra.mxu0 0
    %370 = vmatprep.subr.bf16.mxu0 0
    %371 = vmatpush1.bf16.msra.mxu0 0
    %372 = vmatprep.subr.bf16.mxu0 0
    %373 = vmatpush1.bf16.msra.mxu0 0
    %374 = vmatprep.subr.bf16.mxu0 0
    %375 = vmatpush1.bf16.msra.mxu0 0
    %376 = vmatprep.subr.bf16.mxu0 0
    %377 = vmatpush1.bf16.msra.mxu0 0
    %378 = vmatprep.subr.bf16.mxu0 0
    %379 = vmatpush1.bf16.msra.mxu0 0
    %380 = vmatprep.mubr.bf16.mxu0 0
    %381 = vmatmul.mubr.bf16.gmra.mrb[0].mxu0 %v336
    %v382 = vpop.f32.mrb[0].mxu0
    %v383 = vadd.f32 0.0, %v382
    %v384 = vpop.f32.mrb[0].mxu0
    %v385 = vpop.f32.mrb[0].mxu0
    %v386 = vadd.f32 0.0, %v385
    %v387 = vpop.f32.mrb[0].mxu0
    %388 = vmatprep.mubr.bf16.mxu0 0
    %389 = vmatmul.mubr.bf16.gmra.mrb[0].mxu0 %v339
    %v390 = vpop.f32.mrb[0].mxu0
    %v391 = vadd.f32 0.0, %v390
    %v392 = vpop.f32.mrb[0].mxu0
    %v393 = vpop.f32.mrb[0].mxu0
    %v394 = vadd.f32 0.0, %v393
    %v395 = vpop.f32.mrb[0].mxu0
    %396 = vdwg.mxu0
    %v397 = vpack.c.bf16 %v386, %v383
    %v398 = vpack.c.bf16 %v394, %v391
    %v415 = vunpack.c.l.b16 %v246
    %v416 = vunpack.c.l.b16 %v247
    %v417 = vunpack.c.l.b16 %v248
    %v418 = vunpack.c.l.b16 %v249
    %v419 = vunpack.c.l.b16 %v250
    %v420 = vunpack.c.l.b16 %v251
    %v421 = vunpack.c.l.b16 %v252
    %v422 = vunpack.c.l.b16 %v253
    %v423 = vunpack.c.l.b16 %v254
    %v424 = vunpack.c.l.b16 %v255
    %v425 = vunpack.c.l.b16 %v256
    %v426 = vunpack.c.l.b16 %v257
    %v427 = vunpack.c.l.b16 %v258
    %v428 = vunpack.c.l.b16 %v259
    %v429 = vunpack.c.l.b16 %v260
    %v430 = vunpack.c.l.b16 %v261
    %v431 = vpack.c.b16 %v416, %v415
    %v432 = vpack.c.b16 %v418, %v417
    %v433 = vpack.c.b16 %v420, %v419
    %v434 = vpack.c.b16 %v422, %v421
    %v435 = vpack.c.b16 %v424, %v423
    %v436 = vpack.c.b16 %v426, %v425
    %v437 = vpack.c.b16 %v428, %v427
    %v438 = vpack.c.b16 %v430, %v429
    %vm439 = vcmask 261120
    %v441 = vsel %vm439, %v431, 0
    %v444 = vsel %vm439, %v432, 0
    %v447 = vsel %vm439, %v433, 0
    %v450 = vsel %vm439, %v434, 0
    %v453 = vsel %vm439, %v435, 0
    %v456 = vsel %vm439, %v436, 0
    %v459 = vsel %vm439, %v437, 0
    %v462 = vsel %vm439, %v438, 0
    %464 = vmatprep.subr.bf16.mxu0 0
    %465 = vmatpush1.bf16.msra.mxu0 %v397
    %466 = vmatprep.subr.bf16.mxu0 0
    %467 = vmatpush1.bf16.msra.mxu0 %v398
    %468 = vmatprep.subr.bf16.mxu0 0
    %469 = vmatpush1.bf16.msra.mxu0 0
    %470 = vmatprep.subr.bf16.mxu0 0
    %471 = vmatpush1.bf16.msra.mxu0 0
    %472 = vmatprep.subr.bf16.mxu0 0
    %473 = vmatpush1.bf16.msra.mxu0 0
    %474 = vmatprep.subr.bf16.mxu0 0
    %475 = vmatpush1.bf16.msra.mxu0 0
    %476 = vmatprep.subr.bf16.mxu0 0
    %477 = vmatpush1.bf16.msra.mxu0 0
    %478 = vmatprep.subr.bf16.mxu0 0
    %479 = vmatpush1.bf16.msra.mxu0 0
    %480 = vmatprep.subr.bf16.mxu0 0
    %481 = vmatpush1.bf16.msra.mxu0 0
    %482 = vmatprep.subr.bf16.mxu0 0
    %483 = vmatpush1.bf16.msra.mxu0 0
    %484 = vmatprep.subr.bf16.mxu0 0
    %485 = vmatpush1.bf16.msra.mxu0 0
    %486 = vmatprep.subr.bf16.mxu0 0
    %487 = vmatpush1.bf16.msra.mxu0 0
    %488 = vmatprep.subr.bf16.mxu0 0
    %489 = vmatpush1.bf16.msra.mxu0 0
    %490 = vmatprep.subr.bf16.mxu0 0
    %491 = vmatpush1.bf16.msra.mxu0 0
    %492 = vmatprep.subr.bf16.mxu0 0
    %493 = vmatpush1.bf16.msra.mxu0 0
    %494 = vmatprep.subr.bf16.mxu0 0
    %495 = vmatpush1.bf16.msra.mxu0 0
    %496 = vmatprep.mubr.bf16.mxu0 0
    %497 = vmatmul.mubr.bf16.gmra.mrb[0].mxu0 %v441
    %v498 = vpop.f32.mrb[0].mxu0
    %v499 = vadd.f32 0.0, %v498
    %v500 = vpop.f32.mrb[0].mxu0
    %v501 = vpop.f32.mrb[0].mxu0
    %v502 = vadd.f32 0.0, %v501
    %v503 = vpop.f32.mrb[0].mxu0
    %504 = vmatprep.mubr.bf16.mxu0 0
    %505 = vmatmul.mubr.bf16.gmra.mrb[0].mxu0 %v444
    %v506 = vpop.f32.mrb[0].mxu0
    %v507 = vadd.f32 0.0, %v506
    %v508 = vpop.f32.mrb[0].mxu0
    %v509 = vpop.f32.mrb[0].mxu0
    %v510 = vadd.f32 0.0, %v509
    %v511 = vpop.f32.mrb[0].mxu0
    %512 = vmatprep.mubr.bf16.mxu0 0
    %513 = vmatmul.mubr.bf16.gmra.mrb[0].mxu0 %v447
    %v514 = vpop.f32.mrb[0].mxu0
    %v515 = vadd.f32 0.0, %v514
    %v516 = vpop.f32.mrb[0].mxu0
    %v517 = vpop.f32.mrb[0].mxu0
    %v518 = vadd.f32 0.0, %v517
    %v519 = vpop.f32.mrb[0].mxu0
    %520 = vmatprep.mubr.bf16.mxu0 0
    %521 = vmatmul.mubr.bf16.gmra.mrb[0].mxu0 %v450
    %v522 = vpop.f32.mrb[0].mxu0
    %v523 = vadd.f32 0.0, %v522
    %v524 = vpop.f32.mrb[0].mxu0
    %v525 = vpop.f32.mrb[0].mxu0
    %v526 = vadd.f32 0.0, %v525
    %v527 = vpop.f32.mrb[0].mxu0
    %528 = vmatprep.mubr.bf16.mxu0 0
    %529 = vmatmul.mubr.bf16.gmra.mrb[0].mxu0 %v453
    %v530 = vpop.f32.mrb[0].mxu0
    %v531 = vadd.f32 0.0, %v530
    %v532 = vpop.f32.mrb[0].mxu0
    %v533 = vpop.f32.mrb[0].mxu0
    %v534 = vadd.f32 0.0, %v533
    %v535 = vpop.f32.mrb[0].mxu0
    %536 = vmatprep.mubr.bf16.mxu0 0
    %537 = vmatmul.mubr.bf16.gmra.mrb[0].mxu0 %v456
    %v538 = vpop.f32.mrb[0].mxu0
    %v539 = vadd.f32 0.0, %v538
    %v540 = vpop.f32.mrb[0].mxu0
    %v541 = vpop.f32.mrb[0].mxu0
    %v542 = vadd.f32 0.0, %v541
    %v543 = vpop.f32.mrb[0].mxu0
    %544 = vmatprep.mubr.bf16.mxu0 0
    %545 = vmatmul.mubr.bf16.gmra.mrb[0].mxu0 %v459
    %v546 = vpop.f32.mrb[0].mxu0
    %v547 = vadd.f32 0.0, %v546
    %v548 = vpop.f32.mrb[0].mxu0
    %v549 = vpop.f32.mrb[0].mxu0
    %v550 = vadd.f32 0.0, %v549
    %v551 = vpop.f32.mrb[0].mxu0
    %552 = vmatprep.mubr.bf16.mxu0 0
    %553 = vmatmul.mubr.bf16.gmra.mrb[0].mxu0 %v462
    %v554 = vpop.f32.mrb[0].mxu0
    %v555 = vadd.f32 0.0, %v554
    %v556 = vpop.f32.mrb[0].mxu0
    %v557 = vpop.f32.mrb[0].mxu0
    %v558 = vadd.f32 0.0, %v557
    %v559 = vpop.f32.mrb[0].mxu0
    %560 = vdwg.mxu0
    %v561 = vmul.f32 %v272, %v499
    %v562 = vmul.f32 %v272, %v502
    %v563 = vmul.f32 %v272, %v507
    %v564 = vmul.f32 %v272, %v510
    %v565 = vmul.f32 %v277, %v515
    %v566 = vmul.f32 %v277, %v518
    %v567 = vmul.f32 %v277, %v523
    %v568 = vmul.f32 %v277, %v526
    %v569 = vadd.f32 %v561, %v565
    %v570 = vadd.f32 %v562, %v566
    %v571 = vadd.f32 %v563, %v567
    %v572 = vadd.f32 %v564, %v568
    %v573 = vmul.f32 %v282, %v531
    %v574 = vmul.f32 %v282, %v534
    %v575 = vmul.f32 %v282, %v539
    %v576 = vmul.f32 %v282, %v542
    %v577 = vadd.f32 %v569, %v573
    %v578 = vadd.f32 %v570, %v574
    %v579 = vadd.f32 %v571, %v575
    %v580 = vadd.f32 %v572, %v576
    %v581 = vmul.f32 %v287, %v547
    %v582 = vmul.f32 %v287, %v550
    %v583 = vmul.f32 %v287, %v555
    %v584 = vmul.f32 %v287, %v558
    %v585 = vadd.f32 %v577, %v581
    %v586 = vadd.f32 %v578, %v582
    %v587 = vadd.f32 %v579, %v583
    %v588 = vadd.f32 %v580, %v584
    %v589 = vld [vmem:[%s5] sm:$0x1]
    %v591 = vlaneseq
    %v592 = vshrl.u32 %v591, 7
    %v593 = vsub.s32 0, %v592
    %v594 = vrot.slane %v589, %v593
    %v596 = vmul.f32 %v594, %v383
    %v597 = vmul.f32 %v594, %v386
    %v598 = vmul.f32 %v594, %v391
    %v599 = vmul.f32 %v594, %v394
    %v600 = vadd.f32 %v585, %v596
    %v601 = vadd.f32 %v586, %v597
    %v602 = vadd.f32 %v587, %v598
    %v603 = vadd.f32 %v588, %v599
    %v604 = vld [vmem:[#allocation7] sm:$0x1]
    %v606 = vlaneseq
    %v607 = vshrl.u32 %v606, 7
    %v608 = vsub.s32 0, %v607
    %v609 = vrot.slane %v604, %v608
    %v611 = vadd.f32 %v600, %v609
    %v612 = vadd.f32 %v601, %v609
    %v613 = vadd.f32 %v602, %v609
    %v614 = vadd.f32 %v603, %v609
    %v615 = vmax.f32 %v611, 0.0
    %v616 = vmax.f32 %v612, 0.0
    %v617 = vmax.f32 %v613, 0.0
    %v618 = vmax.f32 %v614, 0.0
    %v619 = vld [vmem:[%s7] sm:$0xf]
    %v620 = vld [vmem:[%s7 + $0x4] sm:$0xf]
    %v621 = vld [vmem:[%s7 + $0x8] sm:$0xf]
    %v622 = vld [vmem:[%s7 + $0xc] sm:$0xf]
    %v623 = vld [vmem:[%s7 + $0x10] sm:$0xf]
    %v624 = vld [vmem:[%s7 + $0x14] sm:$0xf]
    %v625 = vld [vmem:[%s7 + $0x18] sm:$0xf]
    %v626 = vld [vmem:[%s7 + $0x1c] sm:$0xf]
    %v627 = vld [vmem:[%s7 + $0x20] sm:$0xf]
    %v628 = vld [vmem:[%s7 + $0x24] sm:$0xf]
    %v629 = vld [vmem:[%s7 + $0x28] sm:$0xf]
    %v630 = vld [vmem:[%s7 + $0x2c] sm:$0xf]
    %v631 = vld [vmem:[%s7 + $0x30] sm:$0xf]
    %v632 = vld [vmem:[%s7 + $0x34] sm:$0xf]
    %v633 = vld [vmem:[%s7 + $0x38] sm:$0xf]
    %v634 = vld [vmem:[%s7 + $0x3c] sm:$0xf]
    %v635 = vpack.c.bf16 %v616, %v615
    %v636 = vpack.c.bf16 %v618, %v617
    %v637 = vld [vmem:[#allocation8] sm:$0x1]
    %v639 = vlaneseq
    %v640 = vshrl.u32 %v639, 7
    %v641 = vsub.s32 0, %v640
    %v642 = vrot.slane %v637, %v641
    %v660 = vunpack.c.l.b16 %v619
    %v661 = vunpack.c.l.b16 %v620
    %v662 = vunpack.c.l.b16 %v621
    %v663 = vunpack.c.l.b16 %v622
    %v664 = vunpack.c.l.b16 %v623
    %v665 = vunpack.c.l.b16 %v624
    %v666 = vunpack.c.l.b16 %v625
    %v667 = vunpack.c.l.b16 %v626
    %v668 = vunpack.c.l.b16 %v627
    %v669 = vunpack.c.l.b16 %v628
    %v670 = vunpack.c.l.b16 %v629
    %v671 = vunpack.c.l.b16 %v630
    %v672 = vunpack.c.l.b16 %v631
    %v673 = vunpack.c.l.b16 %v632
    %v674 = vunpack.c.l.b16 %v633
    %v675 = vunpack.c.l.b16 %v634
    %v676 = vpack.c.b16 %v661, %v660
    %v677 = vpack.c.b16 %v663, %v662
    %v678 = vpack.c.b16 %v665, %v664
    %v679 = vpack.c.b16 %v667, %v666
    %v680 = vpack.c.b16 %v669, %v668
    %v681 = vpack.c.b16 %v671, %v670
    %v682 = vpack.c.b16 %v673, %v672
    %v683 = vpack.c.b16 %v675, %v674
    %692 = vmatprep.subr.bf16.mxu0 0
    %693 = vmatpush1.bf16.msra.mxu0 %v676
    %694 = vmatprep.subr.bf16.mxu0 0
    %695 = vmatpush1.bf16.msra.mxu0 %v677
    %696 = vmatprep.subr.bf16.mxu0 0
    %697 = vmatpush1.bf16.msra.mxu0 %v678
    %698 = vmatprep.subr.bf16.mxu0 0
    %699 = vmatpush1.bf16.msra.mxu0 %v679
    %700 = vmatprep.subr.bf16.mxu0 0
    %701 = vmatpush1.bf16.msra.mxu0 %v680
    %702 = vmatprep.subr.bf16.mxu0 0
    %703 = vmatpush1.bf16.msra.mxu0 %v681
    %704 = vmatprep.subr.bf16.mxu0 0
    %705 = vmatpush1.bf16.msra.mxu0 %v682
    %706 = vmatprep.subr.bf16.mxu0 0
    %707 = vmatpush1.bf16.msra.mxu0 %v683
    %708 = vmatprep.subr.bf16.mxu0 0
    %709 = vmatpush1.bf16.msra.mxu0 0
    %710 = vmatprep.subr.bf16.mxu0 0
    %711 = vmatpush1.bf16.msra.mxu0 0
    %712 = vmatprep.subr.bf16.mxu0 0
    %713 = vmatpush1.bf16.msra.mxu0 0
    %714 = vmatprep.subr.bf16.mxu0 0
    %715 = vmatpush1.bf16.msra.mxu0 0
    %716 = vmatprep.subr.bf16.mxu0 0
    %717 = vmatpush1.bf16.msra.mxu0 0
    %718 = vmatprep.subr.bf16.mxu0 0
    %719 = vmatpush1.bf16.msra.mxu0 0
    %720 = vmatprep.subr.bf16.mxu0 0
    %721 = vmatpush1.bf16.msra.mxu0 0
    %722 = vmatprep.subr.bf16.mxu0 0
    %723 = vmatpush1.bf16.msra.mxu0 0
    %724 = vmatprep.mubr.bf16.mxu0 0
    %725 = vmatmul.mubr.bf16.gmra.mrb[0].mxu0 %v635
    %v726 = vpop.f32.mrb[0].mxu0
    %v727 = vadd.f32 %v642, %v726
    %v728 = vpop.f32.mrb[0].mxu0
    %v729 = vpop.f32.mrb[0].mxu0
    %v730 = vadd.f32 %v642, %v729
    %v731 = vpop.f32.mrb[0].mxu0
    %732 = vmatprep.mubr.bf16.mxu0 0
    %733 = vmatmul.mubr.bf16.gmra.mrb[0].mxu0 %v636
    %v734 = vpop.f32.mrb[0].mxu0
    %v735 = vadd.f32 %v642, %v734
    %v736 = vpop.f32.mrb[0].mxu0
    %v737 = vpop.f32.mrb[0].mxu0
    %v738 = vadd.f32 %v642, %v737
    %v739 = vpop.f32.mrb[0].mxu0
    %740 = vdwg.mxu0
    %v741 = vmax.f32 %v727, 0.0
    %v742 = vmax.f32 %v730, 0.0
    %v743 = vmax.f32 %v735, 0.0
    %v744 = vmax.f32 %v738, 0.0
    %v745 = vld [vmem:[#allocation10] sm:$0xf]
    %v746 = vld [vmem:[#allocation10 + $0x4] sm:$0xf]
    %v747 = vld [vmem:[#allocation10 + $0x8] sm:$0xf]
    %v748 = vld [vmem:[#allocation10 + $0xc] sm:$0xf]
    %v749 = vld [vmem:[#allocation10 + $0x10] sm:$0xf]
    %v750 = vld [vmem:[#allocation10 + $0x14] sm:$0xf]
    %v751 = vld [vmem:[#allocation10 + $0x18] sm:$0xf]
    %v752 = vld [vmem:[#allocation10 + $0x1c] sm:$0xf]
    %v753 = vld [vmem:[#allocation10 + $0x20] sm:$0xf]
    %v754 = vld [vmem:[#allocation10 + $0x24] sm:$0xf]
    %v755 = vld [vmem:[#allocation10 + $0x28] sm:$0xf]
    %v756 = vld [vmem:[#allocation10 + $0x2c] sm:$0xf]
    %v757 = vld [vmem:[#allocation10 + $0x30] sm:$0xf]
    %v758 = vld [vmem:[#allocation10 + $0x34] sm:$0xf]
    %v759 = vld [vmem:[#allocation10 + $0x38] sm:$0xf]
    %v760 = vld [vmem:[#allocation10 + $0x3c] sm:$0xf]
    %v761 = vpack.c.bf16 %v742, %v741
    %v762 = vpack.c.bf16 %v744, %v743
    %v763 = vld [vmem:[#allocation11] sm:$0x1]
    %v765 = vlaneseq
    %v766 = vshrl.u32 %v765, 7
    %v767 = vsub.s32 0, %v766
    %v768 = vrot.slane %v763, %v767
    %v786 = vunpack.c.l.b16 %v745
    %v787 = vunpack.c.l.b16 %v746
    %v788 = vunpack.c.l.b16 %v747
    %v789 = vunpack.c.l.b16 %v748
    %v790 = vunpack.c.l.b16 %v749
    %v791 = vunpack.c.l.b16 %v750
    %v792 = vunpack.c.l.b16 %v751
    %v793 = vunpack.c.l.b16 %v752
    %v794 = vunpack.c.l.b16 %v753
    %v795 = vunpack.c.l.b16 %v754
    %v796 = vunpack.c.l.b16 %v755
    %v797 = vunpack.c.l.b16 %v756
    %v798 = vunpack.c.l.b16 %v757
    %v799 = vunpack.c.l.b16 %v758
    %v800 = vunpack.c.l.b16 %v759
    %v801 = vunpack.c.l.b16 %v760
    %v802 = vpack.c.b16 %v787, %v786
    %v803 = vpack.c.b16 %v789, %v788
    %v804 = vpack.c.b16 %v791, %v790
    %v805 = vpack.c.b16 %v793, %v792
    %v806 = vpack.c.b16 %v795, %v794
    %v807 = vpack.c.b16 %v797, %v796
    %v808 = vpack.c.b16 %v799, %v798
    %v809 = vpack.c.b16 %v801, %v800
    %818 = vmatprep.subr.bf16.mxu0 0
    %819 = vmatpush1.bf16.msra.mxu0 %v802
    %820 = vmatprep.subr.bf16.mxu0 0
    %821 = vmatpush1.bf16.msra.mxu0 %v803
    %822 = vmatprep.subr.bf16.mxu0 0
    %823 = vmatpush1.bf16.msra.mxu0 %v804
    %824 = vmatprep.subr.bf16.mxu0 0
    %825 = vmatpush1.bf16.msra.mxu0 %v805
    %826 = vmatprep.subr.bf16.mxu0 0
    %827 = vmatpush1.bf16.msra.mxu0 %v806
    %828 = vmatprep.subr.bf16.mxu0 0
    %829 = vmatpush1.bf16.msra.mxu0 %v807
    %830 = vmatprep.subr.bf16.mxu0 0
    %831 = vmatpush1.bf16.msra.mxu0 %v808
    %832 = vmatprep.subr.bf16.mxu0 0
    %833 = vmatpush1.bf16.msra.mxu0 %v809
    %834 = vmatprep.subr.bf16.mxu0 0
    %835 = vmatpush1.bf16.msra.mxu0 0
    %836 = vmatprep.subr.bf16.mxu0 0
    %837 = vmatpush1.bf16.msra.mxu0 0
    %838 = vmatprep.subr.bf16.mxu0 0
    %839 = vmatpush1.bf16.msra.mxu0 0
    %840 = vmatprep.subr.bf16.mxu0 0
    %841 = vmatpush1.bf16.msra.mxu0 0
    %842 = vmatprep.subr.bf16.mxu0 0
    %843 = vmatpush1.bf16.msra.mxu0 0
    %844 = vmatprep.subr.bf16.mxu0 0
    %845 = vmatpush1.bf16.msra.mxu0 0
    %846 = vmatprep.subr.bf16.mxu0 0
    %847 = vmatpush1.bf16.msra.mxu0 0
    %848 = vmatprep.subr.bf16.mxu0 0
    %849 = vmatpush1.bf16.msra.mxu0 0
    %850 = vmatprep.mubr.bf16.mxu0 0
    %851 = vmatmul.mubr.bf16.gmra.mrb[0].mxu0 %v761
    %v852 = vpop.f32.mrb[0].mxu0
    %v853 = vadd.f32 %v768, %v852
    %v854 = vpop.f32.mrb[0].mxu0
    %v855 = vpop.f32.mrb[0].mxu0
    %v856 = vadd.f32 %v768, %v855
    %v857 = vpop.f32.mrb[0].mxu0
    %858 = vmatprep.mubr.bf16.mxu0 0
    %859 = vmatmul.mubr.bf16.gmra.mrb[0].mxu0 %v762
    %v860 = vpop.f32.mrb[0].mxu0
    %v861 = vadd.f32 %v768, %v860
    %v862 = vpop.f32.mrb[0].mxu0
    %v863 = vpop.f32.mrb[0].mxu0
    %v864 = vadd.f32 %v768, %v863
    %v865 = vpop.f32.mrb[0].mxu0
    %866 = vdwg.mxu0
    %v867 = vmax.f32 %v853, 0.0
    %v868 = vmax.f32 %v856, 0.0
    %v869 = vmax.f32 %v861, 0.0
    %v870 = vmax.f32 %v864, 0.0
    %v871 = vld [vmem:[#allocation13] sm:$0xf]
    %v872 = vld [vmem:[#allocation13 + $0x4] sm:$0xf]
    %v873 = vld [vmem:[#allocation13 + $0x8] sm:$0xf]
    %v874 = vld [vmem:[#allocation13 + $0xc] sm:$0xf]
    %v875 = vpack.c.bf16 %v868, %v867
    %v876 = vpack.c.bf16 %v870, %v869
    %v877 = vld [vmem:[#allocation14] sm:$0x1]
    %v879 = vlaneseq
    %v880 = vshrl.u32 %v879, 7
    %v881 = vsub.s32 0, %v880
    %v882 = vrot.slane %v877, %v881
    %v888 = vunpack.c.l.b16 %v871
    %v889 = vunpack.c.l.b16 %v872
    %v890 = vunpack.c.l.b16 %v873
    %v891 = vunpack.c.l.b16 %v874
    %v892 = vpack.c.b16 %v889, %v888
    %v893 = vpack.c.b16 %v891, %v890
    %v897 = vsel %vm439, %v875, 0
    %v900 = vsel %vm439, %v876, 0
    %902 = vmatprep.subr.bf16.mxu0 0
    %903 = vmatpush1.bf16.msra.mxu0 %v892
    %904 = vmatprep.subr.bf16.mxu0 0
    %905 = vmatpush1.bf16.msra.mxu0 %v893
    %906 = vmatprep.subr.bf16.mxu0 0
    %907 = vmatpush1.bf16.msra.mxu0 0
    %908 = vmatprep.subr.bf16.mxu0 0
    %909 = vmatpush1.bf16.msra.mxu0 0
    %910 = vmatprep.subr.bf16.mxu0 0
    %911 = vmatpush1.bf16.msra.mxu0 0
    %912 = vmatprep.subr.bf16.mxu0 0
    %913 = vmatpush1.bf16.msra.mxu0 0
    %914 = vmatprep.subr.bf16.mxu0 0
    %915 = vmatpush1.bf16.msra.mxu0 0
    %916 = vmatprep.subr.bf16.mxu0 0
    %917 = vmatpush1.bf16.msra.mxu0 0
    %918 = vmatprep.subr.bf16.mxu0 0
    %919 = vmatpush1.bf16.msra.mxu0 0
    %920 = vmatprep.subr.bf16.mxu0 0
    %921 = vmatpush1.bf16.msra.mxu0 0
    %922 = vmatprep.subr.bf16.mxu0 0
    %923 = vmatpush1.bf16.msra.mxu0 0
    %924 = vmatprep.subr.bf16.mxu0 0
    %925 = vmatpush1.bf16.msra.mxu0 0
    %926 = vmatprep.subr.bf16.mxu0 0
    %927 = vmatpush1.bf16.msra.mxu0 0
    %928 = vmatprep.subr.bf16.mxu0 0
    %929 = vmatpush1.bf16.msra.mxu0 0
    %930 = vmatprep.subr.bf16.mxu0 0
    %931 = vmatpush1.bf16.msra.mxu0 0
    %932 = vmatprep.subr.bf16.mxu0 0
    %933 = vmatpush1.bf16.msra.mxu0 0
    %934 = vmatprep.mubr.bf16.mxu0 0
    %935 = vmatmul.mubr.bf16.gmra.mrb[0].mxu0 %v897
    %v936 = vpop.f32.mrb[0].mxu0
    %v937 = vadd.f32 %v882, %v936
    %v938 = vpop.f32.mrb[0].mxu0
    %v939 = vpop.f32.mrb[0].mxu0
    %v940 = vadd.f32 %v882, %v939
    %v941 = vpop.f32.mrb[0].mxu0
    %942 = vmatprep.mubr.bf16.mxu0 0
    %943 = vmatmul.mubr.bf16.gmra.mrb[0].mxu0 %v900
    %v944 = vpop.f32.mrb[0].mxu0
    %v945 = vadd.f32 %v882, %v944
    %v946 = vpop.f32.mrb[0].mxu0
    %v947 = vpop.f32.mrb[0].mxu0
    %v948 = vadd.f32 %v882, %v947
    %v949 = vpop.f32.mrb[0].mxu0
    %950 = vdwg.mxu0
    %v951 = vmax.f32 %v937, 0.0
    %v952 = vmax.f32 %v940, 0.0
    %v953 = vmax.f32 %v945, 0.0
    %v954 = vmax.f32 %v948, 0.0
    %v955 = vld [vmem:[%s4] sm:$0xf]
    %v956 = vld [vmem:[%s4 + $0x4] sm:$0xf]
    %v957 = vld [vmem:[%s4 + $0x8] sm:$0xf]
    %v958 = vld [vmem:[%s4 + $0xc] sm:$0xf]
    %v959 = vpack.c.bf16 %v952, %v951
    %v960 = vpack.c.bf16 %v954, %v953
    %v965 = vunpack.c.l.b16 %v955
    %v966 = vunpack.c.l.b16 %v956
    %v967 = vunpack.c.l.b16 %v957
    %v968 = vunpack.c.l.b16 %v958
    %v969 = vpack.c.b16 %v966, %v965
    %v970 = vpack.c.b16 %v968, %v967
    %v974 = vsel %vm439, %v959, 0
    %v977 = vsel %vm439, %v960, 0
    %979 = vmatprep.subr.bf16.mxu0 0
    %980 = vmatpush1.bf16.msra.mxu0 %v969
    %981 = vmatprep.subr.bf16.mxu0 0
    %982 = vmatpush1.bf16.msra.mxu0 %v970
    %983 = vmatprep.subr.bf16.mxu0 0
    %984 = vmatpush1.bf16.msra.mxu0 0
    %985 = vmatprep.subr.bf16.mxu0 0
    %986 = vmatpush1.bf16.msra.mxu0 0
    %987 = vmatprep.subr.bf16.mxu0 0
    %988 = vmatpush1.bf16.msra.mxu0 0
    %989 = vmatprep.subr.bf16.mxu0 0
    %990 = vmatpush1.bf16.msra.mxu0 0
    %991 = vmatprep.subr.bf16.mxu0 0
    %992 = vmatpush1.bf16.msra.mxu0 0
    %993 = vmatprep.subr.bf16.mxu0 0
    %994 = vmatpush1.bf16.msra.mxu0 0
    %995 = vmatprep.subr.bf16.mxu0 0
    %996 = vmatpush1.bf16.msra.mxu0 0
    %997 = vmatprep.subr.bf16.mxu0 0
    %998 = vmatpush1.bf16.msra.mxu0 0
    %999 = vmatprep.subr.bf16.mxu0 0
    %1000 = vmatpush1.bf16.msra.mxu0 0
    %1001 = vmatprep.subr.bf16.mxu0 0
    %1002 = vmatpush1.bf16.msra.mxu0 0
    %1003 = vmatprep.subr.bf16.mxu0 0
    %1004 = vmatpush1.bf16.msra.mxu0 0
    %1005 = vmatprep.subr.bf16.mxu0 0
    %1006 = vmatpush1.bf16.msra.mxu0 0
    %1007 = vmatprep.subr.bf16.mxu0 0
    %1008 = vmatpush1.bf16.msra.mxu0 0
    %1009 = vmatprep.subr.bf16.mxu0 0
    %1010 = vmatpush1.bf16.msra.mxu0 0
    %1011 = vmatprep.mubr.bf16.mxu0 0
    %1012 = vmatmul.mubr.bf16.gmra.mrb[0].mxu0 %v974
    %v1013 = vpop.f32.mrb[0].mxu0
    %v1014 = vadd.f32 0.0, %v1013
    %v1015 = vpop.f32.mrb[0].mxu0
    %v1016 = vpop.f32.mrb[0].mxu0
    %v1017 = vadd.f32 0.0, %v1016
    %v1018 = vpop.f32.mrb[0].mxu0
    %1019 = vmatprep.mubr.bf16.mxu0 0
    %1020 = vmatmul.mubr.bf16.gmra.mrb[0].mxu0 %v977
    %v1021 = vpop.f32.mrb[0].mxu0
    %v1022 = vadd.f32 0.0, %v1021
    %v1023 = vpop.f32.mrb[0].mxu0
    %v1024 = vpop.f32.mrb[0].mxu0
    %v1025 = vadd.f32 0.0, %v1024
    %v1026 = vpop.f32.mrb[0].mxu0
    %1027 = vdwg.mxu0
    %v1028 = vpack.c.bf16 %v1017, %v1014
    %v1029 = vpack.c.bf16 %v1025, %v1022
    %1030 = vmatprep.subr.bf16.mxu0 0
    %1031 = vmatpush1.bf16.msra.mxu0 %v1028
    %1032 = vmatprep.subr.bf16.mxu0 0
    %1033 = vmatpush1.bf16.msra.mxu0 %v1029
    %1034 = vmatprep.subr.bf16.mxu0 0
    %1035 = vmatpush1.bf16.msra.mxu0 0
    %1036 = vmatprep.subr.bf16.mxu0 0
    %1037 = vmatpush1.bf16.msra.mxu0 0
    %1038 = vmatprep.subr.bf16.mxu0 0
    %1039 = vmatpush1.bf16.msra.mxu0 0
    %1040 = vmatprep.subr.bf16.mxu0 0
    %1041 = vmatpush1.bf16.msra.mxu0 0
    %1042 = vmatprep.subr.bf16.mxu0 0
    %1043 = vmatpush1.bf16.msra.mxu0 0
    %1044 = vmatprep.subr.bf16.mxu0 0
    %1045 = vmatpush1.bf16.msra.mxu0 0
    %1046 = vmatprep.subr.bf16.mxu0 0
    %1047 = vmatpush1.bf16.msra.mxu0 0
    %1048 = vmatprep.subr.bf16.mxu0 0
    %1049 = vmatpush1.bf16.msra.mxu0 0
    %1050 = vmatprep.subr.bf16.mxu0 0
    %1051 = vmatpush1.bf16.msra.mxu0 0
    %1052 = vmatprep.subr.bf16.mxu0 0
    %1053 = vmatpush1.bf16.msra.mxu0 0
    %1054 = vmatprep.subr.bf16.mxu0 0
    %1055 = vmatpush1.bf16.msra.mxu0 0
    %1056 = vmatprep.subr.bf16.mxu0 0
    %1057 = vmatpush1.bf16.msra.mxu0 0
    %1058 = vmatprep.subr.bf16.mxu0 0
    %1059 = vmatpush1.bf16.msra.mxu0 0
    %1060 = vmatprep.subr.bf16.mxu0 0
    %1061 = vmatpush1.bf16.msra.mxu0 0
    %1062 = vmatprep.mubr.bf16.mxu0 0
    %1063 = vmatmul.mubr.bf16.gmra.mrb[0].mxu0 %v441
    %v1064 = vpop.f32.mrb[0].mxu0
    %v1065 = vadd.f32 0.0, %v1064
    %v1066 = vpop.f32.mrb[0].mxu0
    %v1067 = vpop.f32.mrb[0].mxu0
    %v1068 = vadd.f32 0.0, %v1067
    %v1069 = vpop.f32.mrb[0].mxu0
    %1070 = vmatprep.mubr.bf16.mxu0 0
    %1071 = vmatmul.mubr.bf16.gmra.mrb[0].mxu0 %v444
    %v1072 = vpop.f32.mrb[0].mxu0
    %v1073 = vadd.f32 0.0, %v1072
    %v1074 = vpop.f32.mrb[0].mxu0
    %v1075 = vpop.f32.mrb[0].mxu0
    %v1076 = vadd.f32 0.0, %v1075
    %v1077 = vpop.f32.mrb[0].mxu0
    %1078 = vmatprep.mubr.bf16.mxu0 0
    %1079 = vmatmul.mubr.bf16.gmra.mrb[0].mxu0 %v447
    %v1080 = vpop.f32.mrb[0].mxu0
    %v1081 = vadd.f32 0.0, %v1080
    %v1082 = vpop.f32.mrb[0].mxu0
    %v1083 = vpop.f32.mrb[0].mxu0
    %v1084 = vadd.f32 0.0, %v1083
    %v1085 = vpop.f32.mrb[0].mxu0
    %1086 = vmatprep.mubr.bf16.mxu0 0
    %1087 = vmatmul.mubr.bf16.gmra.mrb[0].mxu0 %v450
    %v1088 = vpop.f32.mrb[0].mxu0
    %v1089 = vadd.f32 0.0, %v1088
    %v1090 = vpop.f32.mrb[0].mxu0
    %v1091 = vpop.f32.mrb[0].mxu0
    %v1092 = vadd.f32 0.0, %v1091
    %v1093 = vpop.f32.mrb[0].mxu0
    %1094 = vmatprep.mubr.bf16.mxu0 0
    %1095 = vmatmul.mubr.bf16.gmra.mrb[0].mxu0 %v453
    %v1096 = vpop.f32.mrb[0].mxu0
    %v1097 = vadd.f32 0.0, %v1096
    %v1098 = vpop.f32.mrb[0].mxu0
    %v1099 = vpop.f32.mrb[0].mxu0
    %v1100 = vadd.f32 0.0, %v1099
    %v1101 = vpop.f32.mrb[0].mxu0
    %1102 = vmatprep.mubr.bf16.mxu0 0
    %1103 = vmatmul.mubr.bf16.gmra.mrb[0].mxu0 %v456
    %v1104 = vpop.f32.mrb[0].mxu0
    %v1105 = vadd.f32 0.0, %v1104
    %v1106 = vpop.f32.mrb[0].mxu0
    %v1107 = vpop.f32.mrb[0].mxu0
    %v1108 = vadd.f32 0.0, %v1107
    %v1109 = vpop.f32.mrb[0].mxu0
    %1110 = vmatprep.mubr.bf16.mxu0 0
    %1111 = vmatmul.mubr.bf16.gmra.mrb[0].mxu0 %v459
    %v1112 = vpop.f32.mrb[0].mxu0
    %v1113 = vadd.f32 0.0, %v1112
    %v1114 = vpop.f32.mrb[0].mxu0
    %v1115 = vpop.f32.mrb[0].mxu0
    %v1116 = vadd.f32 0.0, %v1115
    %v1117 = vpop.f32.mrb[0].mxu0
    %1118 = vmatprep.mubr.bf16.mxu0 0
    %1119 = vmatmul.mubr.bf16.gmra.mrb[0].mxu0 %v462
    %v1120 = vpop.f32.mrb[0].mxu0
    %v1121 = vadd.f32 0.0, %v1120
    %v1122 = vpop.f32.mrb[0].mxu0
    %v1123 = vpop.f32.mrb[0].mxu0
    %v1124 = vadd.f32 0.0, %v1123
    %v1125 = vpop.f32.mrb[0].mxu0
    %1126 = vdwg.mxu0
    %v1127 = vmul.f32 %v272, %v1065
    %v1128 = vmul.f32 %v272, %v1068
    %v1129 = vmul.f32 %v272, %v1073
    %v1130 = vmul.f32 %v272, %v1076
    %v1131 = vmul.f32 %v277, %v1081
    %v1132 = vmul.f32 %v277, %v1084
    %v1133 = vmul.f32 %v277, %v1089
    %v1134 = vmul.f32 %v277, %v1092
    %v1135 = vadd.f32 %v1127, %v1131
    %v1136 = vadd.f32 %v1128, %v1132
    %v1137 = vadd.f32 %v1129, %v1133
    %v1138 = vadd.f32 %v1130, %v1134
    %v1139 = vmul.f32 %v282, %v1097
    %v1140 = vmul.f32 %v282, %v1100
    %v1141 = vmul.f32 %v282, %v1105
    %v1142 = vmul.f32 %v282, %v1108
    %v1143 = vadd.f32 %v1135, %v1139
    %v1144 = vadd.f32 %v1136, %v1140
    %v1145 = vadd.f32 %v1137, %v1141
    %v1146 = vadd.f32 %v1138, %v1142
    %v1147 = vmul.f32 %v287, %v1113
    %v1148 = vmul.f32 %v287, %v1116
    %v1149 = vmul.f32 %v287, %v1121
    %v1150 = vmul.f32 %v287, %v1124
    %v1151 = vadd.f32 %v1143, %v1147
    %v1152 = vadd.f32 %v1144, %v1148
    %v1153 = vadd.f32 %v1145, %v1149
    %v1154 = vadd.f32 %v1146, %v1150
    %s1155 = scalar_lea.vmem %s5, 1
    %v1156 = vld [vmem:[%s1155] sm:$0x1]
    %v1158 = vlaneseq
    %v1159 = vshrl.u32 %v1158, 7
    %v1160 = vsub.s32 0, %v1159
    %v1161 = vrot.slane %v1156, %v1160
    %v1163 = vmul.f32 %v1161, %v1014
    %v1164 = vmul.f32 %v1161, %v1017
    %v1165 = vmul.f32 %v1161, %v1022
    %v1166 = vmul.f32 %v1161, %v1025
    %v1167 = vadd.f32 %v1151, %v1163
    %v1168 = vadd.f32 %v1152, %v1164
    %v1169 = vadd.f32 %v1153, %v1165
    %v1170 = vadd.f32 %v1154, %v1166
    %s1171 = scalar_lea.vmem [#allocation7], 1
    %v1172 = vld [vmem:[%s1171] sm:$0x1]
    %v1174 = vlaneseq
    %v1175 = vshrl.u32 %v1174, 7
    %v1176 = vsub.s32 0, %v1175
    %v1177 = vrot.slane %v1172, %v1176
    %v1179 = vadd.f32 %v1167, %v1177
    %v1180 = vadd.f32 %v1168, %v1177
    %v1181 = vadd.f32 %v1169, %v1177
    %v1182 = vadd.f32 %v1170, %v1177
    %v1183 = vmax.f32 %v1179, 0.0
    %v1184 = vmax.f32 %v1180, 0.0
    %v1185 = vmax.f32 %v1181, 0.0
    %v1186 = vmax.f32 %v1182, 0.0
    %s1187 = scalar_lea.vmem %s7, 64
    %v1188 = vld [vmem:[%s1187] sm:$0xf]
    %v1189 = vld [vmem:[%s1187 + $0x4] sm:$0xf]
    %v1190 = vld [vmem:[%s1187 + $0x8] sm:$0xf]
    %v1191 = vld [vmem:[%s1187 + $0xc] sm:$0xf]
    %v1192 = vld [vmem:[%s1187 + $0x10] sm:$0xf]
    %v1193 = vld [vmem:[%s1187 + $0x14] sm:$0xf]
    %v1194 = vld [vmem:[%s1187 + $0x18] sm:$0xf]
    %v1195 = vld [vmem:[%s1187 + $0x1c] sm:$0xf]
    %v1196 = vld [vmem:[%s1187 + $0x20] sm:$0xf]
    %v1197 = vld [vmem:[%s1187 + $0x24] sm:$0xf]
    %v1198 = vld [vmem:[%s1187 + $0x28] sm:$0xf]
    %v1199 = vld [vmem:[%s1187 + $0x2c] sm:$0xf]
    %v1200 = vld [vmem:[%s1187 + $0x30] sm:$0xf]
    %v1201 = vld [vmem:[%s1187 + $0x34] sm:$0xf]
    %v1202 = vld [vmem:[%s1187 + $0x38] sm:$0xf]
    %v1203 = vld [vmem:[%s1187 + $0x3c] sm:$0xf]
    %v1204 = vpack.c.bf16 %v1184, %v1183
    %v1205 = vpack.c.bf16 %v1186, %v1185
    %s1206 = scalar_lea.vmem [#allocation8], 1
    %v1207 = vld [vmem:[%s1206] sm:$0x1]
    %v1209 = vlaneseq
    %v1210 = vshrl.u32 %v1209, 7
    %v1211 = vsub.s32 0, %v1210
    %v1212 = vrot.slane %v1207, %v1211
    %v1230 = vunpack.c.l.b16 %v1188
    %v1231 = vunpack.c.l.b16 %v1189
    %v1232 = vunpack.c.l.b16 %v1190
    %v1233 = vunpack.c.l.b16 %v1191
    %v1234 = vunpack.c.l.b16 %v1192
    %v1235 = vunpack.c.l.b16 %v1193
    %v1236 = vunpack.c.l.b16 %v1194
    %v1237 = vunpack.c.l.b16 %v1195
    %v1238 = vunpack.c.l.b16 %v1196
    %v1239 = vunpack.c.l.b16 %v1197
    %v1240 = vunpack.c.l.b16 %v1198
    %v1241 = vunpack.c.l.b16 %v1199
    %v1242 = vunpack.c.l.b16 %v1200
    %v1243 = vunpack.c.l.b16 %v1201
    %v1244 = vunpack.c.l.b16 %v1202
    %v1245 = vunpack.c.l.b16 %v1203
    %v1246 = vpack.c.b16 %v1231, %v1230
    %v1247 = vpack.c.b16 %v1233, %v1232
    %v1248 = vpack.c.b16 %v1235, %v1234
    %v1249 = vpack.c.b16 %v1237, %v1236
    %v1250 = vpack.c.b16 %v1239, %v1238
    %v1251 = vpack.c.b16 %v1241, %v1240
    %v1252 = vpack.c.b16 %v1243, %v1242
    %v1253 = vpack.c.b16 %v1245, %v1244
    %1262 = vmatprep.subr.bf16.mxu0 0
    %1263 = vmatpush1.bf16.msra.mxu0 %v1246
    %1264 = vmatprep.subr.bf16.mxu0 0
    %1265 = vmatpush1.bf16.msra.mxu0 %v1247
    %1266 = vmatprep.subr.bf16.mxu0 0
    %1267 = vmatpush1.bf16.msra.mxu0 %v1248
    %1268 = vmatprep.subr.bf16.mxu0 0
    %1269 = vmatpush1.bf16.msra.mxu0 %v1249
    %1270 = vmatprep.subr.bf16.mxu0 0
    %1271 = vmatpush1.bf16.msra.mxu0 %v1250
    %1272 = vmatprep.subr.bf16.mxu0 0
    %1273 = vmatpush1.bf16.msra.mxu0 %v1251
    %1274 = vmatprep.subr.bf16.mxu0 0
    %1275 = vmatpush1.bf16.msra.mxu0 %v1252
    %1276 = vmatprep.subr.bf16.mxu0 0
    %1277 = vmatpush1.bf16.msra.mxu0 %v1253
    %1278 = vmatprep.subr.bf16.mxu0 0
    %1279 = vmatpush1.bf16.msra.mxu0 0
    %1280 = vmatprep.subr.bf16.mxu0 0
    %1281 = vmatpush1.bf16.msra.mxu0 0
    %1282 = vmatprep.subr.bf16.mxu0 0
    %1283 = vmatpush1.bf16.msra.mxu0 0
    %1284 = vmatprep.subr.bf16.mxu0 0
    %1285 = vmatpush1.bf16.msra.mxu0 0
    %1286 = vmatprep.subr.bf16.mxu0 0
    %1287 = vmatpush1.bf16.msra.mxu0 0
    %1288 = vmatprep.subr.bf16.mxu0 0
    %1289 = vmatpush1.bf16.msra.mxu0 0
    %1290 = vmatprep.subr.bf16.mxu0 0
    %1291 = vmatpush1.bf16.msra.mxu0 0
    %1292 = vmatprep.subr.bf16.mxu0 0
    %1293 = vmatpush1.bf16.msra.mxu0 0
    %1294 = vmatprep.mubr.bf16.mxu0 0
    %1295 = vmatmul.mubr.bf16.gmra.mrb[0].mxu0 %v1204
    %v1296 = vpop.f32.mrb[0].mxu0
    %v1297 = vadd.f32 %v1212, %v1296
    %v1298 = vpop.f32.mrb[0].mxu0
    %v1299 = vpop.f32.mrb[0].mxu0
    %v1300 = vadd.f32 %v1212, %v1299
    %v1301 = vpop.f32.mrb[0].mxu0
    %1302 = vmatprep.mubr.bf16.mxu0 0
    %1303 = vmatmul.mubr.bf16.gmra.mrb[0].mxu0 %v1205
    %v1304 = vpop.f32.mrb[0].mxu0
    %v1305 = vadd.f32 %v1212, %v1304
    %v1306 = vpop.f32.mrb[0].mxu0
    %v1307 = vpop.f32.mrb[0].mxu0
    %v1308 = vadd.f32 %v1212, %v1307
    %v1309 = vpop.f32.mrb[0].mxu0
    %1310 = vdwg.mxu0
    %v1311 = vmax.f32 %v1297, 0.0
    %v1312 = vmax.f32 %v1300, 0.0
    %v1313 = vmax.f32 %v1305, 0.0
    %v1314 = vmax.f32 %v1308, 0.0
    %s1315 = scalar_lea.vmem [#allocation10], 64
    %v1316 = vld [vmem:[%s1315] sm:$0xf]
    %v1317 = vld [vmem:[%s1315 + $0x4] sm:$0xf]
    %v1318 = vld [vmem:[%s1315 + $0x8] sm:$0xf]
    %v1319 = vld [vmem:[%s1315 + $0xc] sm:$0xf]
    %v1320 = vld [vmem:[%s1315 + $0x10] sm:$0xf]
    %v1321 = vld [vmem:[%s1315 + $0x14] sm:$0xf]
    %v1322 = vld [vmem:[%s1315 + $0x18] sm:$0xf]
    %v1323 = vld [vmem:[%s1315 + $0x1c] sm:$0xf]
    %v1324 = vld [vmem:[%s1315 + $0x20] sm:$0xf]
    %v1325 = vld [vmem:[%s1315 + $0x24] sm:$0xf]
    %v1326 = vld [vmem:[%s1315 + $0x28] sm:$0xf]
    %v1327 = vld [vmem:[%s1315 + $0x2c] sm:$0xf]
    %v1328 = vld [vmem:[%s1315 + $0x30] sm:$0xf]
    %v1329 = vld [vmem:[%s1315 + $0x34] sm:$0xf]
    %v1330 = vld [vmem:[%s1315 + $0x38] sm:$0xf]
    %v1331 = vld [vmem:[%s1315 + $0x3c] sm:$0xf]
    %v1332 = vpack.c.bf16 %v1312, %v1311
    %v1333 = vpack.c.bf16 %v1314, %v1313
    %s1334 = scalar_lea.vmem [#allocation11], 1
    %v1335 = vld [vmem:[%s1334] sm:$0x1]
    %v1337 = vlaneseq
    %v1338 = vshrl.u32 %v1337, 7
    %v1339 = vsub.s32 0, %v1338
    %v1340 = vrot.slane %v1335, %v1339
    %v1358 = vunpack.c.l.b16 %v1316
    %v1359 = vunpack.c.l.b16 %v1317
    %v1360 = vunpack.c.l.b16 %v1318
    %v1361 = vunpack.c.l.b16 %v1319
    %v1362 = vunpack.c.l.b16 %v1320
    %v1363 = vunpack.c.l.b16 %v1321
    %v1364 = vunpack.c.l.b16 %v1322
    %v1365 = vunpack.c.l.b16 %v1323
    %v1366 = vunpack.c.l.b16 %v1324
    %v1367 = vunpack.c.l.b16 %v1325
    %v1368 = vunpack.c.l.b16 %v1326
    %v1369 = vunpack.c.l.b16 %v1327
    %v1370 = vunpack.c.l.b16 %v1328
    %v1371 = vunpack.c.l.b16 %v1329
    %v1372 = vunpack.c.l.b16 %v1330
    %v1373 = vunpack.c.l.b16 %v1331
    %v1374 = vpack.c.b16 %v1359, %v1358
    %v1375 = vpack.c.b16 %v1361, %v1360
    %v1376 = vpack.c.b16 %v1363, %v1362
    %v1377 = vpack.c.b16 %v1365, %v1364
    %v1378 = vpack.c.b16 %v1367, %v1366
    %v1379 = vpack.c.b16 %v1369, %v1368
    %v1380 = vpack.c.b16 %v1371, %v1370
    %v1381 = vpack.c.b16 %v1373, %v1372
    %1390 = vmatprep.subr.bf16.mxu0 0
    %1391 = vmatpush1.bf16.msra.mxu0 %v1374
    %1392 = vmatprep.subr.bf16.mxu0 0
    %1393 = vmatpush1.bf16.msra.mxu0 %v1375
    %1394 = vmatprep.subr.bf16.mxu0 0
    %1395 = vmatpush1.bf16.msra.mxu0 %v1376
    %1396 = vmatprep.subr.bf16.mxu0 0
    %1397 = vmatpush1.bf16.msra.mxu0 %v1377
    %1398 = vmatprep.subr.bf16.mxu0 0
    %1399 = vmatpush1.bf16.msra.mxu0 %v1378
    %1400 = vmatprep.subr.bf16.mxu0 0
    %1401 = vmatpush1.bf16.msra.mxu0 %v1379
    %1402 = vmatprep.subr.bf16.mxu0 0
    %1403 = vmatpush1.bf16.msra.mxu0 %v1380
    %1404 = vmatprep.subr.bf16.mxu0 0
    %1405 = vmatpush1.bf16.msra.mxu0 %v1381
    %1406 = vmatprep.subr.bf16.mxu0 0
    %1407 = vmatpush1.bf16.msra.mxu0 0
    %1408 = vmatprep.subr.bf16.mxu0 0
    %1409 = vmatpush1.bf16.msra.mxu0 0
    %1410 = vmatprep.subr.bf16.mxu0 0
    %1411 = vmatpush1.bf16.msra.mxu0 0
    %1412 = vmatprep.subr.bf16.mxu0 0
    %1413 = vmatpush1.bf16.msra.mxu0 0
    %1414 = vmatprep.subr.bf16.mxu0 0
    %1415 = vmatpush1.bf16.msra.mxu0 0
    %1416 = vmatprep.subr.bf16.mxu0 0
    %1417 = vmatpush1.bf16.msra.mxu0 0
    %1418 = vmatprep.subr.bf16.mxu0 0
    %1419 = vmatpush1.bf16.msra.mxu0 0
    %1420 = vmatprep.subr.bf16.mxu0 0
    %1421 = vmatpush1.bf16.msra.mxu0 0
    %1422 = vmatprep.mubr.bf16.mxu0 0
    %1423 = vmatmul.mubr.bf16.gmra.mrb[0].mxu0 %v1332
    %v1424 = vpop.f32.mrb[0].mxu0
    %v1425 = vadd.f32 %v1340, %v1424
    %v1426 = vpop.f32.mrb[0].mxu0
    %v1427 = vpop.f32.mrb[0].mxu0
    %v1428 = vadd.f32 %v1340, %v1427
    %v1429 = vpop.f32.mrb[0].mxu0
    %1430 = vmatprep.mubr.bf16.mxu0 0
    %1431 = vmatmul.mubr.bf16.gmra.mrb[0].mxu0 %v1333
    %v1432 = vpop.f32.mrb[0].mxu0
    %v1433 = vadd.f32 %v1340, %v1432
    %v1434 = vpop.f32.mrb[0].mxu0
    %v1435 = vpop.f32.mrb[0].mxu0
    %v1436 = vadd.f32 %v1340, %v1435
    %v1437 = vpop.f32.mrb[0].mxu0
    %1438 = vdwg.mxu0
    %v1439 = vmax.f32 %v1425, 0.0
    %v1440 = vmax.f32 %v1428, 0.0
    %v1441 = vmax.f32 %v1433, 0.0
    %v1442 = vmax.f32 %v1436, 0.0
    %s1443 = scalar_lea.vmem [#allocation13], 16
    %v1444 = vld [vmem:[%s1443] sm:$0xf]
    %v1445 = vld [vmem:[%s1443 + $0x4] sm:$0xf]
    %v1446 = vld [vmem:[%s1443 + $0x8] sm:$0xf]
    %v1447 = vld [vmem:[%s1443 + $0xc] sm:$0xf]
    %v1448 = vpack.c.bf16 %v1440, %v1439
    %v1449 = vpack.c.bf16 %v1442, %v1441
    %s1450 = scalar_lea.vmem [#allocation14], 1
    %v1451 = vld [vmem:[%s1450] sm:$0x1]
    %v1453 = vlaneseq
    %v1454 = vshrl.u32 %v1453, 7
    %v1455 = vsub.s32 0, %v1454
    %v1456 = vrot.slane %v1451, %v1455
    %v1462 = vunpack.c.l.b16 %v1444
    %v1463 = vunpack.c.l.b16 %v1445
    %v1464 = vunpack.c.l.b16 %v1446
    %v1465 = vunpack.c.l.b16 %v1447
    %v1466 = vpack.c.b16 %v1463, %v1462
    %v1467 = vpack.c.b16 %v1465, %v1464
    %v1471 = vsel %vm439, %v1448, 0
    %v1474 = vsel %vm439, %v1449, 0
    %1476 = vmatprep.subr.bf16.mxu0 0
    %1477 = vmatpush1.bf16.msra.mxu0 %v1466
    %1478 = vmatprep.subr.bf16.mxu0 0
    %1479 = vmatpush1.bf16.msra.mxu0 %v1467
    %1480 = vmatprep.subr.bf16.mxu0 0
    %1481 = vmatpush1.bf16.msra.mxu0 0
    %1482 = vmatprep.subr.bf16.mxu0 0
    %1483 = vmatpush1.bf16.msra.mxu0 0
    %1484 = vmatprep.subr.bf16.mxu0 0
    %1485 = vmatpush1.bf16.msra.mxu0 0
    %1486 = vmatprep.subr.bf16.mxu0 0
    %1487 = vmatpush1.bf16.msra.mxu0 0
    %1488 = vmatprep.subr.bf16.mxu0 0
    %1489 = vmatpush1.bf16.msra.mxu0 0
    %1490 = vmatprep.subr.bf16.mxu0 0
    %1491 = vmatpush1.bf16.msra.mxu0 0
    %1492 = vmatprep.subr.bf16.mxu0 0
    %1493 = vmatpush1.bf16.msra.mxu0 0
    %1494 = vmatprep.subr.bf16.mxu0 0
    %1495 = vmatpush1.bf16.msra.mxu0 0
    %1496 = vmatprep.subr.bf16.mxu0 0
    %1497 = vmatpush1.bf16.msra.mxu0 0
    %1498 = vmatprep.subr.bf16.mxu0 0
    %1499 = vmatpush1.bf16.msra.mxu0 0
    %1500 = vmatprep.subr.bf16.mxu0 0
    %1501 = vmatpush1.bf16.msra.mxu0 0
    %1502 = vmatprep.subr.bf16.mxu0 0
    %1503 = vmatpush1.bf16.msra.mxu0 0
    %1504 = vmatprep.subr.bf16.mxu0 0
    %1505 = vmatpush1.bf16.msra.mxu0 0
    %1506 = vmatprep.subr.bf16.mxu0 0
    %1507 = vmatpush1.bf16.msra.mxu0 0
    %1508 = vmatprep.mubr.bf16.mxu0 0
    %1509 = vmatmul.mubr.bf16.gmra.mrb[0].mxu0 %v1471
    %v1510 = vpop.f32.mrb[0].mxu0
    %v1511 = vadd.f32 %v1456, %v1510
    %v1512 = vpop.f32.mrb[0].mxu0
    %v1513 = vpop.f32.mrb[0].mxu0
    %v1514 = vadd.f32 %v1456, %v1513
    %v1515 = vpop.f32.mrb[0].mxu0
    %1516 = vmatprep.mubr.bf16.mxu0 0
    %1517 = vmatmul.mubr.bf16.gmra.mrb[0].mxu0 %v1474
    %v1518 = vpop.f32.mrb[0].mxu0
    %v1519 = vadd.f32 %v1456, %v1518
    %v1520 = vpop.f32.mrb[0].mxu0
    %v1521 = vpop.f32.mrb[0].mxu0
    %v1522 = vadd.f32 %v1456, %v1521
    %v1523 = vpop.f32.mrb[0].mxu0
    %1524 = vdwg.mxu0
    %v1525 = vmax.f32 %v1511, 0.0
    %v1526 = vmax.f32 %v1514, 0.0
    %v1527 = vmax.f32 %v1519, 0.0
    %v1528 = vmax.f32 %v1522, 0.0
    %s1529 = scalar_lea.vmem %s4, 16
    %v1530 = vld [vmem:[%s1529] sm:$0xf]
    %v1531 = vld [vmem:[%s1529 + $0x4] sm:$0xf]
    %v1532 = vld [vmem:[%s1529 + $0x8] sm:$0xf]
    %v1533 = vld [vmem:[%s1529 + $0xc] sm:$0xf]
    %v1534 = vpack.c.bf16 %v1526, %v1525
    %v1535 = vpack.c.bf16 %v1528, %v1527
    %v1540 = vunpack.c.l.b16 %v1530
    %v1541 = vunpack.c.l.b16 %v1531
    %v1542 = vunpack.c.l.b16 %v1532
    %v1543 = vunpack.c.l.b16 %v1533
    %v1544 = vpack.c.b16 %v1541, %v1540
    %v1545 = vpack.c.b16 %v1543, %v1542
    %v1549 = vsel %vm439, %v1534, 0
    %v1552 = vsel %vm439, %v1535, 0
    %1554 = vmatprep.subr.bf16.mxu0 0
    %1555 = vmatpush1.bf16.msra.mxu0 %v1544
    %1556 = vmatprep.subr.bf16.mxu0 0
    %1557 = vmatpush1.bf16.msra.mxu0 %v1545
    %1558 = vmatprep.subr.bf16.mxu0 0
    %1559 = vmatpush1.bf16.msra.mxu0 0
    %1560 = vmatprep.subr.bf16.mxu0 0
    %1561 = vmatpush1.bf16.msra.mxu0 0
    %1562 = vmatprep.subr.bf16.mxu0 0
    %1563 = vmatpush1.bf16.msra.mxu0 0
    %1564 = vmatprep.subr.bf16.mxu0 0
    %1565 = vmatpush1.bf16.msra.mxu0 0
    %1566 = vmatprep.subr.bf16.mxu0 0
    %1567 = vmatpush1.bf16.msra.mxu0 0
    %1568 = vmatprep.subr.bf16.mxu0 0
    %1569 = vmatpush1.bf16.msra.mxu0 0
    %1570 = vmatprep.subr.bf16.mxu0 0
    %1571 = vmatpush1.bf16.msra.mxu0 0
    %1572 = vmatprep.subr.bf16.mxu0 0
    %1573 = vmatpush1.bf16.msra.mxu0 0
    %1574 = vmatprep.subr.bf16.mxu0 0
    %1575 = vmatpush1.bf16.msra.mxu0 0
    %1576 = vmatprep.subr.bf16.mxu0 0
    %1577 = vmatpush1.bf16.msra.mxu0 0
    %1578 = vmatprep.subr.bf16.mxu0 0
    %1579 = vmatpush1.bf16.msra.mxu0 0
    %1580 = vmatprep.subr.bf16.mxu0 0
    %1581 = vmatpush1.bf16.msra.mxu0 0
    %1582 = vmatprep.subr.bf16.mxu0 0
    %1583 = vmatpush1.bf16.msra.mxu0 0
    %1584 = vmatprep.subr.bf16.mxu0 0
    %1585 = vmatpush1.bf16.msra.mxu0 0
    %1586 = vmatprep.mubr.bf16.mxu0 0
    %1587 = vmatmul.mubr.bf16.gmra.mrb[0].mxu0 %v1549
    %v1588 = vpop.f32.mrb[0].mxu0
    %v1589 = vadd.f32 0.0, %v1588
    %v1590 = vpop.f32.mrb[0].mxu0
    %v1591 = vpop.f32.mrb[0].mxu0
    %v1592 = vadd.f32 0.0, %v1591
    %v1593 = vpop.f32.mrb[0].mxu0
    %1594 = vmatprep.mubr.bf16.mxu0 0
    %1595 = vmatmul.mubr.bf16.gmra.mrb[0].mxu0 %v1552
    %v1596 = vpop.f32.mrb[0].mxu0
    %v1597 = vadd.f32 0.0, %v1596
    %v1598 = vpop.f32.mrb[0].mxu0
    %v1599 = vpop.f32.mrb[0].mxu0
    %v1600 = vadd.f32 0.0, %v1599
    %v1601 = vpop.f32.mrb[0].mxu0
    %1602 = vdwg.mxu0
    %v1603 = vpack.c.bf16 %v1592, %v1589
    %v1604 = vpack.c.bf16 %v1600, %v1597
    %1605 = vmatprep.subr.bf16.mxu0 0
    %1606 = vmatpush1.bf16.msra.mxu0 %v1603
    %1607 = vmatprep.subr.bf16.mxu0 0
    %1608 = vmatpush1.bf16.msra.mxu0 %v1604
    %1609 = vmatprep.subr.bf16.mxu0 0
    %1610 = vmatpush1.bf16.msra.mxu0 0
    %1611 = vmatprep.subr.bf16.mxu0 0
    %1612 = vmatpush1.bf16.msra.mxu0 0
    %1613 = vmatprep.subr.bf16.mxu0 0
    %1614 = vmatpush1.bf16.msra.mxu0 0
    %1615 = vmatprep.subr.bf16.mxu0 0
    %1616 = vmatpush1.bf16.msra.mxu0 0
    %1617 = vmatprep.subr.bf16.mxu0 0
    %1618 = vmatpush1.bf16.msra.mxu0 0
    %1619 = vmatprep.subr.bf16.mxu0 0
    %1620 = vmatpush1.bf16.msra.mxu0 0
    %1621 = vmatprep.subr.bf16.mxu0 0
    %1622 = vmatpush1.bf16.msra.mxu0 0
    %1623 = vmatprep.subr.bf16.mxu0 0
    %1624 = vmatpush1.bf16.msra.mxu0 0
    %1625 = vmatprep.subr.bf16.mxu0 0
    %1626 = vmatpush1.bf16.msra.mxu0 0
    %1627 = vmatprep.subr.bf16.mxu0 0
    %1628 = vmatpush1.bf16.msra.mxu0 0
    %1629 = vmatprep.subr.bf16.mxu0 0
    %1630 = vmatpush1.bf16.msra.mxu0 0
    %1631 = vmatprep.subr.bf16.mxu0 0
    %1632 = vmatpush1.bf16.msra.mxu0 0
    %1633 = vmatprep.subr.bf16.mxu0 0
    %1634 = vmatpush1.bf16.msra.mxu0 0
    %1635 = vmatprep.subr.bf16.mxu0 0
    %1636 = vmatpush1.bf16.msra.mxu0 0
    %1637 = vmatprep.mubr.bf16.mxu0 0
    %1638 = vmatmul.mubr.bf16.gmra.mrb[0].mxu0 %v441
    %v1639 = vpop.f32.mrb[0].mxu0
    %v1640 = vadd.f32 0.0, %v1639
    %v1641 = vpop.f32.mrb[0].mxu0
    %v1642 = vpop.f32.mrb[0].mxu0
    %v1643 = vadd.f32 0.0, %v1642
    %v1644 = vpop.f32.mrb[0].mxu0
    %1645 = vmatprep.mubr.bf16.mxu0 0
    %1646 = vmatmul.mubr.bf16.gmra.mrb[0].mxu0 %v444
    %v1647 = vpop.f32.mrb[0].mxu0
    %v1648 = vadd.f32 0.0, %v1647
    %v1649 = vpop.f32.mrb[0].mxu0
    %v1650 = vpop.f32.mrb[0].mxu0
    %v1651 = vadd.f32 0.0, %v1650
    %v1652 = vpop.f32.mrb[0].mxu0
    %1653 = vmatprep.mubr.bf16.mxu0 0
    %1654 = vmatmul.mubr.bf16.gmra.mrb[0].mxu0 %v447
    %v1655 = vpop.f32.mrb[0].mxu0
    %v1656 = vadd.f32 0.0, %v1655
    %v1657 = vpop.f32.mrb[0].mxu0
    %v1658 = vpop.f32.mrb[0].mxu0
    %v1659 = vadd.f32 0.0, %v1658
    %v1660 = vpop.f32.mrb[0].mxu0
    %1661 = vmatprep.mubr.bf16.mxu0 0
    %1662 = vmatmul.mubr.bf16.gmra.mrb[0].mxu0 %v450
    %v1663 = vpop.f32.mrb[0].mxu0
    %v1664 = vadd.f32 0.0, %v1663
    %v1665 = vpop.f32.mrb[0].mxu0
    %v1666 = vpop.f32.mrb[0].mxu0
    %v1667 = vadd.f32 0.0, %v1666
    %v1668 = vpop.f32.mrb[0].mxu0
    %1669 = vmatprep.mubr.bf16.mxu0 0
    %1670 = vmatmul.mubr.bf16.gmra.mrb[0].mxu0 %v453
    %v1671 = vpop.f32.mrb[0].mxu0
    %v1672 = vadd.f32 0.0, %v1671
    %v1673 = vpop.f32.mrb[0].mxu0
    %v1674 = vpop.f32.mrb[0].mxu0
    %v1675 = vadd.f32 0.0, %v1674
    %v1676 = vpop.f32.mrb[0].mxu0
    %1677 = vmatprep.mubr.bf16.mxu0 0
    %1678 = vmatmul.mubr.bf16.gmra.mrb[0].mxu0 %v456
    %v1679 = vpop.f32.mrb[0].mxu0
    %v1680 = vadd.f32 0.0, %v1679
    %v1681 = vpop.f32.mrb[0].mxu0
    %v1682 = vpop.f32.mrb[0].mxu0
    %v1683 = vadd.f32 0.0, %v1682
    %v1684 = vpop.f32.mrb[0].mxu0
    %1685 = vmatprep.mubr.bf16.mxu0 0
    %1686 = vmatmul.mubr.bf16.gmra.mrb[0].mxu0 %v459
    %v1687 = vpop.f32.mrb[0].mxu0
    %v1688 = vadd.f32 0.0, %v1687
    %v1689 = vpop.f32.mrb[0].mxu0
    %v1690 = vpop.f32.mrb[0].mxu0
    %v1691 = vadd.f32 0.0, %v1690
    %v1692 = vpop.f32.mrb[0].mxu0
    %1693 = vmatprep.mubr.bf16.mxu0 0
    %1694 = vmatmul.mubr.bf16.gmra.mrb[0].mxu0 %v462
    %v1695 = vpop.f32.mrb[0].mxu0
    %v1696 = vadd.f32 0.0, %v1695
    %v1697 = vpop.f32.mrb[0].mxu0
    %v1698 = vpop.f32.mrb[0].mxu0
    %v1699 = vadd.f32 0.0, %v1698
    %v1700 = vpop.f32.mrb[0].mxu0
    %1701 = vdwg.mxu0
    %v1702 = vmul.f32 %v272, %v1640
    %v1703 = vmul.f32 %v272, %v1643
    %v1704 = vmul.f32 %v272, %v1648
    %v1705 = vmul.f32 %v272, %v1651
    %v1706 = vmul.f32 %v277, %v1656
    %v1707 = vmul.f32 %v277, %v1659
    %v1708 = vmul.f32 %v277, %v1664
    %v1709 = vmul.f32 %v277, %v1667
    %v1710 = vadd.f32 %v1702, %v1706
    %v1711 = vadd.f32 %v1703, %v1707
    %v1712 = vadd.f32 %v1704, %v1708
    %v1713 = vadd.f32 %v1705, %v1709
    %v1714 = vmul.f32 %v282, %v1672
    %v1715 = vmul.f32 %v282, %v1675
    %v1716 = vmul.f32 %v282, %v1680
    %v1717 = vmul.f32 %v282, %v1683
    %v1718 = vadd.f32 %v1710, %v1714
    %v1719 = vadd.f32 %v1711, %v1715
    %v1720 = vadd.f32 %v1712, %v1716
    %v1721 = vadd.f32 %v1713, %v1717
    %v1722 = vmul.f32 %v287, %v1688
    %v1723 = vmul.f32 %v287, %v1691
    %v1724 = vmul.f32 %v287, %v1696
    %v1725 = vmul.f32 %v287, %v1699
    %v1726 = vadd.f32 %v1718, %v1722
    %v1727 = vadd.f32 %v1719, %v1723
    %v1728 = vadd.f32 %v1720, %v1724
    %v1729 = vadd.f32 %v1721, %v1725
    %s1730 = scalar_lea.vmem %s5, 2
    %v1731 = vld [vmem:[%s1730] sm:$0x1]
    %v1733 = vlaneseq
    %v1734 = vshrl.u32 %v1733, 7
    %v1735 = vsub.s32 0, %v1734
    %v1736 = vrot.slane %v1731, %v1735
    %v1738 = vmul.f32 %v1736, %v1589
    %v1739 = vmul.f32 %v1736, %v1592
    %v1740 = vmul.f32 %v1736, %v1597
    %v1741 = vmul.f32 %v1736, %v1600
    %v1742 = vadd.f32 %v1726, %v1738
    %v1743 = vadd.f32 %v1727, %v1739
    %v1744 = vadd.f32 %v1728, %v1740
    %v1745 = vadd.f32 %v1729, %v1741
    %s1746 = scalar_lea.vmem [#allocation7], 2
    %v1747 = vld [vmem:[%s1746] sm:$0x1]
    %v1749 = vlaneseq
    %v1750 = vshrl.u32 %v1749, 7
    %v1751 = vsub.s32 0, %v1750
    %v1752 = vrot.slane %v1747, %v1751
    %v1754 = vadd.f32 %v1742, %v1752
    %v1755 = vadd.f32 %v1743, %v1752
    %v1756 = vadd.f32 %v1744, %v1752
    %v1757 = vadd.f32 %v1745, %v1752
    %v1758 = vmax.f32 %v1754, 0.0
    %v1759 = vmax.f32 %v1755, 0.0
    %v1760 = vmax.f32 %v1756, 0.0
    %v1761 = vmax.f32 %v1757, 0.0
    %s1762 = scalar_lea.vmem %s7, 128
    %v1763 = vld [vmem:[%s1762] sm:$0xf]
    %v1764 = vld [vmem:[%s1762 + $0x4] sm:$0xf]
    %v1765 = vld [vmem:[%s1762 + $0x8] sm:$0xf]
    %v1766 = vld [vmem:[%s1762 + $0xc] sm:$0xf]
    %v1767 = vld [vmem:[%s1762 + $0x10] sm:$0xf]
    %v1768 = vld [vmem:[%s1762 + $0x14] sm:$0xf]
    %v1769 = vld [vmem:[%s1762 + $0x18] sm:$0xf]
    %v1770 = vld [vmem:[%s1762 + $0x1c] sm:$0xf]
    %v1771 = vld [vmem:[%s1762 + $0x20] sm:$0xf]
    %v1772 = vld [vmem:[%s1762 + $0x24] sm:$0xf]
    %v1773 = vld [vmem:[%s1762 + $0x28] sm:$0xf]
    %v1774 = vld [vmem:[%s1762 + $0x2c] sm:$0xf]
    %v1775 = vld [vmem:[%s1762 + $0x30] sm:$0xf]
    %v1776 = vld [vmem:[%s1762 + $0x34] sm:$0xf]
    %v1777 = vld [vmem:[%s1762 + $0x38] sm:$0xf]
    %v1778 = vld [vmem:[%s1762 + $0x3c] sm:$0xf]
    %v1779 = vpack.c.bf16 %v1759, %v1758
    %v1780 = vpack.c.bf16 %v1761, %v1760
    %s1781 = scalar_lea.vmem [#allocation8], 2
    %v1782 = vld [vmem:[%s1781] sm:$0x1]
    %v1784 = vlaneseq
    %v1785 = vshrl.u32 %v1784, 7
    %v1786 = vsub.s32 0, %v1785
    %v1787 = vrot.slane %v1782, %v1786
    %v1805 = vunpack.c.l.b16 %v1763
    %v1806 = vunpack.c.l.b16 %v1764
    %v1807 = vunpack.c.l.b16 %v1765
    %v1808 = vunpack.c.l.b16 %v1766
    %v1809 = vunpack.c.l.b16 %v1767
    %v1810 = vunpack.c.l.b16 %v1768
    %v1811 = vunpack.c.l.b16 %v1769
    %v1812 = vunpack.c.l.b16 %v1770
    %v1813 = vunpack.c.l.b16 %v1771
    %v1814 = vunpack.c.l.b16 %v1772
    %v1815 = vunpack.c.l.b16 %v1773
    %v1816 = vunpack.c.l.b16 %v1774
    %v1817 = vunpack.c.l.b16 %v1775
    %v1818 = vunpack.c.l.b16 %v1776
    %v1819 = vunpack.c.l.b16 %v1777
    %v1820 = vunpack.c.l.b16 %v1778
    %v1821 = vpack.c.b16 %v1806, %v1805
    %v1822 = vpack.c.b16 %v1808, %v1807
    %v1823 = vpack.c.b16 %v1810, %v1809
    %v1824 = vpack.c.b16 %v1812, %v1811
    %v1825 = vpack.c.b16 %v1814, %v1813
    %v1826 = vpack.c.b16 %v1816, %v1815
    %v1827 = vpack.c.b16 %v1818, %v1817
    %v1828 = vpack.c.b16 %v1820, %v1819
    %1837 = vmatprep.subr.bf16.mxu0 0
    %1838 = vmatpush1.bf16.msra.mxu0 %v1821
    %1839 = vmatprep.subr.bf16.mxu0 0
    %1840 = vmatpush1.bf16.msra.mxu0 %v1822
    %1841 = vmatprep.subr.bf16.mxu0 0
    %1842 = vmatpush1.bf16.msra.mxu0 %v1823
    %1843 = vmatprep.subr.bf16.mxu0 0
    %1844 = vmatpush1.bf16.msra.mxu0 %v1824
    %1845 = vmatprep.subr.bf16.mxu0 0
    %1846 = vmatpush1.bf16.msra.mxu0 %v1825
    %1847 = vmatprep.subr.bf16.mxu0 0
    %1848 = vmatpush1.bf16.msra.mxu0 %v1826
    %1849 = vmatprep.subr.bf16.mxu0 0
    %1850 = vmatpush1.bf16.msra.mxu0 %v1827
    %1851 = vmatprep.subr.bf16.mxu0 0
    %1852 = vmatpush1.bf16.msra.mxu0 %v1828
    %1853 = vmatprep.subr.bf16.mxu0 0
    %1854 = vmatpush1.bf16.msra.mxu0 0
    %1855 = vmatprep.subr.bf16.mxu0 0
    %1856 = vmatpush1.bf16.msra.mxu0 0
    %1857 = vmatprep.subr.bf16.mxu0 0
    %1858 = vmatpush1.bf16.msra.mxu0 0
    %1859 = vmatprep.subr.bf16.mxu0 0
    %1860 = vmatpush1.bf16.msra.mxu0 0
    %1861 = vmatprep.subr.bf16.mxu0 0
    %1862 = vmatpush1.bf16.msra.mxu0 0
    %1863 = vmatprep.subr.bf16.mxu0 0
    %1864 = vmatpush1.bf16.msra.mxu0 0
    %1865 = vmatprep.subr.bf16.mxu0 0
    %1866 = vmatpush1.bf16.msra.mxu0 0
    %1867 = vmatprep.subr.bf16.mxu0 0
    %1868 = vmatpush1.bf16.msra.mxu0 0
    %1869 = vmatprep.mubr.bf16.mxu0 0
    %1870 = vmatmul.mubr.bf16.gmra.mrb[0].mxu0 %v1779
    %v1871 = vpop.f32.mrb[0].mxu0
    %v1872 = vadd.f32 %v1787, %v1871
    %v1873 = vpop.f32.mrb[0].mxu0
    %v1874 = vpop.f32.mrb[0].mxu0
    %v1875 = vadd.f32 %v1787, %v1874
    %v1876 = vpop.f32.mrb[0].mxu0
    %1877 = vmatprep.mubr.bf16.mxu0 0
    %1878 = vmatmul.mubr.bf16.gmra.mrb[0].mxu0 %v1780
    %v1879 = vpop.f32.mrb[0].mxu0
    %v1880 = vadd.f32 %v1787, %v1879
    %v1881 = vpop.f32.mrb[0].mxu0
    %v1882 = vpop.f32.mrb[0].mxu0
    %v1883 = vadd.f32 %v1787, %v1882
    %v1884 = vpop.f32.mrb[0].mxu0
    %1885 = vdwg.mxu0
    %v1886 = vmax.f32 %v1872, 0.0
    %v1887 = vmax.f32 %v1875, 0.0
    %v1888 = vmax.f32 %v1880, 0.0
    %v1889 = vmax.f32 %v1883, 0.0
    %s1890 = scalar_lea.vmem [#allocation10], 128
    %v1891 = vld [vmem:[%s1890] sm:$0xf]
    %v1892 = vld [vmem:[%s1890 + $0x4] sm:$0xf]
    %v1893 = vld [vmem:[%s1890 + $0x8] sm:$0xf]
    %v1894 = vld [vmem:[%s1890 + $0xc] sm:$0xf]
    %v1895 = vld [vmem:[%s1890 + $0x10] sm:$0xf]
    %v1896 = vld [vmem:[%s1890 + $0x14] sm:$0xf]
    %v1897 = vld [vmem:[%s1890 + $0x18] sm:$0xf]
    %v1898 = vld [vmem:[%s1890 + $0x1c] sm:$0xf]
    %v1899 = vld [vmem:[%s1890 + $0x20] sm:$0xf]
    %v1900 = vld [vmem:[%s1890 + $0x24] sm:$0xf]
    %v1901 = vld [vmem:[%s1890 + $0x28] sm:$0xf]
    %v1902 = vld [vmem:[%s1890 + $0x2c] sm:$0xf]
    %v1903 = vld [vmem:[%s1890 + $0x30] sm:$0xf]
    %v1904 = vld [vmem:[%s1890 + $0x34] sm:$0xf]
    %v1905 = vld [vmem:[%s1890 + $0x38] sm:$0xf]
    %v1906 = vld [vmem:[%s1890 + $0x3c] sm:$0xf]
    %v1907 = vpack.c.bf16 %v1887, %v1886
    %v1908 = vpack.c.bf16 %v1889, %v1888
    %s1909 = scalar_lea.vmem [#allocation11], 2
    %v1910 = vld [vmem:[%s1909] sm:$0x1]
    %v1912 = vlaneseq
    %v1913 = vshrl.u32 %v1912, 7
    %v1914 = vsub.s32 0, %v1913
    %v1915 = vrot.slane %v1910, %v1914
    %v1933 = vunpack.c.l.b16 %v1891
    %v1934 = vunpack.c.l.b16 %v1892
    %v1935 = vunpack.c.l.b16 %v1893
    %v1936 = vunpack.c.l.b16 %v1894
    %v1937 = vunpack.c.l.b16 %v1895
    %v1938 = vunpack.c.l.b16 %v1896
    %v1939 = vunpack.c.l.b16 %v1897
    %v1940 = vunpack.c.l.b16 %v1898
    %v1941 = vunpack.c.l.b16 %v1899
    %v1942 = vunpack.c.l.b16 %v1900
    %v1943 = vunpack.c.l.b16 %v1901
    %v1944 = vunpack.c.l.b16 %v1902
    %v1945 = vunpack.c.l.b16 %v1903
    %v1946 = vunpack.c.l.b16 %v1904
    %v1947 = vunpack.c.l.b16 %v1905
    %v1948 = vunpack.c.l.b16 %v1906
    %v1949 = vpack.c.b16 %v1934, %v1933
    %v1950 = vpack.c.b16 %v1936, %v1935
    %v1951 = vpack.c.b16 %v1938, %v1937
    %v1952 = vpack.c.b16 %v1940, %v1939
    %v1953 = vpack.c.b16 %v1942, %v1941
    %v1954 = vpack.c.b16 %v1944, %v1943
    %v1955 = vpack.c.b16 %v1946, %v1945
    %v1956 = vpack.c.b16 %v1948, %v1947
    %1965 = vmatprep.subr.bf16.mxu0 0
    %1966 = vmatpush1.bf16.msra.mxu0 %v1949
    %1967 = vmatprep.subr.bf16.mxu0 0
    %1968 = vmatpush1.bf16.msra.mxu0 %v1950
    %1969 = vmatprep.subr.bf16.mxu0 0
    %1970 = vmatpush1.bf16.msra.mxu0 %v1951
    %1971 = vmatprep.subr.bf16.mxu0 0
    %1972 = vmatpush1.bf16.msra.mxu0 %v1952
    %1973 = vmatprep.subr.bf16.mxu0 0
    %1974 = vmatpush1.bf16.msra.mxu0 %v1953
    %1975 = vmatprep.subr.bf16.mxu0 0
    %1976 = vmatpush1.bf16.msra.mxu0 %v1954
    %1977 = vmatprep.subr.bf16.mxu0 0
    %1978 = vmatpush1.bf16.msra.mxu0 %v1955
    %1979 = vmatprep.subr.bf16.mxu0 0
    %1980 = vmatpush1.bf16.msra.mxu0 %v1956
    %1981 = vmatprep.subr.bf16.mxu0 0
    %1982 = vmatpush1.bf16.msra.mxu0 0
    %1983 = vmatprep.subr.bf16.mxu0 0
    %1984 = vmatpush1.bf16.msra.mxu0 0
    %1985 = vmatprep.subr.bf16.mxu0 0
    %1986 = vmatpush1.bf16.msra.mxu0 0
    %1987 = vmatprep.subr.bf16.mxu0 0
    %1988 = vmatpush1.bf16.msra.mxu0 0
    %1989 = vmatprep.subr.bf16.mxu0 0
    %1990 = vmatpush1.bf16.msra.mxu0 0
    %1991 = vmatprep.subr.bf16.mxu0 0
    %1992 = vmatpush1.bf16.msra.mxu0 0
    %1993 = vmatprep.subr.bf16.mxu0 0
    %1994 = vmatpush1.bf16.msra.mxu0 0
    %1995 = vmatprep.subr.bf16.mxu0 0
    %1996 = vmatpush1.bf16.msra.mxu0 0
    %1997 = vmatprep.mubr.bf16.mxu0 0
    %1998 = vmatmul.mubr.bf16.gmra.mrb[0].mxu0 %v1907
    %v1999 = vpop.f32.mrb[0].mxu0
    %v2000 = vadd.f32 %v1915, %v1999
    %v2001 = vpop.f32.mrb[0].mxu0
    %v2002 = vpop.f32.mrb[0].mxu0
    %v2003 = vadd.f32 %v1915, %v2002
    %v2004 = vpop.f32.mrb[0].mxu0
    %2005 = vmatprep.mubr.bf16.mxu0 0
    %2006 = vmatmul.mubr.bf16.gmra.mrb[0].mxu0 %v1908
    %v2007 = vpop.f32.mrb[0].mxu0
    %v2008 = vadd.f32 %v1915, %v2007
    %v2009 = vpop.f32.mrb[0].mxu0
    %v2010 = vpop.f32.mrb[0].mxu0
    %v2011 = vadd.f32 %v1915, %v2010
    %v2012 = vpop.f32.mrb[0].mxu0
    %2013 = vdwg.mxu0
    %v2014 = vmax.f32 %v2000, 0.0
    %v2015 = vmax.f32 %v2003, 0.0
    %v2016 = vmax.f32 %v2008, 0.0
    %v2017 = vmax.f32 %v2011, 0.0
    %s2018 = scalar_lea.vmem [#allocation13], 32
    %v2019 = vld [vmem:[%s2018] sm:$0xf]
    %v2020 = vld [vmem:[%s2018 + $0x4] sm:$0xf]
    %v2021 = vld [vmem:[%s2018 + $0x8] sm:$0xf]
    %v2022 = vld [vmem:[%s2018 + $0xc] sm:$0xf]
    %v2023 = vpack.c.bf16 %v2015, %v2014
    %v2024 = vpack.c.bf16 %v2017, %v2016
    %s2025 = scalar_lea.vmem [#allocation14], 2
    %v2026 = vld [vmem:[%s2025] sm:$0x1]
    %v2028 = vlaneseq
    %v2029 = vshrl.u32 %v2028, 7
    %v2030 = vsub.s32 0, %v2029
    %v2031 = vrot.slane %v2026, %v2030
    %v2037 = vunpack.c.l.b16 %v2019
    %v2038 = vunpack.c.l.b16 %v2020
    %v2039 = vunpack.c.l.b16 %v2021
    %v2040 = vunpack.c.l.b16 %v2022
    %v2041 = vpack.c.b16 %v2038, %v2037
    %v2042 = vpack.c.b16 %v2040, %v2039
    %v2046 = vsel %vm439, %v2023, 0
    %v2049 = vsel %vm439, %v2024, 0
    %2051 = vmatprep.subr.bf16.mxu0 0
    %2052 = vmatpush1.bf16.msra.mxu0 %v2041
    %2053 = vmatprep.subr.bf16.mxu0 0
    %2054 = vmatpush1.bf16.msra.mxu0 %v2042
    %2055 = vmatprep.subr.bf16.mxu0 0
    %2056 = vmatpush1.bf16.msra.mxu0 0
    %2057 = vmatprep.subr.bf16.mxu0 0
    %2058 = vmatpush1.bf16.msra.mxu0 0
    %2059 = vmatprep.subr.bf16.mxu0 0
    %2060 = vmatpush1.bf16.msra.mxu0 0
    %2061 = vmatprep.subr.bf16.mxu0 0
    %2062 = vmatpush1.bf16.msra.mxu0 0
    %2063 = vmatprep.subr.bf16.mxu0 0
    %2064 = vmatpush1.bf16.msra.mxu0 0
    %2065 = vmatprep.subr.bf16.mxu0 0
    %2066 = vmatpush1.bf16.msra.mxu0 0
    %2067 = vmatprep.subr.bf16.mxu0 0
    %2068 = vmatpush1.bf16.msra.mxu0 0
    %2069 = vmatprep.subr.bf16.mxu0 0
    %2070 = vmatpush1.bf16.msra.mxu0 0
    %2071 = vmatprep.subr.bf16.mxu0 0
    %2072 = vmatpush1.bf16.msra.mxu0 0
    %2073 = vmatprep.subr.bf16.mxu0 0
    %2074 = vmatpush1.bf16.msra.mxu0 0
    %2075 = vmatprep.subr.bf16.mxu0 0
    %2076 = vmatpush1.bf16.msra.mxu0 0
    %2077 = vmatprep.subr.bf16.mxu0 0
    %2078 = vmatpush1.bf16.msra.mxu0 0
    %2079 = vmatprep.subr.bf16.mxu0 0
    %2080 = vmatpush1.bf16.msra.mxu0 0
    %2081 = vmatprep.subr.bf16.mxu0 0
    %2082 = vmatpush1.bf16.msra.mxu0 0
    %2083 = vmatprep.mubr.bf16.mxu0 0
    %2084 = vmatmul.mubr.bf16.gmra.mrb[0].mxu0 %v2046
    %v2085 = vpop.f32.mrb[0].mxu0
    %v2086 = vadd.f32 %v2031, %v2085
    %v2087 = vpop.f32.mrb[0].mxu0
    %v2088 = vpop.f32.mrb[0].mxu0
    %v2089 = vadd.f32 %v2031, %v2088
    %v2090 = vpop.f32.mrb[0].mxu0
    %2091 = vmatprep.mubr.bf16.mxu0 0
    %2092 = vmatmul.mubr.bf16.gmra.mrb[0].mxu0 %v2049
    %v2093 = vpop.f32.mrb[0].mxu0
    %v2094 = vadd.f32 %v2031, %v2093
    %v2095 = vpop.f32.mrb[0].mxu0
    %v2096 = vpop.f32.mrb[0].mxu0
    %v2097 = vadd.f32 %v2031, %v2096
    %v2098 = vpop.f32.mrb[0].mxu0
    %2099 = vdwg.mxu0
    %v2100 = vmax.f32 %v2086, 0.0
    %v2101 = vmax.f32 %v2089, 0.0
    %v2102 = vmax.f32 %v2094, 0.0
    %v2103 = vmax.f32 %v2097, 0.0
    %s2104 = scalar_lea.vmem %s4, 32
    %v2105 = vld [vmem:[%s2104] sm:$0xf]
    %v2106 = vld [vmem:[%s2104 + $0x4] sm:$0xf]
    %v2107 = vld [vmem:[%s2104 + $0x8] sm:$0xf]
    %v2108 = vld [vmem:[%s2104 + $0xc] sm:$0xf]
    %v2109 = vpack.c.bf16 %v2101, %v2100
    %v2110 = vpack.c.bf16 %v2103, %v2102
    %v2115 = vunpack.c.l.b16 %v2105
    %v2116 = vunpack.c.l.b16 %v2106
    %v2117 = vunpack.c.l.b16 %v2107
    %v2118 = vunpack.c.l.b16 %v2108
    %v2119 = vpack.c.b16 %v2116, %v2115
    %v2120 = vpack.c.b16 %v2118, %v2117
    %v2124 = vsel %vm439, %v2109, 0
    %v2127 = vsel %vm439, %v2110, 0
    %2129 = vmatprep.subr.bf16.mxu0 0
    %2130 = vmatpush1.bf16.msra.mxu0 %v2119
    %2131 = vmatprep.subr.bf16.mxu0 0
    %2132 = vmatpush1.bf16.msra.mxu0 %v2120
    %2133 = vmatprep.subr.bf16.mxu0 0
    %2134 = vmatpush1.bf16.msra.mxu0 0
    %2135 = vmatprep.subr.bf16.mxu0 0
    %2136 = vmatpush1.bf16.msra.mxu0 0
    %2137 = vmatprep.subr.bf16.mxu0 0
    %2138 = vmatpush1.bf16.msra.mxu0 0
    %2139 = vmatprep.subr.bf16.mxu0 0
    %2140 = vmatpush1.bf16.msra.mxu0 0
    %2141 = vmatprep.subr.bf16.mxu0 0
    %2142 = vmatpush1.bf16.msra.mxu0 0
    %2143 = vmatprep.subr.bf16.mxu0 0
    %2144 = vmatpush1.bf16.msra.mxu0 0
    %2145 = vmatprep.subr.bf16.mxu0 0
    %2146 = vmatpush1.bf16.msra.mxu0 0
    %2147 = vmatprep.subr.bf16.mxu0 0
    %2148 = vmatpush1.bf16.msra.mxu0 0
    %2149 = vmatprep.subr.bf16.mxu0 0
    %2150 = vmatpush1.bf16.msra.mxu0 0
    %2151 = vmatprep.subr.bf16.mxu0 0
    %2152 = vmatpush1.bf16.msra.mxu0 0
    %2153 = vmatprep.subr.bf16.mxu0 0
    %2154 = vmatpush1.bf16.msra.mxu0 0
    %2155 = vmatprep.subr.bf16.mxu0 0
    %2156 = vmatpush1.bf16.msra.mxu0 0
    %2157 = vmatprep.subr.bf16.mxu0 0
    %2158 = vmatpush1.bf16.msra.mxu0 0
    %2159 = vmatprep.subr.bf16.mxu0 0
    %2160 = vmatpush1.bf16.msra.mxu0 0
    %2161 = vmatprep.mubr.bf16.mxu0 0
    %2162 = vmatmul.mubr.bf16.gmra.mrb[0].mxu0 %v2124
    %v2163 = vpop.f32.mrb[0].mxu0
    %v2164 = vadd.f32 0.0, %v2163
    %v2165 = vpop.f32.mrb[0].mxu0
    %v2166 = vpop.f32.mrb[0].mxu0
    %v2167 = vadd.f32 0.0, %v2166
    %v2168 = vpop.f32.mrb[0].mxu0
    %2169 = vmatprep.mubr.bf16.mxu0 0
    %2170 = vmatmul.mubr.bf16.gmra.mrb[0].mxu0 %v2127
    %v2171 = vpop.f32.mrb[0].mxu0
    %v2172 = vadd.f32 0.0, %v2171
    %v2173 = vpop.f32.mrb[0].mxu0
    %v2174 = vpop.f32.mrb[0].mxu0
    %v2175 = vadd.f32 0.0, %v2174
    %v2176 = vpop.f32.mrb[0].mxu0
    %2177 = vdwg.mxu0
    %v2178 = vpack.c.bf16 %v2167, %v2164
    %v2179 = vpack.c.bf16 %v2175, %v2172
    %2180 = vmatprep.subr.bf16.mxu0 0
    %2181 = vmatpush1.bf16.msra.mxu0 %v2178
    %2182 = vmatprep.subr.bf16.mxu0 0
    %2183 = vmatpush1.bf16.msra.mxu0 %v2179
    %2184 = vmatprep.subr.bf16.mxu0 0
    %2185 = vmatpush1.bf16.msra.mxu0 0
    %2186 = vmatprep.subr.bf16.mxu0 0
    %2187 = vmatpush1.bf16.msra.mxu0 0
    %2188 = vmatprep.subr.bf16.mxu0 0
    %2189 = vmatpush1.bf16.msra.mxu0 0
    %2190 = vmatprep.subr.bf16.mxu0 0
    %2191 = vmatpush1.bf16.msra.mxu0 0
    %2192 = vmatprep.subr.bf16.mxu0 0
    %2193 = vmatpush1.bf16.msra.mxu0 0
    %2194 = vmatprep.subr.bf16.mxu0 0
    %2195 = vmatpush1.bf16.msra.mxu0 0
    %2196 = vmatprep.subr.bf16.mxu0 0
    %2197 = vmatpush1.bf16.msra.mxu0 0
    %2198 = vmatprep.subr.bf16.mxu0 0
    %2199 = vmatpush1.bf16.msra.mxu0 0
    %2200 = vmatprep.subr.bf16.mxu0 0
    %2201 = vmatpush1.bf16.msra.mxu0 0
    %2202 = vmatprep.subr.bf16.mxu0 0
    %2203 = vmatpush1.bf16.msra.mxu0 0
    %2204 = vmatprep.subr.bf16.mxu0 0
    %2205 = vmatpush1.bf16.msra.mxu0 0
    %2206 = vmatprep.subr.bf16.mxu0 0
    %2207 = vmatpush1.bf16.msra.mxu0 0
    %2208 = vmatprep.subr.bf16.mxu0 0
    %2209 = vmatpush1.bf16.msra.mxu0 0
    %2210 = vmatprep.subr.bf16.mxu0 0
    %2211 = vmatpush1.bf16.msra.mxu0 0
    %2212 = vmatprep.mubr.bf16.mxu0 0
    %2213 = vmatmul.mubr.bf16.gmra.mrb[0].mxu0 %v441
    %v2214 = vpop.f32.mrb[0].mxu0
    %v2215 = vadd.f32 0.0, %v2214
    %v2216 = vpop.f32.mrb[0].mxu0
    %v2217 = vpop.f32.mrb[0].mxu0
    %v2218 = vadd.f32 0.0, %v2217
    %v2219 = vpop.f32.mrb[0].mxu0
    %2220 = vmatprep.mubr.bf16.mxu0 0
    %2221 = vmatmul.mubr.bf16.gmra.mrb[0].mxu0 %v444
    %v2222 = vpop.f32.mrb[0].mxu0
    %v2223 = vadd.f32 0.0, %v2222
    %v2224 = vpop.f32.mrb[0].mxu0
    %v2225 = vpop.f32.mrb[0].mxu0
    %v2226 = vadd.f32 0.0, %v2225
    %v2227 = vpop.f32.mrb[0].mxu0
    %2228 = vmatprep.mubr.bf16.mxu0 0
    %2229 = vmatmul.mubr.bf16.gmra.mrb[0].mxu0 %v447
    %v2230 = vpop.f32.mrb[0].mxu0
    %v2231 = vadd.f32 0.0, %v2230
    %v2232 = vpop.f32.mrb[0].mxu0
    %v2233 = vpop.f32.mrb[0].mxu0
    %v2234 = vadd.f32 0.0, %v2233
    %v2235 = vpop.f32.mrb[0].mxu0
    %2236 = vmatprep.mubr.bf16.mxu0 0
    %2237 = vmatmul.mubr.bf16.gmra.mrb[0].mxu0 %v450
    %v2238 = vpop.f32.mrb[0].mxu0
    %v2239 = vadd.f32 0.0, %v2238
    %v2240 = vpop.f32.mrb[0].mxu0
    %v2241 = vpop.f32.mrb[0].mxu0
    %v2242 = vadd.f32 0.0, %v2241
    %v2243 = vpop.f32.mrb[0].mxu0
    %2244 = vmatprep.mubr.bf16.mxu0 0
    %2245 = vmatmul.mubr.bf16.gmra.mrb[0].mxu0 %v453
    %v2246 = vpop.f32.mrb[0].mxu0
    %v2247 = vadd.f32 0.0, %v2246
    %v2248 = vpop.f32.mrb[0].mxu0
    %v2249 = vpop.f32.mrb[0].mxu0
    %v2250 = vadd.f32 0.0, %v2249
    %v2251 = vpop.f32.mrb[0].mxu0
    %2252 = vmatprep.mubr.bf16.mxu0 0
    %2253 = vmatmul.mubr.bf16.gmra.mrb[0].mxu0 %v456
    %v2254 = vpop.f32.mrb[0].mxu0
    %v2255 = vadd.f32 0.0, %v2254
    %v2256 = vpop.f32.mrb[0].mxu0
    %v2257 = vpop.f32.mrb[0].mxu0
    %v2258 = vadd.f32 0.0, %v2257
    %v2259 = vpop.f32.mrb[0].mxu0
    %2260 = vmatprep.mubr.bf16.mxu0 0
    %2261 = vmatmul.mubr.bf16.gmra.mrb[0].mxu0 %v459
    %v2262 = vpop.f32.mrb[0].mxu0
    %v2263 = vadd.f32 0.0, %v2262
    %v2264 = vpop.f32.mrb[0].mxu0
    %v2265 = vpop.f32.mrb[0].mxu0
    %v2266 = vadd.f32 0.0, %v2265
    %v2267 = vpop.f32.mrb[0].mxu0
    %2268 = vmatprep.mubr.bf16.mxu0 0
    %2269 = vmatmul.mubr.bf16.gmra.mrb[0].mxu0 %v462
    %v2270 = vpop.f32.mrb[0].mxu0
    %v2271 = vadd.f32 0.0, %v2270
    %v2272 = vpop.f32.mrb[0].mxu0
    %v2273 = vpop.f32.mrb[0].mxu0
    %v2274 = vadd.f32 0.0, %v2273
    %v2275 = vpop.f32.mrb[0].mxu0
    %2276 = vdwg.mxu0
    %v2277 = vmul.f32 %v272, %v2215
    %v2278 = vmul.f32 %v272, %v2218
    %v2279 = vmul.f32 %v272, %v2223
    %v2280 = vmul.f32 %v272, %v2226
    %v2281 = vmul.f32 %v277, %v2231
    %v2282 = vmul.f32 %v277, %v2234
    %v2283 = vmul.f32 %v277, %v2239
    %v2284 = vmul.f32 %v277, %v2242
    %v2285 = vadd.f32 %v2277, %v2281
    %v2286 = vadd.f32 %v2278, %v2282
    %v2287 = vadd.f32 %v2279, %v2283
    %v2288 = vadd.f32 %v2280, %v2284
    %v2289 = vmul.f32 %v282, %v2247
    %v2290 = vmul.f32 %v282, %v2250
    %v2291 = vmul.f32 %v282, %v2255
    %v2292 = vmul.f32 %v282, %v2258
    %v2293 = vadd.f32 %v2285, %v2289
    %v2294 = vadd.f32 %v2286, %v2290
    %v2295 = vadd.f32 %v2287, %v2291
    %v2296 = vadd.f32 %v2288, %v2292
    %v2297 = vmul.f32 %v287, %v2263
    %v2298 = vmul.f32 %v287, %v2266
    %v2299 = vmul.f32 %v287, %v2271
    %v2300 = vmul.f32 %v287, %v2274
    %v2301 = vadd.f32 %v2293, %v2297
    %v2302 = vadd.f32 %v2294, %v2298
    %v2303 = vadd.f32 %v2295, %v2299
    %v2304 = vadd.f32 %v2296, %v2300
    %s2305 = scalar_lea.vmem %s5, 3
    %v2306 = vld [vmem:[%s2305] sm:$0x1]
    %v2308 = vlaneseq
    %v2309 = vshrl.u32 %v2308, 7
    %v2310 = vsub.s32 0, %v2309
    %v2311 = vrot.slane %v2306, %v2310
    %v2313 = vmul.f32 %v2311, %v2164
    %v2314 = vmul.f32 %v2311, %v2167
    %v2315 = vmul.f32 %v2311, %v2172
    %v2316 = vmul.f32 %v2311, %v2175
    %v2317 = vadd.f32 %v2301, %v2313
    %v2318 = vadd.f32 %v2302, %v2314
    %v2319 = vadd.f32 %v2303, %v2315
    %v2320 = vadd.f32 %v2304, %v2316
    %s2321 = scalar_lea.vmem [#allocation7], 3
    %v2322 = vld [vmem:[%s2321] sm:$0x1]
    %v2324 = vlaneseq
    %v2325 = vshrl.u32 %v2324, 7
    %v2326 = vsub.s32 0, %v2325
    %v2327 = vrot.slane %v2322, %v2326
    %v2329 = vadd.f32 %v2317, %v2327
    %v2330 = vadd.f32 %v2318, %v2327
    %v2331 = vadd.f32 %v2319, %v2327
    %v2332 = vadd.f32 %v2320, %v2327
    %v2333 = vmax.f32 %v2329, 0.0
    %v2334 = vmax.f32 %v2330, 0.0
    %v2335 = vmax.f32 %v2331, 0.0
    %v2336 = vmax.f32 %v2332, 0.0
    %s2337 = scalar_lea.vmem %s7, 192
    %v2338 = vld [vmem:[%s2337] sm:$0xf]
    %v2339 = vld [vmem:[%s2337 + $0x4] sm:$0xf]
    %v2340 = vld [vmem:[%s2337 + $0x8] sm:$0xf]
    %v2341 = vld [vmem:[%s2337 + $0xc] sm:$0xf]
    %v2342 = vld [vmem:[%s2337 + $0x10] sm:$0xf]
    %v2343 = vld [vmem:[%s2337 + $0x14] sm:$0xf]
    %v2344 = vld [vmem:[%s2337 + $0x18] sm:$0xf]
    %v2345 = vld [vmem:[%s2337 + $0x1c] sm:$0xf]
    %v2346 = vld [vmem:[%s2337 + $0x20] sm:$0xf]
    %v2347 = vld [vmem:[%s2337 + $0x24] sm:$0xf]
    %v2348 = vld [vmem:[%s2337 + $0x28] sm:$0xf]
    %v2349 = vld [vmem:[%s2337 + $0x2c] sm:$0xf]
    %v2350 = vld [vmem:[%s2337 + $0x30] sm:$0xf]
    %v2351 = vld [vmem:[%s2337 + $0x34] sm:$0xf]
    %v2352 = vld [vmem:[%s2337 + $0x38] sm:$0xf]
    %v2353 = vld [vmem:[%s2337 + $0x3c] sm:$0xf]
    %v2354 = vpack.c.bf16 %v2334, %v2333
    %v2355 = vpack.c.bf16 %v2336, %v2335
    %s2356 = scalar_lea.vmem [#allocation8], 3
    %v2357 = vld [vmem:[%s2356] sm:$0x1]
    %v2359 = vlaneseq
    %v2360 = vshrl.u32 %v2359, 7
    %v2361 = vsub.s32 0, %v2360
    %v2362 = vrot.slane %v2357, %v2361
    %v2380 = vunpack.c.l.b16 %v2338
    %v2381 = vunpack.c.l.b16 %v2339
    %v2382 = vunpack.c.l.b16 %v2340
    %v2383 = vunpack.c.l.b16 %v2341
    %v2384 = vunpack.c.l.b16 %v2342
    %v2385 = vunpack.c.l.b16 %v2343
    %v2386 = vunpack.c.l.b16 %v2344
    %v2387 = vunpack.c.l.b16 %v2345
    %v2388 = vunpack.c.l.b16 %v2346
    %v2389 = vunpack.c.l.b16 %v2347
    %v2390 = vunpack.c.l.b16 %v2348
    %v2391 = vunpack.c.l.b16 %v2349
    %v2392 = vunpack.c.l.b16 %v2350
    %v2393 = vunpack.c.l.b16 %v2351
    %v2394 = vunpack.c.l.b16 %v2352
    %v2395 = vunpack.c.l.b16 %v2353
    %v2396 = vpack.c.b16 %v2381, %v2380
    %v2397 = vpack.c.b16 %v2383, %v2382
    %v2398 = vpack.c.b16 %v2385, %v2384
    %v2399 = vpack.c.b16 %v2387, %v2386
    %v2400 = vpack.c.b16 %v2389, %v2388
    %v2401 = vpack.c.b16 %v2391, %v2390
    %v2402 = vpack.c.b16 %v2393, %v2392
    %v2403 = vpack.c.b16 %v2395, %v2394
    %2412 = vmatprep.subr.bf16.mxu0 0
    %2413 = vmatpush1.bf16.msra.mxu0 %v2396
    %2414 = vmatprep.subr.bf16.mxu0 0
    %2415 = vmatpush1.bf16.msra.mxu0 %v2397
    %2416 = vmatprep.subr.bf16.mxu0 0
    %2417 = vmatpush1.bf16.msra.mxu0 %v2398
    %2418 = vmatprep.subr.bf16.mxu0 0
    %2419 = vmatpush1.bf16.msra.mxu0 %v2399
    %2420 = vmatprep.subr.bf16.mxu0 0
    %2421 = vmatpush1.bf16.msra.mxu0 %v2400
    %2422 = vmatprep.subr.bf16.mxu0 0
    %2423 = vmatpush1.bf16.msra.mxu0 %v2401
    %2424 = vmatprep.subr.bf16.mxu0 0
    %2425 = vmatpush1.bf16.msra.mxu0 %v2402
    %2426 = vmatprep.subr.bf16.mxu0 0
    %2427 = vmatpush1.bf16.msra.mxu0 %v2403
    %2428 = vmatprep.subr.bf16.mxu0 0
    %2429 = vmatpush1.bf16.msra.mxu0 0
    %2430 = vmatprep.subr.bf16.mxu0 0
    %2431 = vmatpush1.bf16.msra.mxu0 0
    %2432 = vmatprep.subr.bf16.mxu0 0
    %2433 = vmatpush1.bf16.msra.mxu0 0
    %2434 = vmatprep.subr.bf16.mxu0 0
    %2435 = vmatpush1.bf16.msra.mxu0 0
    %2436 = vmatprep.subr.bf16.mxu0 0
    %2437 = vmatpush1.bf16.msra.mxu0 0
    %2438 = vmatprep.subr.bf16.mxu0 0
    %2439 = vmatpush1.bf16.msra.mxu0 0
    %2440 = vmatprep.subr.bf16.mxu0 0
    %2441 = vmatpush1.bf16.msra.mxu0 0
    %2442 = vmatprep.subr.bf16.mxu0 0
    %2443 = vmatpush1.bf16.msra.mxu0 0
    %2444 = vmatprep.mubr.bf16.mxu0 0
    %2445 = vmatmul.mubr.bf16.gmra.mrb[0].mxu0 %v2354
    %v2446 = vpop.f32.mrb[0].mxu0
    %v2447 = vadd.f32 %v2362, %v2446
    %v2448 = vpop.f32.mrb[0].mxu0
    %v2449 = vpop.f32.mrb[0].mxu0
    %v2450 = vadd.f32 %v2362, %v2449
    %v2451 = vpop.f32.mrb[0].mxu0
    %2452 = vmatprep.mubr.bf16.mxu0 0
    %2453 = vmatmul.mubr.bf16.gmra.mrb[0].mxu0 %v2355
    %v2454 = vpop.f32.mrb[0].mxu0
    %v2455 = vadd.f32 %v2362, %v2454
    %v2456 = vpop.f32.mrb[0].mxu0
    %v2457 = vpop.f32.mrb[0].mxu0
    %v2458 = vadd.f32 %v2362, %v2457
    %v2459 = vpop.f32.mrb[0].mxu0
    %2460 = vdwg.mxu0
    %v2461 = vmax.f32 %v2447, 0.0
    %v2462 = vmax.f32 %v2450, 0.0
    %v2463 = vmax.f32 %v2455, 0.0
    %v2464 = vmax.f32 %v2458, 0.0
    %s2465 = scalar_lea.vmem [#allocation10], 192
    %v2466 = vld [vmem:[%s2465] sm:$0xf]
    %v2467 = vld [vmem:[%s2465 + $0x4] sm:$0xf]
    %v2468 = vld [vmem:[%s2465 + $0x8] sm:$0xf]
    %v2469 = vld [vmem:[%s2465 + $0xc] sm:$0xf]
    %v2470 = vld [vmem:[%s2465 + $0x10] sm:$0xf]
    %v2471 = vld [vmem:[%s2465 + $0x14] sm:$0xf]
    %v2472 = vld [vmem:[%s2465 + $0x18] sm:$0xf]
    %v2473 = vld [vmem:[%s2465 + $0x1c] sm:$0xf]
    %v2474 = vld [vmem:[%s2465 + $0x20] sm:$0xf]
    %v2475 = vld [vmem:[%s2465 + $0x24] sm:$0xf]
    %v2476 = vld [vmem:[%s2465 + $0x28] sm:$0xf]
    %v2477 = vld [vmem:[%s2465 + $0x2c] sm:$0xf]
    %v2478 = vld [vmem:[%s2465 + $0x30] sm:$0xf]
    %v2479 = vld [vmem:[%s2465 + $0x34] sm:$0xf]
    %v2480 = vld [vmem:[%s2465 + $0x38] sm:$0xf]
    %v2481 = vld [vmem:[%s2465 + $0x3c] sm:$0xf]
    %v2482 = vpack.c.bf16 %v2462, %v2461
    %v2483 = vpack.c.bf16 %v2464, %v2463
    %s2484 = scalar_lea.vmem [#allocation11], 3
    %v2485 = vld [vmem:[%s2484] sm:$0x1]
    %v2487 = vlaneseq
    %v2488 = vshrl.u32 %v2487, 7
    %v2489 = vsub.s32 0, %v2488
    %v2490 = vrot.slane %v2485, %v2489
    %v2508 = vunpack.c.l.b16 %v2466
    %v2509 = vunpack.c.l.b16 %v2467
    %v2510 = vunpack.c.l.b16 %v2468
    %v2511 = vunpack.c.l.b16 %v2469
    %v2512 = vunpack.c.l.b16 %v2470
    %v2513 = vunpack.c.l.b16 %v2471
    %v2514 = vunpack.c.l.b16 %v2472
    %v2515 = vunpack.c.l.b16 %v2473
    %v2516 = vunpack.c.l.b16 %v2474
    %v2517 = vunpack.c.l.b16 %v2475
    %v2518 = vunpack.c.l.b16 %v2476
    %v2519 = vunpack.c.l.b16 %v2477
    %v2520 = vunpack.c.l.b16 %v2478
    %v2521 = vunpack.c.l.b16 %v2479
    %v2522 = vunpack.c.l.b16 %v2480
    %v2523 = vunpack.c.l.b16 %v2481
    %v2524 = vpack.c.b16 %v2509, %v2508
    %v2525 = vpack.c.b16 %v2511, %v2510
    %v2526 = vpack.c.b16 %v2513, %v2512
    %v2527 = vpack.c.b16 %v2515, %v2514
    %v2528 = vpack.c.b16 %v2517, %v2516
    %v2529 = vpack.c.b16 %v2519, %v2518
    %v2530 = vpack.c.b16 %v2521, %v2520
    %v2531 = vpack.c.b16 %v2523, %v2522
    %2540 = vmatprep.subr.bf16.mxu0 0
    %2541 = vmatpush1.bf16.msra.mxu0 %v2524
    %2542 = vmatprep.subr.bf16.mxu0 0
    %2543 = vmatpush1.bf16.msra.mxu0 %v2525
    %2544 = vmatprep.subr.bf16.mxu0 0
    %2545 = vmatpush1.bf16.msra.mxu0 %v2526
    %2546 = vmatprep.subr.bf16.mxu0 0
    %2547 = vmatpush1.bf16.msra.mxu0 %v2527
    %2548 = vmatprep.subr.bf16.mxu0 0
    %2549 = vmatpush1.bf16.msra.mxu0 %v2528
    %2550 = vmatprep.subr.bf16.mxu0 0
    %2551 = vmatpush1.bf16.msra.mxu0 %v2529
    %2552 = vmatprep.subr.bf16.mxu0 0
    %2553 = vmatpush1.bf16.msra.mxu0 %v2530
    %2554 = vmatprep.subr.bf16.mxu0 0
    %2555 = vmatpush1.bf16.msra.mxu0 %v2531
    %2556 = vmatprep.subr.bf16.mxu0 0
    %2557 = vmatpush1.bf16.msra.mxu0 0
    %2558 = vmatprep.subr.bf16.mxu0 0
    %2559 = vmatpush1.bf16.msra.mxu0 0
    %2560 = vmatprep.subr.bf16.mxu0 0
    %2561 = vmatpush1.bf16.msra.mxu0 0
    %2562 = vmatprep.subr.bf16.mxu0 0
    %2563 = vmatpush1.bf16.msra.mxu0 0
    %2564 = vmatprep.subr.bf16.mxu0 0
    %2565 = vmatpush1.bf16.msra.mxu0 0
    %2566 = vmatprep.subr.bf16.mxu0 0
    %2567 = vmatpush1.bf16.msra.mxu0 0
    %2568 = vmatprep.subr.bf16.mxu0 0
    %2569 = vmatpush1.bf16.msra.mxu0 0
    %2570 = vmatprep.subr.bf16.mxu0 0
    %2571 = vmatpush1.bf16.msra.mxu0 0
    %2572 = vmatprep.mubr.bf16.mxu0 0
    %2573 = vmatmul.mubr.bf16.gmra.mrb[0].mxu0 %v2482
    %v2574 = vpop.f32.mrb[0].mxu0
    %v2575 = vadd.f32 %v2490, %v2574
    %v2576 = vpop.f32.mrb[0].mxu0
    %v2577 = vpop.f32.mrb[0].mxu0
    %v2578 = vadd.f32 %v2490, %v2577
    %v2579 = vpop.f32.mrb[0].mxu0
    %2580 = vmatprep.mubr.bf16.mxu0 0
    %2581 = vmatmul.mubr.bf16.gmra.mrb[0].mxu0 %v2483
    %v2582 = vpop.f32.mrb[0].mxu0
    %v2583 = vadd.f32 %v2490, %v2582
    %v2584 = vpop.f32.mrb[0].mxu0
    %v2585 = vpop.f32.mrb[0].mxu0
    %v2586 = vadd.f32 %v2490, %v2585
    %v2587 = vpop.f32.mrb[0].mxu0
    %2588 = vdwg.mxu0
    %v2589 = vmax.f32 %v2575, 0.0
    %v2590 = vmax.f32 %v2578, 0.0
    %v2591 = vmax.f32 %v2583, 0.0
    %v2592 = vmax.f32 %v2586, 0.0
    %s2593 = scalar_lea.vmem [#allocation13], 48
    %v2594 = vld [vmem:[%s2593] sm:$0xf]
    %v2595 = vld [vmem:[%s2593 + $0x4] sm:$0xf]
    %v2596 = vld [vmem:[%s2593 + $0x8] sm:$0xf]
    %v2597 = vld [vmem:[%s2593 + $0xc] sm:$0xf]
    %v2598 = vpack.c.bf16 %v2590, %v2589
    %v2599 = vpack.c.bf16 %v2592, %v2591
    %s2600 = scalar_lea.vmem [#allocation14], 3
    %v2601 = vld [vmem:[%s2600] sm:$0x1]
    %v2603 = vlaneseq
    %v2604 = vshrl.u32 %v2603, 7
    %v2605 = vsub.s32 0, %v2604
    %v2606 = vrot.slane %v2601, %v2605
    %v2612 = vunpack.c.l.b16 %v2594
    %v2613 = vunpack.c.l.b16 %v2595
    %v2614 = vunpack.c.l.b16 %v2596
    %v2615 = vunpack.c.l.b16 %v2597
    %v2616 = vpack.c.b16 %v2613, %v2612
    %v2617 = vpack.c.b16 %v2615, %v2614
    %v2621 = vsel %vm439, %v2598, 0
    %v2624 = vsel %vm439, %v2599, 0
    %2626 = vmatprep.subr.bf16.mxu0 0
    %2627 = vmatpush1.bf16.msra.mxu0 %v2616
    %2628 = vmatprep.subr.bf16.mxu0 0
    %2629 = vmatpush1.bf16.msra.mxu0 %v2617
    %2630 = vmatprep.subr.bf16.mxu0 0
    %2631 = vmatpush1.bf16.msra.mxu0 0
    %2632 = vmatprep.subr.bf16.mxu0 0
    %2633 = vmatpush1.bf16.msra.mxu0 0
    %2634 = vmatprep.subr.bf16.mxu0 0
    %2635 = vmatpush1.bf16.msra.mxu0 0
    %2636 = vmatprep.subr.bf16.mxu0 0
    %2637 = vmatpush1.bf16.msra.mxu0 0
    %2638 = vmatprep.subr.bf16.mxu0 0
    %2639 = vmatpush1.bf16.msra.mxu0 0
    %2640 = vmatprep.subr.bf16.mxu0 0
    %2641 = vmatpush1.bf16.msra.mxu0 0
    %2642 = vmatprep.subr.bf16.mxu0 0
    %2643 = vmatpush1.bf16.msra.mxu0 0
    %2644 = vmatprep.subr.bf16.mxu0 0
    %2645 = vmatpush1.bf16.msra.mxu0 0
    %2646 = vmatprep.subr.bf16.mxu0 0
    %2647 = vmatpush1.bf16.msra.mxu0 0
    %2648 = vmatprep.subr.bf16.mxu0 0
    %2649 = vmatpush1.bf16.msra.mxu0 0
    %2650 = vmatprep.subr.bf16.mxu0 0
    %2651 = vmatpush1.bf16.msra.mxu0 0
    %2652 = vmatprep.subr.bf16.mxu0 0
    %2653 = vmatpush1.bf16.msra.mxu0 0
    %2654 = vmatprep.subr.bf16.mxu0 0
    %2655 = vmatpush1.bf16.msra.mxu0 0
    %2656 = vmatprep.subr.bf16.mxu0 0
    %2657 = vmatpush1.bf16.msra.mxu0 0
    %2658 = vmatprep.mubr.bf16.mxu0 0
    %2659 = vmatmul.mubr.bf16.gmra.mrb[0].mxu0 %v2621
    %v2660 = vpop.f32.mrb[0].mxu0
    %v2661 = vadd.f32 %v2606, %v2660
    %v2662 = vpop.f32.mrb[0].mxu0
    %v2663 = vpop.f32.mrb[0].mxu0
    %v2664 = vadd.f32 %v2606, %v2663
    %v2665 = vpop.f32.mrb[0].mxu0
    %2666 = vmatprep.mubr.bf16.mxu0 0
    %2667 = vmatmul.mubr.bf16.gmra.mrb[0].mxu0 %v2624
    %v2668 = vpop.f32.mrb[0].mxu0
    %v2669 = vadd.f32 %v2606, %v2668
    %v2670 = vpop.f32.mrb[0].mxu0
    %v2671 = vpop.f32.mrb[0].mxu0
    %v2672 = vadd.f32 %v2606, %v2671
    %v2673 = vpop.f32.mrb[0].mxu0
    %2674 = vdwg.mxu0
    %v2675 = vmax.f32 %v2661, 0.0
    %v2676 = vmax.f32 %v2664, 0.0
    %v2677 = vmax.f32 %v2669, 0.0
    %v2678 = vmax.f32 %v2672, 0.0
    %s2679 = scalar_lea.vmem %s4, 48
    %v2680 = vld [vmem:[%s2679] sm:$0xf]
    %v2681 = vld [vmem:[%s2679 + $0x4] sm:$0xf]
    %v2682 = vld [vmem:[%s2679 + $0x8] sm:$0xf]
    %v2683 = vld [vmem:[%s2679 + $0xc] sm:$0xf]
    %v2684 = vpack.c.bf16 %v2676, %v2675
    %v2685 = vpack.c.bf16 %v2678, %v2677
    %v2690 = vunpack.c.l.b16 %v2680
    %v2691 = vunpack.c.l.b16 %v2681
    %v2692 = vunpack.c.l.b16 %v2682
    %v2693 = vunpack.c.l.b16 %v2683
    %v2694 = vpack.c.b16 %v2691, %v2690
    %v2695 = vpack.c.b16 %v2693, %v2692
    %v2699 = vsel %vm439, %v2684, 0
    %v2702 = vsel %vm439, %v2685, 0
    %2704 = vmatprep.subr.bf16.mxu0 0
    %2705 = vmatpush1.bf16.msra.mxu0 %v2694
    %2706 = vmatprep.subr.bf16.mxu0 0
    %2707 = vmatpush1.bf16.msra.mxu0 %v2695
    %2708 = vmatprep.subr.bf16.mxu0 0
    %2709 = vmatpush1.bf16.msra.mxu0 0
    %2710 = vmatprep.subr.bf16.mxu0 0
    %2711 = vmatpush1.bf16.msra.mxu0 0
    %2712 = vmatprep.subr.bf16.mxu0 0
    %2713 = vmatpush1.bf16.msra.mxu0 0
    %2714 = vmatprep.subr.bf16.mxu0 0
    %2715 = vmatpush1.bf16.msra.mxu0 0
    %2716 = vmatprep.subr.bf16.mxu0 0
    %2717 = vmatpush1.bf16.msra.mxu0 0
    %2718 = vmatprep.subr.bf16.mxu0 0
    %2719 = vmatpush1.bf16.msra.mxu0 0
    %2720 = vmatprep.subr.bf16.mxu0 0
    %2721 = vmatpush1.bf16.msra.mxu0 0
    %2722 = vmatprep.subr.bf16.mxu0 0
    %2723 = vmatpush1.bf16.msra.mxu0 0
    %2724 = vmatprep.subr.bf16.mxu0 0
    %2725 = vmatpush1.bf16.msra.mxu0 0
    %2726 = vmatprep.subr.bf16.mxu0 0
    %2727 = vmatpush1.bf16.msra.mxu0 0
    %2728 = vmatprep.subr.bf16.mxu0 0
    %2729 = vmatpush1.bf16.msra.mxu0 0
    %2730 = vmatprep.subr.bf16.mxu0 0
    %2731 = vmatpush1.bf16.msra.mxu0 0
    %2732 = vmatprep.subr.bf16.mxu0 0
    %2733 = vmatpush1.bf16.msra.mxu0 0
    %2734 = vmatprep.subr.bf16.mxu0 0
    %2735 = vmatpush1.bf16.msra.mxu0 0
    %2736 = vmatprep.mubr.bf16.mxu0 0
    %2737 = vmatmul.mubr.bf16.gmra.mrb[0].mxu0 %v2699
    %v2738 = vpop.f32.mrb[0].mxu0
    %v2739 = vadd.f32 0.0, %v2738
    %v2740 = vpop.f32.mrb[0].mxu0
    %v2741 = vpop.f32.mrb[0].mxu0
    %v2742 = vadd.f32 0.0, %v2741
    %v2743 = vpop.f32.mrb[0].mxu0
    %2744 = vmatprep.mubr.bf16.mxu0 0
    %2745 = vmatmul.mubr.bf16.gmra.mrb[0].mxu0 %v2702
    %v2746 = vpop.f32.mrb[0].mxu0
    %v2747 = vadd.f32 0.0, %v2746
    %v2748 = vpop.f32.mrb[0].mxu0
    %v2749 = vpop.f32.mrb[0].mxu0
    %v2750 = vadd.f32 0.0, %v2749
    %v2751 = vpop.f32.mrb[0].mxu0
    %2752 = vdwg.mxu0
    %v2753 = vpack.c.bf16 %v2742, %v2739
    %v2754 = vpack.c.bf16 %v2750, %v2747
    %2755 = vmatprep.subr.bf16.mxu0 0
    %2756 = vmatpush1.bf16.msra.mxu0 %v2753
    %2757 = vmatprep.subr.bf16.mxu0 0
    %2758 = vmatpush1.bf16.msra.mxu0 %v2754
    %2759 = vmatprep.subr.bf16.mxu0 0
    %2760 = vmatpush1.bf16.msra.mxu0 0
    %2761 = vmatprep.subr.bf16.mxu0 0
    %2762 = vmatpush1.bf16.msra.mxu0 0
    %2763 = vmatprep.subr.bf16.mxu0 0
    %2764 = vmatpush1.bf16.msra.mxu0 0
    %2765 = vmatprep.subr.bf16.mxu0 0
    %2766 = vmatpush1.bf16.msra.mxu0 0
    %2767 = vmatprep.subr.bf16.mxu0 0
    %2768 = vmatpush1.bf16.msra.mxu0 0
    %2769 = vmatprep.subr.bf16.mxu0 0
    %2770 = vmatpush1.bf16.msra.mxu0 0
    %2771 = vmatprep.subr.bf16.mxu0 0
    %2772 = vmatpush1.bf16.msra.mxu0 0
    %2773 = vmatprep.subr.bf16.mxu0 0
    %2774 = vmatpush1.bf16.msra.mxu0 0
    %2775 = vmatprep.subr.bf16.mxu0 0
    %2776 = vmatpush1.bf16.msra.mxu0 0
    %2777 = vmatprep.subr.bf16.mxu0 0
    %2778 = vmatpush1.bf16.msra.mxu0 0
    %2779 = vmatprep.subr.bf16.mxu0 0
    %2780 = vmatpush1.bf16.msra.mxu0 0
    %2781 = vmatprep.subr.bf16.mxu0 0
    %2782 = vmatpush1.bf16.msra.mxu0 0
    %2783 = vmatprep.subr.bf16.mxu0 0
    %2784 = vmatpush1.bf16.msra.mxu0 0
    %2785 = vmatprep.subr.bf16.mxu0 0
    %2786 = vmatpush1.bf16.msra.mxu0 0
    %2787 = vmatprep.mubr.bf16.mxu0 0
    %2788 = vmatmul.mubr.bf16.gmra.mrb[0].mxu0 %v441
    %v2789 = vpop.f32.mrb[0].mxu0
    %v2790 = vadd.f32 0.0, %v2789
    %v2791 = vpop.f32.mrb[0].mxu0
    %v2792 = vpop.f32.mrb[0].mxu0
    %v2793 = vadd.f32 0.0, %v2792
    %v2794 = vpop.f32.mrb[0].mxu0
    %2795 = vmatprep.mubr.bf16.mxu0 0
    %2796 = vmatmul.mubr.bf16.gmra.mrb[0].mxu0 %v444
    %v2797 = vpop.f32.mrb[0].mxu0
    %v2798 = vadd.f32 0.0, %v2797
    %v2799 = vpop.f32.mrb[0].mxu0
    %v2800 = vpop.f32.mrb[0].mxu0
    %v2801 = vadd.f32 0.0, %v2800
    %v2802 = vpop.f32.mrb[0].mxu0
    %2803 = vmatprep.mubr.bf16.mxu0 0
    %2804 = vmatmul.mubr.bf16.gmra.mrb[0].mxu0 %v447
    %v2805 = vpop.f32.mrb[0].mxu0
    %v2806 = vadd.f32 0.0, %v2805
    %v2807 = vpop.f32.mrb[0].mxu0
    %v2808 = vpop.f32.mrb[0].mxu0
    %v2809 = vadd.f32 0.0, %v2808
    %v2810 = vpop.f32.mrb[0].mxu0
    %2811 = vmatprep.mubr.bf16.mxu0 0
    %2812 = vmatmul.mubr.bf16.gmra.mrb[0].mxu0 %v450
    %v2813 = vpop.f32.mrb[0].mxu0
    %v2814 = vadd.f32 0.0, %v2813
    %v2815 = vpop.f32.mrb[0].mxu0
    %v2816 = vpop.f32.mrb[0].mxu0
    %v2817 = vadd.f32 0.0, %v2816
    %v2818 = vpop.f32.mrb[0].mxu0
    %2819 = vmatprep.mubr.bf16.mxu0 0
    %2820 = vmatmul.mubr.bf16.gmra.mrb[0].mxu0 %v453
    %v2821 = vpop.f32.mrb[0].mxu0
    %v2822 = vadd.f32 0.0, %v2821
    %v2823 = vpop.f32.mrb[0].mxu0
    %v2824 = vpop.f32.mrb[0].mxu0
    %v2825 = vadd.f32 0.0, %v2824
    %v2826 = vpop.f32.mrb[0].mxu0
    %2827 = vmatprep.mubr.bf16.mxu0 0
    %2828 = vmatmul.mubr.bf16.gmra.mrb[0].mxu0 %v456
    %v2829 = vpop.f32.mrb[0].mxu0
    %v2830 = vadd.f32 0.0, %v2829
    %v2831 = vpop.f32.mrb[0].mxu0
    %v2832 = vpop.f32.mrb[0].mxu0
    %v2833 = vadd.f32 0.0, %v2832
    %v2834 = vpop.f32.mrb[0].mxu0
    %2835 = vmatprep.mubr.bf16.mxu0 0
    %2836 = vmatmul.mubr.bf16.gmra.mrb[0].mxu0 %v459
    %v2837 = vpop.f32.mrb[0].mxu0
    %v2838 = vadd.f32 0.0, %v2837
    %v2839 = vpop.f32.mrb[0].mxu0
    %v2840 = vpop.f32.mrb[0].mxu0
    %v2841 = vadd.f32 0.0, %v2840
    %v2842 = vpop.f32.mrb[0].mxu0
    %2843 = vmatprep.mubr.bf16.mxu0 0
    %2844 = vmatmul.mubr.bf16.gmra.mrb[0].mxu0 %v462
    %v2845 = vpop.f32.mrb[0].mxu0
    %v2846 = vadd.f32 0.0, %v2845
    %v2847 = vpop.f32.mrb[0].mxu0
    %v2848 = vpop.f32.mrb[0].mxu0
    %v2849 = vadd.f32 0.0, %v2848
    %v2850 = vpop.f32.mrb[0].mxu0
    %2851 = vdwg.mxu0
    %v2852 = vmul.f32 %v272, %v2790
    %v2853 = vmul.f32 %v272, %v2793
    %v2854 = vmul.f32 %v272, %v2798
    %v2855 = vmul.f32 %v272, %v2801
    %v2856 = vmul.f32 %v277, %v2806
    %v2857 = vmul.f32 %v277, %v2809
    %v2858 = vmul.f32 %v277, %v2814
    %v2859 = vmul.f32 %v277, %v2817
    %v2860 = vadd.f32 %v2852, %v2856
    %v2861 = vadd.f32 %v2853, %v2857
    %v2862 = vadd.f32 %v2854, %v2858
    %v2863 = vadd.f32 %v2855, %v2859
    %v2864 = vmul.f32 %v282, %v2822
    %v2865 = vmul.f32 %v282, %v2825
    %v2866 = vmul.f32 %v282, %v2830
    %v2867 = vmul.f32 %v282, %v2833
    %v2868 = vadd.f32 %v2860, %v2864
    %v2869 = vadd.f32 %v2861, %v2865
    %v2870 = vadd.f32 %v2862, %v2866
    %v2871 = vadd.f32 %v2863, %v2867
    %v2872 = vmul.f32 %v287, %v2838
    %v2873 = vmul.f32 %v287, %v2841
    %v2874 = vmul.f32 %v287, %v2846
    %v2875 = vmul.f32 %v287, %v2849
    %v2876 = vadd.f32 %v2868, %v2872
    %v2877 = vadd.f32 %v2869, %v2873
    %v2878 = vadd.f32 %v2870, %v2874
    %v2879 = vadd.f32 %v2871, %v2875
    %s2880 = scalar_lea.vmem %s5, 4
    %v2881 = vld [vmem:[%s2880] sm:$0x1]
    %v2883 = vlaneseq
    %v2884 = vshrl.u32 %v2883, 7
    %v2885 = vsub.s32 0, %v2884
    %v2886 = vrot.slane %v2881, %v2885
    %v2888 = vmul.f32 %v2886, %v2739
    %v2889 = vmul.f32 %v2886, %v2742
    %v2890 = vmul.f32 %v2886, %v2747
    %v2891 = vmul.f32 %v2886, %v2750
    %v2892 = vadd.f32 %v2876, %v2888
    %v2893 = vadd.f32 %v2877, %v2889
    %v2894 = vadd.f32 %v2878, %v2890
    %v2895 = vadd.f32 %v2879, %v2891
    %s2896 = scalar_lea.vmem [#allocation7], 4
    %v2897 = vld [vmem:[%s2896] sm:$0x1]
    %v2899 = vlaneseq
    %v2900 = vshrl.u32 %v2899, 7
    %v2901 = vsub.s32 0, %v2900
    %v2902 = vrot.slane %v2897, %v2901
    %v2904 = vadd.f32 %v2892, %v2902
    %v2905 = vadd.f32 %v2893, %v2902
    %v2906 = vadd.f32 %v2894, %v2902
    %v2907 = vadd.f32 %v2895, %v2902
    %v2908 = vmax.f32 %v2904, 0.0
    %v2909 = vmax.f32 %v2905, 0.0
    %v2910 = vmax.f32 %v2906, 0.0
    %v2911 = vmax.f32 %v2907, 0.0
    %s2912 = scalar_lea.vmem %s7, 256
    %v2913 = vld [vmem:[%s2912] sm:$0xf]
    %v2914 = vld [vmem:[%s2912 + $0x4] sm:$0xf]
    %v2915 = vld [vmem:[%s2912 + $0x8] sm:$0xf]
    %v2916 = vld [vmem:[%s2912 + $0xc] sm:$0xf]
    %v2917 = vld [vmem:[%s2912 + $0x10] sm:$0xf]
    %v2918 = vld [vmem:[%s2912 + $0x14] sm:$0xf]
    %v2919 = vld [vmem:[%s2912 + $0x18] sm:$0xf]
    %v2920 = vld [vmem:[%s2912 + $0x1c] sm:$0xf]
    %v2921 = vld [vmem:[%s2912 + $0x20] sm:$0xf]
    %v2922 = vld [vmem:[%s2912 + $0x24] sm:$0xf]
    %v2923 = vld [vmem:[%s2912 + $0x28] sm:$0xf]
    %v2924 = vld [vmem:[%s2912 + $0x2c] sm:$0xf]
    %v2925 = vld [vmem:[%s2912 + $0x30] sm:$0xf]
    %v2926 = vld [vmem:[%s2912 + $0x34] sm:$0xf]
    %v2927 = vld [vmem:[%s2912 + $0x38] sm:$0xf]
    %v2928 = vld [vmem:[%s2912 + $0x3c] sm:$0xf]
    %v2929 = vpack.c.bf16 %v2909, %v2908
    %v2930 = vpack.c.bf16 %v2911, %v2910
    %s2931 = scalar_lea.vmem [#allocation8], 4
    %v2932 = vld [vmem:[%s2931] sm:$0x1]
    %v2934 = vlaneseq
    %v2935 = vshrl.u32 %v2934, 7
    %v2936 = vsub.s32 0, %v2935
    %v2937 = vrot.slane %v2932, %v2936
    %v2955 = vunpack.c.l.b16 %v2913
    %v2956 = vunpack.c.l.b16 %v2914
    %v2957 = vunpack.c.l.b16 %v2915
    %v2958 = vunpack.c.l.b16 %v2916
    %v2959 = vunpack.c.l.b16 %v2917
    %v2960 = vunpack.c.l.b16 %v2918
    %v2961 = vunpack.c.l.b16 %v2919
    %v2962 = vunpack.c.l.b16 %v2920
    %v2963 = vunpack.c.l.b16 %v2921
    %v2964 = vunpack.c.l.b16 %v2922
    %v2965 = vunpack.c.l.b16 %v2923
    %v2966 = vunpack.c.l.b16 %v2924
    %v2967 = vunpack.c.l.b16 %v2925
    %v2968 = vunpack.c.l.b16 %v2926
    %v2969 = vunpack.c.l.b16 %v2927
    %v2970 = vunpack.c.l.b16 %v2928
    %v2971 = vpack.c.b16 %v2956, %v2955
    %v2972 = vpack.c.b16 %v2958, %v2957
    %v2973 = vpack.c.b16 %v2960, %v2959
    %v2974 = vpack.c.b16 %v2962, %v2961
    %v2975 = vpack.c.b16 %v2964, %v2963
    %v2976 = vpack.c.b16 %v2966, %v2965
    %v2977 = vpack.c.b16 %v2968, %v2967
    %v2978 = vpack.c.b16 %v2970, %v2969
    %2987 = vmatprep.subr.bf16.mxu0 0
    %2988 = vmatpush1.bf16.msra.mxu0 %v2971
    %2989 = vmatprep.subr.bf16.mxu0 0
    %2990 = vmatpush1.bf16.msra.mxu0 %v2972
    %2991 = vmatprep.subr.bf16.mxu0 0
    %2992 = vmatpush1.bf16.msra.mxu0 %v2973
    %2993 = vmatprep.subr.bf16.mxu0 0
    %2994 = vmatpush1.bf16.msra.mxu0 %v2974
    %2995 = vmatprep.subr.bf16.mxu0 0
    %2996 = vmatpush1.bf16.msra.mxu0 %v2975
    %2997 = vmatprep.subr.bf16.mxu0 0
    %2998 = vmatpush1.bf16.msra.mxu0 %v2976
    %2999 = vmatprep.subr.bf16.mxu0 0
    %3000 = vmatpush1.bf16.msra.mxu0 %v2977
    %3001 = vmatprep.subr.bf16.mxu0 0
    %3002 = vmatpush1.bf16.msra.mxu0 %v2978
    %3003 = vmatprep.subr.bf16.mxu0 0
    %3004 = vmatpush1.bf16.msra.mxu0 0
    %3005 = vmatprep.subr.bf16.mxu0 0
    %3006 = vmatpush1.bf16.msra.mxu0 0
    %3007 = vmatprep.subr.bf16.mxu0 0
    %3008 = vmatpush1.bf16.msra.mxu0 0
    %3009 = vmatprep.subr.bf16.mxu0 0
    %3010 = vmatpush1.bf16.msra.mxu0 0
    %3011 = vmatprep.subr.bf16.mxu0 0
    %3012 = vmatpush1.bf16.msra.mxu0 0
    %3013 = vmatprep.subr.bf16.mxu0 0
    %3014 = vmatpush1.bf16.msra.mxu0 0
    %3015 = vmatprep.subr.bf16.mxu0 0
    %3016 = vmatpush1.bf16.msra.mxu0 0
    %3017 = vmatprep.subr.bf16.mxu0 0
    %3018 = vmatpush1.bf16.msra.mxu0 0
    %3019 = vmatprep.mubr.bf16.mxu0 0
    %3020 = vmatmul.mubr.bf16.gmra.mrb[0].mxu0 %v2929
    %v3021 = vpop.f32.mrb[0].mxu0
    %v3022 = vadd.f32 %v2937, %v3021
    %v3023 = vpop.f32.mrb[0].mxu0
    %v3024 = vpop.f32.mrb[0].mxu0
    %v3025 = vadd.f32 %v2937, %v3024
    %v3026 = vpop.f32.mrb[0].mxu0
    %3027 = vmatprep.mubr.bf16.mxu0 0
    %3028 = vmatmul.mubr.bf16.gmra.mrb[0].mxu0 %v2930
    %v3029 = vpop.f32.mrb[0].mxu0
    %v3030 = vadd.f32 %v2937, %v3029
    %v3031 = vpop.f32.mrb[0].mxu0
    %v3032 = vpop.f32.mrb[0].mxu0
    %v3033 = vadd.f32 %v2937, %v3032
    %v3034 = vpop.f32.mrb[0].mxu0
    %3035 = vdwg.mxu0
    %v3036 = vmax.f32 %v3022, 0.0
    %v3037 = vmax.f32 %v3025, 0.0
    %v3038 = vmax.f32 %v3030, 0.0
    %v3039 = vmax.f32 %v3033, 0.0
    %s3040 = scalar_lea.vmem [#allocation10], 256
    %v3041 = vld [vmem:[%s3040] sm:$0xf]
    %v3042 = vld [vmem:[%s3040 + $0x4] sm:$0xf]
    %v3043 = vld [vmem:[%s3040 + $0x8] sm:$0xf]
    %v3044 = vld [vmem:[%s3040 + $0xc] sm:$0xf]
    %v3045 = vld [vmem:[%s3040 + $0x10] sm:$0xf]
    %v3046 = vld [vmem:[%s3040 + $0x14] sm:$0xf]
    %v3047 = vld [vmem:[%s3040 + $0x18] sm:$0xf]
    %v3048 = vld [vmem:[%s3040 + $0x1c] sm:$0xf]
    %v3049 = vld [vmem:[%s3040 + $0x20] sm:$0xf]
    %v3050 = vld [vmem:[%s3040 + $0x24] sm:$0xf]
    %v3051 = vld [vmem:[%s3040 + $0x28] sm:$0xf]
    %v3052 = vld [vmem:[%s3040 + $0x2c] sm:$0xf]
    %v3053 = vld [vmem:[%s3040 + $0x30] sm:$0xf]
    %v3054 = vld [vmem:[%s3040 + $0x34] sm:$0xf]
    %v3055 = vld [vmem:[%s3040 + $0x38] sm:$0xf]
    %v3056 = vld [vmem:[%s3040 + $0x3c] sm:$0xf]
    %v3057 = vpack.c.bf16 %v3037, %v3036
    %v3058 = vpack.c.bf16 %v3039, %v3038
    %s3059 = scalar_lea.vmem [#allocation11], 4
    %v3060 = vld [vmem:[%s3059] sm:$0x1]
    %v3062 = vlaneseq
    %v3063 = vshrl.u32 %v3062, 7
    %v3064 = vsub.s32 0, %v3063
    %v3065 = vrot.slane %v3060, %v3064
    %v3083 = vunpack.c.l.b16 %v3041
    %v3084 = vunpack.c.l.b16 %v3042
    %v3085 = vunpack.c.l.b16 %v3043
    %v3086 = vunpack.c.l.b16 %v3044
    %v3087 = vunpack.c.l.b16 %v3045
    %v3088 = vunpack.c.l.b16 %v3046
    %v3089 = vunpack.c.l.b16 %v3047
    %v3090 = vunpack.c.l.b16 %v3048
    %v3091 = vunpack.c.l.b16 %v3049
    %v3092 = vunpack.c.l.b16 %v3050
    %v3093 = vunpack.c.l.b16 %v3051
    %v3094 = vunpack.c.l.b16 %v3052
    %v3095 = vunpack.c.l.b16 %v3053
    %v3096 = vunpack.c.l.b16 %v3054
    %v3097 = vunpack.c.l.b16 %v3055
    %v3098 = vunpack.c.l.b16 %v3056
    %v3099 = vpack.c.b16 %v3084, %v3083
    %v3100 = vpack.c.b16 %v3086, %v3085
    %v3101 = vpack.c.b16 %v3088, %v3087
    %v3102 = vpack.c.b16 %v3090, %v3089
    %v3103 = vpack.c.b16 %v3092, %v3091
    %v3104 = vpack.c.b16 %v3094, %v3093
    %v3105 = vpack.c.b16 %v3096, %v3095
    %v3106 = vpack.c.b16 %v3098, %v3097
    %3115 = vmatprep.subr.bf16.mxu0 0
    %3116 = vmatpush1.bf16.msra.mxu0 %v3099
    %3117 = vmatprep.subr.bf16.mxu0 0
    %3118 = vmatpush1.bf16.msra.mxu0 %v3100
    %3119 = vmatprep.subr.bf16.mxu0 0
    %3120 = vmatpush1.bf16.msra.mxu0 %v3101
    %3121 = vmatprep.subr.bf16.mxu0 0
    %3122 = vmatpush1.bf16.msra.mxu0 %v3102
    %3123 = vmatprep.subr.bf16.mxu0 0
    %3124 = vmatpush1.bf16.msra.mxu0 %v3103
    %3125 = vmatprep.subr.bf16.mxu0 0
    %3126 = vmatpush1.bf16.msra.mxu0 %v3104
    %3127 = vmatprep.subr.bf16.mxu0 0
    %3128 = vmatpush1.bf16.msra.mxu0 %v3105
    %3129 = vmatprep.subr.bf16.mxu0 0
    %3130 = vmatpush1.bf16.msra.mxu0 %v3106
    %3131 = vmatprep.subr.bf16.mxu0 0
    %3132 = vmatpush1.bf16.msra.mxu0 0
    %3133 = vmatprep.subr.bf16.mxu0 0
    %3134 = vmatpush1.bf16.msra.mxu0 0
    %3135 = vmatprep.subr.bf16.mxu0 0
    %3136 = vmatpush1.bf16.msra.mxu0 0
    %3137 = vmatprep.subr.bf16.mxu0 0
    %3138 = vmatpush1.bf16.msra.mxu0 0
    %3139 = vmatprep.subr.bf16.mxu0 0
    %3140 = vmatpush1.bf16.msra.mxu0 0
    %3141 = vmatprep.subr.bf16.mxu0 0
    %3142 = vmatpush1.bf16.msra.mxu0 0
    %3143 = vmatprep.subr.bf16.mxu0 0
    %3144 = vmatpush1.bf16.msra.mxu0 0
    %3145 = vmatprep.subr.bf16.mxu0 0
    %3146 = vmatpush1.bf16.msra.mxu0 0
    %3147 = vmatprep.mubr.bf16.mxu0 0
    %3148 = vmatmul.mubr.bf16.gmra.mrb[0].mxu0 %v3057
    %v3149 = vpop.f32.mrb[0].mxu0
    %v3150 = vadd.f32 %v3065, %v3149
    %v3151 = vpop.f32.mrb[0].mxu0
    %v3152 = vpop.f32.mrb[0].mxu0
    %v3153 = vadd.f32 %v3065, %v3152
    %v3154 = vpop.f32.mrb[0].mxu0
    %3155 = vmatprep.mubr.bf16.mxu0 0
    %3156 = vmatmul.mubr.bf16.gmra.mrb[0].mxu0 %v3058
    %v3157 = vpop.f32.mrb[0].mxu0
    %v3158 = vadd.f32 %v3065, %v3157
    %v3159 = vpop.f32.mrb[0].mxu0
    %v3160 = vpop.f32.mrb[0].mxu0
    %v3161 = vadd.f32 %v3065, %v3160
    %v3162 = vpop.f32.mrb[0].mxu0
    %3163 = vdwg.mxu0
    %v3164 = vmax.f32 %v3150, 0.0
    %v3165 = vmax.f32 %v3153, 0.0
    %v3166 = vmax.f32 %v3158, 0.0
    %v3167 = vmax.f32 %v3161, 0.0
    %s3168 = scalar_lea.vmem [#allocation13], 64
    %v3169 = vld [vmem:[%s3168] sm:$0xf]
    %v3170 = vld [vmem:[%s3168 + $0x4] sm:$0xf]
    %v3171 = vld [vmem:[%s3168 + $0x8] sm:$0xf]
    %v3172 = vld [vmem:[%s3168 + $0xc] sm:$0xf]
    %v3173 = vpack.c.bf16 %v3165, %v3164
    %v3174 = vpack.c.bf16 %v3167, %v3166
    %s3175 = scalar_lea.vmem [#allocation14], 4
    %v3176 = vld [vmem:[%s3175] sm:$0x1]
    %v3178 = vlaneseq
    %v3179 = vshrl.u32 %v3178, 7
    %v3180 = vsub.s32 0, %v3179
    %v3181 = vrot.slane %v3176, %v3180
    %v3187 = vunpack.c.l.b16 %v3169
    %v3188 = vunpack.c.l.b16 %v3170
    %v3189 = vunpack.c.l.b16 %v3171
    %v3190 = vunpack.c.l.b16 %v3172
    %v3191 = vpack.c.b16 %v3188, %v3187
    %v3192 = vpack.c.b16 %v3190, %v3189
    %v3196 = vsel %vm439, %v3173, 0
    %v3199 = vsel %vm439, %v3174, 0
    %3201 = vmatprep.subr.bf16.mxu0 0
    %3202 = vmatpush1.bf16.msra.mxu0 %v3191
    %3203 = vmatprep.subr.bf16.mxu0 0
    %3204 = vmatpush1.bf16.msra.mxu0 %v3192
    %3205 = vmatprep.subr.bf16.mxu0 0
    %3206 = vmatpush1.bf16.msra.mxu0 0
    %3207 = vmatprep.subr.bf16.mxu0 0
    %3208 = vmatpush1.bf16.msra.mxu0 0
    %3209 = vmatprep.subr.bf16.mxu0 0
    %3210 = vmatpush1.bf16.msra.mxu0 0
    %3211 = vmatprep.subr.bf16.mxu0 0
    %3212 = vmatpush1.bf16.msra.mxu0 0
    %3213 = vmatprep.subr.bf16.mxu0 0
    %3214 = vmatpush1.bf16.msra.mxu0 0
    %3215 = vmatprep.subr.bf16.mxu0 0
    %3216 = vmatpush1.bf16.msra.mxu0 0
    %3217 = vmatprep.subr.bf16.mxu0 0
    %3218 = vmatpush1.bf16.msra.mxu0 0
    %3219 = vmatprep.subr.bf16.mxu0 0
    %3220 = vmatpush1.bf16.msra.mxu0 0
    %3221 = vmatprep.subr.bf16.mxu0 0
    %3222 = vmatpush1.bf16.msra.mxu0 0
    %3223 = vmatprep.subr.bf16.mxu0 0
    %3224 = vmatpush1.bf16.msra.mxu0 0
    %3225 = vmatprep.subr.bf16.mxu0 0
    %3226 = vmatpush1.bf16.msra.mxu0 0
    %3227 = vmatprep.subr.bf16.mxu0 0
    %3228 = vmatpush1.bf16.msra.mxu0 0
    %3229 = vmatprep.subr.bf16.mxu0 0
    %3230 = vmatpush1.bf16.msra.mxu0 0
    %3231 = vmatprep.subr.bf16.mxu0 0
    %3232 = vmatpush1.bf16.msra.mxu0 0
    %3233 = vmatprep.mubr.bf16.mxu0 0
    %3234 = vmatmul.mubr.bf16.gmra.mrb[0].mxu0 %v3196
    %v3235 = vpop.f32.mrb[0].mxu0
    %v3236 = vadd.f32 %v3181, %v3235
    %v3237 = vpop.f32.mrb[0].mxu0
    %v3238 = vpop.f32.mrb[0].mxu0
    %v3239 = vadd.f32 %v3181, %v3238
    %v3240 = vpop.f32.mrb[0].mxu0
    %3241 = vmatprep.mubr.bf16.mxu0 0
    %3242 = vmatmul.mubr.bf16.gmra.mrb[0].mxu0 %v3199
    %v3243 = vpop.f32.mrb[0].mxu0
    %v3244 = vadd.f32 %v3181, %v3243
    %v3245 = vpop.f32.mrb[0].mxu0
    %v3246 = vpop.f32.mrb[0].mxu0
    %v3247 = vadd.f32 %v3181, %v3246
    %v3248 = vpop.f32.mrb[0].mxu0
    %3249 = vdwg.mxu0
    %v3250 = vmax.f32 %v3236, 0.0
    %v3251 = vmax.f32 %v3239, 0.0
    %v3252 = vmax.f32 %v3244, 0.0
    %v3253 = vmax.f32 %v3247, 0.0
    %s3254 = scalar_lea.vmem %s4, 64
    %v3255 = vld [vmem:[%s3254] sm:$0xf]
    %v3256 = vld [vmem:[%s3254 + $0x4] sm:$0xf]
    %v3257 = vld [vmem:[%s3254 + $0x8] sm:$0xf]
    %v3258 = vld [vmem:[%s3254 + $0xc] sm:$0xf]
    %v3259 = vpack.c.bf16 %v3251, %v3250
    %v3260 = vpack.c.bf16 %v3253, %v3252
    %v3265 = vunpack.c.l.b16 %v3255
    %v3266 = vunpack.c.l.b16 %v3256
    %v3267 = vunpack.c.l.b16 %v3257
    %v3268 = vunpack.c.l.b16 %v3258
    %v3269 = vpack.c.b16 %v3266, %v3265
    %v3270 = vpack.c.b16 %v3268, %v3267
    %v3274 = vsel %vm439, %v3259, 0
    %v3277 = vsel %vm439, %v3260, 0
    %3279 = vmatprep.subr.bf16.mxu0 0
    %3280 = vmatpush1.bf16.msra.mxu0 %v3269
    %3281 = vmatprep.subr.bf16.mxu0 0
    %3282 = vmatpush1.bf16.msra.mxu0 %v3270
    %3283 = vmatprep.subr.bf16.mxu0 0
    %3284 = vmatpush1.bf16.msra.mxu0 0
    %3285 = vmatprep.subr.bf16.mxu0 0
    %3286 = vmatpush1.bf16.msra.mxu0 0
    %3287 = vmatprep.subr.bf16.mxu0 0
    %3288 = vmatpush1.bf16.msra.mxu0 0
    %3289 = vmatprep.subr.bf16.mxu0 0
    %3290 = vmatpush1.bf16.msra.mxu0 0
    %3291 = vmatprep.subr.bf16.mxu0 0
    %3292 = vmatpush1.bf16.msra.mxu0 0
    %3293 = vmatprep.subr.bf16.mxu0 0
    %3294 = vmatpush1.bf16.msra.mxu0 0
    %3295 = vmatprep.subr.bf16.mxu0 0
    %3296 = vmatpush1.bf16.msra.mxu0 0
    %3297 = vmatprep.subr.bf16.mxu0 0
    %3298 = vmatpush1.bf16.msra.mxu0 0
    %3299 = vmatprep.subr.bf16.mxu0 0
    %3300 = vmatpush1.bf16.msra.mxu0 0
    %3301 = vmatprep.subr.bf16.mxu0 0
    %3302 = vmatpush1.bf16.msra.mxu0 0
    %3303 = vmatprep.subr.bf16.mxu0 0
    %3304 = vmatpush1.bf16.msra.mxu0 0
    %3305 = vmatprep.subr.bf16.mxu0 0
    %3306 = vmatpush1.bf16.msra.mxu0 0
    %3307 = vmatprep.subr.bf16.mxu0 0
    %3308 = vmatpush1.bf16.msra.mxu0 0
    %3309 = vmatprep.subr.bf16.mxu0 0
    %3310 = vmatpush1.bf16.msra.mxu0 0
    %3311 = vmatprep.mubr.bf16.mxu0 0
    %3312 = vmatmul.mubr.bf16.gmra.mrb[0].mxu0 %v3274
    %v3313 = vpop.f32.mrb[0].mxu0
    %v3314 = vadd.f32 0.0, %v3313
    %v3315 = vpop.f32.mrb[0].mxu0
    %v3316 = vpop.f32.mrb[0].mxu0
    %v3317 = vadd.f32 0.0, %v3316
    %v3318 = vpop.f32.mrb[0].mxu0
    %3319 = vmatprep.mubr.bf16.mxu0 0
    %3320 = vmatmul.mubr.bf16.gmra.mrb[0].mxu0 %v3277
    %v3321 = vpop.f32.mrb[0].mxu0
    %v3322 = vadd.f32 0.0, %v3321
    %v3323 = vpop.f32.mrb[0].mxu0
    %v3324 = vpop.f32.mrb[0].mxu0
    %v3325 = vadd.f32 0.0, %v3324
    %v3326 = vpop.f32.mrb[0].mxu0
    %3327 = vdwg.mxu0
    %v3328 = vpack.c.bf16 %v3317, %v3314
    %v3329 = vpack.c.bf16 %v3325, %v3322
    %3330 = vmatprep.subr.bf16.mxu0 0
    %3331 = vmatpush1.bf16.msra.mxu0 %v3328
    %3332 = vmatprep.subr.bf16.mxu0 0
    %3333 = vmatpush1.bf16.msra.mxu0 %v3329
    %3334 = vmatprep.subr.bf16.mxu0 0
    %3335 = vmatpush1.bf16.msra.mxu0 0
    %3336 = vmatprep.subr.bf16.mxu0 0
    %3337 = vmatpush1.bf16.msra.mxu0 0
    %3338 = vmatprep.subr.bf16.mxu0 0
    %3339 = vmatpush1.bf16.msra.mxu0 0
    %3340 = vmatprep.subr.bf16.mxu0 0
    %3341 = vmatpush1.bf16.msra.mxu0 0
    %3342 = vmatprep.subr.bf16.mxu0 0
    %3343 = vmatpush1.bf16.msra.mxu0 0
    %3344 = vmatprep.subr.bf16.mxu0 0
    %3345 = vmatpush1.bf16.msra.mxu0 0
    %3346 = vmatprep.subr.bf16.mxu0 0
    %3347 = vmatpush1.bf16.msra.mxu0 0
    %3348 = vmatprep.subr.bf16.mxu0 0
    %3349 = vmatpush1.bf16.msra.mxu0 0
    %3350 = vmatprep.subr.bf16.mxu0 0
    %3351 = vmatpush1.bf16.msra.mxu0 0
    %3352 = vmatprep.subr.bf16.mxu0 0
    %3353 = vmatpush1.bf16.msra.mxu0 0
    %3354 = vmatprep.subr.bf16.mxu0 0
    %3355 = vmatpush1.bf16.msra.mxu0 0
    %3356 = vmatprep.subr.bf16.mxu0 0
    %3357 = vmatpush1.bf16.msra.mxu0 0
    %3358 = vmatprep.subr.bf16.mxu0 0
    %3359 = vmatpush1.bf16.msra.mxu0 0
    %3360 = vmatprep.subr.bf16.mxu0 0
    %3361 = vmatpush1.bf16.msra.mxu0 0
    %3362 = vmatprep.mubr.bf16.mxu0 0
    %3363 = vmatmul.mubr.bf16.gmra.mrb[0].mxu0 %v441
    %v3364 = vpop.f32.mrb[0].mxu0
    %v3365 = vadd.f32 0.0, %v3364
    %v3366 = vpop.f32.mrb[0].mxu0
    %v3367 = vpop.f32.mrb[0].mxu0
    %v3368 = vadd.f32 0.0, %v3367
    %v3369 = vpop.f32.mrb[0].mxu0
    %3370 = vmatprep.mubr.bf16.mxu0 0
    %3371 = vmatmul.mubr.bf16.gmra.mrb[0].mxu0 %v444
    %v3372 = vpop.f32.mrb[0].mxu0
    %v3373 = vadd.f32 0.0, %v3372
    %v3374 = vpop.f32.mrb[0].mxu0
    %v3375 = vpop.f32.mrb[0].mxu0
    %v3376 = vadd.f32 0.0, %v3375
    %v3377 = vpop.f32.mrb[0].mxu0
    %3378 = vmatprep.mubr.bf16.mxu0 0
    %3379 = vmatmul.mubr.bf16.gmra.mrb[0].mxu0 %v447
    %v3380 = vpop.f32.mrb[0].mxu0
    %v3381 = vadd.f32 0.0, %v3380
    %v3382 = vpop.f32.mrb[0].mxu0
    %v3383 = vpop.f32.mrb[0].mxu0
    %v3384 = vadd.f32 0.0, %v3383
    %v3385 = vpop.f32.mrb[0].mxu0
    %3386 = vmatprep.mubr.bf16.mxu0 0
    %3387 = vmatmul.mubr.bf16.gmra.mrb[0].mxu0 %v450
    %v3388 = vpop.f32.mrb[0].mxu0
    %v3389 = vadd.f32 0.0, %v3388
    %v3390 = vpop.f32.mrb[0].mxu0
    %v3391 = vpop.f32.mrb[0].mxu0
    %v3392 = vadd.f32 0.0, %v3391
    %v3393 = vpop.f32.mrb[0].mxu0
    %3394 = vmatprep.mubr.bf16.mxu0 0
    %3395 = vmatmul.mubr.bf16.gmra.mrb[0].mxu0 %v453
    %v3396 = vpop.f32.mrb[0].mxu0
    %v3397 = vadd.f32 0.0, %v3396
    %v3398 = vpop.f32.mrb[0].mxu0
    %v3399 = vpop.f32.mrb[0].mxu0
    %v3400 = vadd.f32 0.0, %v3399
    %v3401 = vpop.f32.mrb[0].mxu0
    %3402 = vmatprep.mubr.bf16.mxu0 0
    %3403 = vmatmul.mubr.bf16.gmra.mrb[0].mxu0 %v456
    %v3404 = vpop.f32.mrb[0].mxu0
    %v3405 = vadd.f32 0.0, %v3404
    %v3406 = vpop.f32.mrb[0].mxu0
    %v3407 = vpop.f32.mrb[0].mxu0
    %v3408 = vadd.f32 0.0, %v3407
    %v3409 = vpop.f32.mrb[0].mxu0
    %3410 = vmatprep.mubr.bf16.mxu0 0
    %3411 = vmatmul.mubr.bf16.gmra.mrb[0].mxu0 %v459
    %v3412 = vpop.f32.mrb[0].mxu0
    %v3413 = vadd.f32 0.0, %v3412
    %v3414 = vpop.f32.mrb[0].mxu0
    %v3415 = vpop.f32.mrb[0].mxu0
    %v3416 = vadd.f32 0.0, %v3415
    %v3417 = vpop.f32.mrb[0].mxu0
    %3418 = vmatprep.mubr.bf16.mxu0 0
    %3419 = vmatmul.mubr.bf16.gmra.mrb[0].mxu0 %v462
    %v3420 = vpop.f32.mrb[0].mxu0
    %v3421 = vadd.f32 0.0, %v3420
    %v3422 = vpop.f32.mrb[0].mxu0
    %v3423 = vpop.f32.mrb[0].mxu0
    %v3424 = vadd.f32 0.0, %v3423
    %v3425 = vpop.f32.mrb[0].mxu0
    %3426 = vdwg.mxu0
    %v3427 = vmul.f32 %v272, %v3365
    %v3428 = vmul.f32 %v272, %v3368
    %v3429 = vmul.f32 %v272, %v3373
    %v3430 = vmul.f32 %v272, %v3376
    %v3431 = vmul.f32 %v277, %v3381
    %v3432 = vmul.f32 %v277, %v3384
    %v3433 = vmul.f32 %v277, %v3389
    %v3434 = vmul.f32 %v277, %v3392
    %v3435 = vadd.f32 %v3427, %v3431
    %v3436 = vadd.f32 %v3428, %v3432
    %v3437 = vadd.f32 %v3429, %v3433
    %v3438 = vadd.f32 %v3430, %v3434
    %v3439 = vmul.f32 %v282, %v3397
    %v3440 = vmul.f32 %v282, %v3400
    %v3441 = vmul.f32 %v282, %v3405
    %v3442 = vmul.f32 %v282, %v3408
    %v3443 = vadd.f32 %v3435, %v3439
    %v3444 = vadd.f32 %v3436, %v3440
    %v3445 = vadd.f32 %v3437, %v3441
    %v3446 = vadd.f32 %v3438, %v3442
    %v3447 = vmul.f32 %v287, %v3413
    %v3448 = vmul.f32 %v287, %v3416
    %v3449 = vmul.f32 %v287, %v3421
    %v3450 = vmul.f32 %v287, %v3424
    %v3451 = vadd.f32 %v3443, %v3447
    %v3452 = vadd.f32 %v3444, %v3448
    %v3453 = vadd.f32 %v3445, %v3449
    %v3454 = vadd.f32 %v3446, %v3450
    %s3455 = scalar_lea.vmem %s5, 5
    %v3456 = vld [vmem:[%s3455] sm:$0x1]
    %v3458 = vlaneseq
    %v3459 = vshrl.u32 %v3458, 7
    %v3460 = vsub.s32 0, %v3459
    %v3461 = vrot.slane %v3456, %v3460
    %v3463 = vmul.f32 %v3461, %v3314
    %v3464 = vmul.f32 %v3461, %v3317
    %v3465 = vmul.f32 %v3461, %v3322
    %v3466 = vmul.f32 %v3461, %v3325
    %v3467 = vadd.f32 %v3451, %v3463
    %v3468 = vadd.f32 %v3452, %v3464
    %v3469 = vadd.f32 %v3453, %v3465
    %v3470 = vadd.f32 %v3454, %v3466
    %s3471 = scalar_lea.vmem [#allocation7], 5
    %v3472 = vld [vmem:[%s3471] sm:$0x1]
    %v3474 = vlaneseq
    %v3475 = vshrl.u32 %v3474, 7
    %v3476 = vsub.s32 0, %v3475
    %v3477 = vrot.slane %v3472, %v3476
    %v3479 = vadd.f32 %v3467, %v3477
    %v3480 = vadd.f32 %v3468, %v3477
    %v3481 = vadd.f32 %v3469, %v3477
    %v3482 = vadd.f32 %v3470, %v3477
    %v3483 = vmax.f32 %v3479, 0.0
    %v3484 = vmax.f32 %v3480, 0.0
    %v3485 = vmax.f32 %v3481, 0.0
    %v3486 = vmax.f32 %v3482, 0.0
    %s3487 = scalar_lea.vmem %s7, 320
    %v3488 = vld [vmem:[%s3487] sm:$0xf]
    %v3489 = vld [vmem:[%s3487 + $0x4] sm:$0xf]
    %v3490 = vld [vmem:[%s3487 + $0x8] sm:$0xf]
    %v3491 = vld [vmem:[%s3487 + $0xc] sm:$0xf]
    %v3492 = vld [vmem:[%s3487 + $0x10] sm:$0xf]
    %v3493 = vld [vmem:[%s3487 + $0x14] sm:$0xf]
    %v3494 = vld [vmem:[%s3487 + $0x18] sm:$0xf]
    %v3495 = vld [vmem:[%s3487 + $0x1c] sm:$0xf]
    %v3496 = vld [vmem:[%s3487 + $0x20] sm:$0xf]
    %v3497 = vld [vmem:[%s3487 + $0x24] sm:$0xf]
    %v3498 = vld [vmem:[%s3487 + $0x28] sm:$0xf]
    %v3499 = vld [vmem:[%s3487 + $0x2c] sm:$0xf]
    %v3500 = vld [vmem:[%s3487 + $0x30] sm:$0xf]
    %v3501 = vld [vmem:[%s3487 + $0x34] sm:$0xf]
    %v3502 = vld [vmem:[%s3487 + $0x38] sm:$0xf]
    %v3503 = vld [vmem:[%s3487 + $0x3c] sm:$0xf]
    %v3504 = vpack.c.bf16 %v3484, %v3483
    %v3505 = vpack.c.bf16 %v3486, %v3485
    %s3506 = scalar_lea.vmem [#allocation8], 5
    %v3507 = vld [vmem:[%s3506] sm:$0x1]
    %v3509 = vlaneseq
    %v3510 = vshrl.u32 %v3509, 7
    %v3511 = vsub.s32 0, %v3510
    %v3512 = vrot.slane %v3507, %v3511
    %v3530 = vunpack.c.l.b16 %v3488
    %v3531 = vunpack.c.l.b16 %v3489
    %v3532 = vunpack.c.l.b16 %v3490
    %v3533 = vunpack.c.l.b16 %v3491
    %v3534 = vunpack.c.l.b16 %v3492
    %v3535 = vunpack.c.l.b16 %v3493
    %v3536 = vunpack.c.l.b16 %v3494
    %v3537 = vunpack.c.l.b16 %v3495
    %v3538 = vunpack.c.l.b16 %v3496
    %v3539 = vunpack.c.l.b16 %v3497
    %v3540 = vunpack.c.l.b16 %v3498
    %v3541 = vunpack.c.l.b16 %v3499
    %v3542 = vunpack.c.l.b16 %v3500
    %v3543 = vunpack.c.l.b16 %v3501
    %v3544 = vunpack.c.l.b16 %v3502
    %v3545 = vunpack.c.l.b16 %v3503
    %v3546 = vpack.c.b16 %v3531, %v3530
    %v3547 = vpack.c.b16 %v3533, %v3532
    %v3548 = vpack.c.b16 %v3535, %v3534
    %v3549 = vpack.c.b16 %v3537, %v3536
    %v3550 = vpack.c.b16 %v3539, %v3538
    %v3551 = vpack.c.b16 %v3541, %v3540
    %v3552 = vpack.c.b16 %v3543, %v3542
    %v3553 = vpack.c.b16 %v3545, %v3544
    %3562 = vmatprep.subr.bf16.mxu0 0
    %3563 = vmatpush1.bf16.msra.mxu0 %v3546
    %3564 = vmatprep.subr.bf16.mxu0 0
    %3565 = vmatpush1.bf16.msra.mxu0 %v3547
    %3566 = vmatprep.subr.bf16.mxu0 0
    %3567 = vmatpush1.bf16.msra.mxu0 %v3548
    %3568 = vmatprep.subr.bf16.mxu0 0
    %3569 = vmatpush1.bf16.msra.mxu0 %v3549
    %3570 = vmatprep.subr.bf16.mxu0 0
    %3571 = vmatpush1.bf16.msra.mxu0 %v3550
    %3572 = vmatprep.subr.bf16.mxu0 0
    %3573 = vmatpush1.bf16.msra.mxu0 %v3551
    %3574 = vmatprep.subr.bf16.mxu0 0
    %3575 = vmatpush1.bf16.msra.mxu0 %v3552
    %3576 = vmatprep.subr.bf16.mxu0 0
    %3577 = vmatpush1.bf16.msra.mxu0 %v3553
    %3578 = vmatprep.subr.bf16.mxu0 0
    %3579 = vmatpush1.bf16.msra.mxu0 0
    %3580 = vmatprep.subr.bf16.mxu0 0
    %3581 = vmatpush1.bf16.msra.mxu0 0
    %3582 = vmatprep.subr.bf16.mxu0 0
    %3583 = vmatpush1.bf16.msra.mxu0 0
    %3584 = vmatprep.subr.bf16.mxu0 0
    %3585 = vmatpush1.bf16.msra.mxu0 0
    %3586 = vmatprep.subr.bf16.mxu0 0
    %3587 = vmatpush1.bf16.msra.mxu0 0
    %3588 = vmatprep.subr.bf16.mxu0 0
    %3589 = vmatpush1.bf16.msra.mxu0 0
    %3590 = vmatprep.subr.bf16.mxu0 0
    %3591 = vmatpush1.bf16.msra.mxu0 0
    %3592 = vmatprep.subr.bf16.mxu0 0
    %3593 = vmatpush1.bf16.msra.mxu0 0
    %3594 = vmatprep.mubr.bf16.mxu0 0
    %3595 = vmatmul.mubr.bf16.gmra.mrb[0].mxu0 %v3504
    %v3596 = vpop.f32.mrb[0].mxu0
    %v3597 = vadd.f32 %v3512, %v3596
    %v3598 = vpop.f32.mrb[0].mxu0
    %v3599 = vpop.f32.mrb[0].mxu0
    %v3600 = vadd.f32 %v3512, %v3599
    %v3601 = vpop.f32.mrb[0].mxu0
    %3602 = vmatprep.mubr.bf16.mxu0 0
    %3603 = vmatmul.mubr.bf16.gmra.mrb[0].mxu0 %v3505
    %v3604 = vpop.f32.mrb[0].mxu0
    %v3605 = vadd.f32 %v3512, %v3604
    %v3606 = vpop.f32.mrb[0].mxu0
    %v3607 = vpop.f32.mrb[0].mxu0
    %v3608 = vadd.f32 %v3512, %v3607
    %v3609 = vpop.f32.mrb[0].mxu0
    %3610 = vdwg.mxu0
    %v3611 = vmax.f32 %v3597, 0.0
    %v3612 = vmax.f32 %v3600, 0.0
    %v3613 = vmax.f32 %v3605, 0.0
    %v3614 = vmax.f32 %v3608, 0.0
    %s3615 = scalar_lea.vmem [#allocation10], 320
    %v3616 = vld [vmem:[%s3615] sm:$0xf]
    %v3617 = vld [vmem:[%s3615 + $0x4] sm:$0xf]
    %v3618 = vld [vmem:[%s3615 + $0x8] sm:$0xf]
    %v3619 = vld [vmem:[%s3615 + $0xc] sm:$0xf]
    %v3620 = vld [vmem:[%s3615 + $0x10] sm:$0xf]
    %v3621 = vld [vmem:[%s3615 + $0x14] sm:$0xf]
    %v3622 = vld [vmem:[%s3615 + $0x18] sm:$0xf]
    %v3623 = vld [vmem:[%s3615 + $0x1c] sm:$0xf]
    %v3624 = vld [vmem:[%s3615 + $0x20] sm:$0xf]
    %v3625 = vld [vmem:[%s3615 + $0x24] sm:$0xf]
    %v3626 = vld [vmem:[%s3615 + $0x28] sm:$0xf]
    %v3627 = vld [vmem:[%s3615 + $0x2c] sm:$0xf]
    %v3628 = vld [vmem:[%s3615 + $0x30] sm:$0xf]
    %v3629 = vld [vmem:[%s3615 + $0x34] sm:$0xf]
    %v3630 = vld [vmem:[%s3615 + $0x38] sm:$0xf]
    %v3631 = vld [vmem:[%s3615 + $0x3c] sm:$0xf]
    %v3632 = vpack.c.bf16 %v3612, %v3611
    %v3633 = vpack.c.bf16 %v3614, %v3613
    %s3634 = scalar_lea.vmem [#allocation11], 5
    %v3635 = vld [vmem:[%s3634] sm:$0x1]
    %v3637 = vlaneseq
    %v3638 = vshrl.u32 %v3637, 7
    %v3639 = vsub.s32 0, %v3638
    %v3640 = vrot.slane %v3635, %v3639
    %v3658 = vunpack.c.l.b16 %v3616
    %v3659 = vunpack.c.l.b16 %v3617
    %v3660 = vunpack.c.l.b16 %v3618
    %v3661 = vunpack.c.l.b16 %v3619
    %v3662 = vunpack.c.l.b16 %v3620
    %v3663 = vunpack.c.l.b16 %v3621
    %v3664 = vunpack.c.l.b16 %v3622
    %v3665 = vunpack.c.l.b16 %v3623
    %v3666 = vunpack.c.l.b16 %v3624
    %v3667 = vunpack.c.l.b16 %v3625
    %v3668 = vunpack.c.l.b16 %v3626
    %v3669 = vunpack.c.l.b16 %v3627
    %v3670 = vunpack.c.l.b16 %v3628
    %v3671 = vunpack.c.l.b16 %v3629
    %v3672 = vunpack.c.l.b16 %v3630
    %v3673 = vunpack.c.l.b16 %v3631
    %v3674 = vpack.c.b16 %v3659, %v3658
    %v3675 = vpack.c.b16 %v3661, %v3660
    %v3676 = vpack.c.b16 %v3663, %v3662
    %v3677 = vpack.c.b16 %v3665, %v3664
    %v3678 = vpack.c.b16 %v3667, %v3666
    %v3679 = vpack.c.b16 %v3669, %v3668
    %v3680 = vpack.c.b16 %v3671, %v3670
    %v3681 = vpack.c.b16 %v3673, %v3672
    %3690 = vmatprep.subr.bf16.mxu0 0
    %3691 = vmatpush1.bf16.msra.mxu0 %v3674
    %3692 = vmatprep.subr.bf16.mxu0 0
    %3693 = vmatpush1.bf16.msra.mxu0 %v3675
    %3694 = vmatprep.subr.bf16.mxu0 0
    %3695 = vmatpush1.bf16.msra.mxu0 %v3676
    %3696 = vmatprep.subr.bf16.mxu0 0
    %3697 = vmatpush1.bf16.msra.mxu0 %v3677
    %3698 = vmatprep.subr.bf16.mxu0 0
    %3699 = vmatpush1.bf16.msra.mxu0 %v3678
    %3700 = vmatprep.subr.bf16.mxu0 0
    %3701 = vmatpush1.bf16.msra.mxu0 %v3679
    %3702 = vmatprep.subr.bf16.mxu0 0
    %3703 = vmatpush1.bf16.msra.mxu0 %v3680
    %3704 = vmatprep.subr.bf16.mxu0 0
    %3705 = vmatpush1.bf16.msra.mxu0 %v3681
    %3706 = vmatprep.subr.bf16.mxu0 0
    %3707 = vmatpush1.bf16.msra.mxu0 0
    %3708 = vmatprep.subr.bf16.mxu0 0
    %3709 = vmatpush1.bf16.msra.mxu0 0
    %3710 = vmatprep.subr.bf16.mxu0 0
    %3711 = vmatpush1.bf16.msra.mxu0 0
    %3712 = vmatprep.subr.bf16.mxu0 0
    %3713 = vmatpush1.bf16.msra.mxu0 0
    %3714 = vmatprep.subr.bf16.mxu0 0
    %3715 = vmatpush1.bf16.msra.mxu0 0
    %3716 = vmatprep.subr.bf16.mxu0 0
    %3717 = vmatpush1.bf16.msra.mxu0 0
    %3718 = vmatprep.subr.bf16.mxu0 0
    %3719 = vmatpush1.bf16.msra.mxu0 0
    %3720 = vmatprep.subr.bf16.mxu0 0
    %3721 = vmatpush1.bf16.msra.mxu0 0
    %3722 = vmatprep.mubr.bf16.mxu0 0
    %3723 = vmatmul.mubr.bf16.gmra.mrb[0].mxu0 %v3632
    %v3724 = vpop.f32.mrb[0].mxu0
    %v3725 = vadd.f32 %v3640, %v3724
    %v3726 = vpop.f32.mrb[0].mxu0
    %v3727 = vpop.f32.mrb[0].mxu0
    %v3728 = vadd.f32 %v3640, %v3727
    %v3729 = vpop.f32.mrb[0].mxu0
    %3730 = vmatprep.mubr.bf16.mxu0 0
    %3731 = vmatmul.mubr.bf16.gmra.mrb[0].mxu0 %v3633
    %v3732 = vpop.f32.mrb[0].mxu0
    %v3733 = vadd.f32 %v3640, %v3732
    %v3734 = vpop.f32.mrb[0].mxu0
    %v3735 = vpop.f32.mrb[0].mxu0
    %v3736 = vadd.f32 %v3640, %v3735
    %v3737 = vpop.f32.mrb[0].mxu0
    %3738 = vdwg.mxu0
    %v3739 = vmax.f32 %v3725, 0.0
    %v3740 = vmax.f32 %v3728, 0.0
    %v3741 = vmax.f32 %v3733, 0.0
    %v3742 = vmax.f32 %v3736, 0.0
    %s3743 = scalar_lea.vmem [#allocation13], 80
    %v3744 = vld [vmem:[%s3743] sm:$0xf]
    %v3745 = vld [vmem:[%s3743 + $0x4] sm:$0xf]
    %v3746 = vld [vmem:[%s3743 + $0x8] sm:$0xf]
    %v3747 = vld [vmem:[%s3743 + $0xc] sm:$0xf]
    %v3748 = vpack.c.bf16 %v3740, %v3739
    %v3749 = vpack.c.bf16 %v3742, %v3741
    %s3750 = scalar_lea.vmem [#allocation14], 5
    %v3751 = vld [vmem:[%s3750] sm:$0x1]
    %v3753 = vlaneseq
    %v3754 = vshrl.u32 %v3753, 7
    %v3755 = vsub.s32 0, %v3754
    %v3756 = vrot.slane %v3751, %v3755
    %v3762 = vunpack.c.l.b16 %v3744
    %v3763 = vunpack.c.l.b16 %v3745
    %v3764 = vunpack.c.l.b16 %v3746
    %v3765 = vunpack.c.l.b16 %v3747
    %v3766 = vpack.c.b16 %v3763, %v3762
    %v3767 = vpack.c.b16 %v3765, %v3764
    %v3771 = vsel %vm439, %v3748, 0
    %v3774 = vsel %vm439, %v3749, 0
    %3776 = vmatprep.subr.bf16.mxu0 0
    %3777 = vmatpush1.bf16.msra.mxu0 %v3766
    %3778 = vmatprep.subr.bf16.mxu0 0
    %3779 = vmatpush1.bf16.msra.mxu0 %v3767
    %3780 = vmatprep.subr.bf16.mxu0 0
    %3781 = vmatpush1.bf16.msra.mxu0 0
    %3782 = vmatprep.subr.bf16.mxu0 0
    %3783 = vmatpush1.bf16.msra.mxu0 0
    %3784 = vmatprep.subr.bf16.mxu0 0
    %3785 = vmatpush1.bf16.msra.mxu0 0
    %3786 = vmatprep.subr.bf16.mxu0 0
    %3787 = vmatpush1.bf16.msra.mxu0 0
    %3788 = vmatprep.subr.bf16.mxu0 0
    %3789 = vmatpush1.bf16.msra.mxu0 0
    %3790 = vmatprep.subr.bf16.mxu0 0
    %3791 = vmatpush1.bf16.msra.mxu0 0
    %3792 = vmatprep.subr.bf16.mxu0 0
    %3793 = vmatpush1.bf16.msra.mxu0 0
    %3794 = vmatprep.subr.bf16.mxu0 0
    %3795 = vmatpush1.bf16.msra.mxu0 0
    %3796 = vmatprep.subr.bf16.mxu0 0
    %3797 = vmatpush1.bf16.msra.mxu0 0
    %3798 = vmatprep.subr.bf16.mxu0 0
    %3799 = vmatpush1.bf16.msra.mxu0 0
    %3800 = vmatprep.subr.bf16.mxu0 0
    %3801 = vmatpush1.bf16.msra.mxu0 0
    %3802 = vmatprep.subr.bf16.mxu0 0
    %3803 = vmatpush1.bf16.msra.mxu0 0
    %3804 = vmatprep.subr.bf16.mxu0 0
    %3805 = vmatpush1.bf16.msra.mxu0 0
    %3806 = vmatprep.subr.bf16.mxu0 0
    %3807 = vmatpush1.bf16.msra.mxu0 0
    %3808 = vmatprep.mubr.bf16.mxu0 0
    %3809 = vmatmul.mubr.bf16.gmra.mrb[0].mxu0 %v3771
    %v3810 = vpop.f32.mrb[0].mxu0
    %v3811 = vadd.f32 %v3756, %v3810
    %v3812 = vpop.f32.mrb[0].mxu0
    %v3813 = vpop.f32.mrb[0].mxu0
    %v3814 = vadd.f32 %v3756, %v3813
    %v3815 = vpop.f32.mrb[0].mxu0
    %3816 = vmatprep.mubr.bf16.mxu0 0
    %3817 = vmatmul.mubr.bf16.gmra.mrb[0].mxu0 %v3774
    %v3818 = vpop.f32.mrb[0].mxu0
    %v3819 = vadd.f32 %v3756, %v3818
    %v3820 = vpop.f32.mrb[0].mxu0
    %v3821 = vpop.f32.mrb[0].mxu0
    %v3822 = vadd.f32 %v3756, %v3821
    %v3823 = vpop.f32.mrb[0].mxu0
    %3824 = vdwg.mxu0
    %v3825 = vmax.f32 %v3811, 0.0
    %v3826 = vmax.f32 %v3814, 0.0
    %v3827 = vmax.f32 %v3819, 0.0
    %v3828 = vmax.f32 %v3822, 0.0
    %v3829 = vld [vmem:[%s2] sm:$0x3]
    %v3830 = vpack.c.bf16 %v3826, %v3825
    %v3831 = vpack.c.bf16 %v3828, %v3827
    %3832 = vxpose.xlu0.b32.start [1/16] %v3825, 128
    %3833 = vxpose.xlu0.b32.cont [2/16] %v3826, 128
    %3834 = vxpose.xlu0.b32.cont [3/16] %v3827, 128
    %3835 = vxpose.xlu0.b32.cont [4/16] %v3828, 128
    %3836 = vxpose.xlu0.b32.cont [5/16] 0.0, 128
    %3837 = vxpose.xlu0.b32.cont [6/16] 0.0, 128
    %3838 = vxpose.xlu0.b32.cont [7/16] 0.0, 128
    %3839 = vxpose.xlu0.b32.cont [8/16] 0.0, 128
    %3840 = vxpose.xlu0.b32.cont [9/16] 0.0, 128
    %3841 = vxpose.xlu0.b32.cont [10/16] 0.0, 128
    %3842 = vxpose.xlu0.b32.cont [11/16] 0.0, 128
    %3843 = vxpose.xlu0.b32.cont [12/16] 0.0, 128
    %3844 = vxpose.xlu0.b32.cont [13/16] 0.0, 128
    %3845 = vxpose.xlu0.b32.cont [14/16] 0.0, 128
    %3846 = vxpose.xlu0.b32.cont [15/16] 0.0, 128
    %3847 = vxpose.xlu0.b32.end [16/16] 0.0, 128
    %v3848 = vpop.trf.xlu0
    %v3849 = vpop.trf.xlu0
    %v3850 = vpop.trf.xlu0
    %v3851 = vpop.trf.xlu0
    %v3852 = vpop.trf.xlu0
    %v3853 = vpop.trf.xlu0
    %v3854 = vpop.trf.xlu0
    %v3855 = vpop.trf.xlu0
    %v3856 = vpop.trf.xlu0
    %v3857 = vpop.trf.xlu0
    %v3858 = vpop.trf.xlu0
    %v3859 = vpop.trf.xlu0
    %v3860 = vpop.trf.xlu0
    %v3861 = vpop.trf.xlu0
    %v3862 = vpop.trf.xlu0
    %v3863 = vpop.trf.xlu0
    %v3864 = vpack.c.bf16 %v3849, %v3848
    %v3865 = vpack.c.bf16 %v3851, %v3850
    %v3866 = vld [vmem:[#allocation16] sm:$0xf]
    %v3867 = vld [vmem:[#allocation16 + $0x4] sm:$0xf]
    %v3868 = vld [vmem:[#allocation16 + $0x8] sm:$0xf]
    %v3869 = vld [vmem:[#allocation16 + $0xc] sm:$0xf]
    %v3870 = vld [vmem:[#allocation17] sm:$0xf]
    %v3871 = vld [vmem:[#allocation17 + $0x4] sm:$0xf]
    %v3872 = vld [vmem:[#allocation17 + $0x8] sm:$0xf]
    %v3873 = vld [vmem:[#allocation17 + $0xc] sm:$0xf]
    %v3874 = vld [vmem:[%s15] sm:$0x1]
    %v3879 = vunpack.c.l.b16 %v3870
    %v3880 = vunpack.c.l.b16 %v3871
    %v3881 = vunpack.c.l.b16 %v3872
    %v3882 = vunpack.c.l.b16 %v3873
    %v3883 = vpack.c.b16 %v3880, %v3879
    %v3884 = vpack.c.b16 %v3882, %v3881
    %v3888 = vsel %vm439, 0, 0
    %3890 = vmatprep.subr.bf16.mxu0 0
    %3891 = vmatpush1.bf16.msra.mxu0 %v3883
    %3892 = vmatprep.subr.bf16.mxu0 0
    %3893 = vmatpush1.bf16.msra.mxu0 %v3884
    %3894 = vmatprep.subr.bf16.mxu0 0
    %3895 = vmatpush1.bf16.msra.mxu0 0
    %3896 = vmatprep.subr.bf16.mxu0 0
    %3897 = vmatpush1.bf16.msra.mxu0 0
    %3898 = vmatprep.subr.bf16.mxu0 0
    %3899 = vmatpush1.bf16.msra.mxu0 0
    %3900 = vmatprep.subr.bf16.mxu0 0
    %3901 = vmatpush1.bf16.msra.mxu0 0
    %3902 = vmatprep.subr.bf16.mxu0 0
    %3903 = vmatpush1.bf16.msra.mxu0 0
    %3904 = vmatprep.subr.bf16.mxu0 0
    %3905 = vmatpush1.bf16.msra.mxu0 0
    %3906 = vmatprep.subr.bf16.mxu0 0
    %3907 = vmatpush1.bf16.msra.mxu0 0
    %3908 = vmatprep.subr.bf16.mxu0 0
    %3909 = vmatpush1.bf16.msra.mxu0 0
    %3910 = vmatprep.subr.bf16.mxu0 0
    %3911 = vmatpush1.bf16.msra.mxu0 0
    %3912 = vmatprep.subr.bf16.mxu0 0
    %3913 = vmatpush1.bf16.msra.mxu0 0
    %3914 = vmatprep.subr.bf16.mxu0 0
    %3915 = vmatpush1.bf16.msra.mxu0 0
    %3916 = vmatprep.subr.bf16.mxu0 0
    %3917 = vmatpush1.bf16.msra.mxu0 0
    %3918 = vmatprep.subr.bf16.mxu0 0
    %3919 = vmatpush1.bf16.msra.mxu0 0
    %3920 = vmatprep.subr.bf16.mxu0 0
    %3921 = vmatpush1.bf16.msra.mxu0 0
    %3922 = vmatprep.mubr.bf16.mxu0 0
    %3923 = vmatmul.mubr.bf16.gmra.mrb[0].mxu0 %v3888
    %v3924 = vpop.f32.mrb[0].mxu0
    %v3925 = vadd.f32 0.0, %v3924
    %v3926 = vpop.f32.mrb[0].mxu0
    %v3927 = vpop.f32.mrb[0].mxu0
    %v3928 = vpop.f32.mrb[0].mxu0
    %3929 = vdwg.mxu0
    %v3934 = vunpack.c.l.b16 %v3866
    %v3935 = vunpack.c.l.b16 %v3867
    %v3936 = vunpack.c.l.b16 %v3868
    %v3937 = vunpack.c.l.b16 %v3869
    %v3938 = vpack.c.b16 %v3935, %v3934
    %v3939 = vpack.c.b16 %v3937, %v3936
    %3942 = vmatprep.subr.bf16.mxu0 0
    %3943 = vmatpush1.bf16.msra.mxu0 %v3938
    %3944 = vmatprep.subr.bf16.mxu0 0
    %3945 = vmatpush1.bf16.msra.mxu0 %v3939
    %3946 = vmatprep.subr.bf16.mxu0 0
    %3947 = vmatpush1.bf16.msra.mxu0 0
    %3948 = vmatprep.subr.bf16.mxu0 0
    %3949 = vmatpush1.bf16.msra.mxu0 0
    %3950 = vmatprep.subr.bf16.mxu0 0
    %3951 = vmatpush1.bf16.msra.mxu0 0
    %3952 = vmatprep.subr.bf16.mxu0 0
    %3953 = vmatpush1.bf16.msra.mxu0 0
    %3954 = vmatprep.subr.bf16.mxu0 0
    %3955 = vmatpush1.bf16.msra.mxu0 0
    %3956 = vmatprep.subr.bf16.mxu0 0
    %3957 = vmatpush1.bf16.msra.mxu0 0
    %3958 = vmatprep.subr.bf16.mxu0 0
    %3959 = vmatpush1.bf16.msra.mxu0 0
    %3960 = vmatprep.subr.bf16.mxu0 0
    %3961 = vmatpush1.bf16.msra.mxu0 0
    %3962 = vmatprep.subr.bf16.mxu0 0
    %3963 = vmatpush1.bf16.msra.mxu0 0
    %3964 = vmatprep.subr.bf16.mxu0 0
    %3965 = vmatpush1.bf16.msra.mxu0 0
    %3966 = vmatprep.subr.bf16.mxu0 0
    %3967 = vmatpush1.bf16.msra.mxu0 0
    %3968 = vmatprep.subr.bf16.mxu0 0
    %3969 = vmatpush1.bf16.msra.mxu0 0
    %3970 = vmatprep.subr.bf16.mxu0 0
    %3971 = vmatpush1.bf16.msra.mxu0 0
    %3972 = vmatprep.subr.bf16.mxu0 0
    %3973 = vmatpush1.bf16.msra.mxu0 0
    %3974 = vmatprep.mubr.bf16.mxu0 0
    %3975 = vmatmul.mubr.bf16.gmra.mrb[0].mxu0 %v3888
    %v3976 = vpop.f32.mrb[0].mxu0
    %v3977 = vadd.f32 %v3925, %v3976
    %v3978 = vpop.f32.mrb[0].mxu0
    %v3979 = vpop.f32.mrb[0].mxu0
    %v3980 = vpop.f32.mrb[0].mxu0
    %3981 = vdwg.mxu0
    %v3983 = vlaneseq
    %v3984 = vshrl.u32 %v3983, 7
    %v3985 = vsub.s32 0, %v3984
    %v3986 = vrot.slane %v3874, %v3985
    %v3988 = vadd.f32 %v3977, %v3986
    %v3989 = vxor.u32 %v3988, 2147483648
    %v3990 = vmul.f32 %v3989, 1.442695
    %v3991 = vpow.pop %v3990
    %v3992 = vadd.f32 %v3991, 1.0
    %v3993 = vrcp.pop %v3992
    %v3994 = vmul.f32 1.0, %v3993
    %v3995 = vtanh.pop %v3988
    %v3996 = vmul.f32 %v3994, 0.0
    %3998 = vrot.lane.b32.xlu0 %v3995, 64
    %v3999 = vpop.permute.xlu0 %3998
    %v4001 = vmul.f32 %v3994, %v3999
    %4003 = vrot.lane.b32.xlu0 %v4001, 32
    %v4004 = vpop.permute.xlu0 %4003
    %v4006 = vadd.f32 %v3996, %v4004
    %v4007 = vtanh.pop %v4006
    %4009 = vrot.lane.b32.xlu0 %v4007, 64
    %v4010 = vpop.permute.xlu0 %4009
    %v4012 = vmul.f32 %v3994, %v4010
    %v4013 = vpack.c.bf16 %v4012, %v4012
    %4015 = vrot.lane.b32.xlu0 %v4013, 32
    %v4016 = vpop.permute.xlu0 %4015
    %v4018 = vsel %vm439, %v4016, 0
    %4020 = vmatprep.subr.bf16.mxu0 0
    %4021 = vmatpush1.bf16.msra.mxu0 %v3864
    %4022 = vmatprep.subr.bf16.mxu0 0
    %4023 = vmatpush1.bf16.msra.mxu0 %v3865
    %4024 = vmatprep.subr.bf16.mxu0 0
    %4025 = vmatpush1.bf16.msra.mxu0 0
    %4026 = vmatprep.subr.bf16.mxu0 0
    %4027 = vmatpush1.bf16.msra.mxu0 0
    %4028 = vmatprep.subr.bf16.mxu0 0
    %4029 = vmatpush1.bf16.msra.mxu0 0
    %4030 = vmatprep.subr.bf16.mxu0 0
    %4031 = vmatpush1.bf16.msra.mxu0 0
    %4032 = vmatprep.subr.bf16.mxu0 0
    %4033 = vmatpush1.bf16.msra.mxu0 0
    %4034 = vmatprep.subr.bf16.mxu0 0
    %4035 = vmatpush1.bf16.msra.mxu0 0
    %4036 = vmatprep.subr.bf16.mxu0 0
    %4037 = vmatpush1.bf16.msra.mxu0 0
    %4038 = vmatprep.subr.bf16.mxu0 0
    %4039 = vmatpush1.bf16.msra.mxu0 0
    %4040 = vmatprep.subr.bf16.mxu0 0
    %4041 = vmatpush1.bf16.msra.mxu0 0
    %4042 = vmatprep.subr.bf16.mxu0 0
    %4043 = vmatpush1.bf16.msra.mxu0 0
    %4044 = vmatprep.subr.bf16.mxu0 0
    %4045 = vmatpush1.bf16.msra.mxu0 0
    %4046 = vmatprep.subr.bf16.mxu0 0
    %4047 = vmatpush1.bf16.msra.mxu0 0
    %4048 = vmatprep.subr.bf16.mxu0 0
    %4049 = vmatpush1.bf16.msra.mxu0 0
    %4050 = vmatprep.subr.bf16.mxu0 0
    %4051 = vmatpush1.bf16.msra.mxu0 0
    %4052 = vmatprep.mubr.bf16.mxu0 0
    %4053 = vmatmul.mubr.bf16.gmra.mrb[0].mxu0 %v4018
    %v4054 = vpop.f32.mrb[0].mxu0
    %v4055 = vadd.f32 0.0, %v4054
    %v4056 = vpop.f32.mrb[0].mxu0
    %v4057 = vpop.f32.mrb[0].mxu0
    %v4058 = vpop.f32.mrb[0].mxu0
    %4059 = vdwg.mxu0
    %vm4060 = vcmp.gt.f32.partialorder %v3829, 0.0
    %v4061 = vsel %vm4060, %v4055, -1e+30
    %vm4062 = vcmask 254976
    %v4063 = vsel %vm4062, %v4061, -inf
    %4064 = vmax.xlane.f32.xlu0 %v4063
    %v4065 = vpop.xlane.xlu0 %4064
    %v4066 = vsub.f32 %v4061, %v4065
    %v4067 = vmul.f32 %v4066, 1.442695
    %v4068 = vpow.pop %v4067
    %v4069 = vsel %vm4062, %v4068, 0.0
    %4070 = vadd.xlane.f32.xlu0 %v4069
    %v4071 = vpop.xlane.xlu0 %4070
    %v4072 = vrcp.pop %v4071
    %v4073 = vmul.f32 %v4068, %v4072
    %v4074 = vpack.c.bf16 %v4073, %v4073
    %v4076 = vsel %vm439, %v4074, 0
    %4078 = vmatprep.subr.bf16.mxu0 0
    %4079 = vmatpush1.bf16.msra.mxu0 %v3830
    %4080 = vmatprep.subr.bf16.mxu0 0
    %4081 = vmatpush1.bf16.msra.mxu0 %v3831
    %4082 = vmatprep.subr.bf16.mxu0 0
    %4083 = vmatpush1.bf16.msra.mxu0 0
    %4084 = vmatprep.subr.bf16.mxu0 0
    %4085 = vmatpush1.bf16.msra.mxu0 0
    %4086 = vmatprep.subr.bf16.mxu0 0
    %4087 = vmatpush1.bf16.msra.mxu0 0
    %4088 = vmatprep.subr.bf16.mxu0 0
    %4089 = vmatpush1.bf16.msra.mxu0 0
    %4090 = vmatprep.subr.bf16.mxu0 0
    %4091 = vmatpush1.bf16.msra.mxu0 0
    %4092 = vmatprep.subr.bf16.mxu0 0
    %4093 = vmatpush1.bf16.msra.mxu0 0
    %4094 = vmatprep.subr.bf16.mxu0 0
    %4095 = vmatpush1.bf16.msra.mxu0 0
    %4096 = vmatprep.subr.bf16.mxu0 0
    %4097 = vmatpush1.bf16.msra.mxu0 0
    %4098 = vmatprep.subr.bf16.mxu0 0
    %4099 = vmatpush1.bf16.msra.mxu0 0
    %4100 = vmatprep.subr.bf16.mxu0 0
    %4101 = vmatpush1.bf16.msra.mxu0 0
    %4102 = vmatprep.subr.bf16.mxu0 0
    %4103 = vmatpush1.bf16.msra.mxu0 0
    %4104 = vmatprep.subr.bf16.mxu0 0
    %4105 = vmatpush1.bf16.msra.mxu0 0
    %4106 = vmatprep.subr.bf16.mxu0 0
    %4107 = vmatpush1.bf16.msra.mxu0 0
    %4108 = vmatprep.subr.bf16.mxu0 0
    %4109 = vmatpush1.bf16.msra.mxu0 0
    %4110 = vmatprep.mubr.bf16.mxu0 0
    %4111 = vmatmul.mubr.bf16.gmra.mrb[0].mxu0 %v4076
    %v4112 = vpop.f32.mrb[0].mxu0
    %v4113 = vadd.f32 0.0, %v4112
    %v4114 = vpop.f32.mrb[0].mxu0
    %v4115 = vpop.f32.mrb[0].mxu0
    %v4116 = vpop.f32.mrb[0].mxu0
    %4117 = vdwg.mxu0
    %v4118 = vpack.c.bf16 %v4113, %v4113
    %v4120 = vsel %vm439, %v4118, 0
    %4122 = vmatprep.subr.bf16.mxu0 0
    %4123 = vmatpush1.bf16.msra.mxu0 %v3883
    %4124 = vmatprep.subr.bf16.mxu0 0
    %4125 = vmatpush1.bf16.msra.mxu0 %v3884
    %4126 = vmatprep.subr.bf16.mxu0 0
    %4127 = vmatpush1.bf16.msra.mxu0 0
    %4128 = vmatprep.subr.bf16.mxu0 0
    %4129 = vmatpush1.bf16.msra.mxu0 0
    %4130 = vmatprep.subr.bf16.mxu0 0
    %4131 = vmatpush1.bf16.msra.mxu0 0
    %4132 = vmatprep.subr.bf16.mxu0 0
    %4133 = vmatpush1.bf16.msra.mxu0 0
    %4134 = vmatprep.subr.bf16.mxu0 0
    %4135 = vmatpush1.bf16.msra.mxu0 0
    %4136 = vmatprep.subr.bf16.mxu0 0
    %4137 = vmatpush1.bf16.msra.mxu0 0
    %4138 = vmatprep.subr.bf16.mxu0 0
    %4139 = vmatpush1.bf16.msra.mxu0 0
    %4140 = vmatprep.subr.bf16.mxu0 0
    %4141 = vmatpush1.bf16.msra.mxu0 0
    %4142 = vmatprep.subr.bf16.mxu0 0
    %4143 = vmatpush1.bf16.msra.mxu0 0
    %4144 = vmatprep.subr.bf16.mxu0 0
    %4145 = vmatpush1.bf16.msra.mxu0 0
    %4146 = vmatprep.subr.bf16.mxu0 0
    %4147 = vmatpush1.bf16.msra.mxu0 0
    %4148 = vmatprep.subr.bf16.mxu0 0
    %4149 = vmatpush1.bf16.msra.mxu0 0
    %4150 = vmatprep.subr.bf16.mxu0 0
    %4151 = vmatpush1.bf16.msra.mxu0 0
    %4152 = vmatprep.subr.bf16.mxu0 0
    %4153 = vmatpush1.bf16.msra.mxu0 0
    %4154 = vmatprep.mubr.bf16.mxu0 0
    %4155 = vmatmul.mubr.bf16.gmra.mrb[0].mxu0 %v4120
    %v4156 = vpop.f32.mrb[0].mxu0
    %v4157 = vadd.f32 0.0, %v4156
    %v4158 = vpop.f32.mrb[0].mxu0
    %v4159 = vpop.f32.mrb[0].mxu0
    %v4160 = vpop.f32.mrb[0].mxu0
    %4161 = vdwg.mxu0
    %4162 = vmatprep.subr.bf16.mxu0 0
    %4163 = vmatpush1.bf16.msra.mxu0 %v3938
    %4164 = vmatprep.subr.bf16.mxu0 0
    %4165 = vmatpush1.bf16.msra.mxu0 %v3939
    %4166 = vmatprep.subr.bf16.mxu0 0
    %4167 = vmatpush1.bf16.msra.mxu0 0
    %4168 = vmatprep.subr.bf16.mxu0 0
    %4169 = vmatpush1.bf16.msra.mxu0 0
    %4170 = vmatprep.subr.bf16.mxu0 0
    %4171 = vmatpush1.bf16.msra.mxu0 0
    %4172 = vmatprep.subr.bf16.mxu0 0
    %4173 = vmatpush1.bf16.msra.mxu0 0
    %4174 = vmatprep.subr.bf16.mxu0 0
    %4175 = vmatpush1.bf16.msra.mxu0 0
    %4176 = vmatprep.subr.bf16.mxu0 0
    %4177 = vmatpush1.bf16.msra.mxu0 0
    %4178 = vmatprep.subr.bf16.mxu0 0
    %4179 = vmatpush1.bf16.msra.mxu0 0
    %4180 = vmatprep.subr.bf16.mxu0 0
    %4181 = vmatpush1.bf16.msra.mxu0 0
    %4182 = vmatprep.subr.bf16.mxu0 0
    %4183 = vmatpush1.bf16.msra.mxu0 0
    %4184 = vmatprep.subr.bf16.mxu0 0
    %4185 = vmatpush1.bf16.msra.mxu0 0
    %4186 = vmatprep.subr.bf16.mxu0 0
    %4187 = vmatpush1.bf16.msra.mxu0 0
    %4188 = vmatprep.subr.bf16.mxu0 0
    %4189 = vmatpush1.bf16.msra.mxu0 0
    %4190 = vmatprep.subr.bf16.mxu0 0
    %4191 = vmatpush1.bf16.msra.mxu0 0
    %4192 = vmatprep.subr.bf16.mxu0 0
    %4193 = vmatpush1.bf16.msra.mxu0 0
    %4194 = vmatprep.mubr.bf16.mxu0 0
    %4195 = vmatmul.mubr.bf16.gmra.mrb[0].mxu0 %v4018
    %v4196 = vpop.f32.mrb[0].mxu0
    %v4197 = vadd.f32 %v4157, %v4196
    %v4198 = vpop.f32.mrb[0].mxu0
    %v4199 = vpop.f32.mrb[0].mxu0
    %v4200 = vpop.f32.mrb[0].mxu0
    %4201 = vdwg.mxu0
    %v4202 = vadd.f32 %v4197, %v3986
    %v4203 = vxor.u32 %v4202, 2147483648
    %v4204 = vmul.f32 %v4203, 1.442695
    %v4205 = vpow.pop %v4204
    %v4206 = vadd.f32 %v4205, 1.0
    %v4207 = vrcp.pop %v4206
    %v4208 = vmul.f32 1.0, %v4207
    %v4209 = vtanh.pop %v4202
    %v4210 = vmul.f32 %v4208, %v4006
    %4212 = vrot.lane.b32.xlu0 %v4209, 64
    %v4213 = vpop.permute.xlu0 %4212
    %v4215 = vmul.f32 %v4208, %v4213
    %4217 = vrot.lane.b32.xlu0 %v4215, 32
    %v4218 = vpop.permute.xlu0 %4217
    %v4220 = vadd.f32 %v4210, %v4218
    %v4221 = vtanh.pop %v4220
    %4223 = vrot.lane.b32.xlu0 %v4221, 64
    %v4224 = vpop.permute.xlu0 %4223
    %v4226 = vmul.f32 %v4208, %v4224
    %v4227 = vpack.c.bf16 %v4226, %v4226
    %4229 = vrot.lane.b32.xlu0 %v4227, 32
    %v4230 = vpop.permute.xlu0 %4229
    %v4232 = vsel %vm439, %v4230, 0
    %4234 = vmatprep.subr.bf16.mxu0 0
    %4235 = vmatpush1.bf16.msra.mxu0 %v3864
    %4236 = vmatprep.subr.bf16.mxu0 0
    %4237 = vmatpush1.bf16.msra.mxu0 %v3865
    %4238 = vmatprep.subr.bf16.mxu0 0
    %4239 = vmatpush1.bf16.msra.mxu0 0
    %4240 = vmatprep.subr.bf16.mxu0 0
    %4241 = vmatpush1.bf16.msra.mxu0 0
    %4242 = vmatprep.subr.bf16.mxu0 0
    %4243 = vmatpush1.bf16.msra.mxu0 0
    %4244 = vmatprep.subr.bf16.mxu0 0
    %4245 = vmatpush1.bf16.msra.mxu0 0
    %4246 = vmatprep.subr.bf16.mxu0 0
    %4247 = vmatpush1.bf16.msra.mxu0 0
    %4248 = vmatprep.subr.bf16.mxu0 0
    %4249 = vmatpush1.bf16.msra.mxu0 0
    %4250 = vmatprep.subr.bf16.mxu0 0
    %4251 = vmatpush1.bf16.msra.mxu0 0
    %4252 = vmatprep.subr.bf16.mxu0 0
    %4253 = vmatpush1.bf16.msra.mxu0 0
    %4254 = vmatprep.subr.bf16.mxu0 0
    %4255 = vmatpush1.bf16.msra.mxu0 0
    %4256 = vmatprep.subr.bf16.mxu0 0
    %4257 = vmatpush1.bf16.msra.mxu0 0
    %4258 = vmatprep.subr.bf16.mxu0 0
    %4259 = vmatpush1.bf16.msra.mxu0 0
    %4260 = vmatprep.subr.bf16.mxu0 0
    %4261 = vmatpush1.bf16.msra.mxu0 0
    %4262 = vmatprep.subr.bf16.mxu0 0
    %4263 = vmatpush1.bf16.msra.mxu0 0
    %4264 = vmatprep.subr.bf16.mxu0 0
    %4265 = vmatpush1.bf16.msra.mxu0 0
    %4266 = vmatprep.mubr.bf16.mxu0 0
    %4267 = vmatmul.mubr.bf16.gmra.mrb[0].mxu0 %v4232
    %v4268 = vpop.f32.mrb[0].mxu0
    %v4269 = vadd.f32 0.0, %v4268
    %v4270 = vpop.f32.mrb[0].mxu0
    %v4271 = vpop.f32.mrb[0].mxu0
    %v4272 = vpop.f32.mrb[0].mxu0
    %4273 = vdwg.mxu0
    %v4274 = vsel %vm4060, %v4269, -1e+30
    %v4275 = vsel %vm4062, %v4274, -inf
    %4276 = vmax.xlane.f32.xlu0 %v4275
    %v4277 = vpop.xlane.xlu0 %4276
    %v4278 = vsub.f32 %v4274, %v4277
    %v4279 = vmul.f32 %v4278, 1.442695
    %v4280 = vpow.pop %v4279
    %v4281 = vsel %vm4062, %v4280, 0.0
    %4282 = vadd.xlane.f32.xlu0 %v4281
    %v4283 = vpop.xlane.xlu0 %4282
    %v4284 = vrcp.pop %v4283
    %v4285 = vmul.f32 %v4280, %v4284
    %v4286 = vpack.c.bf16 %v4285, %v4285
    %v4288 = vsel %vm439, %v4286, 0
    %4290 = vmatprep.subr.bf16.mxu0 0
    %4291 = vmatpush1.bf16.msra.mxu0 %v3830
    %4292 = vmatprep.subr.bf16.mxu0 0
    %4293 = vmatpush1.bf16.msra.mxu0 %v3831
    %4294 = vmatprep.subr.bf16.mxu0 0
    %4295 = vmatpush1.bf16.msra.mxu0 0
    %4296 = vmatprep.subr.bf16.mxu0 0
    %4297 = vmatpush1.bf16.msra.mxu0 0
    %4298 = vmatprep.subr.bf16.mxu0 0
    %4299 = vmatpush1.bf16.msra.mxu0 0
    %4300 = vmatprep.subr.bf16.mxu0 0
    %4301 = vmatpush1.bf16.msra.mxu0 0
    %4302 = vmatprep.subr.bf16.mxu0 0
    %4303 = vmatpush1.bf16.msra.mxu0 0
    %4304 = vmatprep.subr.bf16.mxu0 0
    %4305 = vmatpush1.bf16.msra.mxu0 0
    %4306 = vmatprep.subr.bf16.mxu0 0
    %4307 = vmatpush1.bf16.msra.mxu0 0
    %4308 = vmatprep.subr.bf16.mxu0 0
    %4309 = vmatpush1.bf16.msra.mxu0 0
    %4310 = vmatprep.subr.bf16.mxu0 0
    %4311 = vmatpush1.bf16.msra.mxu0 0
    %4312 = vmatprep.subr.bf16.mxu0 0
    %4313 = vmatpush1.bf16.msra.mxu0 0
    %4314 = vmatprep.subr.bf16.mxu0 0
    %4315 = vmatpush1.bf16.msra.mxu0 0
    %4316 = vmatprep.subr.bf16.mxu0 0
    %4317 = vmatpush1.bf16.msra.mxu0 0
    %4318 = vmatprep.subr.bf16.mxu0 0
    %4319 = vmatpush1.bf16.msra.mxu0 0
    %4320 = vmatprep.subr.bf16.mxu0 0
    %4321 = vmatpush1.bf16.msra.mxu0 0
    %4322 = vmatprep.mubr.bf16.mxu0 0
    %4323 = vmatmul.mubr.bf16.gmra.mrb[0].mxu0 %v4288
    %v4324 = vpop.f32.mrb[0].mxu0
    %v4325 = vadd.f32 0.0, %v4324
    %v4326 = vpop.f32.mrb[0].mxu0
    %v4327 = vpop.f32.mrb[0].mxu0
    %v4328 = vpop.f32.mrb[0].mxu0
    %4329 = vdwg.mxu0
    %v4330 = vpack.c.bf16 %v4325, %v4325
    %v4332 = vsel %vm439, %v4330, 0
    %4334 = vmatprep.subr.bf16.mxu0 0
    %4335 = vmatpush1.bf16.msra.mxu0 %v3883
    %4336 = vmatprep.subr.bf16.mxu0 0
    %4337 = vmatpush1.bf16.msra.mxu0 %v3884
    %4338 = vmatprep.subr.bf16.mxu0 0
    %4339 = vmatpush1.bf16.msra.mxu0 0
    %4340 = vmatprep.subr.bf16.mxu0 0
    %4341 = vmatpush1.bf16.msra.mxu0 0
    %4342 = vmatprep.subr.bf16.mxu0 0
    %4343 = vmatpush1.bf16.msra.mxu0 0
    %4344 = vmatprep.subr.bf16.mxu0 0
    %4345 = vmatpush1.bf16.msra.mxu0 0
    %4346 = vmatprep.subr.bf16.mxu0 0
    %4347 = vmatpush1.bf16.msra.mxu0 0
    %4348 = vmatprep.subr.bf16.mxu0 0
    %4349 = vmatpush1.bf16.msra.mxu0 0
    %4350 = vmatprep.subr.bf16.mxu0 0
    %4351 = vmatpush1.bf16.msra.mxu0 0
    %4352 = vmatprep.subr.bf16.mxu0 0
    %4353 = vmatpush1.bf16.msra.mxu0 0
    %4354 = vmatprep.subr.bf16.mxu0 0
    %4355 = vmatpush1.bf16.msra.mxu0 0
    %4356 = vmatprep.subr.bf16.mxu0 0
    %4357 = vmatpush1.bf16.msra.mxu0 0
    %4358 = vmatprep.subr.bf16.mxu0 0
    %4359 = vmatpush1.bf16.msra.mxu0 0
    %4360 = vmatprep.subr.bf16.mxu0 0
    %4361 = vmatpush1.bf16.msra.mxu0 0
    %4362 = vmatprep.subr.bf16.mxu0 0
    %4363 = vmatpush1.bf16.msra.mxu0 0
    %4364 = vmatprep.subr.bf16.mxu0 0
    %4365 = vmatpush1.bf16.msra.mxu0 0
    %4366 = vmatprep.mubr.bf16.mxu0 0
    %4367 = vmatmul.mubr.bf16.gmra.mrb[0].mxu0 %v4332
    %v4368 = vpop.f32.mrb[0].mxu0
    %v4369 = vadd.f32 0.0, %v4368
    %v4370 = vpop.f32.mrb[0].mxu0
    %v4371 = vpop.f32.mrb[0].mxu0
    %v4372 = vpop.f32.mrb[0].mxu0
    %4373 = vdwg.mxu0
    %4374 = vmatprep.subr.bf16.mxu0 0
    %4375 = vmatpush1.bf16.msra.mxu0 %v3938
    %4376 = vmatprep.subr.bf16.mxu0 0
    %4377 = vmatpush1.bf16.msra.mxu0 %v3939
    %4378 = vmatprep.subr.bf16.mxu0 0
    %4379 = vmatpush1.bf16.msra.mxu0 0
    %4380 = vmatprep.subr.bf16.mxu0 0
    %4381 = vmatpush1.bf16.msra.mxu0 0
    %4382 = vmatprep.subr.bf16.mxu0 0
    %4383 = vmatpush1.bf16.msra.mxu0 0
    %4384 = vmatprep.subr.bf16.mxu0 0
    %4385 = vmatpush1.bf16.msra.mxu0 0
    %4386 = vmatprep.subr.bf16.mxu0 0
    %4387 = vmatpush1.bf16.msra.mxu0 0
    %4388 = vmatprep.subr.bf16.mxu0 0
    %4389 = vmatpush1.bf16.msra.mxu0 0
    %4390 = vmatprep.subr.bf16.mxu0 0
    %4391 = vmatpush1.bf16.msra.mxu0 0
    %4392 = vmatprep.subr.bf16.mxu0 0
    %4393 = vmatpush1.bf16.msra.mxu0 0
    %4394 = vmatprep.subr.bf16.mxu0 0
    %4395 = vmatpush1.bf16.msra.mxu0 0
    %4396 = vmatprep.subr.bf16.mxu0 0
    %4397 = vmatpush1.bf16.msra.mxu0 0
    %4398 = vmatprep.subr.bf16.mxu0 0
    %4399 = vmatpush1.bf16.msra.mxu0 0
    %4400 = vmatprep.subr.bf16.mxu0 0
    %4401 = vmatpush1.bf16.msra.mxu0 0
    %4402 = vmatprep.subr.bf16.mxu0 0
    %4403 = vmatpush1.bf16.msra.mxu0 0
    %4404 = vmatprep.subr.bf16.mxu0 0
    %4405 = vmatpush1.bf16.msra.mxu0 0
    %4406 = vmatprep.mubr.bf16.mxu0 0
    %4407 = vmatmul.mubr.bf16.gmra.mrb[0].mxu0 %v4232
    %v4408 = vpop.f32.mrb[0].mxu0
    %v4409 = vadd.f32 %v4369, %v4408
    %v4410 = vpop.f32.mrb[0].mxu0
    %v4411 = vpop.f32.mrb[0].mxu0
    %v4412 = vpop.f32.mrb[0].mxu0
    %4413 = vdwg.mxu0
    %v4414 = vadd.f32 %v4409, %v3986
    %v4415 = vxor.u32 %v4414, 2147483648
    %v4416 = vmul.f32 %v4415, 1.442695
    %v4417 = vpow.pop %v4416
    %v4418 = vadd.f32 %v4417, 1.0
    %v4419 = vrcp.pop %v4418
    %v4420 = vmul.f32 1.0, %v4419
    %v4421 = vtanh.pop %v4414
    %v4422 = vmul.f32 %v4420, %v4220
    %4424 = vrot.lane.b32.xlu0 %v4421, 64
    %v4425 = vpop.permute.xlu0 %4424
    %v4427 = vmul.f32 %v4420, %v4425
    %4429 = vrot.lane.b32.xlu0 %v4427, 32
    %v4430 = vpop.permute.xlu0 %4429
    %v4432 = vadd.f32 %v4422, %v4430
    %v4433 = vtanh.pop %v4432
    %4435 = vrot.lane.b32.xlu0 %v4433, 64
    %v4436 = vpop.permute.xlu0 %4435
    %v4438 = vmul.f32 %v4420, %v4436
    %v4439 = vpack.c.bf16 %v4438, %v4438
    %4441 = vrot.lane.b32.xlu0 %v4439, 32
    %v4442 = vpop.permute.xlu0 %4441
    %v4444 = vsel %vm439, %v4442, 0
    %4446 = vmatprep.subr.bf16.mxu0 0
    %4447 = vmatpush1.bf16.msra.mxu0 %v3864
    %4448 = vmatprep.subr.bf16.mxu0 0
    %4449 = vmatpush1.bf16.msra.mxu0 %v3865
    %4450 = vmatprep.subr.bf16.mxu0 0
    %4451 = vmatpush1.bf16.msra.mxu0 0
    %4452 = vmatprep.subr.bf16.mxu0 0
    %4453 = vmatpush1.bf16.msra.mxu0 0
    %4454 = vmatprep.subr.bf16.mxu0 0
    %4455 = vmatpush1.bf16.msra.mxu0 0
    %4456 = vmatprep.subr.bf16.mxu0 0
    %4457 = vmatpush1.bf16.msra.mxu0 0
    %4458 = vmatprep.subr.bf16.mxu0 0
    %4459 = vmatpush1.bf16.msra.mxu0 0
    %4460 = vmatprep.subr.bf16.mxu0 0
    %4461 = vmatpush1.bf16.msra.mxu0 0
    %4462 = vmatprep.subr.bf16.mxu0 0
    %4463 = vmatpush1.bf16.msra.mxu0 0
    %4464 = vmatprep.subr.bf16.mxu0 0
    %4465 = vmatpush1.bf16.msra.mxu0 0
    %4466 = vmatprep.subr.bf16.mxu0 0
    %4467 = vmatpush1.bf16.msra.mxu0 0
    %4468 = vmatprep.subr.bf16.mxu0 0
    %4469 = vmatpush1.bf16.msra.mxu0 0
    %4470 = vmatprep.subr.bf16.mxu0 0
    %4471 = vmatpush1.bf16.msra.mxu0 0
    %4472 = vmatprep.subr.bf16.mxu0 0
    %4473 = vmatpush1.bf16.msra.mxu0 0
    %4474 = vmatprep.subr.bf16.mxu0 0
    %4475 = vmatpush1.bf16.msra.mxu0 0
    %4476 = vmatprep.subr.bf16.mxu0 0
    %4477 = vmatpush1.bf16.msra.mxu0 0
    %4478 = vmatprep.mubr.bf16.mxu0 0
    %4479 = vmatmul.mubr.bf16.gmra.mrb[0].mxu0 %v4444
    %v4480 = vpop.f32.mrb[0].mxu0
    %v4481 = vadd.f32 0.0, %v4480
    %v4482 = vpop.f32.mrb[0].mxu0
    %v4483 = vpop.f32.mrb[0].mxu0
    %v4484 = vpop.f32.mrb[0].mxu0
    %4485 = vdwg.mxu0
    %v4486 = vsel %vm4060, %v4481, -1e+30
    %v4487 = vsel %vm4062, %v4486, -inf
    %4488 = vmax.xlane.f32.xlu0 %v4487
    %v4489 = vpop.xlane.xlu0 %4488
    %v4490 = vsub.f32 %v4486, %v4489
    %v4491 = vmul.f32 %v4490, 1.442695
    %v4492 = vpow.pop %v4491
    %v4493 = vsel %vm4062, %v4492, 0.0
    %4494 = vadd.xlane.f32.xlu0 %v4493
    %v4495 = vpop.xlane.xlu0 %4494
    %v4496 = vrcp.pop %v4495
    %v4497 = vmul.f32 %v4492, %v4496
    %v4498 = vpack.c.bf16 %v4497, %v4497
    %v4500 = vsel %vm439, %v4498, 0
    %4502 = vmatprep.subr.bf16.mxu0 0
    %4503 = vmatpush1.bf16.msra.mxu0 %v3830
    %4504 = vmatprep.subr.bf16.mxu0 0
    %4505 = vmatpush1.bf16.msra.mxu0 %v3831
    %4506 = vmatprep.subr.bf16.mxu0 0
    %4507 = vmatpush1.bf16.msra.mxu0 0
    %4508 = vmatprep.subr.bf16.mxu0 0
    %4509 = vmatpush1.bf16.msra.mxu0 0
    %4510 = vmatprep.subr.bf16.mxu0 0
    %4511 = vmatpush1.bf16.msra.mxu0 0
    %4512 = vmatprep.subr.bf16.mxu0 0
    %4513 = vmatpush1.bf16.msra.mxu0 0
    %4514 = vmatprep.subr.bf16.mxu0 0
    %4515 = vmatpush1.bf16.msra.mxu0 0
    %4516 = vmatprep.subr.bf16.mxu0 0
    %4517 = vmatpush1.bf16.msra.mxu0 0
    %4518 = vmatprep.subr.bf16.mxu0 0
    %4519 = vmatpush1.bf16.msra.mxu0 0
    %4520 = vmatprep.subr.bf16.mxu0 0
    %4521 = vmatpush1.bf16.msra.mxu0 0
    %4522 = vmatprep.subr.bf16.mxu0 0
    %4523 = vmatpush1.bf16.msra.mxu0 0
    %4524 = vmatprep.subr.bf16.mxu0 0
    %4525 = vmatpush1.bf16.msra.mxu0 0
    %4526 = vmatprep.subr.bf16.mxu0 0
    %4527 = vmatpush1.bf16.msra.mxu0 0
    %4528 = vmatprep.subr.bf16.mxu0 0
    %4529 = vmatpush1.bf16.msra.mxu0 0
    %4530 = vmatprep.subr.bf16.mxu0 0
    %4531 = vmatpush1.bf16.msra.mxu0 0
    %4532 = vmatprep.subr.bf16.mxu0 0
    %4533 = vmatpush1.bf16.msra.mxu0 0
    %4534 = vmatprep.mubr.bf16.mxu0 0
    %4535 = vmatmul.mubr.bf16.gmra.mrb[0].mxu0 %v4500
    %v4536 = vpop.f32.mrb[0].mxu0
    %v4537 = vadd.f32 0.0, %v4536
    %v4538 = vpop.f32.mrb[0].mxu0
    %v4539 = vpop.f32.mrb[0].mxu0
    %v4540 = vpop.f32.mrb[0].mxu0
    %4541 = vdwg.mxu0
    %v4542 = vpack.c.bf16 %v4537, %v4537
    %v4544 = vsel %vm439, %v4542, 0
    %4546 = vmatprep.subr.bf16.mxu0 0
    %4547 = vmatpush1.bf16.msra.mxu0 %v3883
    %4548 = vmatprep.subr.bf16.mxu0 0
    %4549 = vmatpush1.bf16.msra.mxu0 %v3884
    %4550 = vmatprep.subr.bf16.mxu0 0
    %4551 = vmatpush1.bf16.msra.mxu0 0
    %4552 = vmatprep.subr.bf16.mxu0 0
    %4553 = vmatpush1.bf16.msra.mxu0 0
    %4554 = vmatprep.subr.bf16.mxu0 0
    %4555 = vmatpush1.bf16.msra.mxu0 0
    %4556 = vmatprep.subr.bf16.mxu0 0
    %4557 = vmatpush1.bf16.msra.mxu0 0
    %4558 = vmatprep.subr.bf16.mxu0 0
    %4559 = vmatpush1.bf16.msra.mxu0 0
    %4560 = vmatprep.subr.bf16.mxu0 0
    %4561 = vmatpush1.bf16.msra.mxu0 0
    %4562 = vmatprep.subr.bf16.mxu0 0
    %4563 = vmatpush1.bf16.msra.mxu0 0
    %4564 = vmatprep.subr.bf16.mxu0 0
    %4565 = vmatpush1.bf16.msra.mxu0 0
    %4566 = vmatprep.subr.bf16.mxu0 0
    %4567 = vmatpush1.bf16.msra.mxu0 0
    %4568 = vmatprep.subr.bf16.mxu0 0
    %4569 = vmatpush1.bf16.msra.mxu0 0
    %4570 = vmatprep.subr.bf16.mxu0 0
    %4571 = vmatpush1.bf16.msra.mxu0 0
    %4572 = vmatprep.subr.bf16.mxu0 0
    %4573 = vmatpush1.bf16.msra.mxu0 0
    %4574 = vmatprep.subr.bf16.mxu0 0
    %4575 = vmatpush1.bf16.msra.mxu0 0
    %4576 = vmatprep.subr.bf16.mxu0 0
    %4577 = vmatpush1.bf16.msra.mxu0 0
    %4578 = vmatprep.mubr.bf16.mxu0 0
    %4579 = vmatmul.mubr.bf16.gmra.mrb[0].mxu0 %v4544
    %v4580 = vpop.f32.mrb[0].mxu0
    %v4581 = vadd.f32 0.0, %v4580
    %v4582 = vpop.f32.mrb[0].mxu0
    %v4583 = vpop.f32.mrb[0].mxu0
    %v4584 = vpop.f32.mrb[0].mxu0
    %4585 = vdwg.mxu0
    %4586 = vmatprep.subr.bf16.mxu0 0
    %4587 = vmatpush1.bf16.msra.mxu0 %v3938
    %4588 = vmatprep.subr.bf16.mxu0 0
    %4589 = vmatpush1.bf16.msra.mxu0 %v3939
    %4590 = vmatprep.subr.bf16.mxu0 0
    %4591 = vmatpush1.bf16.msra.mxu0 0
    %4592 = vmatprep.subr.bf16.mxu0 0
    %4593 = vmatpush1.bf16.msra.mxu0 0
    %4594 = vmatprep.subr.bf16.mxu0 0
    %4595 = vmatpush1.bf16.msra.mxu0 0
    %4596 = vmatprep.subr.bf16.mxu0 0
    %4597 = vmatpush1.bf16.msra.mxu0 0
    %4598 = vmatprep.subr.bf16.mxu0 0
    %4599 = vmatpush1.bf16.msra.mxu0 0
    %4600 = vmatprep.subr.bf16.mxu0 0
    %4601 = vmatpush1.bf16.msra.mxu0 0
    %4602 = vmatprep.subr.bf16.mxu0 0
    %4603 = vmatpush1.bf16.msra.mxu0 0
    %4604 = vmatprep.subr.bf16.mxu0 0
    %4605 = vmatpush1.bf16.msra.mxu0 0
    %4606 = vmatprep.subr.bf16.mxu0 0
    %4607 = vmatpush1.bf16.msra.mxu0 0
    %4608 = vmatprep.subr.bf16.mxu0 0
    %4609 = vmatpush1.bf16.msra.mxu0 0
    %4610 = vmatprep.subr.bf16.mxu0 0
    %4611 = vmatpush1.bf16.msra.mxu0 0
    %4612 = vmatprep.subr.bf16.mxu0 0
    %4613 = vmatpush1.bf16.msra.mxu0 0
    %4614 = vmatprep.subr.bf16.mxu0 0
    %4615 = vmatpush1.bf16.msra.mxu0 0
    %4616 = vmatprep.subr.bf16.mxu0 0
    %4617 = vmatpush1.bf16.msra.mxu0 0
    %4618 = vmatprep.mubr.bf16.mxu0 0
    %4619 = vmatmul.mubr.bf16.gmra.mrb[0].mxu0 %v4444
    %v4620 = vpop.f32.mrb[0].mxu0
    %v4621 = vadd.f32 %v4581, %v4620
    %v4622 = vpop.f32.mrb[0].mxu0
    %v4623 = vpop.f32.mrb[0].mxu0
    %v4624 = vpop.f32.mrb[0].mxu0
    %4625 = vdwg.mxu0
    %v4626 = vadd.f32 %v4621, %v3986
    %v4627 = vxor.u32 %v4626, 2147483648
    %v4628 = vmul.f32 %v4627, 1.442695
    %v4629 = vpow.pop %v4628
    %v4630 = vadd.f32 %v4629, 1.0
    %v4631 = vrcp.pop %v4630
    %v4632 = vmul.f32 1.0, %v4631
    %v4633 = vtanh.pop %v4626
    %v4634 = vmul.f32 %v4632, %v4432
    %4636 = vrot.lane.b32.xlu0 %v4633, 64
    %v4637 = vpop.permute.xlu0 %4636
    %v4639 = vmul.f32 %v4632, %v4637
    %4641 = vrot.lane.b32.xlu0 %v4639, 32
    %v4642 = vpop.permute.xlu0 %4641
    %v4644 = vadd.f32 %v4634, %v4642
    %v4645 = vtanh.pop %v4644
    %4647 = vrot.lane.b32.xlu0 %v4645, 64
    %v4648 = vpop.permute.xlu0 %4647
    %v4650 = vmul.f32 %v4632, %v4648
    %v4651 = vpack.c.bf16 %v4650, %v4650
    %4653 = vrot.lane.b32.xlu0 %v4651, 32
    %v4654 = vpop.permute.xlu0 %4653
    %v4656 = vsel %vm439, %v4654, 0
    %4658 = vmatprep.subr.bf16.mxu0 0
    %4659 = vmatpush1.bf16.msra.mxu0 %v3864
    %4660 = vmatprep.subr.bf16.mxu0 0
    %4661 = vmatpush1.bf16.msra.mxu0 %v3865
    %4662 = vmatprep.subr.bf16.mxu0 0
    %4663 = vmatpush1.bf16.msra.mxu0 0
    %4664 = vmatprep.subr.bf16.mxu0 0
    %4665 = vmatpush1.bf16.msra.mxu0 0
    %4666 = vmatprep.subr.bf16.mxu0 0
    %4667 = vmatpush1.bf16.msra.mxu0 0
    %4668 = vmatprep.subr.bf16.mxu0 0
    %4669 = vmatpush1.bf16.msra.mxu0 0
    %4670 = vmatprep.subr.bf16.mxu0 0
    %4671 = vmatpush1.bf16.msra.mxu0 0
    %4672 = vmatprep.subr.bf16.mxu0 0
    %4673 = vmatpush1.bf16.msra.mxu0 0
    %4674 = vmatprep.subr.bf16.mxu0 0
    %4675 = vmatpush1.bf16.msra.mxu0 0
    %4676 = vmatprep.subr.bf16.mxu0 0
    %4677 = vmatpush1.bf16.msra.mxu0 0
    %4678 = vmatprep.subr.bf16.mxu0 0
    %4679 = vmatpush1.bf16.msra.mxu0 0
    %4680 = vmatprep.subr.bf16.mxu0 0
    %4681 = vmatpush1.bf16.msra.mxu0 0
    %4682 = vmatprep.subr.bf16.mxu0 0
    %4683 = vmatpush1.bf16.msra.mxu0 0
    %4684 = vmatprep.subr.bf16.mxu0 0
    %4685 = vmatpush1.bf16.msra.mxu0 0
    %4686 = vmatprep.subr.bf16.mxu0 0
    %4687 = vmatpush1.bf16.msra.mxu0 0
    %4688 = vmatprep.subr.bf16.mxu0 0
    %4689 = vmatpush1.bf16.msra.mxu0 0
    %4690 = vmatprep.mubr.bf16.mxu0 0
    %4691 = vmatmul.mubr.bf16.gmra.mrb[0].mxu0 %v4656
    %v4692 = vpop.f32.mrb[0].mxu0
    %v4693 = vadd.f32 0.0, %v4692
    %v4694 = vpop.f32.mrb[0].mxu0
    %v4695 = vpop.f32.mrb[0].mxu0
    %v4696 = vpop.f32.mrb[0].mxu0
    %4697 = vdwg.mxu0
    %v4698 = vsel %vm4060, %v4693, -1e+30
    %v4699 = vsel %vm4062, %v4698, -inf
    %4700 = vmax.xlane.f32.xlu0 %v4699
    %v4701 = vpop.xlane.xlu0 %4700
    %v4702 = vsub.f32 %v4698, %v4701
    %v4703 = vmul.f32 %v4702, 1.442695
    %v4704 = vpow.pop %v4703
    %v4705 = vsel %vm4062, %v4704, 0.0
    %4706 = vadd.xlane.f32.xlu0 %v4705
    %v4707 = vpop.xlane.xlu0 %4706
    %v4708 = vrcp.pop %v4707
    %v4709 = vmul.f32 %v4704, %v4708
    %v4710 = vpack.c.bf16 %v4709, %v4709
    %v4712 = vsel %vm439, %v4710, 0
    %4714 = vmatprep.subr.bf16.mxu0 0
    %4715 = vmatpush1.bf16.msra.mxu0 %v3830
    %4716 = vmatprep.subr.bf16.mxu0 0
    %4717 = vmatpush1.bf16.msra.mxu0 %v3831
    %4718 = vmatprep.subr.bf16.mxu0 0
    %4719 = vmatpush1.bf16.msra.mxu0 0
    %4720 = vmatprep.subr.bf16.mxu0 0
    %4721 = vmatpush1.bf16.msra.mxu0 0
    %4722 = vmatprep.subr.bf16.mxu0 0
    %4723 = vmatpush1.bf16.msra.mxu0 0
    %4724 = vmatprep.subr.bf16.mxu0 0
    %4725 = vmatpush1.bf16.msra.mxu0 0
    %4726 = vmatprep.subr.bf16.mxu0 0
    %4727 = vmatpush1.bf16.msra.mxu0 0
    %4728 = vmatprep.subr.bf16.mxu0 0
    %4729 = vmatpush1.bf16.msra.mxu0 0
    %4730 = vmatprep.subr.bf16.mxu0 0
    %4731 = vmatpush1.bf16.msra.mxu0 0
    %4732 = vmatprep.subr.bf16.mxu0 0
    %4733 = vmatpush1.bf16.msra.mxu0 0
    %4734 = vmatprep.subr.bf16.mxu0 0
    %4735 = vmatpush1.bf16.msra.mxu0 0
    %4736 = vmatprep.subr.bf16.mxu0 0
    %4737 = vmatpush1.bf16.msra.mxu0 0
    %4738 = vmatprep.subr.bf16.mxu0 0
    %4739 = vmatpush1.bf16.msra.mxu0 0
    %4740 = vmatprep.subr.bf16.mxu0 0
    %4741 = vmatpush1.bf16.msra.mxu0 0
    %4742 = vmatprep.subr.bf16.mxu0 0
    %4743 = vmatpush1.bf16.msra.mxu0 0
    %4744 = vmatprep.subr.bf16.mxu0 0
    %4745 = vmatpush1.bf16.msra.mxu0 0
    %4746 = vmatprep.mubr.bf16.mxu0 0
    %4747 = vmatmul.mubr.bf16.gmra.mrb[0].mxu0 %v4712
    %v4748 = vpop.f32.mrb[0].mxu0
    %v4749 = vadd.f32 0.0, %v4748
    %v4750 = vpop.f32.mrb[0].mxu0
    %v4751 = vpop.f32.mrb[0].mxu0
    %v4752 = vpop.f32.mrb[0].mxu0
    %4753 = vdwg.mxu0
    %v4754 = vpack.c.bf16 %v4749, %v4749
    %v4756 = vsel %vm439, %v4754, 0
    %4758 = vmatprep.subr.bf16.mxu0 0
    %4759 = vmatpush1.bf16.msra.mxu0 %v3883
    %4760 = vmatprep.subr.bf16.mxu0 0
    %4761 = vmatpush1.bf16.msra.mxu0 %v3884
    %4762 = vmatprep.subr.bf16.mxu0 0
    %4763 = vmatpush1.bf16.msra.mxu0 0
    %4764 = vmatprep.subr.bf16.mxu0 0
    %4765 = vmatpush1.bf16.msra.mxu0 0
    %4766 = vmatprep.subr.bf16.mxu0 0
    %4767 = vmatpush1.bf16.msra.mxu0 0
    %4768 = vmatprep.subr.bf16.mxu0 0
    %4769 = vmatpush1.bf16.msra.mxu0 0
    %4770 = vmatprep.subr.bf16.mxu0 0
    %4771 = vmatpush1.bf16.msra.mxu0 0
    %4772 = vmatprep.subr.bf16.mxu0 0
    %4773 = vmatpush1.bf16.msra.mxu0 0
    %4774 = vmatprep.subr.bf16.mxu0 0
    %4775 = vmatpush1.bf16.msra.mxu0 0
    %4776 = vmatprep.subr.bf16.mxu0 0
    %4777 = vmatpush1.bf16.msra.mxu0 0
    %4778 = vmatprep.subr.bf16.mxu0 0
    %4779 = vmatpush1.bf16.msra.mxu0 0
    %4780 = vmatprep.subr.bf16.mxu0 0
    %4781 = vmatpush1.bf16.msra.mxu0 0
    %4782 = vmatprep.subr.bf16.mxu0 0
    %4783 = vmatpush1.bf16.msra.mxu0 0
    %4784 = vmatprep.subr.bf16.mxu0 0
    %4785 = vmatpush1.bf16.msra.mxu0 0
    %4786 = vmatprep.subr.bf16.mxu0 0
    %4787 = vmatpush1.bf16.msra.mxu0 0
    %4788 = vmatprep.subr.bf16.mxu0 0
    %4789 = vmatpush1.bf16.msra.mxu0 0
    %4790 = vmatprep.mubr.bf16.mxu0 0
    %4791 = vmatmul.mubr.bf16.gmra.mrb[0].mxu0 %v4756
    %v4792 = vpop.f32.mrb[0].mxu0
    %v4793 = vadd.f32 0.0, %v4792
    %v4794 = vpop.f32.mrb[0].mxu0
    %v4795 = vpop.f32.mrb[0].mxu0
    %v4796 = vpop.f32.mrb[0].mxu0
    %4797 = vdwg.mxu0
    %4798 = vmatprep.subr.bf16.mxu0 0
    %4799 = vmatpush1.bf16.msra.mxu0 %v3938
    %4800 = vmatprep.subr.bf16.mxu0 0
    %4801 = vmatpush1.bf16.msra.mxu0 %v3939
    %4802 = vmatprep.subr.bf16.mxu0 0
    %4803 = vmatpush1.bf16.msra.mxu0 0
    %4804 = vmatprep.subr.bf16.mxu0 0
    %4805 = vmatpush1.bf16.msra.mxu0 0
    %4806 = vmatprep.subr.bf16.mxu0 0
    %4807 = vmatpush1.bf16.msra.mxu0 0
    %4808 = vmatprep.subr.bf16.mxu0 0
    %4809 = vmatpush1.bf16.msra.mxu0 0
    %4810 = vmatprep.subr.bf16.mxu0 0
    %4811 = vmatpush1.bf16.msra.mxu0 0
    %4812 = vmatprep.subr.bf16.mxu0 0
    %4813 = vmatpush1.bf16.msra.mxu0 0
    %4814 = vmatprep.subr.bf16.mxu0 0
    %4815 = vmatpush1.bf16.msra.mxu0 0
    %4816 = vmatprep.subr.bf16.mxu0 0
    %4817 = vmatpush1.bf16.msra.mxu0 0
    %4818 = vmatprep.subr.bf16.mxu0 0
    %4819 = vmatpush1.bf16.msra.mxu0 0
    %4820 = vmatprep.subr.bf16.mxu0 0
    %4821 = vmatpush1.bf16.msra.mxu0 0
    %4822 = vmatprep.subr.bf16.mxu0 0
    %4823 = vmatpush1.bf16.msra.mxu0 0
    %4824 = vmatprep.subr.bf16.mxu0 0
    %4825 = vmatpush1.bf16.msra.mxu0 0
    %4826 = vmatprep.subr.bf16.mxu0 0
    %4827 = vmatpush1.bf16.msra.mxu0 0
    %4828 = vmatprep.subr.bf16.mxu0 0
    %4829 = vmatpush1.bf16.msra.mxu0 0
    %4830 = vmatprep.mubr.bf16.mxu0 0
    %4831 = vmatmul.mubr.bf16.gmra.mrb[0].mxu0 %v4656
    %v4832 = vpop.f32.mrb[0].mxu0
    %v4833 = vadd.f32 %v4793, %v4832
    %v4834 = vpop.f32.mrb[0].mxu0
    %v4835 = vpop.f32.mrb[0].mxu0
    %v4836 = vpop.f32.mrb[0].mxu0
    %4837 = vdwg.mxu0
    %v4838 = vadd.f32 %v4833, %v3986
    %v4839 = vxor.u32 %v4838, 2147483648
    %v4840 = vmul.f32 %v4839, 1.442695
    %v4841 = vpow.pop %v4840
    %v4842 = vadd.f32 %v4841, 1.0
    %v4843 = vrcp.pop %v4842
    %v4844 = vmul.f32 1.0, %v4843
    %v4845 = vtanh.pop %v4838
    %v4846 = vmul.f32 %v4844, %v4644
    %4848 = vrot.lane.b32.xlu0 %v4845, 64
    %v4849 = vpop.permute.xlu0 %4848
    %v4851 = vmul.f32 %v4844, %v4849
    %4853 = vrot.lane.b32.xlu0 %v4851, 32
    %v4854 = vpop.permute.xlu0 %4853
    %v4856 = vadd.f32 %v4846, %v4854
    %v4857 = vtanh.pop %v4856
    %4859 = vrot.lane.b32.xlu0 %v4857, 64
    %v4860 = vpop.permute.xlu0 %4859
    %v4862 = vmul.f32 %v4844, %v4860
    %v4863 = vpack.c.bf16 %v4862, %v4862
    %4865 = vrot.lane.b32.xlu0 %v4863, 32
    %v4866 = vpop.permute.xlu0 %4865
    %v4868 = vsel %vm439, %v4866, 0
    %4870 = vmatprep.subr.bf16.mxu0 0
    %4871 = vmatpush1.bf16.msra.mxu0 %v3864
    %4872 = vmatprep.subr.bf16.mxu0 0
    %4873 = vmatpush1.bf16.msra.mxu0 %v3865
    %4874 = vmatprep.subr.bf16.mxu0 0
    %4875 = vmatpush1.bf16.msra.mxu0 0
    %4876 = vmatprep.subr.bf16.mxu0 0
    %4877 = vmatpush1.bf16.msra.mxu0 0
    %4878 = vmatprep.subr.bf16.mxu0 0
    %4879 = vmatpush1.bf16.msra.mxu0 0
    %4880 = vmatprep.subr.bf16.mxu0 0
    %4881 = vmatpush1.bf16.msra.mxu0 0
    %4882 = vmatprep.subr.bf16.mxu0 0
    %4883 = vmatpush1.bf16.msra.mxu0 0
    %4884 = vmatprep.subr.bf16.mxu0 0
    %4885 = vmatpush1.bf16.msra.mxu0 0
    %4886 = vmatprep.subr.bf16.mxu0 0
    %4887 = vmatpush1.bf16.msra.mxu0 0
    %4888 = vmatprep.subr.bf16.mxu0 0
    %4889 = vmatpush1.bf16.msra.mxu0 0
    %4890 = vmatprep.subr.bf16.mxu0 0
    %4891 = vmatpush1.bf16.msra.mxu0 0
    %4892 = vmatprep.subr.bf16.mxu0 0
    %4893 = vmatpush1.bf16.msra.mxu0 0
    %4894 = vmatprep.subr.bf16.mxu0 0
    %4895 = vmatpush1.bf16.msra.mxu0 0
    %4896 = vmatprep.subr.bf16.mxu0 0
    %4897 = vmatpush1.bf16.msra.mxu0 0
    %4898 = vmatprep.subr.bf16.mxu0 0
    %4899 = vmatpush1.bf16.msra.mxu0 0
    %4900 = vmatprep.subr.bf16.mxu0 0
    %4901 = vmatpush1.bf16.msra.mxu0 0
    %4902 = vmatprep.mubr.bf16.mxu0 0
    %4903 = vmatmul.mubr.bf16.gmra.mrb[0].mxu0 %v4868
    %v4904 = vpop.f32.mrb[0].mxu0
    %v4905 = vadd.f32 0.0, %v4904
    %v4906 = vpop.f32.mrb[0].mxu0
    %v4907 = vpop.f32.mrb[0].mxu0
    %v4908 = vpop.f32.mrb[0].mxu0
    %4909 = vdwg.mxu0
    %v4910 = vsel %vm4060, %v4905, -1e+30
    %v4911 = vsel %vm4062, %v4910, -inf
    %4912 = vmax.xlane.f32.xlu0 %v4911
    %v4913 = vpop.xlane.xlu0 %4912
    %v4914 = vsub.f32 %v4910, %v4913
    %v4915 = vmul.f32 %v4914, 1.442695
    %v4916 = vpow.pop %v4915
    %v4917 = vsel %vm4062, %v4916, 0.0
    %4918 = vadd.xlane.f32.xlu0 %v4917
    %v4919 = vpop.xlane.xlu0 %4918
    %v4920 = vrcp.pop %v4919
    %v4921 = vmul.f32 %v4916, %v4920
    %v4922 = vpack.c.bf16 %v4921, %v4921
    %v4924 = vsel %vm439, %v4922, 0
    %4926 = vmatprep.subr.bf16.mxu0 0
    %4927 = vmatpush1.bf16.msra.mxu0 %v3830
    %4928 = vmatprep.subr.bf16.mxu0 0
    %4929 = vmatpush1.bf16.msra.mxu0 %v3831
    %4930 = vmatprep.subr.bf16.mxu0 0
    %4931 = vmatpush1.bf16.msra.mxu0 0
    %4932 = vmatprep.subr.bf16.mxu0 0
    %4933 = vmatpush1.bf16.msra.mxu0 0
    %4934 = vmatprep.subr.bf16.mxu0 0
    %4935 = vmatpush1.bf16.msra.mxu0 0
    %4936 = vmatprep.subr.bf16.mxu0 0
    %4937 = vmatpush1.bf16.msra.mxu0 0
    %4938 = vmatprep.subr.bf16.mxu0 0
    %4939 = vmatpush1.bf16.msra.mxu0 0
    %4940 = vmatprep.subr.bf16.mxu0 0
    %4941 = vmatpush1.bf16.msra.mxu0 0
    %4942 = vmatprep.subr.bf16.mxu0 0
    %4943 = vmatpush1.bf16.msra.mxu0 0
    %4944 = vmatprep.subr.bf16.mxu0 0
    %4945 = vmatpush1.bf16.msra.mxu0 0
    %4946 = vmatprep.subr.bf16.mxu0 0
    %4947 = vmatpush1.bf16.msra.mxu0 0
    %4948 = vmatprep.subr.bf16.mxu0 0
    %4949 = vmatpush1.bf16.msra.mxu0 0
    %4950 = vmatprep.subr.bf16.mxu0 0
    %4951 = vmatpush1.bf16.msra.mxu0 0
    %4952 = vmatprep.subr.bf16.mxu0 0
    %4953 = vmatpush1.bf16.msra.mxu0 0
    %4954 = vmatprep.subr.bf16.mxu0 0
    %4955 = vmatpush1.bf16.msra.mxu0 0
    %4956 = vmatprep.subr.bf16.mxu0 0
    %4957 = vmatpush1.bf16.msra.mxu0 0
    %4958 = vmatprep.mubr.bf16.mxu0 0
    %4959 = vmatmul.mubr.bf16.gmra.mrb[0].mxu0 %v4924
    %v4960 = vpop.f32.mrb[0].mxu0
    %v4961 = vadd.f32 0.0, %v4960
    %v4962 = vpop.f32.mrb[0].mxu0
    %v4963 = vpop.f32.mrb[0].mxu0
    %v4964 = vpop.f32.mrb[0].mxu0
    %4965 = vdwg.mxu0
    %v4966 = vpack.c.bf16 %v4961, %v4961
    %v4968 = vsel %vm439, %v4966, 0
    %4970 = vmatprep.subr.bf16.mxu0 0
    %4971 = vmatpush1.bf16.msra.mxu0 %v3883
    %4972 = vmatprep.subr.bf16.mxu0 0
    %4973 = vmatpush1.bf16.msra.mxu0 %v3884
    %4974 = vmatprep.subr.bf16.mxu0 0
    %4975 = vmatpush1.bf16.msra.mxu0 0
    %4976 = vmatprep.subr.bf16.mxu0 0
    %4977 = vmatpush1.bf16.msra.mxu0 0
    %4978 = vmatprep.subr.bf16.mxu0 0
    %4979 = vmatpush1.bf16.msra.mxu0 0
    %4980 = vmatprep.subr.bf16.mxu0 0
    %4981 = vmatpush1.bf16.msra.mxu0 0
    %4982 = vmatprep.subr.bf16.mxu0 0
    %4983 = vmatpush1.bf16.msra.mxu0 0
    %4984 = vmatprep.subr.bf16.mxu0 0
    %4985 = vmatpush1.bf16.msra.mxu0 0
    %4986 = vmatprep.subr.bf16.mxu0 0
    %4987 = vmatpush1.bf16.msra.mxu0 0
    %4988 = vmatprep.subr.bf16.mxu0 0
    %4989 = vmatpush1.bf16.msra.mxu0 0
    %4990 = vmatprep.subr.bf16.mxu0 0
    %4991 = vmatpush1.bf16.msra.mxu0 0
    %4992 = vmatprep.subr.bf16.mxu0 0
    %4993 = vmatpush1.bf16.msra.mxu0 0
    %4994 = vmatprep.subr.bf16.mxu0 0
    %4995 = vmatpush1.bf16.msra.mxu0 0
    %4996 = vmatprep.subr.bf16.mxu0 0
    %4997 = vmatpush1.bf16.msra.mxu0 0
    %4998 = vmatprep.subr.bf16.mxu0 0
    %4999 = vmatpush1.bf16.msra.mxu0 0
    %5000 = vmatprep.subr.bf16.mxu0 0
    %5001 = vmatpush1.bf16.msra.mxu0 0
    %5002 = vmatprep.mubr.bf16.mxu0 0
    %5003 = vmatmul.mubr.bf16.gmra.mrb[0].mxu0 %v4968
    %v5004 = vpop.f32.mrb[0].mxu0
    %v5005 = vadd.f32 0.0, %v5004
    %v5006 = vpop.f32.mrb[0].mxu0
    %v5007 = vpop.f32.mrb[0].mxu0
    %v5008 = vpop.f32.mrb[0].mxu0
    %5009 = vdwg.mxu0
    %5010 = vmatprep.subr.bf16.mxu0 0
    %5011 = vmatpush1.bf16.msra.mxu0 %v3938
    %5012 = vmatprep.subr.bf16.mxu0 0
    %5013 = vmatpush1.bf16.msra.mxu0 %v3939
    %5014 = vmatprep.subr.bf16.mxu0 0
    %5015 = vmatpush1.bf16.msra.mxu0 0
    %5016 = vmatprep.subr.bf16.mxu0 0
    %5017 = vmatpush1.bf16.msra.mxu0 0
    %5018 = vmatprep.subr.bf16.mxu0 0
    %5019 = vmatpush1.bf16.msra.mxu0 0
    %5020 = vmatprep.subr.bf16.mxu0 0
    %5021 = vmatpush1.bf16.msra.mxu0 0
    %5022 = vmatprep.subr.bf16.mxu0 0
    %5023 = vmatpush1.bf16.msra.mxu0 0
    %5024 = vmatprep.subr.bf16.mxu0 0
    %5025 = vmatpush1.bf16.msra.mxu0 0
    %5026 = vmatprep.subr.bf16.mxu0 0
    %5027 = vmatpush1.bf16.msra.mxu0 0
    %5028 = vmatprep.subr.bf16.mxu0 0
    %5029 = vmatpush1.bf16.msra.mxu0 0
    %5030 = vmatprep.subr.bf16.mxu0 0
    %5031 = vmatpush1.bf16.msra.mxu0 0
    %5032 = vmatprep.subr.bf16.mxu0 0
    %5033 = vmatpush1.bf16.msra.mxu0 0
    %5034 = vmatprep.subr.bf16.mxu0 0
    %5035 = vmatpush1.bf16.msra.mxu0 0
    %5036 = vmatprep.subr.bf16.mxu0 0
    %5037 = vmatpush1.bf16.msra.mxu0 0
    %5038 = vmatprep.subr.bf16.mxu0 0
    %5039 = vmatpush1.bf16.msra.mxu0 0
    %5040 = vmatprep.subr.bf16.mxu0 0
    %5041 = vmatpush1.bf16.msra.mxu0 0
    %5042 = vmatprep.mubr.bf16.mxu0 0
    %5043 = vmatmul.mubr.bf16.gmra.mrb[0].mxu0 %v4868
    %v5044 = vpop.f32.mrb[0].mxu0
    %v5045 = vadd.f32 %v5005, %v5044
    %v5046 = vpop.f32.mrb[0].mxu0
    %v5047 = vpop.f32.mrb[0].mxu0
    %v5048 = vpop.f32.mrb[0].mxu0
    %5049 = vdwg.mxu0
    %v5050 = vadd.f32 %v5045, %v3986
    %v5051 = vxor.u32 %v5050, 2147483648
    %v5052 = vmul.f32 %v5051, 1.442695
    %v5053 = vpow.pop %v5052
    %v5054 = vadd.f32 %v5053, 1.0
    %v5055 = vrcp.pop %v5054
    %v5056 = vmul.f32 1.0, %v5055
    %v5057 = vtanh.pop %v5050
    %v5058 = vmul.f32 %v5056, %v4856
    %5060 = vrot.lane.b32.xlu0 %v5057, 64
    %v5061 = vpop.permute.xlu0 %5060
    %v5063 = vmul.f32 %v5056, %v5061
    %5065 = vrot.lane.b32.xlu0 %v5063, 32
    %v5066 = vpop.permute.xlu0 %5065
    %v5068 = vadd.f32 %v5058, %v5066
    %v5069 = vtanh.pop %v5068
    %5071 = vrot.lane.b32.xlu0 %v5069, 64
    %v5072 = vpop.permute.xlu0 %5071
    %v5074 = vmul.f32 %v5056, %v5072
    %v5075 = vpack.c.bf16 %v5074, %v5074
    %5077 = vrot.lane.b32.xlu0 %v5075, 32
    %v5078 = vpop.permute.xlu0 %5077
    %v5080 = vsel %vm439, %v5078, 0
    %5082 = vmatprep.subr.bf16.mxu0 0
    %5083 = vmatpush1.bf16.msra.mxu0 %v3864
    %5084 = vmatprep.subr.bf16.mxu0 0
    %5085 = vmatpush1.bf16.msra.mxu0 %v3865
    %5086 = vmatprep.subr.bf16.mxu0 0
    %5087 = vmatpush1.bf16.msra.mxu0 0
    %5088 = vmatprep.subr.bf16.mxu0 0
    %5089 = vmatpush1.bf16.msra.mxu0 0
    %5090 = vmatprep.subr.bf16.mxu0 0
    %5091 = vmatpush1.bf16.msra.mxu0 0
    %5092 = vmatprep.subr.bf16.mxu0 0
    %5093 = vmatpush1.bf16.msra.mxu0 0
    %5094 = vmatprep.subr.bf16.mxu0 0
    %5095 = vmatpush1.bf16.msra.mxu0 0
    %5096 = vmatprep.subr.bf16.mxu0 0
    %5097 = vmatpush1.bf16.msra.mxu0 0
    %5098 = vmatprep.subr.bf16.mxu0 0
    %5099 = vmatpush1.bf16.msra.mxu0 0
    %5100 = vmatprep.subr.bf16.mxu0 0
    %5101 = vmatpush1.bf16.msra.mxu0 0
    %5102 = vmatprep.subr.bf16.mxu0 0
    %5103 = vmatpush1.bf16.msra.mxu0 0
    %5104 = vmatprep.subr.bf16.mxu0 0
    %5105 = vmatpush1.bf16.msra.mxu0 0
    %5106 = vmatprep.subr.bf16.mxu0 0
    %5107 = vmatpush1.bf16.msra.mxu0 0
    %5108 = vmatprep.subr.bf16.mxu0 0
    %5109 = vmatpush1.bf16.msra.mxu0 0
    %5110 = vmatprep.subr.bf16.mxu0 0
    %5111 = vmatpush1.bf16.msra.mxu0 0
    %5112 = vmatprep.subr.bf16.mxu0 0
    %5113 = vmatpush1.bf16.msra.mxu0 0
    %5114 = vmatprep.mubr.bf16.mxu0 0
    %5115 = vmatmul.mubr.bf16.gmra.mrb[0].mxu0 %v5080
    %v5116 = vpop.f32.mrb[0].mxu0
    %v5117 = vadd.f32 0.0, %v5116
    %v5118 = vpop.f32.mrb[0].mxu0
    %v5119 = vpop.f32.mrb[0].mxu0
    %v5120 = vpop.f32.mrb[0].mxu0
    %5121 = vdwg.mxu0
    %v5122 = vsel %vm4060, %v5117, -1e+30
    %v5123 = vsel %vm4062, %v5122, -inf
    %5124 = vmax.xlane.f32.xlu0 %v5123
    %v5125 = vpop.xlane.xlu0 %5124
    %v5126 = vsub.f32 %v5122, %v5125
    %v5127 = vmul.f32 %v5126, 1.442695
    %v5128 = vpow.pop %v5127
    %v5129 = vsel %vm4062, %v5128, 0.0
    %5130 = vadd.xlane.f32.xlu0 %v5129
    %v5131 = vpop.xlane.xlu0 %5130
    %v5132 = vrcp.pop %v5131
    %v5133 = vmul.f32 %v5128, %v5132
    %v5134 = vpack.c.bf16 %v5133, %v5133
    %v5136 = vsel %vm439, %v5134, 0
    %5138 = vmatprep.subr.bf16.mxu0 0
    %5139 = vmatpush1.bf16.msra.mxu0 %v3830
    %5140 = vmatprep.subr.bf16.mxu0 0
    %5141 = vmatpush1.bf16.msra.mxu0 %v3831
    %5142 = vmatprep.subr.bf16.mxu0 0
    %5143 = vmatpush1.bf16.msra.mxu0 0
    %5144 = vmatprep.subr.bf16.mxu0 0
    %5145 = vmatpush1.bf16.msra.mxu0 0
    %5146 = vmatprep.subr.bf16.mxu0 0
    %5147 = vmatpush1.bf16.msra.mxu0 0
    %5148 = vmatprep.subr.bf16.mxu0 0
    %5149 = vmatpush1.bf16.msra.mxu0 0
    %5150 = vmatprep.subr.bf16.mxu0 0
    %5151 = vmatpush1.bf16.msra.mxu0 0
    %5152 = vmatprep.subr.bf16.mxu0 0
    %5153 = vmatpush1.bf16.msra.mxu0 0
    %5154 = vmatprep.subr.bf16.mxu0 0
    %5155 = vmatpush1.bf16.msra.mxu0 0
    %5156 = vmatprep.subr.bf16.mxu0 0
    %5157 = vmatpush1.bf16.msra.mxu0 0
    %5158 = vmatprep.subr.bf16.mxu0 0
    %5159 = vmatpush1.bf16.msra.mxu0 0
    %5160 = vmatprep.subr.bf16.mxu0 0
    %5161 = vmatpush1.bf16.msra.mxu0 0
    %5162 = vmatprep.subr.bf16.mxu0 0
    %5163 = vmatpush1.bf16.msra.mxu0 0
    %5164 = vmatprep.subr.bf16.mxu0 0
    %5165 = vmatpush1.bf16.msra.mxu0 0
    %5166 = vmatprep.subr.bf16.mxu0 0
    %5167 = vmatpush1.bf16.msra.mxu0 0
    %5168 = vmatprep.subr.bf16.mxu0 0
    %5169 = vmatpush1.bf16.msra.mxu0 0
    %5170 = vmatprep.mubr.bf16.mxu0 0
    %5171 = vmatmul.mubr.bf16.gmra.mrb[0].mxu0 %v5136
    %v5172 = vpop.f32.mrb[0].mxu0
    %v5173 = vadd.f32 0.0, %v5172
    %v5174 = vpop.f32.mrb[0].mxu0
    %v5175 = vpop.f32.mrb[0].mxu0
    %v5176 = vpop.f32.mrb[0].mxu0
    %5177 = vdwg.mxu0
    %v5178 = vld [vmem:[#allocation19] sm:$0xf]
    %v5179 = vld [vmem:[#allocation19 + $0x4] sm:$0xf]
    %v5180 = vld [vmem:[#allocation19 + $0x8] sm:$0xf]
    %v5181 = vld [vmem:[#allocation19 + $0xc] sm:$0xf]
    %v5182 = vld [vmem:[#allocation20] sm:$0xf]
    %v5183 = vld [vmem:[#allocation20 + $0x4] sm:$0xf]
    %v5184 = vld [vmem:[#allocation20 + $0x8] sm:$0xf]
    %v5185 = vld [vmem:[#allocation20 + $0xc] sm:$0xf]
    %v5186 = vpack.c.bf16 %v5173, %v5173
    %v5191 = vunpack.c.l.b16 %v5182
    %v5192 = vunpack.c.l.b16 %v5183
    %v5193 = vunpack.c.l.b16 %v5184
    %v5194 = vunpack.c.l.b16 %v5185
    %v5195 = vpack.c.b16 %v5192, %v5191
    %v5196 = vpack.c.b16 %v5194, %v5193
    %v5200 = vsel %vm439, %v5186, 0
    %5202 = vmatprep.subr.bf16.mxu0 0
    %5203 = vmatpush1.bf16.msra.mxu0 %v5195
    %5204 = vmatprep.subr.bf16.mxu0 0
    %5205 = vmatpush1.bf16.msra.mxu0 %v5196
    %5206 = vmatprep.subr.bf16.mxu0 0
    %5207 = vmatpush1.bf16.msra.mxu0 0
    %5208 = vmatprep.subr.bf16.mxu0 0
    %5209 = vmatpush1.bf16.msra.mxu0 0
    %5210 = vmatprep.subr.bf16.mxu0 0
    %5211 = vmatpush1.bf16.msra.mxu0 0
    %5212 = vmatprep.subr.bf16.mxu0 0
    %5213 = vmatpush1.bf16.msra.mxu0 0
    %5214 = vmatprep.subr.bf16.mxu0 0
    %5215 = vmatpush1.bf16.msra.mxu0 0
    %5216 = vmatprep.subr.bf16.mxu0 0
    %5217 = vmatpush1.bf16.msra.mxu0 0
    %5218 = vmatprep.subr.bf16.mxu0 0
    %5219 = vmatpush1.bf16.msra.mxu0 0
    %5220 = vmatprep.subr.bf16.mxu0 0
    %5221 = vmatpush1.bf16.msra.mxu0 0
    %5222 = vmatprep.subr.bf16.mxu0 0
    %5223 = vmatpush1.bf16.msra.mxu0 0
    %5224 = vmatprep.subr.bf16.mxu0 0
    %5225 = vmatpush1.bf16.msra.mxu0 0
    %5226 = vmatprep.subr.bf16.mxu0 0
    %5227 = vmatpush1.bf16.msra.mxu0 0
    %5228 = vmatprep.subr.bf16.mxu0 0
    %5229 = vmatpush1.bf16.msra.mxu0 0
    %5230 = vmatprep.subr.bf16.mxu0 0
    %5231 = vmatpush1.bf16.msra.mxu0 0
    %5232 = vmatprep.subr.bf16.mxu0 0
    %5233 = vmatpush1.bf16.msra.mxu0 0
    %5234 = vmatprep.mubr.bf16.mxu0 0
    %5235 = vmatmul.mubr.bf16.gmra.mrb[0].mxu0 %v5200
    %v5236 = vpop.f32.mrb[0].mxu0
    %v5237 = vadd.f32 0.0, %v5236
    %v5238 = vpop.f32.mrb[0].mxu0
    %v5239 = vpop.f32.mrb[0].mxu0
    %v5240 = vpop.f32.mrb[0].mxu0
    %5241 = vdwg.mxu0
    %v5246 = vunpack.c.l.b16 %v5178
    %v5247 = vunpack.c.l.b16 %v5179
    %v5248 = vunpack.c.l.b16 %v5180
    %v5249 = vunpack.c.l.b16 %v5181
    %v5250 = vpack.c.b16 %v5247, %v5246
    %v5251 = vpack.c.b16 %v5249, %v5248
    %5254 = vmatprep.subr.bf16.mxu0 0
    %5255 = vmatpush1.bf16.msra.mxu0 %v5250
    %5256 = vmatprep.subr.bf16.mxu0 0
    %5257 = vmatpush1.bf16.msra.mxu0 %v5251
    %5258 = vmatprep.subr.bf16.mxu0 0
    %5259 = vmatpush1.bf16.msra.mxu0 0
    %5260 = vmatprep.subr.bf16.mxu0 0
    %5261 = vmatpush1.bf16.msra.mxu0 0
    %5262 = vmatprep.subr.bf16.mxu0 0
    %5263 = vmatpush1.bf16.msra.mxu0 0
    %5264 = vmatprep.subr.bf16.mxu0 0
    %5265 = vmatpush1.bf16.msra.mxu0 0
    %5266 = vmatprep.subr.bf16.mxu0 0
    %5267 = vmatpush1.bf16.msra.mxu0 0
    %5268 = vmatprep.subr.bf16.mxu0 0
    %5269 = vmatpush1.bf16.msra.mxu0 0
    %5270 = vmatprep.subr.bf16.mxu0 0
    %5271 = vmatpush1.bf16.msra.mxu0 0
    %5272 = vmatprep.subr.bf16.mxu0 0
    %5273 = vmatpush1.bf16.msra.mxu0 0
    %5274 = vmatprep.subr.bf16.mxu0 0
    %5275 = vmatpush1.bf16.msra.mxu0 0
    %5276 = vmatprep.subr.bf16.mxu0 0
    %5277 = vmatpush1.bf16.msra.mxu0 0
    %5278 = vmatprep.subr.bf16.mxu0 0
    %5279 = vmatpush1.bf16.msra.mxu0 0
    %5280 = vmatprep.subr.bf16.mxu0 0
    %5281 = vmatpush1.bf16.msra.mxu0 0
    %5282 = vmatprep.subr.bf16.mxu0 0
    %5283 = vmatpush1.bf16.msra.mxu0 0
    %5284 = vmatprep.subr.bf16.mxu0 0
    %5285 = vmatpush1.bf16.msra.mxu0 0
    %5286 = vmatprep.mubr.bf16.mxu0 0
    %5287 = vmatmul.mubr.bf16.gmra.mrb[0].mxu0 %v5080
    %v5288 = vpop.f32.mrb[0].mxu0
    %v5289 = vadd.f32 %v5237, %v5288
    %v5290 = vpop.f32.mrb[0].mxu0
    %v5291 = vpop.f32.mrb[0].mxu0
    %v5292 = vpop.f32.mrb[0].mxu0
    %5293 = vdwg.mxu0
    %v5294 = vld [vmem:[%s18] sm:$0x1]
    %v5296 = vlaneseq
    %v5297 = vshrl.u32 %v5296, 7
    %v5298 = vsub.s32 0, %v5297
    %v5299 = vrot.slane %v5294, %v5298
    %v5301 = vadd.f32 %v5289, %v5299
    %v5302 = vmax.f32 %v5301, 0.0
    %v5303 = vld [vmem:[#allocation22] sm:$0xf]
    %v5304 = vld [vmem:[#allocation22 + $0x4] sm:$0xf]
    %v5305 = vld [vmem:[#allocation22 + $0x8] sm:$0xf]
    %v5306 = vld [vmem:[#allocation22 + $0xc] sm:$0xf]
    %v5307 = vpack.c.bf16 %v5302, %v5302
    %v5308 = vld [vmem:[%s20] sm:$0x1]
    %v5310 = vlaneseq
    %v5311 = vshrl.u32 %v5310, 7
    %v5312 = vsub.s32 0, %v5311
    %v5313 = vrot.slane %v5308, %v5312
    %v5319 = vunpack.c.l.b16 %v5303
    %v5320 = vunpack.c.l.b16 %v5304
    %v5321 = vunpack.c.l.b16 %v5305
    %v5322 = vunpack.c.l.b16 %v5306
    %v5323 = vpack.c.b16 %v5320, %v5319
    %v5324 = vpack.c.b16 %v5322, %v5321
    %v5328 = vsel %vm439, %v5307, 0
    %5330 = vmatprep.subr.bf16.mxu0 0
    %5331 = vmatpush1.bf16.msra.mxu0 %v5323
    %5332 = vmatprep.subr.bf16.mxu0 0
    %5333 = vmatpush1.bf16.msra.mxu0 %v5324
    %5334 = vmatprep.subr.bf16.mxu0 0
    %5335 = vmatpush1.bf16.msra.mxu0 0
    %5336 = vmatprep.subr.bf16.mxu0 0
    %5337 = vmatpush1.bf16.msra.mxu0 0
    %5338 = vmatprep.subr.bf16.mxu0 0
    %5339 = vmatpush1.bf16.msra.mxu0 0
    %5340 = vmatprep.subr.bf16.mxu0 0
    %5341 = vmatpush1.bf16.msra.mxu0 0
    %5342 = vmatprep.subr.bf16.mxu0 0
    %5343 = vmatpush1.bf16.msra.mxu0 0
    %5344 = vmatprep.subr.bf16.mxu0 0
    %5345 = vmatpush1.bf16.msra.mxu0 0
    %5346 = vmatprep.subr.bf16.mxu0 0
    %5347 = vmatpush1.bf16.msra.mxu0 0
    %5348 = vmatprep.subr.bf16.mxu0 0
    %5349 = vmatpush1.bf16.msra.mxu0 0
    %5350 = vmatprep.subr.bf16.mxu0 0
    %5351 = vmatpush1.bf16.msra.mxu0 0
    %5352 = vmatprep.subr.bf16.mxu0 0
    %5353 = vmatpush1.bf16.msra.mxu0 0
    %5354 = vmatprep.subr.bf16.mxu0 0
    %5355 = vmatpush1.bf16.msra.mxu0 0
    %5356 = vmatprep.subr.bf16.mxu0 0
    %5357 = vmatpush1.bf16.msra.mxu0 0
    %5358 = vmatprep.subr.bf16.mxu0 0
    %5359 = vmatpush1.bf16.msra.mxu0 0
    %5360 = vmatprep.subr.bf16.mxu0 0
    %5361 = vmatpush1.bf16.msra.mxu0 0
    %5362 = vmatprep.mubr.bf16.mxu0 0
    %5363 = vmatmul.mubr.bf16.gmra.mrb[0].mxu0 %v5328
    %v5364 = vpop.f32.mrb[0].mxu0
    %v5365 = vadd.f32 %v5313, %v5364
    %v5366 = vpop.f32.mrb[0].mxu0
    %v5367 = vpop.f32.mrb[0].mxu0
    %v5368 = vpop.f32.mrb[0].mxu0
    %5369 = vdwg.mxu0
    %vm5370 = vcmask 91136
    %5371 = vst.msk [vmem:[#allocation23] sm:$0x3] %vm5370, %v5365
    // Predicated region
    $region138: #{fwd.1} parent=1 // pred_check
      _
    $region139: #{fwd.1} parent=1 // pred_check_branch
      %5373 = sbr.rel (0) target = $region141
    $region140: #{fwd.1} parent=1 // pred_region
      %s5375 = ssub.s32 32, 32
      %5376 = vsyncadd [#allocation4], %s5375
      %s5378 = sshll.u32 [#allocation23], 4
      %s5379 = int_to_ptr.vmem [resolvable:$true] %s5378
      %5381 = dma.vmem_to_hbm [thread:$0]  %s5379, 32, %s21, [#allocation4]
    $region141: #{fwd.1} parent=1 // pred_fallthru
      _
    // Predicated region
    $region142: #{fwd.1} parent=1 // pred_check
      _
    $region143: #{fwd.1} parent=1 // pred_check_branch
      %5383 = sbr.rel (0) target = $region145
    $region144: #{fwd.1} parent=1 // pred_region
      %5384 = dma.done [#allocation4], 32
    $region145: #{fwd.1} parent=1 // pred_fallthru
      _
    %5385 = vsyncpa [#allocation3], 1
    %5386 = vsyncpa [#allocation6], 1
    %5387 = vsyncpa [#allocation9], 1
    %5388 = vsyncpa [#allocation12], 1
    %5389 = vsyncpa [#allocation15], 1
    %5390 = vsyncpa [#allocation18], 1
    %5391 = vsyncpa [#allocation21], 1
    %5392 = vsyncpa [#allocation4], 1

</llo_original>
